<compile_context>
chip_gen: v7x
topology: tpu7x:2x2x1
jax: 0.10.0
libtpu: 0.0.40
codegen_flags: <defaults>
</compile_context>

<pallas_src>
import jax
import jax.numpy as jnp
from jax.experimental import pallas as pl
from jax.experimental.pallas import tpu as pltpu

HP = 128   # padded per-gate / hidden width (one full lane register)
BP = 8     # padded batch (one full sublane group)

_VMEM = pl.BlockSpec(memory_space=pltpu.MemorySpace.VMEM)


# ----------------------------------------------------------------------------
# Fused Pallas kernel
# ----------------------------------------------------------------------------
def _make_fused_kernel(T, Bp, Hp):
    """Build the fused BiGRU+FC kernel for static (T, Bp, Hp)."""

    def kernel(x_ref,
               wih0f_ref, whh0f_ref, bih0f_ref, bhh0f_ref,
               wih0b_ref, whh0b_ref, bih0b_ref, bhh0b_ref,
               wih1f_ref, whh1f_ref, bih1f_ref, bhh1f_ref,
               wih1b_ref, whh1b_ref, bih1b_ref, bhh1b_ref,
               fcw_ref, fcb_ref,
               out_ref):
        f32 = jnp.float32

        def gru_direction(gi_all, whh_ref, bhh_ref, reverse):
            # gi_all: (T*Bp, 3Hp) precomputed x @ W_ih^T + b_ih (time-major rows).
            whh = whh_ref[...]          # (Hp, 3Hp)
            bhh = bhh_ref[...]          # (1, 3Hp)
            h = jnp.zeros((Bp, Hp), f32)
            outs = [None] * T
            steps = range(T - 1, -1, -1) if reverse else range(T)
            for t in steps:             # fully unrolled: static trip count
                gi = gi_all[t * Bp:(t + 1) * Bp, :]                          # (Bp, 3Hp)
                gh = jnp.dot(h, whh, preferred_element_type=f32) + bhh       # (Bp, 3Hp)
                r = jax.nn.sigmoid(gi[:, 0:Hp] + gh[:, 0:Hp])
                z = jax.nn.sigmoid(gi[:, Hp:2 * Hp] + gh[:, Hp:2 * Hp])
                n = jnp.tanh(gi[:, 2 * Hp:3 * Hp] + r * gh[:, 2 * Hp:3 * Hp])
                h = (1.0 - z) * n + z * h
                outs[t] = h
            return jnp.concatenate(outs, axis=0)        # (T*Bp, Hp), time-major

        x = x_ref[...]                                   # (T*Bp, F)

        # ---- layer 0: hoisted input projections (one matmul per direction) ----
        gi0f = jnp.dot(x, wih0f_ref[...], preferred_element_type=f32) + bih0f_ref[...]
        gi0b = jnp.dot(x, wih0b_ref[...], preferred_element_type=f32) + bih0b_ref[...]
        h0f = gru_direction(gi0f, whh0f_ref, bhh0f_ref, reverse=False)
        h0b = gru_direction(gi0b, whh0b_ref, bhh0b_ref, reverse=True)
        h0 = jnp.concatenate([h0f, h0b], axis=1)         # (T*Bp, 2Hp)

        # ---- layer 1 ----
        gi1f = jnp.dot(h0, wih1f_ref[...], preferred_element_type=f32) + bih1f_ref[...]
        gi1b = jnp.dot(h0, wih1b_ref[...], preferred_element_type=f32) + bih1b_ref[...]
        h1f = gru_direction(gi1f, whh1f_ref, bhh1f_ref, reverse=False)
        h1b = gru_direction(gi1b, whh1b_ref, bhh1b_ref, reverse=True)
        h1 = jnp.concatenate([h1f, h1b], axis=1)         # (T*Bp, 2Hp)

        # ---- fused FC epilogue (single output store) ----
        out_ref[...] = jnp.dot(h1, fcw_ref[...], preferred_element_type=f32) + fcb_ref[...]

    return kernel


def bigru_fused_call(x_pad, kernel_args, *, T, n_out):
    kernel = _make_fused_kernel(T, BP, HP)
    return pl.pallas_call(
        kernel,
        out_shape=jax.ShapeDtypeStruct((T * BP, n_out), jnp.float32),
        in_specs=[_VMEM] * (1 + len(kernel_args)),
        out_specs=_VMEM,
        compiler_params=pltpu.CompilerParams(vmem_limit_bytes=32 * 1024 * 1024),
    )(x_pad, *kernel_args)


# ----------------------------------------------------------------------------
# Forward wrapper (matches nn.GRU(batch_first=True, bidirectional=True, layers=2) + fc)
# ----------------------------------------------------------------------------
def model_bigru_forward(ecfp, kernel_args):
    # ecfp: (B, T, num_features)
    B, T, F = ecfp.shape
    n_out = kernel_args[-2].shape[1]                      # fc weight: (2*HP, n_out)

    x_tm = jnp.transpose(ecfp, (1, 0, 2)).astype(jnp.float32)        # (T, B, F)
    x_pad = jnp.zeros((T, BP, F), jnp.float32).at[:, :B, :].set(x_tm)
    x_pad = x_pad.reshape(T * BP, F)                                  # time-major rows t*BP+b

    out = bigru_fused_call(x_pad, kernel_args, T=T, n_out=n_out)      # (T*BP, n_out)

    out = out.reshape(T, BP, n_out)[:, :B, :]                         # drop padded batch rows
    return jnp.transpose(out, (1, 0, 2)).reshape(1, -1)               # == out.view(1, -1)


# ----------------------------------------------------------------------------
# Parameter init (PyTorch-style uniform(-1/sqrt(H), 1/sqrt(H))) and padding/packing
# ----------------------------------------------------------------------------
def init_params(key, num_features, hidden, output_dim, n_output):
    params = {}
    keys = iter(jax.random.split(key, 32))
    kgru = 1.0 / float(jnp.sqrt(hidden))

    def u(shape, scale):
        return jax.random.uniform(next(keys), shape, jnp.float32, -scale, scale)

    for layer in range(2):
        d_in = num_features if layer == 0 else 2 * hidden
        for direction in ("fwd", "bwd"):
            params[f"l{layer}_{direction}"] = dict(
                wih=u((d_in, 3 * hidden), kgru),      # W_ih.T, gate order [r|z|n]
                whh=u((hidden, 3 * hidden), kgru),    # W_hh.T
                bih=u((3 * hidden,), kgru),
                bhh=u((3 * hidden,), kgru),
            )
    kfc = 1.0 / float(jnp.sqrt(output_dim))
    params["fc_w"] = u((output_dim, n_output), kfc)   # Linear weight, pre-transposed (2H, n_out)
    params["fc_b"] = u((n_output,), kfc)
    return params


def _pad_gate_cols(w, H, Hp):
    # (D, 3H) -> (D, 3Hp): gate g columns placed at [g*Hp, g*Hp+H); padding columns are zero.
    D = w.shape[0]
    out = jnp.zeros((D, 3 * Hp), w.dtype)
    for g in range(3):
        out = out.at[:, g * Hp:g * Hp + H].set(w[:, g * H:(g + 1) * H])
    return out


def _pad_bias(b, H, Hp):
    out = jnp.zeros((1, 3 * Hp), b.dtype)
    for g in range(3):
        out = out.at[0, g * Hp:g * Hp + H].set(b[g * H:(g + 1) * H])
    return out


def _pad_rows(w, H, Hp):
    # (H, C) -> (Hp, C) with zero-padded rows (so padded h lanes never feed real columns).
    out = jnp.zeros((Hp,) + w.shape[1:], w.dtype)
    return out.at[:H].set(w)


def _pad_rows_bidir(w, H, Hp):
    # (2H, C) -> (2Hp, C): forward half at rows [0,H), backward half at rows [Hp, Hp+H).
    out = jnp.zeros((2 * Hp,) + w.shape[1:], w.dtype)
    out = out.at[0:H].set(w[0:H])
    out = out.at[Hp:Hp + H].set(w[H:2 * H])
    return out


def prepare_kernel_params(params, hidden, Hp=HP):
    """Pad logical (PyTorch-layout, pre-transposed) params to lane-aligned kernel layout."""
    H = hidden
    args = []
    for layer in range(2):
        for direction in ("fwd", "bwd"):
            p = params[f"l{layer}_{direction}"]
            wih = _pad_gate_cols(p["wih"], H, Hp)            # (D_in, 3Hp)
            if layer == 1:
                wih = _pad_rows_bidir(wih, H, Hp)            # (2Hp, 3Hp)
            whh = _pad_rows(_pad_gate_cols(p["whh"], H, Hp), H, Hp)   # (Hp, 3Hp)
            bih = _pad_bias(p["bih"], H, Hp)                 # (1, 3Hp)
            bhh = _pad_bias(p["bhh"], H, Hp)                 # (1, 3Hp)
            args += [wih, whh, bih, bhh]
    fcw = _pad_rows_bidir(params["fc_w"], H, Hp)             # (2Hp, n_out)
    fcb = params["fc_b"].reshape(1, -1)                      # (1, n_out)
    args += [fcw, fcb]
    return tuple(args)


if __name__ == "__main__":
    B, T = 2, 8
    num_features = 16
    hidden_dim_lstm = 32
    output_dim = 2 * hidden_dim_lstm   # fc input must match BiGRU output width (2H)
    n_output = 4

    key = jax.random.PRNGKey(0)
    kp, kx = jax.random.split(key)
    params = init_params(kp, num_features, hidden_dim_lstm, output_dim, n_output)
    kernel_args = prepare_kernel_params(params, hidden_dim_lstm)
    ecfp = jax.random.normal(kx, (B, T, num_features), jnp.float32)

    fwd = jax.jit(model_bigru_forward)
    out = fwd(ecfp, kernel_args)
    jax.block_until_ready(out)

    assert out.shape == (1, B * T * n_output), out.shape
    assert bool(jnp.all(jnp.isfinite(out)))
    print("KERNEL_OK")
</pallas_src>

<mosaic_0001>
module attributes {stable_mosaic.version = 11 : i64} {
  func.func @kernel(%arg0: memref<64x16xf32, #tpu.memory_space<vmem>>, %arg1: memref<16x384xf32, #tpu.memory_space<vmem>>, %arg2: memref<128x384xf32, #tpu.memory_space<vmem>>, %arg3: memref<1x384xf32, #tpu.memory_space<vmem>>, %arg4: memref<1x384xf32, #tpu.memory_space<vmem>>, %arg5: memref<16x384xf32, #tpu.memory_space<vmem>>, %arg6: memref<128x384xf32, #tpu.memory_space<vmem>>, %arg7: memref<1x384xf32, #tpu.memory_space<vmem>>, %arg8: memref<1x384xf32, #tpu.memory_space<vmem>>, %arg9: memref<256x384xf32, #tpu.memory_space<vmem>>, %arg10: memref<128x384xf32, #tpu.memory_space<vmem>>, %arg11: memref<1x384xf32, #tpu.memory_space<vmem>>, %arg12: memref<1x384xf32, #tpu.memory_space<vmem>>, %arg13: memref<256x384xf32, #tpu.memory_space<vmem>>, %arg14: memref<128x384xf32, #tpu.memory_space<vmem>>, %arg15: memref<1x384xf32, #tpu.memory_space<vmem>>, %arg16: memref<1x384xf32, #tpu.memory_space<vmem>>, %arg17: memref<256x4xf32, #tpu.memory_space<vmem>>, %arg18: memref<1x4xf32, #tpu.memory_space<vmem>>, %arg19: memref<64x4xf32, #tpu.memory_space<vmem>>) attributes {dimension_semantics = [], scalar_prefetch = 0 : i64, scratch_operands = 0 : i64, tpu.core_type = #tpu.core_type<tc>} {
    %c0 = arith.constant 0 : index
    %c0_0 = arith.constant 0 : index
    %0 = vector.load %arg0[%c0, %c0_0] : memref<64x16xf32, #tpu.memory_space<vmem>>, vector<64x16xf32>
    %c0_1 = arith.constant 0 : index
    %c0_2 = arith.constant 0 : index
    %1 = vector.load %arg1[%c0_1, %c0_2] : memref<16x384xf32, #tpu.memory_space<vmem>>, vector<16x384xf32>
    %cst = arith.constant dense<0.000000e+00> : vector<64x384xf32>
    %2 = tpu.matmul %0, %1, %cst {dimension_numbers = #tpu.dot_dimension_numbers<[1], [0], [0], [1], [0, 0, 1, 1], [], []>} : vector<64x16xf32>, vector<16x384xf32>, vector<64x384xf32> -> vector<64x384xf32>
    %c0_3 = arith.constant 0 : index
    %c0_4 = arith.constant 0 : index
    %3 = vector.load %arg3[%c0_3, %c0_4] : memref<1x384xf32, #tpu.memory_space<vmem>>, vector<1x384xf32>
    %4 = vector.broadcast %3 : vector<1x384xf32> to vector<64x384xf32>
    %5 = arith.addf %2, %4 : vector<64x384xf32>
    %c0_5 = arith.constant 0 : index
    %c0_6 = arith.constant 0 : index
    %6 = vector.load %arg5[%c0_5, %c0_6] : memref<16x384xf32, #tpu.memory_space<vmem>>, vector<16x384xf32>
    %cst_7 = arith.constant dense<0.000000e+00> : vector<64x384xf32>
    %7 = tpu.matmul %0, %6, %cst_7 {dimension_numbers = #tpu.dot_dimension_numbers<[1], [0], [0], [1], [0, 0, 1, 1], [], []>} : vector<64x16xf32>, vector<16x384xf32>, vector<64x384xf32> -> vector<64x384xf32>
    %c0_8 = arith.constant 0 : index
    %c0_9 = arith.constant 0 : index
    %8 = vector.load %arg7[%c0_8, %c0_9] : memref<1x384xf32, #tpu.memory_space<vmem>>, vector<1x384xf32>
    %9 = vector.broadcast %8 : vector<1x384xf32> to vector<64x384xf32>
    %10 = arith.addf %7, %9 : vector<64x384xf32>
    %c0_10 = arith.constant 0 : index
    %c0_11 = arith.constant 0 : index
    %11 = vector.load %arg2[%c0_10, %c0_11] : memref<128x384xf32, #tpu.memory_space<vmem>>, vector<128x384xf32>
    %c0_12 = arith.constant 0 : index
    %c0_13 = arith.constant 0 : index
    %12 = vector.load %arg4[%c0_12, %c0_13] : memref<1x384xf32, #tpu.memory_space<vmem>>, vector<1x384xf32>
    %cst_14 = arith.constant 0.000000e+00 : f32
    %13 = vector.broadcast %cst_14 : f32 to vector<8x128xf32>
    %14 = vector.extract_strided_slice %5 {offsets = [0, 0], sizes = [8, 384], strides = [1, 1]} : vector<64x384xf32> to vector<8x384xf32>
    %cst_15 = arith.constant dense<0.000000e+00> : vector<8x384xf32>
    %15 = tpu.matmul %13, %11, %cst_15 {dimension_numbers = #tpu.dot_dimension_numbers<[1], [0], [0], [1], [0, 0, 1, 1], [], []>} : vector<8x128xf32>, vector<128x384xf32>, vector<8x384xf32> -> vector<8x384xf32>
    %16 = vector.broadcast %12 : vector<1x384xf32> to vector<8x384xf32>
    %17 = arith.addf %15, %16 : vector<8x384xf32>
    %18 = vector.extract_strided_slice %14 {offsets = [0, 0], sizes = [8, 128], strides = [1, 1]} : vector<8x384xf32> to vector<8x128xf32>
    %19 = vector.extract_strided_slice %17 {offsets = [0, 0], sizes = [8, 128], strides = [1, 1]} : vector<8x384xf32> to vector<8x128xf32>
    %20 = arith.addf %18, %19 : vector<8x128xf32>
    %21 = arith.negf %20 : vector<8x128xf32>
    %22 = math.exp %21 : vector<8x128xf32>
    %cst_16 = arith.constant 1.000000e+00 : f32
    %23 = vector.broadcast %cst_16 : f32 to vector<8x128xf32>
    %24 = arith.addf %23, %22 : vector<8x128xf32>
    %25 = arith.divf %23, %24 : vector<8x128xf32>
    %26 = vector.extract_strided_slice %14 {offsets = [0, 128], sizes = [8, 128], strides = [1, 1]} : vector<8x384xf32> to vector<8x128xf32>
    %27 = vector.extract_strided_slice %17 {offsets = [0, 128], sizes = [8, 128], strides = [1, 1]} : vector<8x384xf32> to vector<8x128xf32>
    %28 = arith.addf %26, %27 : vector<8x128xf32>
    %29 = arith.negf %28 : vector<8x128xf32>
    %30 = math.exp %29 : vector<8x128xf32>
    %cst_17 = arith.constant 1.000000e+00 : f32
    %31 = vector.broadcast %cst_17 : f32 to vector<8x128xf32>
    %32 = arith.addf %31, %30 : vector<8x128xf32>
    %33 = arith.divf %31, %32 : vector<8x128xf32>
    %34 = vector.extract_strided_slice %14 {offsets = [0, 256], sizes = [8, 128], strides = [1, 1]} : vector<8x384xf32> to vector<8x128xf32>
    %35 = vector.extract_strided_slice %17 {offsets = [0, 256], sizes = [8, 128], strides = [1, 1]} : vector<8x384xf32> to vector<8x128xf32>
    %36 = arith.mulf %25, %35 : vector<8x128xf32>
    %37 = arith.addf %34, %36 : vector<8x128xf32>
    %38 = math.tanh %37 : vector<8x128xf32>
    %cst_18 = arith.constant 1.000000e+00 : f32
    %39 = vector.broadcast %cst_18 : f32 to vector<8x128xf32>
    %40 = arith.subf %39, %33 : vector<8x128xf32>
    %41 = arith.mulf %40, %38 : vector<8x128xf32>
    %42 = arith.mulf %33, %13 : vector<8x128xf32>
    %43 = arith.addf %41, %42 : vector<8x128xf32>
    %44 = vector.extract_strided_slice %5 {offsets = [8, 0], sizes = [8, 384], strides = [1, 1]} : vector<64x384xf32> to vector<8x384xf32>
    %cst_19 = arith.constant dense<0.000000e+00> : vector<8x384xf32>
    %45 = tpu.matmul %43, %11, %cst_19 {dimension_numbers = #tpu.dot_dimension_numbers<[1], [0], [0], [1], [0, 0, 1, 1], [], []>} : vector<8x128xf32>, vector<128x384xf32>, vector<8x384xf32> -> vector<8x384xf32>
    %46 = vector.broadcast %12 : vector<1x384xf32> to vector<8x384xf32>
    %47 = arith.addf %45, %46 : vector<8x384xf32>
    %48 = vector.extract_strided_slice %44 {offsets = [0, 0], sizes = [8, 128], strides = [1, 1]} : vector<8x384xf32> to vector<8x128xf32>
    %49 = vector.extract_strided_slice %47 {offsets = [0, 0], sizes = [8, 128], strides = [1, 1]} : vector<8x384xf32> to vector<8x128xf32>
    %50 = arith.addf %48, %49 : vector<8x128xf32>
    %51 = arith.negf %50 : vector<8x128xf32>
    %52 = math.exp %51 : vector<8x128xf32>
    %cst_20 = arith.constant 1.000000e+00 : f32
    %53 = vector.broadcast %cst_20 : f32 to vector<8x128xf32>
    %54 = arith.addf %53, %52 : vector<8x128xf32>
    %55 = arith.divf %53, %54 : vector<8x128xf32>
    %56 = vector.extract_strided_slice %44 {offsets = [0, 128], sizes = [8, 128], strides = [1, 1]} : vector<8x384xf32> to vector<8x128xf32>
    %57 = vector.extract_strided_slice %47 {offsets = [0, 128], sizes = [8, 128], strides = [1, 1]} : vector<8x384xf32> to vector<8x128xf32>
    %58 = arith.addf %56, %57 : vector<8x128xf32>
    %59 = arith.negf %58 : vector<8x128xf32>
    %60 = math.exp %59 : vector<8x128xf32>
    %cst_21 = arith.constant 1.000000e+00 : f32
    %61 = vector.broadcast %cst_21 : f32 to vector<8x128xf32>
    %62 = arith.addf %61, %60 : vector<8x128xf32>
    %63 = arith.divf %61, %62 : vector<8x128xf32>
    %64 = vector.extract_strided_slice %44 {offsets = [0, 256], sizes = [8, 128], strides = [1, 1]} : vector<8x384xf32> to vector<8x128xf32>
    %65 = vector.extract_strided_slice %47 {offsets = [0, 256], sizes = [8, 128], strides = [1, 1]} : vector<8x384xf32> to vector<8x128xf32>
    %66 = arith.mulf %55, %65 : vector<8x128xf32>
    %67 = arith.addf %64, %66 : vector<8x128xf32>
    %68 = math.tanh %67 : vector<8x128xf32>
    %cst_22 = arith.constant 1.000000e+00 : f32
    %69 = vector.broadcast %cst_22 : f32 to vector<8x128xf32>
    %70 = arith.subf %69, %63 : vector<8x128xf32>
    %71 = arith.mulf %70, %68 : vector<8x128xf32>
    %72 = arith.mulf %63, %43 : vector<8x128xf32>
    %73 = arith.addf %71, %72 : vector<8x128xf32>
    %74 = vector.extract_strided_slice %5 {offsets = [16, 0], sizes = [8, 384], strides = [1, 1]} : vector<64x384xf32> to vector<8x384xf32>
    %cst_23 = arith.constant dense<0.000000e+00> : vector<8x384xf32>
    %75 = tpu.matmul %73, %11, %cst_23 {dimension_numbers = #tpu.dot_dimension_numbers<[1], [0], [0], [1], [0, 0, 1, 1], [], []>} : vector<8x128xf32>, vector<128x384xf32>, vector<8x384xf32> -> vector<8x384xf32>
    %76 = vector.broadcast %12 : vector<1x384xf32> to vector<8x384xf32>
    %77 = arith.addf %75, %76 : vector<8x384xf32>
    %78 = vector.extract_strided_slice %74 {offsets = [0, 0], sizes = [8, 128], strides = [1, 1]} : vector<8x384xf32> to vector<8x128xf32>
    %79 = vector.extract_strided_slice %77 {offsets = [0, 0], sizes = [8, 128], strides = [1, 1]} : vector<8x384xf32> to vector<8x128xf32>
    %80 = arith.addf %78, %79 : vector<8x128xf32>
    %81 = arith.negf %80 : vector<8x128xf32>
    %82 = math.exp %81 : vector<8x128xf32>
    %cst_24 = arith.constant 1.000000e+00 : f32
    %83 = vector.broadcast %cst_24 : f32 to vector<8x128xf32>
    %84 = arith.addf %83, %82 : vector<8x128xf32>
    %85 = arith.divf %83, %84 : vector<8x128xf32>
    %86 = vector.extract_strided_slice %74 {offsets = [0, 128], sizes = [8, 128], strides = [1, 1]} : vector<8x384xf32> to vector<8x128xf32>
    %87 = vector.extract_strided_slice %77 {offsets = [0, 128], sizes = [8, 128], strides = [1, 1]} : vector<8x384xf32> to vector<8x128xf32>
    %88 = arith.addf %86, %87 : vector<8x128xf32>
    %89 = arith.negf %88 : vector<8x128xf32>
    %90 = math.exp %89 : vector<8x128xf32>
    %cst_25 = arith.constant 1.000000e+00 : f32
    %91 = vector.broadcast %cst_25 : f32 to vector<8x128xf32>
    %92 = arith.addf %91, %90 : vector<8x128xf32>
    %93 = arith.divf %91, %92 : vector<8x128xf32>
    %94 = vector.extract_strided_slice %74 {offsets = [0, 256], sizes = [8, 128], strides = [1, 1]} : vector<8x384xf32> to vector<8x128xf32>
    %95 = vector.extract_strided_slice %77 {offsets = [0, 256], sizes = [8, 128], strides = [1, 1]} : vector<8x384xf32> to vector<8x128xf32>
    %96 = arith.mulf %85, %95 : vector<8x128xf32>
    %97 = arith.addf %94, %96 : vector<8x128xf32>
    %98 = math.tanh %97 : vector<8x128xf32>
    %cst_26 = arith.constant 1.000000e+00 : f32
    %99 = vector.broadcast %cst_26 : f32 to vector<8x128xf32>
    %100 = arith.subf %99, %93 : vector<8x128xf32>
    %101 = arith.mulf %100, %98 : vector<8x128xf32>
    %102 = arith.mulf %93, %73 : vector<8x128xf32>
    %103 = arith.addf %101, %102 : vector<8x128xf32>
    %104 = vector.extract_strided_slice %5 {offsets = [24, 0], sizes = [8, 384], strides = [1, 1]} : vector<64x384xf32> to vector<8x384xf32>
    %cst_27 = arith.constant dense<0.000000e+00> : vector<8x384xf32>
    %105 = tpu.matmul %103, %11, %cst_27 {dimension_numbers = #tpu.dot_dimension_numbers<[1], [0], [0], [1], [0, 0, 1, 1], [], []>} : vector<8x128xf32>, vector<128x384xf32>, vector<8x384xf32> -> vector<8x384xf32>
    %106 = vector.broadcast %12 : vector<1x384xf32> to vector<8x384xf32>
    %107 = arith.addf %105, %106 : vector<8x384xf32>
    %108 = vector.extract_strided_slice %104 {offsets = [0, 0], sizes = [8, 128], strides = [1, 1]} : vector<8x384xf32> to vector<8x128xf32>
    %109 = vector.extract_strided_slice %107 {offsets = [0, 0], sizes = [8, 128], strides = [1, 1]} : vector<8x384xf32> to vector<8x128xf32>
    %110 = arith.addf %108, %109 : vector<8x128xf32>
    %111 = arith.negf %110 : vector<8x128xf32>
    %112 = math.exp %111 : vector<8x128xf32>
    %cst_28 = arith.constant 1.000000e+00 : f32
    %113 = vector.broadcast %cst_28 : f32 to vector<8x128xf32>
    %114 = arith.addf %113, %112 : vector<8x128xf32>
    %115 = arith.divf %113, %114 : vector<8x128xf32>
    %116 = vector.extract_strided_slice %104 {offsets = [0, 128], sizes = [8, 128], strides = [1, 1]} : vector<8x384xf32> to vector<8x128xf32>
    %117 = vector.extract_strided_slice %107 {offsets = [0, 128], sizes = [8, 128], strides = [1, 1]} : vector<8x384xf32> to vector<8x128xf32>
    %118 = arith.addf %116, %117 : vector<8x128xf32>
    %119 = arith.negf %118 : vector<8x128xf32>
    %120 = math.exp %119 : vector<8x128xf32>
    %cst_29 = arith.constant 1.000000e+00 : f32
    %121 = vector.broadcast %cst_29 : f32 to vector<8x128xf32>
    %122 = arith.addf %121, %120 : vector<8x128xf32>
    %123 = arith.divf %121, %122 : vector<8x128xf32>
    %124 = vector.extract_strided_slice %104 {offsets = [0, 256], sizes = [8, 128], strides = [1, 1]} : vector<8x384xf32> to vector<8x128xf32>
    %125 = vector.extract_strided_slice %107 {offsets = [0, 256], sizes = [8, 128], strides = [1, 1]} : vector<8x384xf32> to vector<8x128xf32>
    %126 = arith.mulf %115, %125 : vector<8x128xf32>
    %127 = arith.addf %124, %126 : vector<8x128xf32>
    %128 = math.tanh %127 : vector<8x128xf32>
    %cst_30 = arith.constant 1.000000e+00 : f32
    %129 = vector.broadcast %cst_30 : f32 to vector<8x128xf32>
    %130 = arith.subf %129, %123 : vector<8x128xf32>
    %131 = arith.mulf %130, %128 : vector<8x128xf32>
    %132 = arith.mulf %123, %103 : vector<8x128xf32>
    %133 = arith.addf %131, %132 : vector<8x128xf32>
    %134 = vector.extract_strided_slice %5 {offsets = [32, 0], sizes = [8, 384], strides = [1, 1]} : vector<64x384xf32> to vector<8x384xf32>
    %cst_31 = arith.constant dense<0.000000e+00> : vector<8x384xf32>
    %135 = tpu.matmul %133, %11, %cst_31 {dimension_numbers = #tpu.dot_dimension_numbers<[1], [0], [0], [1], [0, 0, 1, 1], [], []>} : vector<8x128xf32>, vector<128x384xf32>, vector<8x384xf32> -> vector<8x384xf32>
    %136 = vector.broadcast %12 : vector<1x384xf32> to vector<8x384xf32>
    %137 = arith.addf %135, %136 : vector<8x384xf32>
    %138 = vector.extract_strided_slice %134 {offsets = [0, 0], sizes = [8, 128], strides = [1, 1]} : vector<8x384xf32> to vector<8x128xf32>
    %139 = vector.extract_strided_slice %137 {offsets = [0, 0], sizes = [8, 128], strides = [1, 1]} : vector<8x384xf32> to vector<8x128xf32>
    %140 = arith.addf %138, %139 : vector<8x128xf32>
    %141 = arith.negf %140 : vector<8x128xf32>
    %142 = math.exp %141 : vector<8x128xf32>
    %cst_32 = arith.constant 1.000000e+00 : f32
    %143 = vector.broadcast %cst_32 : f32 to vector<8x128xf32>
    %144 = arith.addf %143, %142 : vector<8x128xf32>
    %145 = arith.divf %143, %144 : vector<8x128xf32>
    %146 = vector.extract_strided_slice %134 {offsets = [0, 128], sizes = [8, 128], strides = [1, 1]} : vector<8x384xf32> to vector<8x128xf32>
    %147 = vector.extract_strided_slice %137 {offsets = [0, 128], sizes = [8, 128], strides = [1, 1]} : vector<8x384xf32> to vector<8x128xf32>
    %148 = arith.addf %146, %147 : vector<8x128xf32>
    %149 = arith.negf %148 : vector<8x128xf32>
    %150 = math.exp %149 : vector<8x128xf32>
    %cst_33 = arith.constant 1.000000e+00 : f32
    %151 = vector.broadcast %cst_33 : f32 to vector<8x128xf32>
    %152 = arith.addf %151, %150 : vector<8x128xf32>
    %153 = arith.divf %151, %152 : vector<8x128xf32>
    %154 = vector.extract_strided_slice %134 {offsets = [0, 256], sizes = [8, 128], strides = [1, 1]} : vector<8x384xf32> to vector<8x128xf32>
    %155 = vector.extract_strided_slice %137 {offsets = [0, 256], sizes = [8, 128], strides = [1, 1]} : vector<8x384xf32> to vector<8x128xf32>
    %156 = arith.mulf %145, %155 : vector<8x128xf32>
    %157 = arith.addf %154, %156 : vector<8x128xf32>
    %158 = math.tanh %157 : vector<8x128xf32>
    %cst_34 = arith.constant 1.000000e+00 : f32
    %159 = vector.broadcast %cst_34 : f32 to vector<8x128xf32>
    %160 = arith.subf %159, %153 : vector<8x128xf32>
    %161 = arith.mulf %160, %158 : vector<8x128xf32>
    %162 = arith.mulf %153, %133 : vector<8x128xf32>
    %163 = arith.addf %161, %162 : vector<8x128xf32>
    %164 = vector.extract_strided_slice %5 {offsets = [40, 0], sizes = [8, 384], strides = [1, 1]} : vector<64x384xf32> to vector<8x384xf32>
    %cst_35 = arith.constant dense<0.000000e+00> : vector<8x384xf32>
    %165 = tpu.matmul %163, %11, %cst_35 {dimension_numbers = #tpu.dot_dimension_numbers<[1], [0], [0], [1], [0, 0, 1, 1], [], []>} : vector<8x128xf32>, vector<128x384xf32>, vector<8x384xf32> -> vector<8x384xf32>
    %166 = vector.broadcast %12 : vector<1x384xf32> to vector<8x384xf32>
    %167 = arith.addf %165, %166 : vector<8x384xf32>
    %168 = vector.extract_strided_slice %164 {offsets = [0, 0], sizes = [8, 128], strides = [1, 1]} : vector<8x384xf32> to vector<8x128xf32>
    %169 = vector.extract_strided_slice %167 {offsets = [0, 0], sizes = [8, 128], strides = [1, 1]} : vector<8x384xf32> to vector<8x128xf32>
    %170 = arith.addf %168, %169 : vector<8x128xf32>
    %171 = arith.negf %170 : vector<8x128xf32>
    %172 = math.exp %171 : vector<8x128xf32>
    %cst_36 = arith.constant 1.000000e+00 : f32
    %173 = vector.broadcast %cst_36 : f32 to vector<8x128xf32>
    %174 = arith.addf %173, %172 : vector<8x128xf32>
    %175 = arith.divf %173, %174 : vector<8x128xf32>
    %176 = vector.extract_strided_slice %164 {offsets = [0, 128], sizes = [8, 128], strides = [1, 1]} : vector<8x384xf32> to vector<8x128xf32>
    %177 = vector.extract_strided_slice %167 {offsets = [0, 128], sizes = [8, 128], strides = [1, 1]} : vector<8x384xf32> to vector<8x128xf32>
    %178 = arith.addf %176, %177 : vector<8x128xf32>
    %179 = arith.negf %178 : vector<8x128xf32>
    %180 = math.exp %179 : vector<8x128xf32>
    %cst_37 = arith.constant 1.000000e+00 : f32
    %181 = vector.broadcast %cst_37 : f32 to vector<8x128xf32>
    %182 = arith.addf %181, %180 : vector<8x128xf32>
    %183 = arith.divf %181, %182 : vector<8x128xf32>
    %184 = vector.extract_strided_slice %164 {offsets = [0, 256], sizes = [8, 128], strides = [1, 1]} : vector<8x384xf32> to vector<8x128xf32>
    %185 = vector.extract_strided_slice %167 {offsets = [0, 256], sizes = [8, 128], strides = [1, 1]} : vector<8x384xf32> to vector<8x128xf32>
    %186 = arith.mulf %175, %185 : vector<8x128xf32>
    %187 = arith.addf %184, %186 : vector<8x128xf32>
    %188 = math.tanh %187 : vector<8x128xf32>
    %cst_38 = arith.constant 1.000000e+00 : f32
    %189 = vector.broadcast %cst_38 : f32 to vector<8x128xf32>
    %190 = arith.subf %189, %183 : vector<8x128xf32>
    %191 = arith.mulf %190, %188 : vector<8x128xf32>
    %192 = arith.mulf %183, %163 : vector<8x128xf32>
    %193 = arith.addf %191, %192 : vector<8x128xf32>
    %194 = vector.extract_strided_slice %5 {offsets = [48, 0], sizes = [8, 384], strides = [1, 1]} : vector<64x384xf32> to vector<8x384xf32>
    %cst_39 = arith.constant dense<0.000000e+00> : vector<8x384xf32>
    %195 = tpu.matmul %193, %11, %cst_39 {dimension_numbers = #tpu.dot_dimension_numbers<[1], [0], [0], [1], [0, 0, 1, 1], [], []>} : vector<8x128xf32>, vector<128x384xf32>, vector<8x384xf32> -> vector<8x384xf32>
    %196 = vector.broadcast %12 : vector<1x384xf32> to vector<8x384xf32>
    %197 = arith.addf %195, %196 : vector<8x384xf32>
    %198 = vector.extract_strided_slice %194 {offsets = [0, 0], sizes = [8, 128], strides = [1, 1]} : vector<8x384xf32> to vector<8x128xf32>
    %199 = vector.extract_strided_slice %197 {offsets = [0, 0], sizes = [8, 128], strides = [1, 1]} : vector<8x384xf32> to vector<8x128xf32>
    %200 = arith.addf %198, %199 : vector<8x128xf32>
    %201 = arith.negf %200 : vector<8x128xf32>
    %202 = math.exp %201 : vector<8x128xf32>
    %cst_40 = arith.constant 1.000000e+00 : f32
    %203 = vector.broadcast %cst_40 : f32 to vector<8x128xf32>
    %204 = arith.addf %203, %202 : vector<8x128xf32>
    %205 = arith.divf %203, %204 : vector<8x128xf32>
    %206 = vector.extract_strided_slice %194 {offsets = [0, 128], sizes = [8, 128], strides = [1, 1]} : vector<8x384xf32> to vector<8x128xf32>
    %207 = vector.extract_strided_slice %197 {offsets = [0, 128], sizes = [8, 128], strides = [1, 1]} : vector<8x384xf32> to vector<8x128xf32>
    %208 = arith.addf %206, %207 : vector<8x128xf32>
    %209 = arith.negf %208 : vector<8x128xf32>
    %210 = math.exp %209 : vector<8x128xf32>
    %cst_41 = arith.constant 1.000000e+00 : f32
    %211 = vector.broadcast %cst_41 : f32 to vector<8x128xf32>
    %212 = arith.addf %211, %210 : vector<8x128xf32>
    %213 = arith.divf %211, %212 : vector<8x128xf32>
    %214 = vector.extract_strided_slice %194 {offsets = [0, 256], sizes = [8, 128], strides = [1, 1]} : vector<8x384xf32> to vector<8x128xf32>
    %215 = vector.extract_strided_slice %197 {offsets = [0, 256], sizes = [8, 128], strides = [1, 1]} : vector<8x384xf32> to vector<8x128xf32>
    %216 = arith.mulf %205, %215 : vector<8x128xf32>
    %217 = arith.addf %214, %216 : vector<8x128xf32>
    %218 = math.tanh %217 : vector<8x128xf32>
    %cst_42 = arith.constant 1.000000e+00 : f32
    %219 = vector.broadcast %cst_42 : f32 to vector<8x128xf32>
    %220 = arith.subf %219, %213 : vector<8x128xf32>
    %221 = arith.mulf %220, %218 : vector<8x128xf32>
    %222 = arith.mulf %213, %193 : vector<8x128xf32>
    %223 = arith.addf %221, %222 : vector<8x128xf32>
    %224 = vector.extract_strided_slice %5 {offsets = [56, 0], sizes = [8, 384], strides = [1, 1]} : vector<64x384xf32> to vector<8x384xf32>
    %cst_43 = arith.constant dense<0.000000e+00> : vector<8x384xf32>
    %225 = tpu.matmul %223, %11, %cst_43 {dimension_numbers = #tpu.dot_dimension_numbers<[1], [0], [0], [1], [0, 0, 1, 1], [], []>} : vector<8x128xf32>, vector<128x384xf32>, vector<8x384xf32> -> vector<8x384xf32>
    %226 = vector.broadcast %12 : vector<1x384xf32> to vector<8x384xf32>
    %227 = arith.addf %225, %226 : vector<8x384xf32>
    %228 = vector.extract_strided_slice %224 {offsets = [0, 0], sizes = [8, 128], strides = [1, 1]} : vector<8x384xf32> to vector<8x128xf32>
    %229 = vector.extract_strided_slice %227 {offsets = [0, 0], sizes = [8, 128], strides = [1, 1]} : vector<8x384xf32> to vector<8x128xf32>
    %230 = arith.addf %228, %229 : vector<8x128xf32>
    %231 = arith.negf %230 : vector<8x128xf32>
    %232 = math.exp %231 : vector<8x128xf32>
    %cst_44 = arith.constant 1.000000e+00 : f32
    %233 = vector.broadcast %cst_44 : f32 to vector<8x128xf32>
    %234 = arith.addf %233, %232 : vector<8x128xf32>
    %235 = arith.divf %233, %234 : vector<8x128xf32>
    %236 = vector.extract_strided_slice %224 {offsets = [0, 128], sizes = [8, 128], strides = [1, 1]} : vector<8x384xf32> to vector<8x128xf32>
    %237 = vector.extract_strided_slice %227 {offsets = [0, 128], sizes = [8, 128], strides = [1, 1]} : vector<8x384xf32> to vector<8x128xf32>
    %238 = arith.addf %236, %237 : vector<8x128xf32>
    %239 = arith.negf %238 : vector<8x128xf32>
    %240 = math.exp %239 : vector<8x128xf32>
    %cst_45 = arith.constant 1.000000e+00 : f32
    %241 = vector.broadcast %cst_45 : f32 to vector<8x128xf32>
    %242 = arith.addf %241, %240 : vector<8x128xf32>
    %243 = arith.divf %241, %242 : vector<8x128xf32>
    %244 = vector.extract_strided_slice %224 {offsets = [0, 256], sizes = [8, 128], strides = [1, 1]} : vector<8x384xf32> to vector<8x128xf32>
    %245 = vector.extract_strided_slice %227 {offsets = [0, 256], sizes = [8, 128], strides = [1, 1]} : vector<8x384xf32> to vector<8x128xf32>
    %246 = arith.mulf %235, %245 : vector<8x128xf32>
    %247 = arith.addf %244, %246 : vector<8x128xf32>
    %248 = math.tanh %247 : vector<8x128xf32>
    %cst_46 = arith.constant 1.000000e+00 : f32
    %249 = vector.broadcast %cst_46 : f32 to vector<8x128xf32>
    %250 = arith.subf %249, %243 : vector<8x128xf32>
    %251 = arith.mulf %250, %248 : vector<8x128xf32>
    %252 = arith.mulf %243, %223 : vector<8x128xf32>
    %253 = arith.addf %251, %252 : vector<8x128xf32>
    %254 = tpu.concatenate %43, %73, %103, %133, %163, %193, %223, %253 in 0 : vector<8x128xf32>, vector<8x128xf32>, vector<8x128xf32>, vector<8x128xf32>, vector<8x128xf32>, vector<8x128xf32>, vector<8x128xf32>, vector<8x128xf32> -> vector<64x128xf32>
    %c0_47 = arith.constant 0 : index
    %c0_48 = arith.constant 0 : index
    %255 = vector.load %arg6[%c0_47, %c0_48] : memref<128x384xf32, #tpu.memory_space<vmem>>, vector<128x384xf32>
    %c0_49 = arith.constant 0 : index
    %c0_50 = arith.constant 0 : index
    %256 = vector.load %arg8[%c0_49, %c0_50] : memref<1x384xf32, #tpu.memory_space<vmem>>, vector<1x384xf32>
    %cst_51 = arith.constant 0.000000e+00 : f32
    %257 = vector.broadcast %cst_51 : f32 to vector<8x128xf32>
    %258 = vector.extract_strided_slice %10 {offsets = [56, 0], sizes = [8, 384], strides = [1, 1]} : vector<64x384xf32> to vector<8x384xf32>
    %cst_52 = arith.constant dense<0.000000e+00> : vector<8x384xf32>
    %259 = tpu.matmul %257, %255, %cst_52 {dimension_numbers = #tpu.dot_dimension_numbers<[1], [0], [0], [1], [0, 0, 1, 1], [], []>} : vector<8x128xf32>, vector<128x384xf32>, vector<8x384xf32> -> vector<8x384xf32>
    %260 = vector.broadcast %256 : vector<1x384xf32> to vector<8x384xf32>
    %261 = arith.addf %259, %260 : vector<8x384xf32>
    %262 = vector.extract_strided_slice %258 {offsets = [0, 0], sizes = [8, 128], strides = [1, 1]} : vector<8x384xf32> to vector<8x128xf32>
    %263 = vector.extract_strided_slice %261 {offsets = [0, 0], sizes = [8, 128], strides = [1, 1]} : vector<8x384xf32> to vector<8x128xf32>
    %264 = arith.addf %262, %263 : vector<8x128xf32>
    %265 = arith.negf %264 : vector<8x128xf32>
    %266 = math.exp %265 : vector<8x128xf32>
    %cst_53 = arith.constant 1.000000e+00 : f32
    %267 = vector.broadcast %cst_53 : f32 to vector<8x128xf32>
    %268 = arith.addf %267, %266 : vector<8x128xf32>
    %269 = arith.divf %267, %268 : vector<8x128xf32>
    %270 = vector.extract_strided_slice %258 {offsets = [0, 128], sizes = [8, 128], strides = [1, 1]} : vector<8x384xf32> to vector<8x128xf32>
    %271 = vector.extract_strided_slice %261 {offsets = [0, 128], sizes = [8, 128], strides = [1, 1]} : vector<8x384xf32> to vector<8x128xf32>
    %272 = arith.addf %270, %271 : vector<8x128xf32>
    %273 = arith.negf %272 : vector<8x128xf32>
    %274 = math.exp %273 : vector<8x128xf32>
    %cst_54 = arith.constant 1.000000e+00 : f32
    %275 = vector.broadcast %cst_54 : f32 to vector<8x128xf32>
    %276 = arith.addf %275, %274 : vector<8x128xf32>
    %277 = arith.divf %275, %276 : vector<8x128xf32>
    %278 = vector.extract_strided_slice %258 {offsets = [0, 256], sizes = [8, 128], strides = [1, 1]} : vector<8x384xf32> to vector<8x128xf32>
    %279 = vector.extract_strided_slice %261 {offsets = [0, 256], sizes = [8, 128], strides = [1, 1]} : vector<8x384xf32> to vector<8x128xf32>
    %280 = arith.mulf %269, %279 : vector<8x128xf32>
    %281 = arith.addf %278, %280 : vector<8x128xf32>
    %282 = math.tanh %281 : vector<8x128xf32>
    %cst_55 = arith.constant 1.000000e+00 : f32
    %283 = vector.broadcast %cst_55 : f32 to vector<8x128xf32>
    %284 = arith.subf %283, %277 : vector<8x128xf32>
    %285 = arith.mulf %284, %282 : vector<8x128xf32>
    %286 = arith.mulf %277, %257 : vector<8x128xf32>
    %287 = arith.addf %285, %286 : vector<8x128xf32>
    %288 = vector.extract_strided_slice %10 {offsets = [48, 0], sizes = [8, 384], strides = [1, 1]} : vector<64x384xf32> to vector<8x384xf32>
    %cst_56 = arith.constant dense<0.000000e+00> : vector<8x384xf32>
    %289 = tpu.matmul %287, %255, %cst_56 {dimension_numbers = #tpu.dot_dimension_numbers<[1], [0], [0], [1], [0, 0, 1, 1], [], []>} : vector<8x128xf32>, vector<128x384xf32>, vector<8x384xf32> -> vector<8x384xf32>
    %290 = vector.broadcast %256 : vector<1x384xf32> to vector<8x384xf32>
    %291 = arith.addf %289, %290 : vector<8x384xf32>
    %292 = vector.extract_strided_slice %288 {offsets = [0, 0], sizes = [8, 128], strides = [1, 1]} : vector<8x384xf32> to vector<8x128xf32>
    %293 = vector.extract_strided_slice %291 {offsets = [0, 0], sizes = [8, 128], strides = [1, 1]} : vector<8x384xf32> to vector<8x128xf32>
    %294 = arith.addf %292, %293 : vector<8x128xf32>
    %295 = arith.negf %294 : vector<8x128xf32>
    %296 = math.exp %295 : vector<8x128xf32>
    %cst_57 = arith.constant 1.000000e+00 : f32
    %297 = vector.broadcast %cst_57 : f32 to vector<8x128xf32>
    %298 = arith.addf %297, %296 : vector<8x128xf32>
    %299 = arith.divf %297, %298 : vector<8x128xf32>
    %300 = vector.extract_strided_slice %288 {offsets = [0, 128], sizes = [8, 128], strides = [1, 1]} : vector<8x384xf32> to vector<8x128xf32>
    %301 = vector.extract_strided_slice %291 {offsets = [0, 128], sizes = [8, 128], strides = [1, 1]} : vector<8x384xf32> to vector<8x128xf32>
    %302 = arith.addf %300, %301 : vector<8x128xf32>
    %303 = arith.negf %302 : vector<8x128xf32>
    %304 = math.exp %303 : vector<8x128xf32>
    %cst_58 = arith.constant 1.000000e+00 : f32
    %305 = vector.broadcast %cst_58 : f32 to vector<8x128xf32>
    %306 = arith.addf %305, %304 : vector<8x128xf32>
    %307 = arith.divf %305, %306 : vector<8x128xf32>
    %308 = vector.extract_strided_slice %288 {offsets = [0, 256], sizes = [8, 128], strides = [1, 1]} : vector<8x384xf32> to vector<8x128xf32>
    %309 = vector.extract_strided_slice %291 {offsets = [0, 256], sizes = [8, 128], strides = [1, 1]} : vector<8x384xf32> to vector<8x128xf32>
    %310 = arith.mulf %299, %309 : vector<8x128xf32>
    %311 = arith.addf %308, %310 : vector<8x128xf32>
    %312 = math.tanh %311 : vector<8x128xf32>
    %cst_59 = arith.constant 1.000000e+00 : f32
    %313 = vector.broadcast %cst_59 : f32 to vector<8x128xf32>
    %314 = arith.subf %313, %307 : vector<8x128xf32>
    %315 = arith.mulf %314, %312 : vector<8x128xf32>
    %316 = arith.mulf %307, %287 : vector<8x128xf32>
    %317 = arith.addf %315, %316 : vector<8x128xf32>
    %318 = vector.extract_strided_slice %10 {offsets = [40, 0], sizes = [8, 384], strides = [1, 1]} : vector<64x384xf32> to vector<8x384xf32>
    %cst_60 = arith.constant dense<0.000000e+00> : vector<8x384xf32>
    %319 = tpu.matmul %317, %255, %cst_60 {dimension_numbers = #tpu.dot_dimension_numbers<[1], [0], [0], [1], [0, 0, 1, 1], [], []>} : vector<8x128xf32>, vector<128x384xf32>, vector<8x384xf32> -> vector<8x384xf32>
    %320 = vector.broadcast %256 : vector<1x384xf32> to vector<8x384xf32>
    %321 = arith.addf %319, %320 : vector<8x384xf32>
    %322 = vector.extract_strided_slice %318 {offsets = [0, 0], sizes = [8, 128], strides = [1, 1]} : vector<8x384xf32> to vector<8x128xf32>
    %323 = vector.extract_strided_slice %321 {offsets = [0, 0], sizes = [8, 128], strides = [1, 1]} : vector<8x384xf32> to vector<8x128xf32>
    %324 = arith.addf %322, %323 : vector<8x128xf32>
    %325 = arith.negf %324 : vector<8x128xf32>
    %326 = math.exp %325 : vector<8x128xf32>
    %cst_61 = arith.constant 1.000000e+00 : f32
    %327 = vector.broadcast %cst_61 : f32 to vector<8x128xf32>
    %328 = arith.addf %327, %326 : vector<8x128xf32>
    %329 = arith.divf %327, %328 : vector<8x128xf32>
    %330 = vector.extract_strided_slice %318 {offsets = [0, 128], sizes = [8, 128], strides = [1, 1]} : vector<8x384xf32> to vector<8x128xf32>
    %331 = vector.extract_strided_slice %321 {offsets = [0, 128], sizes = [8, 128], strides = [1, 1]} : vector<8x384xf32> to vector<8x128xf32>
    %332 = arith.addf %330, %331 : vector<8x128xf32>
    %333 = arith.negf %332 : vector<8x128xf32>
    %334 = math.exp %333 : vector<8x128xf32>
    %cst_62 = arith.constant 1.000000e+00 : f32
    %335 = vector.broadcast %cst_62 : f32 to vector<8x128xf32>
    %336 = arith.addf %335, %334 : vector<8x128xf32>
    %337 = arith.divf %335, %336 : vector<8x128xf32>
    %338 = vector.extract_strided_slice %318 {offsets = [0, 256], sizes = [8, 128], strides = [1, 1]} : vector<8x384xf32> to vector<8x128xf32>
    %339 = vector.extract_strided_slice %321 {offsets = [0, 256], sizes = [8, 128], strides = [1, 1]} : vector<8x384xf32> to vector<8x128xf32>
    %340 = arith.mulf %329, %339 : vector<8x128xf32>
    %341 = arith.addf %338, %340 : vector<8x128xf32>
    %342 = math.tanh %341 : vector<8x128xf32>
    %cst_63 = arith.constant 1.000000e+00 : f32
    %343 = vector.broadcast %cst_63 : f32 to vector<8x128xf32>
    %344 = arith.subf %343, %337 : vector<8x128xf32>
    %345 = arith.mulf %344, %342 : vector<8x128xf32>
    %346 = arith.mulf %337, %317 : vector<8x128xf32>
    %347 = arith.addf %345, %346 : vector<8x128xf32>
    %348 = vector.extract_strided_slice %10 {offsets = [32, 0], sizes = [8, 384], strides = [1, 1]} : vector<64x384xf32> to vector<8x384xf32>
    %cst_64 = arith.constant dense<0.000000e+00> : vector<8x384xf32>
    %349 = tpu.matmul %347, %255, %cst_64 {dimension_numbers = #tpu.dot_dimension_numbers<[1], [0], [0], [1], [0, 0, 1, 1], [], []>} : vector<8x128xf32>, vector<128x384xf32>, vector<8x384xf32> -> vector<8x384xf32>
    %350 = vector.broadcast %256 : vector<1x384xf32> to vector<8x384xf32>
    %351 = arith.addf %349, %350 : vector<8x384xf32>
    %352 = vector.extract_strided_slice %348 {offsets = [0, 0], sizes = [8, 128], strides = [1, 1]} : vector<8x384xf32> to vector<8x128xf32>
    %353 = vector.extract_strided_slice %351 {offsets = [0, 0], sizes = [8, 128], strides = [1, 1]} : vector<8x384xf32> to vector<8x128xf32>
    %354 = arith.addf %352, %353 : vector<8x128xf32>
    %355 = arith.negf %354 : vector<8x128xf32>
    %356 = math.exp %355 : vector<8x128xf32>
    %cst_65 = arith.constant 1.000000e+00 : f32
    %357 = vector.broadcast %cst_65 : f32 to vector<8x128xf32>
    %358 = arith.addf %357, %356 : vector<8x128xf32>
    %359 = arith.divf %357, %358 : vector<8x128xf32>
    %360 = vector.extract_strided_slice %348 {offsets = [0, 128], sizes = [8, 128], strides = [1, 1]} : vector<8x384xf32> to vector<8x128xf32>
    %361 = vector.extract_strided_slice %351 {offsets = [0, 128], sizes = [8, 128], strides = [1, 1]} : vector<8x384xf32> to vector<8x128xf32>
    %362 = arith.addf %360, %361 : vector<8x128xf32>
    %363 = arith.negf %362 : vector<8x128xf32>
    %364 = math.exp %363 : vector<8x128xf32>
    %cst_66 = arith.constant 1.000000e+00 : f32
    %365 = vector.broadcast %cst_66 : f32 to vector<8x128xf32>
    %366 = arith.addf %365, %364 : vector<8x128xf32>
    %367 = arith.divf %365, %366 : vector<8x128xf32>
    %368 = vector.extract_strided_slice %348 {offsets = [0, 256], sizes = [8, 128], strides = [1, 1]} : vector<8x384xf32> to vector<8x128xf32>
    %369 = vector.extract_strided_slice %351 {offsets = [0, 256], sizes = [8, 128], strides = [1, 1]} : vector<8x384xf32> to vector<8x128xf32>
    %370 = arith.mulf %359, %369 : vector<8x128xf32>
    %371 = arith.addf %368, %370 : vector<8x128xf32>
    %372 = math.tanh %371 : vector<8x128xf32>
    %cst_67 = arith.constant 1.000000e+00 : f32
    %373 = vector.broadcast %cst_67 : f32 to vector<8x128xf32>
    %374 = arith.subf %373, %367 : vector<8x128xf32>
    %375 = arith.mulf %374, %372 : vector<8x128xf32>
    %376 = arith.mulf %367, %347 : vector<8x128xf32>
    %377 = arith.addf %375, %376 : vector<8x128xf32>
    %378 = vector.extract_strided_slice %10 {offsets = [24, 0], sizes = [8, 384], strides = [1, 1]} : vector<64x384xf32> to vector<8x384xf32>
    %cst_68 = arith.constant dense<0.000000e+00> : vector<8x384xf32>
    %379 = tpu.matmul %377, %255, %cst_68 {dimension_numbers = #tpu.dot_dimension_numbers<[1], [0], [0], [1], [0, 0, 1, 1], [], []>} : vector<8x128xf32>, vector<128x384xf32>, vector<8x384xf32> -> vector<8x384xf32>
    %380 = vector.broadcast %256 : vector<1x384xf32> to vector<8x384xf32>
    %381 = arith.addf %379, %380 : vector<8x384xf32>
    %382 = vector.extract_strided_slice %378 {offsets = [0, 0], sizes = [8, 128], strides = [1, 1]} : vector<8x384xf32> to vector<8x128xf32>
    %383 = vector.extract_strided_slice %381 {offsets = [0, 0], sizes = [8, 128], strides = [1, 1]} : vector<8x384xf32> to vector<8x128xf32>
    %384 = arith.addf %382, %383 : vector<8x128xf32>
    %385 = arith.negf %384 : vector<8x128xf32>
    %386 = math.exp %385 : vector<8x128xf32>
    %cst_69 = arith.constant 1.000000e+00 : f32
    %387 = vector.broadcast %cst_69 : f32 to vector<8x128xf32>
    %388 = arith.addf %387, %386 : vector<8x128xf32>
    %389 = arith.divf %387, %388 : vector<8x128xf32>
    %390 = vector.extract_strided_slice %378 {offsets = [0, 128], sizes = [8, 128], strides = [1, 1]} : vector<8x384xf32> to vector<8x128xf32>
    %391 = vector.extract_strided_slice %381 {offsets = [0, 128], sizes = [8, 128], strides = [1, 1]} : vector<8x384xf32> to vector<8x128xf32>
    %392 = arith.addf %390, %391 : vector<8x128xf32>
    %393 = arith.negf %392 : vector<8x128xf32>
    %394 = math.exp %393 : vector<8x128xf32>
    %cst_70 = arith.constant 1.000000e+00 : f32
    %395 = vector.broadcast %cst_70 : f32 to vector<8x128xf32>
    %396 = arith.addf %395, %394 : vector<8x128xf32>
    %397 = arith.divf %395, %396 : vector<8x128xf32>
    %398 = vector.extract_strided_slice %378 {offsets = [0, 256], sizes = [8, 128], strides = [1, 1]} : vector<8x384xf32> to vector<8x128xf32>
    %399 = vector.extract_strided_slice %381 {offsets = [0, 256], sizes = [8, 128], strides = [1, 1]} : vector<8x384xf32> to vector<8x128xf32>
    %400 = arith.mulf %389, %399 : vector<8x128xf32>
    %401 = arith.addf %398, %400 : vector<8x128xf32>
    %402 = math.tanh %401 : vector<8x128xf32>
    %cst_71 = arith.constant 1.000000e+00 : f32
    %403 = vector.broadcast %cst_71 : f32 to vector<8x128xf32>
    %404 = arith.subf %403, %397 : vector<8x128xf32>
    %405 = arith.mulf %404, %402 : vector<8x128xf32>
    %406 = arith.mulf %397, %377 : vector<8x128xf32>
    %407 = arith.addf %405, %406 : vector<8x128xf32>
    %408 = vector.extract_strided_slice %10 {offsets = [16, 0], sizes = [8, 384], strides = [1, 1]} : vector<64x384xf32> to vector<8x384xf32>
    %cst_72 = arith.constant dense<0.000000e+00> : vector<8x384xf32>
    %409 = tpu.matmul %407, %255, %cst_72 {dimension_numbers = #tpu.dot_dimension_numbers<[1], [0], [0], [1], [0, 0, 1, 1], [], []>} : vector<8x128xf32>, vector<128x384xf32>, vector<8x384xf32> -> vector<8x384xf32>
    %410 = vector.broadcast %256 : vector<1x384xf32> to vector<8x384xf32>
    %411 = arith.addf %409, %410 : vector<8x384xf32>
    %412 = vector.extract_strided_slice %408 {offsets = [0, 0], sizes = [8, 128], strides = [1, 1]} : vector<8x384xf32> to vector<8x128xf32>
    %413 = vector.extract_strided_slice %411 {offsets = [0, 0], sizes = [8, 128], strides = [1, 1]} : vector<8x384xf32> to vector<8x128xf32>
    %414 = arith.addf %412, %413 : vector<8x128xf32>
    %415 = arith.negf %414 : vector<8x128xf32>
    %416 = math.exp %415 : vector<8x128xf32>
    %cst_73 = arith.constant 1.000000e+00 : f32
    %417 = vector.broadcast %cst_73 : f32 to vector<8x128xf32>
    %418 = arith.addf %417, %416 : vector<8x128xf32>
    %419 = arith.divf %417, %418 : vector<8x128xf32>
    %420 = vector.extract_strided_slice %408 {offsets = [0, 128], sizes = [8, 128], strides = [1, 1]} : vector<8x384xf32> to vector<8x128xf32>
    %421 = vector.extract_strided_slice %411 {offsets = [0, 128], sizes = [8, 128], strides = [1, 1]} : vector<8x384xf32> to vector<8x128xf32>
    %422 = arith.addf %420, %421 : vector<8x128xf32>
    %423 = arith.negf %422 : vector<8x128xf32>
    %424 = math.exp %423 : vector<8x128xf32>
    %cst_74 = arith.constant 1.000000e+00 : f32
    %425 = vector.broadcast %cst_74 : f32 to vector<8x128xf32>
    %426 = arith.addf %425, %424 : vector<8x128xf32>
    %427 = arith.divf %425, %426 : vector<8x128xf32>
    %428 = vector.extract_strided_slice %408 {offsets = [0, 256], sizes = [8, 128], strides = [1, 1]} : vector<8x384xf32> to vector<8x128xf32>
    %429 = vector.extract_strided_slice %411 {offsets = [0, 256], sizes = [8, 128], strides = [1, 1]} : vector<8x384xf32> to vector<8x128xf32>
    %430 = arith.mulf %419, %429 : vector<8x128xf32>
    %431 = arith.addf %428, %430 : vector<8x128xf32>
    %432 = math.tanh %431 : vector<8x128xf32>
    %cst_75 = arith.constant 1.000000e+00 : f32
    %433 = vector.broadcast %cst_75 : f32 to vector<8x128xf32>
    %434 = arith.subf %433, %427 : vector<8x128xf32>
    %435 = arith.mulf %434, %432 : vector<8x128xf32>
    %436 = arith.mulf %427, %407 : vector<8x128xf32>
    %437 = arith.addf %435, %436 : vector<8x128xf32>
    %438 = vector.extract_strided_slice %10 {offsets = [8, 0], sizes = [8, 384], strides = [1, 1]} : vector<64x384xf32> to vector<8x384xf32>
    %cst_76 = arith.constant dense<0.000000e+00> : vector<8x384xf32>
    %439 = tpu.matmul %437, %255, %cst_76 {dimension_numbers = #tpu.dot_dimension_numbers<[1], [0], [0], [1], [0, 0, 1, 1], [], []>} : vector<8x128xf32>, vector<128x384xf32>, vector<8x384xf32> -> vector<8x384xf32>
    %440 = vector.broadcast %256 : vector<1x384xf32> to vector<8x384xf32>
    %441 = arith.addf %439, %440 : vector<8x384xf32>
    %442 = vector.extract_strided_slice %438 {offsets = [0, 0], sizes = [8, 128], strides = [1, 1]} : vector<8x384xf32> to vector<8x128xf32>
    %443 = vector.extract_strided_slice %441 {offsets = [0, 0], sizes = [8, 128], strides = [1, 1]} : vector<8x384xf32> to vector<8x128xf32>
    %444 = arith.addf %442, %443 : vector<8x128xf32>
    %445 = arith.negf %444 : vector<8x128xf32>
    %446 = math.exp %445 : vector<8x128xf32>
    %cst_77 = arith.constant 1.000000e+00 : f32
    %447 = vector.broadcast %cst_77 : f32 to vector<8x128xf32>
    %448 = arith.addf %447, %446 : vector<8x128xf32>
    %449 = arith.divf %447, %448 : vector<8x128xf32>
    %450 = vector.extract_strided_slice %438 {offsets = [0, 128], sizes = [8, 128], strides = [1, 1]} : vector<8x384xf32> to vector<8x128xf32>
    %451 = vector.extract_strided_slice %441 {offsets = [0, 128], sizes = [8, 128], strides = [1, 1]} : vector<8x384xf32> to vector<8x128xf32>
    %452 = arith.addf %450, %451 : vector<8x128xf32>
    %453 = arith.negf %452 : vector<8x128xf32>
    %454 = math.exp %453 : vector<8x128xf32>
    %cst_78 = arith.constant 1.000000e+00 : f32
    %455 = vector.broadcast %cst_78 : f32 to vector<8x128xf32>
    %456 = arith.addf %455, %454 : vector<8x128xf32>
    %457 = arith.divf %455, %456 : vector<8x128xf32>
    %458 = vector.extract_strided_slice %438 {offsets = [0, 256], sizes = [8, 128], strides = [1, 1]} : vector<8x384xf32> to vector<8x128xf32>
    %459 = vector.extract_strided_slice %441 {offsets = [0, 256], sizes = [8, 128], strides = [1, 1]} : vector<8x384xf32> to vector<8x128xf32>
    %460 = arith.mulf %449, %459 : vector<8x128xf32>
    %461 = arith.addf %458, %460 : vector<8x128xf32>
    %462 = math.tanh %461 : vector<8x128xf32>
    %cst_79 = arith.constant 1.000000e+00 : f32
    %463 = vector.broadcast %cst_79 : f32 to vector<8x128xf32>
    %464 = arith.subf %463, %457 : vector<8x128xf32>
    %465 = arith.mulf %464, %462 : vector<8x128xf32>
    %466 = arith.mulf %457, %437 : vector<8x128xf32>
    %467 = arith.addf %465, %466 : vector<8x128xf32>
    %468 = vector.extract_strided_slice %10 {offsets = [0, 0], sizes = [8, 384], strides = [1, 1]} : vector<64x384xf32> to vector<8x384xf32>
    %cst_80 = arith.constant dense<0.000000e+00> : vector<8x384xf32>
    %469 = tpu.matmul %467, %255, %cst_80 {dimension_numbers = #tpu.dot_dimension_numbers<[1], [0], [0], [1], [0, 0, 1, 1], [], []>} : vector<8x128xf32>, vector<128x384xf32>, vector<8x384xf32> -> vector<8x384xf32>
    %470 = vector.broadcast %256 : vector<1x384xf32> to vector<8x384xf32>
    %471 = arith.addf %469, %470 : vector<8x384xf32>
    %472 = vector.extract_strided_slice %468 {offsets = [0, 0], sizes = [8, 128], strides = [1, 1]} : vector<8x384xf32> to vector<8x128xf32>
    %473 = vector.extract_strided_slice %471 {offsets = [0, 0], sizes = [8, 128], strides = [1, 1]} : vector<8x384xf32> to vector<8x128xf32>
    %474 = arith.addf %472, %473 : vector<8x128xf32>
    %475 = arith.negf %474 : vector<8x128xf32>
    %476 = math.exp %475 : vector<8x128xf32>
    %cst_81 = arith.constant 1.000000e+00 : f32
    %477 = vector.broadcast %cst_81 : f32 to vector<8x128xf32>
    %478 = arith.addf %477, %476 : vector<8x128xf32>
    %479 = arith.divf %477, %478 : vector<8x128xf32>
    %480 = vector.extract_strided_slice %468 {offsets = [0, 128], sizes = [8, 128], strides = [1, 1]} : vector<8x384xf32> to vector<8x128xf32>
    %481 = vector.extract_strided_slice %471 {offsets = [0, 128], sizes = [8, 128], strides = [1, 1]} : vector<8x384xf32> to vector<8x128xf32>
    %482 = arith.addf %480, %481 : vector<8x128xf32>
    %483 = arith.negf %482 : vector<8x128xf32>
    %484 = math.exp %483 : vector<8x128xf32>
    %cst_82 = arith.constant 1.000000e+00 : f32
    %485 = vector.broadcast %cst_82 : f32 to vector<8x128xf32>
    %486 = arith.addf %485, %484 : vector<8x128xf32>
    %487 = arith.divf %485, %486 : vector<8x128xf32>
    %488 = vector.extract_strided_slice %468 {offsets = [0, 256], sizes = [8, 128], strides = [1, 1]} : vector<8x384xf32> to vector<8x128xf32>
    %489 = vector.extract_strided_slice %471 {offsets = [0, 256], sizes = [8, 128], strides = [1, 1]} : vector<8x384xf32> to vector<8x128xf32>
    %490 = arith.mulf %479, %489 : vector<8x128xf32>
    %491 = arith.addf %488, %490 : vector<8x128xf32>
    %492 = math.tanh %491 : vector<8x128xf32>
    %cst_83 = arith.constant 1.000000e+00 : f32
    %493 = vector.broadcast %cst_83 : f32 to vector<8x128xf32>
    %494 = arith.subf %493, %487 : vector<8x128xf32>
    %495 = arith.mulf %494, %492 : vector<8x128xf32>
    %496 = arith.mulf %487, %467 : vector<8x128xf32>
    %497 = arith.addf %495, %496 : vector<8x128xf32>
    %498 = tpu.concatenate %497, %467, %437, %407, %377, %347, %317, %287 in 0 : vector<8x128xf32>, vector<8x128xf32>, vector<8x128xf32>, vector<8x128xf32>, vector<8x128xf32>, vector<8x128xf32>, vector<8x128xf32>, vector<8x128xf32> -> vector<64x128xf32>
    %499 = tpu.concatenate %254, %498 in 1 : vector<64x128xf32>, vector<64x128xf32> -> vector<64x256xf32>
    %c0_84 = arith.constant 0 : index
    %c0_85 = arith.constant 0 : index
    %500 = vector.load %arg9[%c0_84, %c0_85] : memref<256x384xf32, #tpu.memory_space<vmem>>, vector<256x384xf32>
    %cst_86 = arith.constant dense<0.000000e+00> : vector<64x384xf32>
    %501 = tpu.matmul %499, %500, %cst_86 {dimension_numbers = #tpu.dot_dimension_numbers<[1], [0], [0], [1], [0, 0, 1, 1], [], []>} : vector<64x256xf32>, vector<256x384xf32>, vector<64x384xf32> -> vector<64x384xf32>
    %c0_87 = arith.constant 0 : index
    %c0_88 = arith.constant 0 : index
    %502 = vector.load %arg11[%c0_87, %c0_88] : memref<1x384xf32, #tpu.memory_space<vmem>>, vector<1x384xf32>
    %503 = vector.broadcast %502 : vector<1x384xf32> to vector<64x384xf32>
    %504 = arith.addf %501, %503 : vector<64x384xf32>
    %c0_89 = arith.constant 0 : index
    %c0_90 = arith.constant 0 : index
    %505 = vector.load %arg13[%c0_89, %c0_90] : memref<256x384xf32, #tpu.memory_space<vmem>>, vector<256x384xf32>
    %cst_91 = arith.constant dense<0.000000e+00> : vector<64x384xf32>
    %506 = tpu.matmul %499, %505, %cst_91 {dimension_numbers = #tpu.dot_dimension_numbers<[1], [0], [0], [1], [0, 0, 1, 1], [], []>} : vector<64x256xf32>, vector<256x384xf32>, vector<64x384xf32> -> vector<64x384xf32>
    %c0_92 = arith.constant 0 : index
    %c0_93 = arith.constant 0 : index
    %507 = vector.load %arg15[%c0_92, %c0_93] : memref<1x384xf32, #tpu.memory_space<vmem>>, vector<1x384xf32>
    %508 = vector.broadcast %507 : vector<1x384xf32> to vector<64x384xf32>
    %509 = arith.addf %506, %508 : vector<64x384xf32>
    %c0_94 = arith.constant 0 : index
    %c0_95 = arith.constant 0 : index
    %510 = vector.load %arg10[%c0_94, %c0_95] : memref<128x384xf32, #tpu.memory_space<vmem>>, vector<128x384xf32>
    %c0_96 = arith.constant 0 : index
    %c0_97 = arith.constant 0 : index
    %511 = vector.load %arg12[%c0_96, %c0_97] : memref<1x384xf32, #tpu.memory_space<vmem>>, vector<1x384xf32>
    %cst_98 = arith.constant 0.000000e+00 : f32
    %512 = vector.broadcast %cst_98 : f32 to vector<8x128xf32>
    %513 = vector.extract_strided_slice %504 {offsets = [0, 0], sizes = [8, 384], strides = [1, 1]} : vector<64x384xf32> to vector<8x384xf32>
    %cst_99 = arith.constant dense<0.000000e+00> : vector<8x384xf32>
    %514 = tpu.matmul %512, %510, %cst_99 {dimension_numbers = #tpu.dot_dimension_numbers<[1], [0], [0], [1], [0, 0, 1, 1], [], []>} : vector<8x128xf32>, vector<128x384xf32>, vector<8x384xf32> -> vector<8x384xf32>
    %515 = vector.broadcast %511 : vector<1x384xf32> to vector<8x384xf32>
    %516 = arith.addf %514, %515 : vector<8x384xf32>
    %517 = vector.extract_strided_slice %513 {offsets = [0, 0], sizes = [8, 128], strides = [1, 1]} : vector<8x384xf32> to vector<8x128xf32>
    %518 = vector.extract_strided_slice %516 {offsets = [0, 0], sizes = [8, 128], strides = [1, 1]} : vector<8x384xf32> to vector<8x128xf32>
    %519 = arith.addf %517, %518 : vector<8x128xf32>
    %520 = arith.negf %519 : vector<8x128xf32>
    %521 = math.exp %520 : vector<8x128xf32>
    %cst_100 = arith.constant 1.000000e+00 : f32
    %522 = vector.broadcast %cst_100 : f32 to vector<8x128xf32>
    %523 = arith.addf %522, %521 : vector<8x128xf32>
    %524 = arith.divf %522, %523 : vector<8x128xf32>
    %525 = vector.extract_strided_slice %513 {offsets = [0, 128], sizes = [8, 128], strides = [1, 1]} : vector<8x384xf32> to vector<8x128xf32>
    %526 = vector.extract_strided_slice %516 {offsets = [0, 128], sizes = [8, 128], strides = [1, 1]} : vector<8x384xf32> to vector<8x128xf32>
    %527 = arith.addf %525, %526 : vector<8x128xf32>
    %528 = arith.negf %527 : vector<8x128xf32>
    %529 = math.exp %528 : vector<8x128xf32>
    %cst_101 = arith.constant 1.000000e+00 : f32
    %530 = vector.broadcast %cst_101 : f32 to vector<8x128xf32>
    %531 = arith.addf %530, %529 : vector<8x128xf32>
    %532 = arith.divf %530, %531 : vector<8x128xf32>
    %533 = vector.extract_strided_slice %513 {offsets = [0, 256], sizes = [8, 128], strides = [1, 1]} : vector<8x384xf32> to vector<8x128xf32>
    %534 = vector.extract_strided_slice %516 {offsets = [0, 256], sizes = [8, 128], strides = [1, 1]} : vector<8x384xf32> to vector<8x128xf32>
    %535 = arith.mulf %524, %534 : vector<8x128xf32>
    %536 = arith.addf %533, %535 : vector<8x128xf32>
    %537 = math.tanh %536 : vector<8x128xf32>
    %cst_102 = arith.constant 1.000000e+00 : f32
    %538 = vector.broadcast %cst_102 : f32 to vector<8x128xf32>
    %539 = arith.subf %538, %532 : vector<8x128xf32>
    %540 = arith.mulf %539, %537 : vector<8x128xf32>
    %541 = arith.mulf %532, %512 : vector<8x128xf32>
    %542 = arith.addf %540, %541 : vector<8x128xf32>
    %543 = vector.extract_strided_slice %504 {offsets = [8, 0], sizes = [8, 384], strides = [1, 1]} : vector<64x384xf32> to vector<8x384xf32>
    %cst_103 = arith.constant dense<0.000000e+00> : vector<8x384xf32>
    %544 = tpu.matmul %542, %510, %cst_103 {dimension_numbers = #tpu.dot_dimension_numbers<[1], [0], [0], [1], [0, 0, 1, 1], [], []>} : vector<8x128xf32>, vector<128x384xf32>, vector<8x384xf32> -> vector<8x384xf32>
    %545 = vector.broadcast %511 : vector<1x384xf32> to vector<8x384xf32>
    %546 = arith.addf %544, %545 : vector<8x384xf32>
    %547 = vector.extract_strided_slice %543 {offsets = [0, 0], sizes = [8, 128], strides = [1, 1]} : vector<8x384xf32> to vector<8x128xf32>
    %548 = vector.extract_strided_slice %546 {offsets = [0, 0], sizes = [8, 128], strides = [1, 1]} : vector<8x384xf32> to vector<8x128xf32>
    %549 = arith.addf %547, %548 : vector<8x128xf32>
    %550 = arith.negf %549 : vector<8x128xf32>
    %551 = math.exp %550 : vector<8x128xf32>
    %cst_104 = arith.constant 1.000000e+00 : f32
    %552 = vector.broadcast %cst_104 : f32 to vector<8x128xf32>
    %553 = arith.addf %552, %551 : vector<8x128xf32>
    %554 = arith.divf %552, %553 : vector<8x128xf32>
    %555 = vector.extract_strided_slice %543 {offsets = [0, 128], sizes = [8, 128], strides = [1, 1]} : vector<8x384xf32> to vector<8x128xf32>
    %556 = vector.extract_strided_slice %546 {offsets = [0, 128], sizes = [8, 128], strides = [1, 1]} : vector<8x384xf32> to vector<8x128xf32>
    %557 = arith.addf %555, %556 : vector<8x128xf32>
    %558 = arith.negf %557 : vector<8x128xf32>
    %559 = math.exp %558 : vector<8x128xf32>
    %cst_105 = arith.constant 1.000000e+00 : f32
    %560 = vector.broadcast %cst_105 : f32 to vector<8x128xf32>
    %561 = arith.addf %560, %559 : vector<8x128xf32>
    %562 = arith.divf %560, %561 : vector<8x128xf32>
    %563 = vector.extract_strided_slice %543 {offsets = [0, 256], sizes = [8, 128], strides = [1, 1]} : vector<8x384xf32> to vector<8x128xf32>
    %564 = vector.extract_strided_slice %546 {offsets = [0, 256], sizes = [8, 128], strides = [1, 1]} : vector<8x384xf32> to vector<8x128xf32>
    %565 = arith.mulf %554, %564 : vector<8x128xf32>
    %566 = arith.addf %563, %565 : vector<8x128xf32>
    %567 = math.tanh %566 : vector<8x128xf32>
    %cst_106 = arith.constant 1.000000e+00 : f32
    %568 = vector.broadcast %cst_106 : f32 to vector<8x128xf32>
    %569 = arith.subf %568, %562 : vector<8x128xf32>
    %570 = arith.mulf %569, %567 : vector<8x128xf32>
    %571 = arith.mulf %562, %542 : vector<8x128xf32>
    %572 = arith.addf %570, %571 : vector<8x128xf32>
    %573 = vector.extract_strided_slice %504 {offsets = [16, 0], sizes = [8, 384], strides = [1, 1]} : vector<64x384xf32> to vector<8x384xf32>
    %cst_107 = arith.constant dense<0.000000e+00> : vector<8x384xf32>
    %574 = tpu.matmul %572, %510, %cst_107 {dimension_numbers = #tpu.dot_dimension_numbers<[1], [0], [0], [1], [0, 0, 1, 1], [], []>} : vector<8x128xf32>, vector<128x384xf32>, vector<8x384xf32> -> vector<8x384xf32>
    %575 = vector.broadcast %511 : vector<1x384xf32> to vector<8x384xf32>
    %576 = arith.addf %574, %575 : vector<8x384xf32>
    %577 = vector.extract_strided_slice %573 {offsets = [0, 0], sizes = [8, 128], strides = [1, 1]} : vector<8x384xf32> to vector<8x128xf32>
    %578 = vector.extract_strided_slice %576 {offsets = [0, 0], sizes = [8, 128], strides = [1, 1]} : vector<8x384xf32> to vector<8x128xf32>
    %579 = arith.addf %577, %578 : vector<8x128xf32>
    %580 = arith.negf %579 : vector<8x128xf32>
    %581 = math.exp %580 : vector<8x128xf32>
    %cst_108 = arith.constant 1.000000e+00 : f32
    %582 = vector.broadcast %cst_108 : f32 to vector<8x128xf32>
    %583 = arith.addf %582, %581 : vector<8x128xf32>
    %584 = arith.divf %582, %583 : vector<8x128xf32>
    %585 = vector.extract_strided_slice %573 {offsets = [0, 128], sizes = [8, 128], strides = [1, 1]} : vector<8x384xf32> to vector<8x128xf32>
    %586 = vector.extract_strided_slice %576 {offsets = [0, 128], sizes = [8, 128], strides = [1, 1]} : vector<8x384xf32> to vector<8x128xf32>
    %587 = arith.addf %585, %586 : vector<8x128xf32>
    %588 = arith.negf %587 : vector<8x128xf32>
    %589 = math.exp %588 : vector<8x128xf32>
    %cst_109 = arith.constant 1.000000e+00 : f32
    %590 = vector.broadcast %cst_109 : f32 to vector<8x128xf32>
    %591 = arith.addf %590, %589 : vector<8x128xf32>
    %592 = arith.divf %590, %591 : vector<8x128xf32>
    %593 = vector.extract_strided_slice %573 {offsets = [0, 256], sizes = [8, 128], strides = [1, 1]} : vector<8x384xf32> to vector<8x128xf32>
    %594 = vector.extract_strided_slice %576 {offsets = [0, 256], sizes = [8, 128], strides = [1, 1]} : vector<8x384xf32> to vector<8x128xf32>
    %595 = arith.mulf %584, %594 : vector<8x128xf32>
    %596 = arith.addf %593, %595 : vector<8x128xf32>
    %597 = math.tanh %596 : vector<8x128xf32>
    %cst_110 = arith.constant 1.000000e+00 : f32
    %598 = vector.broadcast %cst_110 : f32 to vector<8x128xf32>
    %599 = arith.subf %598, %592 : vector<8x128xf32>
    %600 = arith.mulf %599, %597 : vector<8x128xf32>
    %601 = arith.mulf %592, %572 : vector<8x128xf32>
    %602 = arith.addf %600, %601 : vector<8x128xf32>
    %603 = vector.extract_strided_slice %504 {offsets = [24, 0], sizes = [8, 384], strides = [1, 1]} : vector<64x384xf32> to vector<8x384xf32>
    %cst_111 = arith.constant dense<0.000000e+00> : vector<8x384xf32>
    %604 = tpu.matmul %602, %510, %cst_111 {dimension_numbers = #tpu.dot_dimension_numbers<[1], [0], [0], [1], [0, 0, 1, 1], [], []>} : vector<8x128xf32>, vector<128x384xf32>, vector<8x384xf32> -> vector<8x384xf32>
    %605 = vector.broadcast %511 : vector<1x384xf32> to vector<8x384xf32>
    %606 = arith.addf %604, %605 : vector<8x384xf32>
    %607 = vector.extract_strided_slice %603 {offsets = [0, 0], sizes = [8, 128], strides = [1, 1]} : vector<8x384xf32> to vector<8x128xf32>
    %608 = vector.extract_strided_slice %606 {offsets = [0, 0], sizes = [8, 128], strides = [1, 1]} : vector<8x384xf32> to vector<8x128xf32>
    %609 = arith.addf %607, %608 : vector<8x128xf32>
    %610 = arith.negf %609 : vector<8x128xf32>
    %611 = math.exp %610 : vector<8x128xf32>
    %cst_112 = arith.constant 1.000000e+00 : f32
    %612 = vector.broadcast %cst_112 : f32 to vector<8x128xf32>
    %613 = arith.addf %612, %611 : vector<8x128xf32>
    %614 = arith.divf %612, %613 : vector<8x128xf32>
    %615 = vector.extract_strided_slice %603 {offsets = [0, 128], sizes = [8, 128], strides = [1, 1]} : vector<8x384xf32> to vector<8x128xf32>
    %616 = vector.extract_strided_slice %606 {offsets = [0, 128], sizes = [8, 128], strides = [1, 1]} : vector<8x384xf32> to vector<8x128xf32>
    %617 = arith.addf %615, %616 : vector<8x128xf32>
    %618 = arith.negf %617 : vector<8x128xf32>
    %619 = math.exp %618 : vector<8x128xf32>
    %cst_113 = arith.constant 1.000000e+00 : f32
    %620 = vector.broadcast %cst_113 : f32 to vector<8x128xf32>
    %621 = arith.addf %620, %619 : vector<8x128xf32>
    %622 = arith.divf %620, %621 : vector<8x128xf32>
    %623 = vector.extract_strided_slice %603 {offsets = [0, 256], sizes = [8, 128], strides = [1, 1]} : vector<8x384xf32> to vector<8x128xf32>
    %624 = vector.extract_strided_slice %606 {offsets = [0, 256], sizes = [8, 128], strides = [1, 1]} : vector<8x384xf32> to vector<8x128xf32>
    %625 = arith.mulf %614, %624 : vector<8x128xf32>
    %626 = arith.addf %623, %625 : vector<8x128xf32>
    %627 = math.tanh %626 : vector<8x128xf32>
    %cst_114 = arith.constant 1.000000e+00 : f32
    %628 = vector.broadcast %cst_114 : f32 to vector<8x128xf32>
    %629 = arith.subf %628, %622 : vector<8x128xf32>
    %630 = arith.mulf %629, %627 : vector<8x128xf32>
    %631 = arith.mulf %622, %602 : vector<8x128xf32>
    %632 = arith.addf %630, %631 : vector<8x128xf32>
    %633 = vector.extract_strided_slice %504 {offsets = [32, 0], sizes = [8, 384], strides = [1, 1]} : vector<64x384xf32> to vector<8x384xf32>
    %cst_115 = arith.constant dense<0.000000e+00> : vector<8x384xf32>
    %634 = tpu.matmul %632, %510, %cst_115 {dimension_numbers = #tpu.dot_dimension_numbers<[1], [0], [0], [1], [0, 0, 1, 1], [], []>} : vector<8x128xf32>, vector<128x384xf32>, vector<8x384xf32> -> vector<8x384xf32>
    %635 = vector.broadcast %511 : vector<1x384xf32> to vector<8x384xf32>
    %636 = arith.addf %634, %635 : vector<8x384xf32>
    %637 = vector.extract_strided_slice %633 {offsets = [0, 0], sizes = [8, 128], strides = [1, 1]} : vector<8x384xf32> to vector<8x128xf32>
    %638 = vector.extract_strided_slice %636 {offsets = [0, 0], sizes = [8, 128], strides = [1, 1]} : vector<8x384xf32> to vector<8x128xf32>
    %639 = arith.addf %637, %638 : vector<8x128xf32>
    %640 = arith.negf %639 : vector<8x128xf32>
    %641 = math.exp %640 : vector<8x128xf32>
    %cst_116 = arith.constant 1.000000e+00 : f32
    %642 = vector.broadcast %cst_116 : f32 to vector<8x128xf32>
    %643 = arith.addf %642, %641 : vector<8x128xf32>
    %644 = arith.divf %642, %643 : vector<8x128xf32>
    %645 = vector.extract_strided_slice %633 {offsets = [0, 128], sizes = [8, 128], strides = [1, 1]} : vector<8x384xf32> to vector<8x128xf32>
    %646 = vector.extract_strided_slice %636 {offsets = [0, 128], sizes = [8, 128], strides = [1, 1]} : vector<8x384xf32> to vector<8x128xf32>
    %647 = arith.addf %645, %646 : vector<8x128xf32>
    %648 = arith.negf %647 : vector<8x128xf32>
    %649 = math.exp %648 : vector<8x128xf32>
    %cst_117 = arith.constant 1.000000e+00 : f32
    %650 = vector.broadcast %cst_117 : f32 to vector<8x128xf32>
    %651 = arith.addf %650, %649 : vector<8x128xf32>
    %652 = arith.divf %650, %651 : vector<8x128xf32>
    %653 = vector.extract_strided_slice %633 {offsets = [0, 256], sizes = [8, 128], strides = [1, 1]} : vector<8x384xf32> to vector<8x128xf32>
    %654 = vector.extract_strided_slice %636 {offsets = [0, 256], sizes = [8, 128], strides = [1, 1]} : vector<8x384xf32> to vector<8x128xf32>
    %655 = arith.mulf %644, %654 : vector<8x128xf32>
    %656 = arith.addf %653, %655 : vector<8x128xf32>
    %657 = math.tanh %656 : vector<8x128xf32>
    %cst_118 = arith.constant 1.000000e+00 : f32
    %658 = vector.broadcast %cst_118 : f32 to vector<8x128xf32>
    %659 = arith.subf %658, %652 : vector<8x128xf32>
    %660 = arith.mulf %659, %657 : vector<8x128xf32>
    %661 = arith.mulf %652, %632 : vector<8x128xf32>
    %662 = arith.addf %660, %661 : vector<8x128xf32>
    %663 = vector.extract_strided_slice %504 {offsets = [40, 0], sizes = [8, 384], strides = [1, 1]} : vector<64x384xf32> to vector<8x384xf32>
    %cst_119 = arith.constant dense<0.000000e+00> : vector<8x384xf32>
    %664 = tpu.matmul %662, %510, %cst_119 {dimension_numbers = #tpu.dot_dimension_numbers<[1], [0], [0], [1], [0, 0, 1, 1], [], []>} : vector<8x128xf32>, vector<128x384xf32>, vector<8x384xf32> -> vector<8x384xf32>
    %665 = vector.broadcast %511 : vector<1x384xf32> to vector<8x384xf32>
    %666 = arith.addf %664, %665 : vector<8x384xf32>
    %667 = vector.extract_strided_slice %663 {offsets = [0, 0], sizes = [8, 128], strides = [1, 1]} : vector<8x384xf32> to vector<8x128xf32>
    %668 = vector.extract_strided_slice %666 {offsets = [0, 0], sizes = [8, 128], strides = [1, 1]} : vector<8x384xf32> to vector<8x128xf32>
    %669 = arith.addf %667, %668 : vector<8x128xf32>
    %670 = arith.negf %669 : vector<8x128xf32>
    %671 = math.exp %670 : vector<8x128xf32>
    %cst_120 = arith.constant 1.000000e+00 : f32
    %672 = vector.broadcast %cst_120 : f32 to vector<8x128xf32>
    %673 = arith.addf %672, %671 : vector<8x128xf32>
    %674 = arith.divf %672, %673 : vector<8x128xf32>
    %675 = vector.extract_strided_slice %663 {offsets = [0, 128], sizes = [8, 128], strides = [1, 1]} : vector<8x384xf32> to vector<8x128xf32>
    %676 = vector.extract_strided_slice %666 {offsets = [0, 128], sizes = [8, 128], strides = [1, 1]} : vector<8x384xf32> to vector<8x128xf32>
    %677 = arith.addf %675, %676 : vector<8x128xf32>
    %678 = arith.negf %677 : vector<8x128xf32>
    %679 = math.exp %678 : vector<8x128xf32>
    %cst_121 = arith.constant 1.000000e+00 : f32
    %680 = vector.broadcast %cst_121 : f32 to vector<8x128xf32>
    %681 = arith.addf %680, %679 : vector<8x128xf32>
    %682 = arith.divf %680, %681 : vector<8x128xf32>
    %683 = vector.extract_strided_slice %663 {offsets = [0, 256], sizes = [8, 128], strides = [1, 1]} : vector<8x384xf32> to vector<8x128xf32>
    %684 = vector.extract_strided_slice %666 {offsets = [0, 256], sizes = [8, 128], strides = [1, 1]} : vector<8x384xf32> to vector<8x128xf32>
    %685 = arith.mulf %674, %684 : vector<8x128xf32>
    %686 = arith.addf %683, %685 : vector<8x128xf32>
    %687 = math.tanh %686 : vector<8x128xf32>
    %cst_122 = arith.constant 1.000000e+00 : f32
    %688 = vector.broadcast %cst_122 : f32 to vector<8x128xf32>
    %689 = arith.subf %688, %682 : vector<8x128xf32>
    %690 = arith.mulf %689, %687 : vector<8x128xf32>
    %691 = arith.mulf %682, %662 : vector<8x128xf32>
    %692 = arith.addf %690, %691 : vector<8x128xf32>
    %693 = vector.extract_strided_slice %504 {offsets = [48, 0], sizes = [8, 384], strides = [1, 1]} : vector<64x384xf32> to vector<8x384xf32>
    %cst_123 = arith.constant dense<0.000000e+00> : vector<8x384xf32>
    %694 = tpu.matmul %692, %510, %cst_123 {dimension_numbers = #tpu.dot_dimension_numbers<[1], [0], [0], [1], [0, 0, 1, 1], [], []>} : vector<8x128xf32>, vector<128x384xf32>, vector<8x384xf32> -> vector<8x384xf32>
    %695 = vector.broadcast %511 : vector<1x384xf32> to vector<8x384xf32>
    %696 = arith.addf %694, %695 : vector<8x384xf32>
    %697 = vector.extract_strided_slice %693 {offsets = [0, 0], sizes = [8, 128], strides = [1, 1]} : vector<8x384xf32> to vector<8x128xf32>
    %698 = vector.extract_strided_slice %696 {offsets = [0, 0], sizes = [8, 128], strides = [1, 1]} : vector<8x384xf32> to vector<8x128xf32>
    %699 = arith.addf %697, %698 : vector<8x128xf32>
    %700 = arith.negf %699 : vector<8x128xf32>
    %701 = math.exp %700 : vector<8x128xf32>
    %cst_124 = arith.constant 1.000000e+00 : f32
    %702 = vector.broadcast %cst_124 : f32 to vector<8x128xf32>
    %703 = arith.addf %702, %701 : vector<8x128xf32>
    %704 = arith.divf %702, %703 : vector<8x128xf32>
    %705 = vector.extract_strided_slice %693 {offsets = [0, 128], sizes = [8, 128], strides = [1, 1]} : vector<8x384xf32> to vector<8x128xf32>
    %706 = vector.extract_strided_slice %696 {offsets = [0, 128], sizes = [8, 128], strides = [1, 1]} : vector<8x384xf32> to vector<8x128xf32>
    %707 = arith.addf %705, %706 : vector<8x128xf32>
    %708 = arith.negf %707 : vector<8x128xf32>
    %709 = math.exp %708 : vector<8x128xf32>
    %cst_125 = arith.constant 1.000000e+00 : f32
    %710 = vector.broadcast %cst_125 : f32 to vector<8x128xf32>
    %711 = arith.addf %710, %709 : vector<8x128xf32>
    %712 = arith.divf %710, %711 : vector<8x128xf32>
    %713 = vector.extract_strided_slice %693 {offsets = [0, 256], sizes = [8, 128], strides = [1, 1]} : vector<8x384xf32> to vector<8x128xf32>
    %714 = vector.extract_strided_slice %696 {offsets = [0, 256], sizes = [8, 128], strides = [1, 1]} : vector<8x384xf32> to vector<8x128xf32>
    %715 = arith.mulf %704, %714 : vector<8x128xf32>
    %716 = arith.addf %713, %715 : vector<8x128xf32>
    %717 = math.tanh %716 : vector<8x128xf32>
    %cst_126 = arith.constant 1.000000e+00 : f32
    %718 = vector.broadcast %cst_126 : f32 to vector<8x128xf32>
    %719 = arith.subf %718, %712 : vector<8x128xf32>
    %720 = arith.mulf %719, %717 : vector<8x128xf32>
    %721 = arith.mulf %712, %692 : vector<8x128xf32>
    %722 = arith.addf %720, %721 : vector<8x128xf32>
    %723 = vector.extract_strided_slice %504 {offsets = [56, 0], sizes = [8, 384], strides = [1, 1]} : vector<64x384xf32> to vector<8x384xf32>
    %cst_127 = arith.constant dense<0.000000e+00> : vector<8x384xf32>
    %724 = tpu.matmul %722, %510, %cst_127 {dimension_numbers = #tpu.dot_dimension_numbers<[1], [0], [0], [1], [0, 0, 1, 1], [], []>} : vector<8x128xf32>, vector<128x384xf32>, vector<8x384xf32> -> vector<8x384xf32>
    %725 = vector.broadcast %511 : vector<1x384xf32> to vector<8x384xf32>
    %726 = arith.addf %724, %725 : vector<8x384xf32>
    %727 = vector.extract_strided_slice %723 {offsets = [0, 0], sizes = [8, 128], strides = [1, 1]} : vector<8x384xf32> to vector<8x128xf32>
    %728 = vector.extract_strided_slice %726 {offsets = [0, 0], sizes = [8, 128], strides = [1, 1]} : vector<8x384xf32> to vector<8x128xf32>
    %729 = arith.addf %727, %728 : vector<8x128xf32>
    %730 = arith.negf %729 : vector<8x128xf32>
    %731 = math.exp %730 : vector<8x128xf32>
    %cst_128 = arith.constant 1.000000e+00 : f32
    %732 = vector.broadcast %cst_128 : f32 to vector<8x128xf32>
    %733 = arith.addf %732, %731 : vector<8x128xf32>
    %734 = arith.divf %732, %733 : vector<8x128xf32>
    %735 = vector.extract_strided_slice %723 {offsets = [0, 128], sizes = [8, 128], strides = [1, 1]} : vector<8x384xf32> to vector<8x128xf32>
    %736 = vector.extract_strided_slice %726 {offsets = [0, 128], sizes = [8, 128], strides = [1, 1]} : vector<8x384xf32> to vector<8x128xf32>
    %737 = arith.addf %735, %736 : vector<8x128xf32>
    %738 = arith.negf %737 : vector<8x128xf32>
    %739 = math.exp %738 : vector<8x128xf32>
    %cst_129 = arith.constant 1.000000e+00 : f32
    %740 = vector.broadcast %cst_129 : f32 to vector<8x128xf32>
    %741 = arith.addf %740, %739 : vector<8x128xf32>
    %742 = arith.divf %740, %741 : vector<8x128xf32>
    %743 = vector.extract_strided_slice %723 {offsets = [0, 256], sizes = [8, 128], strides = [1, 1]} : vector<8x384xf32> to vector<8x128xf32>
    %744 = vector.extract_strided_slice %726 {offsets = [0, 256], sizes = [8, 128], strides = [1, 1]} : vector<8x384xf32> to vector<8x128xf32>
    %745 = arith.mulf %734, %744 : vector<8x128xf32>
    %746 = arith.addf %743, %745 : vector<8x128xf32>
    %747 = math.tanh %746 : vector<8x128xf32>
    %cst_130 = arith.constant 1.000000e+00 : f32
    %748 = vector.broadcast %cst_130 : f32 to vector<8x128xf32>
    %749 = arith.subf %748, %742 : vector<8x128xf32>
    %750 = arith.mulf %749, %747 : vector<8x128xf32>
    %751 = arith.mulf %742, %722 : vector<8x128xf32>
    %752 = arith.addf %750, %751 : vector<8x128xf32>
    %753 = tpu.concatenate %542, %572, %602, %632, %662, %692, %722, %752 in 0 : vector<8x128xf32>, vector<8x128xf32>, vector<8x128xf32>, vector<8x128xf32>, vector<8x128xf32>, vector<8x128xf32>, vector<8x128xf32>, vector<8x128xf32> -> vector<64x128xf32>
    %c0_131 = arith.constant 0 : index
    %c0_132 = arith.constant 0 : index
    %754 = vector.load %arg14[%c0_131, %c0_132] : memref<128x384xf32, #tpu.memory_space<vmem>>, vector<128x384xf32>
    %c0_133 = arith.constant 0 : index
    %c0_134 = arith.constant 0 : index
    %755 = vector.load %arg16[%c0_133, %c0_134] : memref<1x384xf32, #tpu.memory_space<vmem>>, vector<1x384xf32>
    %cst_135 = arith.constant 0.000000e+00 : f32
    %756 = vector.broadcast %cst_135 : f32 to vector<8x128xf32>
    %757 = vector.extract_strided_slice %509 {offsets = [56, 0], sizes = [8, 384], strides = [1, 1]} : vector<64x384xf32> to vector<8x384xf32>
    %cst_136 = arith.constant dense<0.000000e+00> : vector<8x384xf32>
    %758 = tpu.matmul %756, %754, %cst_136 {dimension_numbers = #tpu.dot_dimension_numbers<[1], [0], [0], [1], [0, 0, 1, 1], [], []>} : vector<8x128xf32>, vector<128x384xf32>, vector<8x384xf32> -> vector<8x384xf32>
    %759 = vector.broadcast %755 : vector<1x384xf32> to vector<8x384xf32>
    %760 = arith.addf %758, %759 : vector<8x384xf32>
    %761 = vector.extract_strided_slice %757 {offsets = [0, 0], sizes = [8, 128], strides = [1, 1]} : vector<8x384xf32> to vector<8x128xf32>
    %762 = vector.extract_strided_slice %760 {offsets = [0, 0], sizes = [8, 128], strides = [1, 1]} : vector<8x384xf32> to vector<8x128xf32>
    %763 = arith.addf %761, %762 : vector<8x128xf32>
    %764 = arith.negf %763 : vector<8x128xf32>
    %765 = math.exp %764 : vector<8x128xf32>
    %cst_137 = arith.constant 1.000000e+00 : f32
    %766 = vector.broadcast %cst_137 : f32 to vector<8x128xf32>
    %767 = arith.addf %766, %765 : vector<8x128xf32>
    %768 = arith.divf %766, %767 : vector<8x128xf32>
    %769 = vector.extract_strided_slice %757 {offsets = [0, 128], sizes = [8, 128], strides = [1, 1]} : vector<8x384xf32> to vector<8x128xf32>
    %770 = vector.extract_strided_slice %760 {offsets = [0, 128], sizes = [8, 128], strides = [1, 1]} : vector<8x384xf32> to vector<8x128xf32>
    %771 = arith.addf %769, %770 : vector<8x128xf32>
    %772 = arith.negf %771 : vector<8x128xf32>
    %773 = math.exp %772 : vector<8x128xf32>
    %cst_138 = arith.constant 1.000000e+00 : f32
    %774 = vector.broadcast %cst_138 : f32 to vector<8x128xf32>
    %775 = arith.addf %774, %773 : vector<8x128xf32>
    %776 = arith.divf %774, %775 : vector<8x128xf32>
    %777 = vector.extract_strided_slice %757 {offsets = [0, 256], sizes = [8, 128], strides = [1, 1]} : vector<8x384xf32> to vector<8x128xf32>
    %778 = vector.extract_strided_slice %760 {offsets = [0, 256], sizes = [8, 128], strides = [1, 1]} : vector<8x384xf32> to vector<8x128xf32>
    %779 = arith.mulf %768, %778 : vector<8x128xf32>
    %780 = arith.addf %777, %779 : vector<8x128xf32>
    %781 = math.tanh %780 : vector<8x128xf32>
    %cst_139 = arith.constant 1.000000e+00 : f32
    %782 = vector.broadcast %cst_139 : f32 to vector<8x128xf32>
    %783 = arith.subf %782, %776 : vector<8x128xf32>
    %784 = arith.mulf %783, %781 : vector<8x128xf32>
    %785 = arith.mulf %776, %756 : vector<8x128xf32>
    %786 = arith.addf %784, %785 : vector<8x128xf32>
    %787 = vector.extract_strided_slice %509 {offsets = [48, 0], sizes = [8, 384], strides = [1, 1]} : vector<64x384xf32> to vector<8x384xf32>
    %cst_140 = arith.constant dense<0.000000e+00> : vector<8x384xf32>
    %788 = tpu.matmul %786, %754, %cst_140 {dimension_numbers = #tpu.dot_dimension_numbers<[1], [0], [0], [1], [0, 0, 1, 1], [], []>} : vector<8x128xf32>, vector<128x384xf32>, vector<8x384xf32> -> vector<8x384xf32>
    %789 = vector.broadcast %755 : vector<1x384xf32> to vector<8x384xf32>
    %790 = arith.addf %788, %789 : vector<8x384xf32>
    %791 = vector.extract_strided_slice %787 {offsets = [0, 0], sizes = [8, 128], strides = [1, 1]} : vector<8x384xf32> to vector<8x128xf32>
    %792 = vector.extract_strided_slice %790 {offsets = [0, 0], sizes = [8, 128], strides = [1, 1]} : vector<8x384xf32> to vector<8x128xf32>
    %793 = arith.addf %791, %792 : vector<8x128xf32>
    %794 = arith.negf %793 : vector<8x128xf32>
    %795 = math.exp %794 : vector<8x128xf32>
    %cst_141 = arith.constant 1.000000e+00 : f32
    %796 = vector.broadcast %cst_141 : f32 to vector<8x128xf32>
    %797 = arith.addf %796, %795 : vector<8x128xf32>
    %798 = arith.divf %796, %797 : vector<8x128xf32>
    %799 = vector.extract_strided_slice %787 {offsets = [0, 128], sizes = [8, 128], strides = [1, 1]} : vector<8x384xf32> to vector<8x128xf32>
    %800 = vector.extract_strided_slice %790 {offsets = [0, 128], sizes = [8, 128], strides = [1, 1]} : vector<8x384xf32> to vector<8x128xf32>
    %801 = arith.addf %799, %800 : vector<8x128xf32>
    %802 = arith.negf %801 : vector<8x128xf32>
    %803 = math.exp %802 : vector<8x128xf32>
    %cst_142 = arith.constant 1.000000e+00 : f32
    %804 = vector.broadcast %cst_142 : f32 to vector<8x128xf32>
    %805 = arith.addf %804, %803 : vector<8x128xf32>
    %806 = arith.divf %804, %805 : vector<8x128xf32>
    %807 = vector.extract_strided_slice %787 {offsets = [0, 256], sizes = [8, 128], strides = [1, 1]} : vector<8x384xf32> to vector<8x128xf32>
    %808 = vector.extract_strided_slice %790 {offsets = [0, 256], sizes = [8, 128], strides = [1, 1]} : vector<8x384xf32> to vector<8x128xf32>
    %809 = arith.mulf %798, %808 : vector<8x128xf32>
    %810 = arith.addf %807, %809 : vector<8x128xf32>
    %811 = math.tanh %810 : vector<8x128xf32>
    %cst_143 = arith.constant 1.000000e+00 : f32
    %812 = vector.broadcast %cst_143 : f32 to vector<8x128xf32>
    %813 = arith.subf %812, %806 : vector<8x128xf32>
    %814 = arith.mulf %813, %811 : vector<8x128xf32>
    %815 = arith.mulf %806, %786 : vector<8x128xf32>
    %816 = arith.addf %814, %815 : vector<8x128xf32>
    %817 = vector.extract_strided_slice %509 {offsets = [40, 0], sizes = [8, 384], strides = [1, 1]} : vector<64x384xf32> to vector<8x384xf32>
    %cst_144 = arith.constant dense<0.000000e+00> : vector<8x384xf32>
    %818 = tpu.matmul %816, %754, %cst_144 {dimension_numbers = #tpu.dot_dimension_numbers<[1], [0], [0], [1], [0, 0, 1, 1], [], []>} : vector<8x128xf32>, vector<128x384xf32>, vector<8x384xf32> -> vector<8x384xf32>
    %819 = vector.broadcast %755 : vector<1x384xf32> to vector<8x384xf32>
    %820 = arith.addf %818, %819 : vector<8x384xf32>
    %821 = vector.extract_strided_slice %817 {offsets = [0, 0], sizes = [8, 128], strides = [1, 1]} : vector<8x384xf32> to vector<8x128xf32>
    %822 = vector.extract_strided_slice %820 {offsets = [0, 0], sizes = [8, 128], strides = [1, 1]} : vector<8x384xf32> to vector<8x128xf32>
    %823 = arith.addf %821, %822 : vector<8x128xf32>
    %824 = arith.negf %823 : vector<8x128xf32>
    %825 = math.exp %824 : vector<8x128xf32>
    %cst_145 = arith.constant 1.000000e+00 : f32
    %826 = vector.broadcast %cst_145 : f32 to vector<8x128xf32>
    %827 = arith.addf %826, %825 : vector<8x128xf32>
    %828 = arith.divf %826, %827 : vector<8x128xf32>
    %829 = vector.extract_strided_slice %817 {offsets = [0, 128], sizes = [8, 128], strides = [1, 1]} : vector<8x384xf32> to vector<8x128xf32>
    %830 = vector.extract_strided_slice %820 {offsets = [0, 128], sizes = [8, 128], strides = [1, 1]} : vector<8x384xf32> to vector<8x128xf32>
    %831 = arith.addf %829, %830 : vector<8x128xf32>
    %832 = arith.negf %831 : vector<8x128xf32>
    %833 = math.exp %832 : vector<8x128xf32>
    %cst_146 = arith.constant 1.000000e+00 : f32
    %834 = vector.broadcast %cst_146 : f32 to vector<8x128xf32>
    %835 = arith.addf %834, %833 : vector<8x128xf32>
    %836 = arith.divf %834, %835 : vector<8x128xf32>
    %837 = vector.extract_strided_slice %817 {offsets = [0, 256], sizes = [8, 128], strides = [1, 1]} : vector<8x384xf32> to vector<8x128xf32>
    %838 = vector.extract_strided_slice %820 {offsets = [0, 256], sizes = [8, 128], strides = [1, 1]} : vector<8x384xf32> to vector<8x128xf32>
    %839 = arith.mulf %828, %838 : vector<8x128xf32>
    %840 = arith.addf %837, %839 : vector<8x128xf32>
    %841 = math.tanh %840 : vector<8x128xf32>
    %cst_147 = arith.constant 1.000000e+00 : f32
    %842 = vector.broadcast %cst_147 : f32 to vector<8x128xf32>
    %843 = arith.subf %842, %836 : vector<8x128xf32>
    %844 = arith.mulf %843, %841 : vector<8x128xf32>
    %845 = arith.mulf %836, %816 : vector<8x128xf32>
    %846 = arith.addf %844, %845 : vector<8x128xf32>
    %847 = vector.extract_strided_slice %509 {offsets = [32, 0], sizes = [8, 384], strides = [1, 1]} : vector<64x384xf32> to vector<8x384xf32>
    %cst_148 = arith.constant dense<0.000000e+00> : vector<8x384xf32>
    %848 = tpu.matmul %846, %754, %cst_148 {dimension_numbers = #tpu.dot_dimension_numbers<[1], [0], [0], [1], [0, 0, 1, 1], [], []>} : vector<8x128xf32>, vector<128x384xf32>, vector<8x384xf32> -> vector<8x384xf32>
    %849 = vector.broadcast %755 : vector<1x384xf32> to vector<8x384xf32>
    %850 = arith.addf %848, %849 : vector<8x384xf32>
    %851 = vector.extract_strided_slice %847 {offsets = [0, 0], sizes = [8, 128], strides = [1, 1]} : vector<8x384xf32> to vector<8x128xf32>
    %852 = vector.extract_strided_slice %850 {offsets = [0, 0], sizes = [8, 128], strides = [1, 1]} : vector<8x384xf32> to vector<8x128xf32>
    %853 = arith.addf %851, %852 : vector<8x128xf32>
    %854 = arith.negf %853 : vector<8x128xf32>
    %855 = math.exp %854 : vector<8x128xf32>
    %cst_149 = arith.constant 1.000000e+00 : f32
    %856 = vector.broadcast %cst_149 : f32 to vector<8x128xf32>
    %857 = arith.addf %856, %855 : vector<8x128xf32>
    %858 = arith.divf %856, %857 : vector<8x128xf32>
    %859 = vector.extract_strided_slice %847 {offsets = [0, 128], sizes = [8, 128], strides = [1, 1]} : vector<8x384xf32> to vector<8x128xf32>
    %860 = vector.extract_strided_slice %850 {offsets = [0, 128], sizes = [8, 128], strides = [1, 1]} : vector<8x384xf32> to vector<8x128xf32>
    %861 = arith.addf %859, %860 : vector<8x128xf32>
    %862 = arith.negf %861 : vector<8x128xf32>
    %863 = math.exp %862 : vector<8x128xf32>
    %cst_150 = arith.constant 1.000000e+00 : f32
    %864 = vector.broadcast %cst_150 : f32 to vector<8x128xf32>
    %865 = arith.addf %864, %863 : vector<8x128xf32>
    %866 = arith.divf %864, %865 : vector<8x128xf32>
    %867 = vector.extract_strided_slice %847 {offsets = [0, 256], sizes = [8, 128], strides = [1, 1]} : vector<8x384xf32> to vector<8x128xf32>
    %868 = vector.extract_strided_slice %850 {offsets = [0, 256], sizes = [8, 128], strides = [1, 1]} : vector<8x384xf32> to vector<8x128xf32>
    %869 = arith.mulf %858, %868 : vector<8x128xf32>
    %870 = arith.addf %867, %869 : vector<8x128xf32>
    %871 = math.tanh %870 : vector<8x128xf32>
    %cst_151 = arith.constant 1.000000e+00 : f32
    %872 = vector.broadcast %cst_151 : f32 to vector<8x128xf32>
    %873 = arith.subf %872, %866 : vector<8x128xf32>
    %874 = arith.mulf %873, %871 : vector<8x128xf32>
    %875 = arith.mulf %866, %846 : vector<8x128xf32>
    %876 = arith.addf %874, %875 : vector<8x128xf32>
    %877 = vector.extract_strided_slice %509 {offsets = [24, 0], sizes = [8, 384], strides = [1, 1]} : vector<64x384xf32> to vector<8x384xf32>
    %cst_152 = arith.constant dense<0.000000e+00> : vector<8x384xf32>
    %878 = tpu.matmul %876, %754, %cst_152 {dimension_numbers = #tpu.dot_dimension_numbers<[1], [0], [0], [1], [0, 0, 1, 1], [], []>} : vector<8x128xf32>, vector<128x384xf32>, vector<8x384xf32> -> vector<8x384xf32>
    %879 = vector.broadcast %755 : vector<1x384xf32> to vector<8x384xf32>
    %880 = arith.addf %878, %879 : vector<8x384xf32>
    %881 = vector.extract_strided_slice %877 {offsets = [0, 0], sizes = [8, 128], strides = [1, 1]} : vector<8x384xf32> to vector<8x128xf32>
    %882 = vector.extract_strided_slice %880 {offsets = [0, 0], sizes = [8, 128], strides = [1, 1]} : vector<8x384xf32> to vector<8x128xf32>
    %883 = arith.addf %881, %882 : vector<8x128xf32>
    %884 = arith.negf %883 : vector<8x128xf32>
    %885 = math.exp %884 : vector<8x128xf32>
    %cst_153 = arith.constant 1.000000e+00 : f32
    %886 = vector.broadcast %cst_153 : f32 to vector<8x128xf32>
    %887 = arith.addf %886, %885 : vector<8x128xf32>
    %888 = arith.divf %886, %887 : vector<8x128xf32>
    %889 = vector.extract_strided_slice %877 {offsets = [0, 128], sizes = [8, 128], strides = [1, 1]} : vector<8x384xf32> to vector<8x128xf32>
    %890 = vector.extract_strided_slice %880 {offsets = [0, 128], sizes = [8, 128], strides = [1, 1]} : vector<8x384xf32> to vector<8x128xf32>
    %891 = arith.addf %889, %890 : vector<8x128xf32>
    %892 = arith.negf %891 : vector<8x128xf32>
    %893 = math.exp %892 : vector<8x128xf32>
    %cst_154 = arith.constant 1.000000e+00 : f32
    %894 = vector.broadcast %cst_154 : f32 to vector<8x128xf32>
    %895 = arith.addf %894, %893 : vector<8x128xf32>
    %896 = arith.divf %894, %895 : vector<8x128xf32>
    %897 = vector.extract_strided_slice %877 {offsets = [0, 256], sizes = [8, 128], strides = [1, 1]} : vector<8x384xf32> to vector<8x128xf32>
    %898 = vector.extract_strided_slice %880 {offsets = [0, 256], sizes = [8, 128], strides = [1, 1]} : vector<8x384xf32> to vector<8x128xf32>
    %899 = arith.mulf %888, %898 : vector<8x128xf32>
    %900 = arith.addf %897, %899 : vector<8x128xf32>
    %901 = math.tanh %900 : vector<8x128xf32>
    %cst_155 = arith.constant 1.000000e+00 : f32
    %902 = vector.broadcast %cst_155 : f32 to vector<8x128xf32>
    %903 = arith.subf %902, %896 : vector<8x128xf32>
    %904 = arith.mulf %903, %901 : vector<8x128xf32>
    %905 = arith.mulf %896, %876 : vector<8x128xf32>
    %906 = arith.addf %904, %905 : vector<8x128xf32>
    %907 = vector.extract_strided_slice %509 {offsets = [16, 0], sizes = [8, 384], strides = [1, 1]} : vector<64x384xf32> to vector<8x384xf32>
    %cst_156 = arith.constant dense<0.000000e+00> : vector<8x384xf32>
    %908 = tpu.matmul %906, %754, %cst_156 {dimension_numbers = #tpu.dot_dimension_numbers<[1], [0], [0], [1], [0, 0, 1, 1], [], []>} : vector<8x128xf32>, vector<128x384xf32>, vector<8x384xf32> -> vector<8x384xf32>
    %909 = vector.broadcast %755 : vector<1x384xf32> to vector<8x384xf32>
    %910 = arith.addf %908, %909 : vector<8x384xf32>
    %911 = vector.extract_strided_slice %907 {offsets = [0, 0], sizes = [8, 128], strides = [1, 1]} : vector<8x384xf32> to vector<8x128xf32>
    %912 = vector.extract_strided_slice %910 {offsets = [0, 0], sizes = [8, 128], strides = [1, 1]} : vector<8x384xf32> to vector<8x128xf32>
    %913 = arith.addf %911, %912 : vector<8x128xf32>
    %914 = arith.negf %913 : vector<8x128xf32>
    %915 = math.exp %914 : vector<8x128xf32>
    %cst_157 = arith.constant 1.000000e+00 : f32
    %916 = vector.broadcast %cst_157 : f32 to vector<8x128xf32>
    %917 = arith.addf %916, %915 : vector<8x128xf32>
    %918 = arith.divf %916, %917 : vector<8x128xf32>
    %919 = vector.extract_strided_slice %907 {offsets = [0, 128], sizes = [8, 128], strides = [1, 1]} : vector<8x384xf32> to vector<8x128xf32>
    %920 = vector.extract_strided_slice %910 {offsets = [0, 128], sizes = [8, 128], strides = [1, 1]} : vector<8x384xf32> to vector<8x128xf32>
    %921 = arith.addf %919, %920 : vector<8x128xf32>
    %922 = arith.negf %921 : vector<8x128xf32>
    %923 = math.exp %922 : vector<8x128xf32>
    %cst_158 = arith.constant 1.000000e+00 : f32
    %924 = vector.broadcast %cst_158 : f32 to vector<8x128xf32>
    %925 = arith.addf %924, %923 : vector<8x128xf32>
    %926 = arith.divf %924, %925 : vector<8x128xf32>
    %927 = vector.extract_strided_slice %907 {offsets = [0, 256], sizes = [8, 128], strides = [1, 1]} : vector<8x384xf32> to vector<8x128xf32>
    %928 = vector.extract_strided_slice %910 {offsets = [0, 256], sizes = [8, 128], strides = [1, 1]} : vector<8x384xf32> to vector<8x128xf32>
    %929 = arith.mulf %918, %928 : vector<8x128xf32>
    %930 = arith.addf %927, %929 : vector<8x128xf32>
    %931 = math.tanh %930 : vector<8x128xf32>
    %cst_159 = arith.constant 1.000000e+00 : f32
    %932 = vector.broadcast %cst_159 : f32 to vector<8x128xf32>
    %933 = arith.subf %932, %926 : vector<8x128xf32>
    %934 = arith.mulf %933, %931 : vector<8x128xf32>
    %935 = arith.mulf %926, %906 : vector<8x128xf32>
    %936 = arith.addf %934, %935 : vector<8x128xf32>
    %937 = vector.extract_strided_slice %509 {offsets = [8, 0], sizes = [8, 384], strides = [1, 1]} : vector<64x384xf32> to vector<8x384xf32>
    %cst_160 = arith.constant dense<0.000000e+00> : vector<8x384xf32>
    %938 = tpu.matmul %936, %754, %cst_160 {dimension_numbers = #tpu.dot_dimension_numbers<[1], [0], [0], [1], [0, 0, 1, 1], [], []>} : vector<8x128xf32>, vector<128x384xf32>, vector<8x384xf32> -> vector<8x384xf32>
    %939 = vector.broadcast %755 : vector<1x384xf32> to vector<8x384xf32>
    %940 = arith.addf %938, %939 : vector<8x384xf32>
    %941 = vector.extract_strided_slice %937 {offsets = [0, 0], sizes = [8, 128], strides = [1, 1]} : vector<8x384xf32> to vector<8x128xf32>
    %942 = vector.extract_strided_slice %940 {offsets = [0, 0], sizes = [8, 128], strides = [1, 1]} : vector<8x384xf32> to vector<8x128xf32>
    %943 = arith.addf %941, %942 : vector<8x128xf32>
    %944 = arith.negf %943 : vector<8x128xf32>
    %945 = math.exp %944 : vector<8x128xf32>
    %cst_161 = arith.constant 1.000000e+00 : f32
    %946 = vector.broadcast %cst_161 : f32 to vector<8x128xf32>
    %947 = arith.addf %946, %945 : vector<8x128xf32>
    %948 = arith.divf %946, %947 : vector<8x128xf32>
    %949 = vector.extract_strided_slice %937 {offsets = [0, 128], sizes = [8, 128], strides = [1, 1]} : vector<8x384xf32> to vector<8x128xf32>
    %950 = vector.extract_strided_slice %940 {offsets = [0, 128], sizes = [8, 128], strides = [1, 1]} : vector<8x384xf32> to vector<8x128xf32>
    %951 = arith.addf %949, %950 : vector<8x128xf32>
    %952 = arith.negf %951 : vector<8x128xf32>
    %953 = math.exp %952 : vector<8x128xf32>
    %cst_162 = arith.constant 1.000000e+00 : f32
    %954 = vector.broadcast %cst_162 : f32 to vector<8x128xf32>
    %955 = arith.addf %954, %953 : vector<8x128xf32>
    %956 = arith.divf %954, %955 : vector<8x128xf32>
    %957 = vector.extract_strided_slice %937 {offsets = [0, 256], sizes = [8, 128], strides = [1, 1]} : vector<8x384xf32> to vector<8x128xf32>
    %958 = vector.extract_strided_slice %940 {offsets = [0, 256], sizes = [8, 128], strides = [1, 1]} : vector<8x384xf32> to vector<8x128xf32>
    %959 = arith.mulf %948, %958 : vector<8x128xf32>
    %960 = arith.addf %957, %959 : vector<8x128xf32>
    %961 = math.tanh %960 : vector<8x128xf32>
    %cst_163 = arith.constant 1.000000e+00 : f32
    %962 = vector.broadcast %cst_163 : f32 to vector<8x128xf32>
    %963 = arith.subf %962, %956 : vector<8x128xf32>
    %964 = arith.mulf %963, %961 : vector<8x128xf32>
    %965 = arith.mulf %956, %936 : vector<8x128xf32>
    %966 = arith.addf %964, %965 : vector<8x128xf32>
    %967 = vector.extract_strided_slice %509 {offsets = [0, 0], sizes = [8, 384], strides = [1, 1]} : vector<64x384xf32> to vector<8x384xf32>
    %cst_164 = arith.constant dense<0.000000e+00> : vector<8x384xf32>
    %968 = tpu.matmul %966, %754, %cst_164 {dimension_numbers = #tpu.dot_dimension_numbers<[1], [0], [0], [1], [0, 0, 1, 1], [], []>} : vector<8x128xf32>, vector<128x384xf32>, vector<8x384xf32> -> vector<8x384xf32>
    %969 = vector.broadcast %755 : vector<1x384xf32> to vector<8x384xf32>
    %970 = arith.addf %968, %969 : vector<8x384xf32>
    %971 = vector.extract_strided_slice %967 {offsets = [0, 0], sizes = [8, 128], strides = [1, 1]} : vector<8x384xf32> to vector<8x128xf32>
    %972 = vector.extract_strided_slice %970 {offsets = [0, 0], sizes = [8, 128], strides = [1, 1]} : vector<8x384xf32> to vector<8x128xf32>
    %973 = arith.addf %971, %972 : vector<8x128xf32>
    %974 = arith.negf %973 : vector<8x128xf32>
    %975 = math.exp %974 : vector<8x128xf32>
    %cst_165 = arith.constant 1.000000e+00 : f32
    %976 = vector.broadcast %cst_165 : f32 to vector<8x128xf32>
    %977 = arith.addf %976, %975 : vector<8x128xf32>
    %978 = arith.divf %976, %977 : vector<8x128xf32>
    %979 = vector.extract_strided_slice %967 {offsets = [0, 128], sizes = [8, 128], strides = [1, 1]} : vector<8x384xf32> to vector<8x128xf32>
    %980 = vector.extract_strided_slice %970 {offsets = [0, 128], sizes = [8, 128], strides = [1, 1]} : vector<8x384xf32> to vector<8x128xf32>
    %981 = arith.addf %979, %980 : vector<8x128xf32>
    %982 = arith.negf %981 : vector<8x128xf32>
    %983 = math.exp %982 : vector<8x128xf32>
    %cst_166 = arith.constant 1.000000e+00 : f32
    %984 = vector.broadcast %cst_166 : f32 to vector<8x128xf32>
    %985 = arith.addf %984, %983 : vector<8x128xf32>
    %986 = arith.divf %984, %985 : vector<8x128xf32>
    %987 = vector.extract_strided_slice %967 {offsets = [0, 256], sizes = [8, 128], strides = [1, 1]} : vector<8x384xf32> to vector<8x128xf32>
    %988 = vector.extract_strided_slice %970 {offsets = [0, 256], sizes = [8, 128], strides = [1, 1]} : vector<8x384xf32> to vector<8x128xf32>
    %989 = arith.mulf %978, %988 : vector<8x128xf32>
    %990 = arith.addf %987, %989 : vector<8x128xf32>
    %991 = math.tanh %990 : vector<8x128xf32>
    %cst_167 = arith.constant 1.000000e+00 : f32
    %992 = vector.broadcast %cst_167 : f32 to vector<8x128xf32>
    %993 = arith.subf %992, %986 : vector<8x128xf32>
    %994 = arith.mulf %993, %991 : vector<8x128xf32>
    %995 = arith.mulf %986, %966 : vector<8x128xf32>
    %996 = arith.addf %994, %995 : vector<8x128xf32>
    %997 = tpu.concatenate %996, %966, %936, %906, %876, %846, %816, %786 in 0 : vector<8x128xf32>, vector<8x128xf32>, vector<8x128xf32>, vector<8x128xf32>, vector<8x128xf32>, vector<8x128xf32>, vector<8x128xf32>, vector<8x128xf32> -> vector<64x128xf32>
    %998 = tpu.concatenate %753, %997 in 1 : vector<64x128xf32>, vector<64x128xf32> -> vector<64x256xf32>
    %c0_168 = arith.constant 0 : index
    %c0_169 = arith.constant 0 : index
    %999 = vector.load %arg17[%c0_168, %c0_169] : memref<256x4xf32, #tpu.memory_space<vmem>>, vector<256x4xf32>
    %cst_170 = arith.constant dense<0.000000e+00> : vector<64x4xf32>
    %1000 = tpu.matmul %998, %999, %cst_170 {dimension_numbers = #tpu.dot_dimension_numbers<[1], [0], [0], [1], [0, 0, 1, 1], [], []>} : vector<64x256xf32>, vector<256x4xf32>, vector<64x4xf32> -> vector<64x4xf32>
    %c0_171 = arith.constant 0 : index
    %c0_172 = arith.constant 0 : index
    %1001 = vector.load %arg18[%c0_171, %c0_172] : memref<1x4xf32, #tpu.memory_space<vmem>>, vector<1x4xf32>
    %1002 = vector.broadcast %1001 : vector<1x4xf32> to vector<64x4xf32>
    %1003 = arith.addf %1000, %1002 : vector<64x4xf32>
    %c0_173 = arith.constant 0 : index
    %c0_174 = arith.constant 0 : index
    %1004 = vector.load %arg19[%c0_173, %c0_174] : memref<64x4xf32, #tpu.memory_space<vmem>>, vector<64x4xf32>
    tpu.vector_store %arg19[%c0_173, %c0_174], %1003 {strides = array<i32>} : memref<64x4xf32, #tpu.memory_space<vmem>>, vector<64x4xf32>,
    return
  }
}

</mosaic_0001>

<llo_original>
// kernel: model_bigru_forward.1
$region0: #{model_bigru_forward.1}
  #allocation0 [shape = 'u32[]', space=smem, size = 0x4, offset = 0x4, fixed_abs, tag = 'smem constant byte address 0x4 - core index']
  #allocation1 [shape = 'u32[144,128]{1,0:T(1,128)}', space=vmem, size = 0x12000, scoped, tag = 'internal scratch']
  %s0 = inlined_call_operand.vmem [shape: f32[64,16], index: 0, kind: input, shape index: {}]
  %s1 = inlined_call_operand.hbm [shape: f32[16,384], index: 1, kind: input, shape index: {}]
  %s2 = inlined_call_operand.vmem [shape: f32[128,384], index: 2, kind: input, shape index: {}]
  %s3 = inlined_call_operand.hbm [shape: f32[1,384], index: 3, kind: input, shape index: {}]
  %s4 = inlined_call_operand.hbm [shape: f32[1,384], index: 4, kind: input, shape index: {}]
  %s5 = inlined_call_operand.hbm [shape: f32[16,384], index: 5, kind: input, shape index: {}]
  %s6 = inlined_call_operand.hbm [shape: f32[128,384], index: 6, kind: input, shape index: {}]
  %s7 = inlined_call_operand.vmem [shape: f32[1,384], index: 7, kind: input, shape index: {}]
  %s8 = inlined_call_operand.vmem [shape: f32[1,384], index: 8, kind: input, shape index: {}]
  %s9 = inlined_call_operand.hbm [shape: f32[256,384], index: 9, kind: input, shape index: {}]
  %s10 = inlined_call_operand.hbm [shape: f32[128,384], index: 10, kind: input, shape index: {}]
  %s11 = inlined_call_operand.vmem [shape: f32[1,384], index: 11, kind: input, shape index: {}]
  %s12 = inlined_call_operand.vmem [shape: f32[1,384], index: 12, kind: input, shape index: {}]
  %s13 = inlined_call_operand.hbm [shape: f32[256,384], index: 13, kind: input, shape index: {}]
  %s14 = inlined_call_operand.hbm [shape: f32[128,384], index: 14, kind: input, shape index: {}]
  %s15 = inlined_call_operand.vmem [shape: f32[1,384], index: 15, kind: input, shape index: {}]
  %s16 = inlined_call_operand.vmem [shape: f32[1,384], index: 16, kind: input, shape index: {}]
  %s17 = inlined_call_operand.vmem [shape: f32[256,4], index: 17, kind: input, shape index: {}]
  %s18 = inlined_call_operand.vmem [shape: f32[1,4], index: 18, kind: input, shape index: {}]
  %s19 = inlined_call_operand.vmem [shape: f32[64,4], index: 19, kind: output, shape index: {}]
  %s20 = sld [smem:[#allocation0]]
  $region122: #{model_bigru_forward.1} parent=0
    _
  %s22 = ssub.s32 1, %s20
  %s23 = scalar_select 0, %s22, %s20
  $region1: #{model_bigru_forward.1} parent=0
    #allocation2 [shape = 'u8[24576]{0}', space=vmem, size = 0x6000, scoped, tag = 'input window, operand 1, single buffered']
    #allocation3 [shape = 's32[1]{0}', space=sflag, size = 0x4, scoped, tag = 'scoped memory for model_bigru_forward.1']
    #allocation4 [shape = 'u8[1536]{0}', space=vmem, size = 0x800, scoped, tag = 'input window, operand 3, single buffered']
    #allocation5 [shape = 's32[1]{0}', space=sflag, size = 0x4, scoped, tag = 'scoped memory for model_bigru_forward.1']
    #allocation6 [shape = 'u8[1536]{0}', space=vmem, size = 0x800, scoped, tag = 'input window, operand 4, single buffered']
    #allocation7 [shape = 'u8[24576]{0}', space=vmem, size = 0x6000, scoped, tag = 'input window, operand 5, single buffered']
    #allocation8 [shape = 's32[1]{0}', space=sflag, size = 0x4, scoped, tag = 'scoped memory for model_bigru_forward.1']
    #allocation9 [shape = 'u8[196608]{0}', space=vmem, size = 0x30000, scoped, tag = 'input window, operand 6, single buffered']
    #allocation10 [shape = 'u8[393216]{0}', space=vmem, size = 0x60000, scoped, tag = 'input window, operand 9, single buffered']
    #allocation11 [shape = 's32[1]{0}', space=sflag, size = 0x4, scoped, tag = 'scoped memory for model_bigru_forward.1']
    #allocation12 [shape = 'u8[196608]{0}', space=vmem, size = 0x30000, scoped, tag = 'input window, operand 10, single buffered']
    #allocation13 [shape = 'u8[393216]{0}', space=vmem, size = 0x60000, scoped, tag = 'input window, operand 13, single buffered']
    #allocation14 [shape = 's32[1]{0}', space=sflag, size = 0x4, scoped, tag = 'scoped memory for model_bigru_forward.1']
    #allocation15 [shape = 'u8[196608]{0}', space=vmem, size = 0x30000, scoped, tag = 'input window, operand 14, single buffered']
    %24 = vsyncpa [#allocation3], 0
    %25 = vsyncpa [#allocation5], 0
    %26 = vsyncpa [#allocation8], 0
    %27 = vsyncpa [#allocation11], 0
    %28 = vsyncpa [#allocation14], 0
    // Predicated region
    $region2: #{model_bigru_forward.1} parent=1 // pred_check
      _
    $region3: #{model_bigru_forward.1} parent=1 // pred_check_branch
      %30 = sbr.rel (0) target = $region5
    $region4: #{model_bigru_forward.1} parent=1 // pred_region
      _
    $region5: #{model_bigru_forward.1} parent=1 // pred_fallthru
      _
    // Predicated region
    $region6: #{model_bigru_forward.1} parent=1 // pred_check
      _
    $region7: #{model_bigru_forward.1} parent=1 // pred_check_branch
      %32 = sbr.rel (0) target = $region9
    $region8: #{model_bigru_forward.1} parent=1 // pred_region
      %s34 = ssub.s32 768, 768
      %35 = vsyncadd [#allocation3], %s34
      %s36 = sshll.u32 [#allocation2], 4
      %s37 = int_to_ptr.vmem [resolvable:$true] %s36
      %42 = dma.hbm_to_vmem [thread:$0]  %s1, 768, %s37, [#allocation3], 384, 384, 24
    $region9: #{model_bigru_forward.1} parent=1 // pred_fallthru
      _
    // Predicated region
    $region10: #{model_bigru_forward.1} parent=1 // pred_check
      _
    $region11: #{model_bigru_forward.1} parent=1 // pred_check_branch
      %44 = sbr.rel (0) target = $region13
    $region12: #{model_bigru_forward.1} parent=1 // pred_region
      _
    $region13: #{model_bigru_forward.1} parent=1 // pred_fallthru
      _
    // Predicated region
    $region14: #{model_bigru_forward.1} parent=1 // pred_check
      _
    $region15: #{model_bigru_forward.1} parent=1 // pred_check_branch
      %46 = sbr.rel (0) target = $region17
    $region16: #{model_bigru_forward.1} parent=1 // pred_region
      %s48 = ssub.s32 48, 48
      %49 = vsyncadd [#allocation5], %s48
      %s51 = sshll.u32 [#allocation4], 4
      %s52 = int_to_ptr.vmem [resolvable:$true] %s51
      %54 = dma.hbm_to_vmem [thread:$0]  %s3, 48, %s52, [#allocation5]
    $region17: #{model_bigru_forward.1} parent=1 // pred_fallthru
      _
    // Predicated region
    $region18: #{model_bigru_forward.1} parent=1 // pred_check
      _
    $region19: #{model_bigru_forward.1} parent=1 // pred_check_branch
      %56 = sbr.rel (0) target = $region21
    $region20: #{model_bigru_forward.1} parent=1 // pred_region
      %s58 = ssub.s32 48, 48
      %59 = vsyncadd [#allocation5], %s58
      %s61 = sshll.u32 [#allocation6], 4
      %s62 = int_to_ptr.vmem [resolvable:$true] %s61
      %64 = dma.hbm_to_vmem [thread:$0]  %s4, 48, %s62, [#allocation5]
    $region21: #{model_bigru_forward.1} parent=1 // pred_fallthru
      _
    // Predicated region
    $region22: #{model_bigru_forward.1} parent=1 // pred_check
      _
    $region23: #{model_bigru_forward.1} parent=1 // pred_check_branch
      %66 = sbr.rel (0) target = $region25
    $region24: #{model_bigru_forward.1} parent=1 // pred_region
      %s68 = ssub.s32 768, 768
      %69 = vsyncadd [#allocation8], %s68
      %s70 = sshll.u32 [#allocation7], 4
      %s71 = int_to_ptr.vmem [resolvable:$true] %s70
      %76 = dma.hbm_to_vmem [thread:$0]  %s5, 768, %s71, [#allocation8], 384, 384, 24
    $region25: #{model_bigru_forward.1} parent=1 // pred_fallthru
      _
    // Predicated region
    $region26: #{model_bigru_forward.1} parent=1 // pred_check
      _
    $region27: #{model_bigru_forward.1} parent=1 // pred_check_branch
      %78 = sbr.rel (0) target = $region29
    $region28: #{model_bigru_forward.1} parent=1 // pred_region
      %s80 = ssub.s32 6144, 6144
      %81 = vsyncadd [#allocation8], %s80
      %s82 = sshll.u32 [#allocation9], 4
      %s83 = int_to_ptr.vmem [resolvable:$true] %s82
      %88 = dma.hbm_to_vmem [thread:$0]  %s6, 6144, %s83, [#allocation8], 384, 384, 24
    $region29: #{model_bigru_forward.1} parent=1 // pred_fallthru
      _
    // Predicated region
    $region30: #{model_bigru_forward.1} parent=1 // pred_check
      _
    $region31: #{model_bigru_forward.1} parent=1 // pred_check_branch
      %90 = sbr.rel (0) target = $region33
    $region32: #{model_bigru_forward.1} parent=1 // pred_region
      _
    $region33: #{model_bigru_forward.1} parent=1 // pred_fallthru
      _
    // Predicated region
    $region34: #{model_bigru_forward.1} parent=1 // pred_check
      _
    $region35: #{model_bigru_forward.1} parent=1 // pred_check_branch
      %92 = sbr.rel (0) target = $region37
    $region36: #{model_bigru_forward.1} parent=1 // pred_region
      _
    $region37: #{model_bigru_forward.1} parent=1 // pred_fallthru
      _
    // Predicated region
    $region38: #{model_bigru_forward.1} parent=1 // pred_check
      _
    $region39: #{model_bigru_forward.1} parent=1 // pred_check_branch
      %94 = sbr.rel (0) target = $region41
    $region40: #{model_bigru_forward.1} parent=1 // pred_region
      %s96 = ssub.s32 12288, 12288
      %97 = vsyncadd [#allocation11], %s96
      %s98 = sshll.u32 [#allocation10], 4
      %s99 = int_to_ptr.vmem [resolvable:$true] %s98
      %104 = dma.hbm_to_vmem [thread:$0]  %s9, 12288, %s99, [#allocation11], 384, 384, 24
    $region41: #{model_bigru_forward.1} parent=1 // pred_fallthru
      _
    // Predicated region
    $region42: #{model_bigru_forward.1} parent=1 // pred_check
      _
    $region43: #{model_bigru_forward.1} parent=1 // pred_check_branch
      %106 = sbr.rel (0) target = $region45
    $region44: #{model_bigru_forward.1} parent=1 // pred_region
      %s108 = ssub.s32 6144, 6144
      %109 = vsyncadd [#allocation11], %s108
      %s110 = sshll.u32 [#allocation12], 4
      %s111 = int_to_ptr.vmem [resolvable:$true] %s110
      %116 = dma.hbm_to_vmem [thread:$0]  %s10, 6144, %s111, [#allocation11], 384, 384, 24
    $region45: #{model_bigru_forward.1} parent=1 // pred_fallthru
      _
    // Predicated region
    $region46: #{model_bigru_forward.1} parent=1 // pred_check
      _
    $region47: #{model_bigru_forward.1} parent=1 // pred_check_branch
      %118 = sbr.rel (0) target = $region49
    $region48: #{model_bigru_forward.1} parent=1 // pred_region
      _
    $region49: #{model_bigru_forward.1} parent=1 // pred_fallthru
      _
    // Predicated region
    $region50: #{model_bigru_forward.1} parent=1 // pred_check
      _
    $region51: #{model_bigru_forward.1} parent=1 // pred_check_branch
      %120 = sbr.rel (0) target = $region53
    $region52: #{model_bigru_forward.1} parent=1 // pred_region
      _
    $region53: #{model_bigru_forward.1} parent=1 // pred_fallthru
      _
    // Predicated region
    $region54: #{model_bigru_forward.1} parent=1 // pred_check
      _
    $region55: #{model_bigru_forward.1} parent=1 // pred_check_branch
      %122 = sbr.rel (0) target = $region57
    $region56: #{model_bigru_forward.1} parent=1 // pred_region
      %s124 = ssub.s32 12288, 12288
      %125 = vsyncadd [#allocation14], %s124
      %s126 = sshll.u32 [#allocation13], 4
      %s127 = int_to_ptr.vmem [resolvable:$true] %s126
      %132 = dma.hbm_to_vmem [thread:$0]  %s13, 12288, %s127, [#allocation14], 384, 384, 24
    $region57: #{model_bigru_forward.1} parent=1 // pred_fallthru
      _
    // Predicated region
    $region58: #{model_bigru_forward.1} parent=1 // pred_check
      _
    $region59: #{model_bigru_forward.1} parent=1 // pred_check_branch
      %134 = sbr.rel (0) target = $region61
    $region60: #{model_bigru_forward.1} parent=1 // pred_region
      %s136 = ssub.s32 6144, 6144
      %137 = vsyncadd [#allocation14], %s136
      %s138 = sshll.u32 [#allocation15], 4
      %s139 = int_to_ptr.vmem [resolvable:$true] %s138
      %144 = dma.hbm_to_vmem [thread:$0]  %s14, 6144, %s139, [#allocation14], 384, 384, 24
    $region61: #{model_bigru_forward.1} parent=1 // pred_fallthru
      _
    // Predicated region
    $region62: #{model_bigru_forward.1} parent=1 // pred_check
      _
    $region63: #{model_bigru_forward.1} parent=1 // pred_check_branch
      %146 = sbr.rel (0) target = $region65
    $region64: #{model_bigru_forward.1} parent=1 // pred_region
      _
    $region65: #{model_bigru_forward.1} parent=1 // pred_fallthru
      _
    // Predicated region
    $region66: #{model_bigru_forward.1} parent=1 // pred_check
      _
    $region67: #{model_bigru_forward.1} parent=1 // pred_check_branch
      %148 = sbr.rel (0) target = $region69
    $region68: #{model_bigru_forward.1} parent=1 // pred_region
      _
    $region69: #{model_bigru_forward.1} parent=1 // pred_fallthru
      _
    // Predicated region
    $region70: #{model_bigru_forward.1} parent=1 // pred_check
      _
    $region71: #{model_bigru_forward.1} parent=1 // pred_check_branch
      %150 = sbr.rel (0) target = $region73
    $region72: #{model_bigru_forward.1} parent=1 // pred_region
      _
    $region73: #{model_bigru_forward.1} parent=1 // pred_fallthru
      _
    // Predicated region
    $region74: #{model_bigru_forward.1} parent=1 // pred_check
      _
    $region75: #{model_bigru_forward.1} parent=1 // pred_check_branch
      %152 = sbr.rel (0) target = $region77
    $region76: #{model_bigru_forward.1} parent=1 // pred_region
      _
    $region77: #{model_bigru_forward.1} parent=1 // pred_fallthru
      _
    // Predicated region
    $region78: #{model_bigru_forward.1} parent=1 // pred_check
      _
    $region79: #{model_bigru_forward.1} parent=1 // pred_check_branch
      %154 = sbr.rel (0) target = $region81
    $region80: #{model_bigru_forward.1} parent=1 // pred_region
      %155 = dma.done [#allocation3], 768
    $region81: #{model_bigru_forward.1} parent=1 // pred_fallthru
      _
    // Predicated region
    $region82: #{model_bigru_forward.1} parent=1 // pred_check
      _
    $region83: #{model_bigru_forward.1} parent=1 // pred_check_branch
      %157 = sbr.rel (0) target = $region85
    $region84: #{model_bigru_forward.1} parent=1 // pred_region
      %158 = dma.done [#allocation5], 48
    $region85: #{model_bigru_forward.1} parent=1 // pred_fallthru
      _
    // Predicated region
    $region86: #{model_bigru_forward.1} parent=1 // pred_check
      _
    $region87: #{model_bigru_forward.1} parent=1 // pred_check_branch
      %160 = sbr.rel (0) target = $region89
    $region88: #{model_bigru_forward.1} parent=1 // pred_region
      %161 = dma.done [#allocation5], 48
    $region89: #{model_bigru_forward.1} parent=1 // pred_fallthru
      _
    // Predicated region
    $region90: #{model_bigru_forward.1} parent=1 // pred_check
      _
    $region91: #{model_bigru_forward.1} parent=1 // pred_check_branch
      %163 = sbr.rel (0) target = $region93
    $region92: #{model_bigru_forward.1} parent=1 // pred_region
      %164 = dma.done [#allocation8], 768
    $region93: #{model_bigru_forward.1} parent=1 // pred_fallthru
      _
    // Predicated region
    $region94: #{model_bigru_forward.1} parent=1 // pred_check
      _
    $region95: #{model_bigru_forward.1} parent=1 // pred_check_branch
      %166 = sbr.rel (0) target = $region97
    $region96: #{model_bigru_forward.1} parent=1 // pred_region
      %167 = dma.done [#allocation8], 6144
    $region97: #{model_bigru_forward.1} parent=1 // pred_fallthru
      _
    // Predicated region
    $region98: #{model_bigru_forward.1} parent=1 // pred_check
      _
    $region99: #{model_bigru_forward.1} parent=1 // pred_check_branch
      %169 = sbr.rel (0) target = $region101
    $region100: #{model_bigru_forward.1} parent=1 // pred_region
      %170 = dma.done [#allocation11], 12288
    $region101: #{model_bigru_forward.1} parent=1 // pred_fallthru
      _
    // Predicated region
    $region102: #{model_bigru_forward.1} parent=1 // pred_check
      _
    $region103: #{model_bigru_forward.1} parent=1 // pred_check_branch
      %172 = sbr.rel (0) target = $region105
    $region104: #{model_bigru_forward.1} parent=1 // pred_region
      %173 = dma.done [#allocation11], 6144
    $region105: #{model_bigru_forward.1} parent=1 // pred_fallthru
      _
    // Predicated region
    $region106: #{model_bigru_forward.1} parent=1 // pred_check
      _
    $region107: #{model_bigru_forward.1} parent=1 // pred_check_branch
      %175 = sbr.rel (0) target = $region109
    $region108: #{model_bigru_forward.1} parent=1 // pred_region
      %176 = dma.done [#allocation14], 12288
    $region109: #{model_bigru_forward.1} parent=1 // pred_fallthru
      _
    // Predicated region
    $region110: #{model_bigru_forward.1} parent=1 // pred_check
      _
    $region111: #{model_bigru_forward.1} parent=1 // pred_check_branch
      %178 = sbr.rel (0) target = $region113
    $region112: #{model_bigru_forward.1} parent=1 // pred_region
      %179 = dma.done [#allocation14], 6144
    $region113: #{model_bigru_forward.1} parent=1 // pred_fallthru
      _
    %v180 = vld [vmem:[%s0] sm:$0xff]
    %v181 = vld [vmem:[%s0 + $0x8] sm:$0xff]
    %v182 = vld [vmem:[%s0 + $0x10] sm:$0xff]
    %v183 = vld [vmem:[%s0 + $0x18] sm:$0xff]
    %v184 = vld [vmem:[%s0 + $0x20] sm:$0xff]
    %v185 = vld [vmem:[%s0 + $0x28] sm:$0xff]
    %v186 = vld [vmem:[%s0 + $0x30] sm:$0xff]
    %v187 = vld [vmem:[%s0 + $0x38] sm:$0xff]
    %v188 = vld [vmem:[#allocation2] sm:$0xff]
    %v189 = vld [vmem:[#allocation2 + $0x8] sm:$0xff]
    %v190 = vld [vmem:[#allocation2 + $0x10] sm:$0xff]
    %v191 = vld [vmem:[#allocation2 + $0x18] sm:$0xff]
    %v192 = vld [vmem:[#allocation2 + $0x20] sm:$0xff]
    %v193 = vld [vmem:[#allocation2 + $0x28] sm:$0xff]
    %v194 = vld [vmem:[#allocation4] sm:$0x7]
    %v196 = vlaneseq
    %v197 = vshrl.u32 %v196, 7
    %v198 = vsub.s32 0, %v197
    %v199 = vrot.slane %v194, %v198
    %v200 = vlaneseq
    %v201 = vshrl.u32 %v200, 7
    %v202 = vsub.s32 1, %v201
    %v203 = vrot.slane %v194, %v202
    %v204 = vlaneseq
    %v205 = vshrl.u32 %v204, 7
    %v206 = vsub.s32 2, %v205
    %v207 = vrot.slane %v194, %v206
    %vm211 = vcmask 130048
    %v213 = vsel %vm211, %v180, 0
    %v216 = vsel %vm211, %v181, 0
    %v219 = vsel %vm211, %v182, 0
    %v222 = vsel %vm211, %v183, 0
    %v225 = vsel %vm211, %v184, 0
    %v228 = vsel %vm211, %v185, 0
    %v231 = vsel %vm211, %v186, 0
    %v234 = vsel %vm211, %v187, 0
    %236 = vmatprep.subr.mxu0 %v189
    %237 = vmatpush1.msra.mxu0 %v188
    %238 = vmatprep.subr.mxu0 %v192
    %239 = vmatpush1.msra.mxu0 %v191
    %240 = vmatprep.subr.mxu0 0.0
    %241 = vmatpush1.msra.mxu0 0.0
    %242 = vmatprep.subr.mxu0 0.0
    %243 = vmatpush1.msra.mxu0 0.0
    %244 = vmatprep.subr.mxu0 0.0
    %245 = vmatpush1.msra.mxu0 0.0
    %246 = vmatprep.subr.mxu0 0.0
    %247 = vmatpush1.msra.mxu0 0.0
    %248 = vmatprep.subr.mxu0 0.0
    %249 = vmatpush1.msra.mxu0 0.0
    %250 = vmatprep.subr.mxu0 0.0
    %251 = vmatpush1.msra.mxu0 0.0
    %252 = vmatprep.subr.mxu0 0.0
    %253 = vmatpush1.msra.mxu0 0.0
    %254 = vmatprep.subr.mxu0 0.0
    %255 = vmatpush1.msra.mxu0 0.0
    %256 = vmatprep.subr.mxu0 0.0
    %257 = vmatpush1.msra.mxu0 0.0
    %258 = vmatprep.subr.mxu0 0.0
    %259 = vmatpush1.msra.mxu0 0.0
    %260 = vmatprep.subr.mxu0 0.0
    %261 = vmatpush1.msra.mxu0 0.0
    %262 = vmatprep.subr.mxu0 0.0
    %263 = vmatpush1.msra.mxu0 0.0
    %264 = vmatprep.subr.mxu0 0.0
    %265 = vmatpush1.msra.mxu0 0.0
    %266 = vmatprep.subr.mxu0 0.0
    %267 = vmatpush1.msra.mxu0 0.0
    %268 = vmatprep.subr.mxu0 0.0
    %269 = vmatpush1.msra.mxu0 0.0
    %270 = vmatprep.subr.mxu0 0.0
    %271 = vmatpush1.msra.mxu0 0.0
    %272 = vmatprep.subr.mxu0 0.0
    %273 = vmatpush1.msra.mxu0 0.0
    %274 = vmatprep.subr.mxu0 0.0
    %275 = vmatpush1.msra.mxu0 0.0
    %276 = vmatprep.subr.mxu0 0.0
    %277 = vmatpush1.msra.mxu0 0.0
    %278 = vmatprep.subr.mxu0 0.0
    %279 = vmatpush1.msra.mxu0 0.0
    %280 = vmatprep.subr.mxu0 0.0
    %281 = vmatpush1.msra.mxu0 0.0
    %282 = vmatprep.subr.mxu0 0.0
    %283 = vmatpush1.msra.mxu0 0.0
    %284 = vmatprep.subr.mxu0 0.0
    %285 = vmatpush1.msra.mxu0 0.0
    %286 = vmatprep.subr.mxu0 0.0
    %287 = vmatpush1.msra.mxu0 0.0
    %288 = vmatprep.subr.mxu0 0.0
    %289 = vmatpush1.msra.mxu0 0.0
    %290 = vmatprep.subr.mxu0 0.0
    %291 = vmatpush1.msra.mxu0 0.0
    %292 = vmatprep.subr.mxu0 0.0
    %293 = vmatpush1.msra.mxu0 0.0
    %294 = vmatprep.subr.mxu0 0.0
    %295 = vmatpush1.msra.mxu0 0.0
    %296 = vmatprep.subr.mxu0 0.0
    %297 = vmatpush1.msra.mxu0 0.0
    %298 = vmatprep.subr.mxu0 0.0
    %299 = vmatpush1.msra.mxu0 0.0
    %300 = vmatprep.mubr.f32.mxu0 0.0
    %301 = vmatmul.mubr.f32.gmra.mrb[0].mxu0 %v213
    %v302 = vpop.f32.mrb[0].mxu0
    %v303 = vadd.f32 %v199, %v302
    %v304 = vpop.f32.mrb[0].mxu0
    %v305 = vadd.f32 %v203, %v304
    %306 = vmatprep.mubr.f32.mxu0 0.0
    %307 = vmatmul.mubr.f32.gmra.mrb[0].mxu0 %v216
    %v308 = vpop.f32.mrb[0].mxu0
    %v309 = vadd.f32 %v199, %v308
    %v310 = vpop.f32.mrb[0].mxu0
    %v311 = vadd.f32 %v203, %v310
    %312 = vmatprep.mubr.f32.mxu0 0.0
    %313 = vmatmul.mubr.f32.gmra.mrb[0].mxu0 %v219
    %v314 = vpop.f32.mrb[0].mxu0
    %v315 = vadd.f32 %v199, %v314
    %v316 = vpop.f32.mrb[0].mxu0
    %v317 = vadd.f32 %v203, %v316
    %318 = vmatprep.mubr.f32.mxu0 0.0
    %319 = vmatmul.mubr.f32.gmra.mrb[0].mxu0 %v222
    %v320 = vpop.f32.mrb[0].mxu0
    %v321 = vadd.f32 %v199, %v320
    %v322 = vpop.f32.mrb[0].mxu0
    %v323 = vadd.f32 %v203, %v322
    %324 = vmatprep.mubr.f32.mxu0 0.0
    %325 = vmatmul.mubr.f32.gmra.mrb[0].mxu0 %v225
    %v326 = vpop.f32.mrb[0].mxu0
    %v327 = vadd.f32 %v199, %v326
    %v328 = vpop.f32.mrb[0].mxu0
    %v329 = vadd.f32 %v203, %v328
    %330 = vmatprep.mubr.f32.mxu0 0.0
    %331 = vmatmul.mubr.f32.gmra.mrb[0].mxu0 %v228
    %v332 = vpop.f32.mrb[0].mxu0
    %v333 = vadd.f32 %v199, %v332
    %v334 = vpop.f32.mrb[0].mxu0
    %v335 = vadd.f32 %v203, %v334
    %336 = vmatprep.mubr.f32.mxu0 0.0
    %337 = vmatmul.mubr.f32.gmra.mrb[0].mxu0 %v231
    %v338 = vpop.f32.mrb[0].mxu0
    %v339 = vadd.f32 %v199, %v338
    %v340 = vpop.f32.mrb[0].mxu0
    %v341 = vadd.f32 %v203, %v340
    %342 = vmatprep.mubr.f32.mxu0 0.0
    %343 = vmatmul.mubr.f32.gmra.mrb[0].mxu0 %v234
    %v344 = vpop.f32.mrb[0].mxu0
    %v345 = vadd.f32 %v199, %v344
    %v346 = vpop.f32.mrb[0].mxu0
    %v347 = vadd.f32 %v203, %v346
    %348 = vdwg.mxu0
    %349 = vmatprep.subr.mxu0 0.0
    %350 = vmatpush1.msra.mxu0 %v190
    %351 = vmatprep.subr.mxu0 0.0
    %352 = vmatpush1.msra.mxu0 %v193
    %353 = vmatprep.subr.mxu0 0.0
    %354 = vmatpush1.msra.mxu0 0.0
    %355 = vmatprep.subr.mxu0 0.0
    %356 = vmatpush1.msra.mxu0 0.0
    %357 = vmatprep.subr.mxu0 0.0
    %358 = vmatpush1.msra.mxu0 0.0
    %359 = vmatprep.subr.mxu0 0.0
    %360 = vmatpush1.msra.mxu0 0.0
    %361 = vmatprep.subr.mxu0 0.0
    %362 = vmatpush1.msra.mxu0 0.0
    %363 = vmatprep.subr.mxu0 0.0
    %364 = vmatpush1.msra.mxu0 0.0
    %365 = vmatprep.subr.mxu0 0.0
    %366 = vmatpush1.msra.mxu0 0.0
    %367 = vmatprep.subr.mxu0 0.0
    %368 = vmatpush1.msra.mxu0 0.0
    %369 = vmatprep.subr.mxu0 0.0
    %370 = vmatpush1.msra.mxu0 0.0
    %371 = vmatprep.subr.mxu0 0.0
    %372 = vmatpush1.msra.mxu0 0.0
    %373 = vmatprep.subr.mxu0 0.0
    %374 = vmatpush1.msra.mxu0 0.0
    %375 = vmatprep.subr.mxu0 0.0
    %376 = vmatpush1.msra.mxu0 0.0
    %377 = vmatprep.subr.mxu0 0.0
    %378 = vmatpush1.msra.mxu0 0.0
    %379 = vmatprep.subr.mxu0 0.0
    %380 = vmatpush1.msra.mxu0 0.0
    %381 = vmatprep.subr.mxu0 0.0
    %382 = vmatpush1.msra.mxu0 0.0
    %383 = vmatprep.subr.mxu0 0.0
    %384 = vmatpush1.msra.mxu0 0.0
    %385 = vmatprep.subr.mxu0 0.0
    %386 = vmatpush1.msra.mxu0 0.0
    %387 = vmatprep.subr.mxu0 0.0
    %388 = vmatpush1.msra.mxu0 0.0
    %389 = vmatprep.subr.mxu0 0.0
    %390 = vmatpush1.msra.mxu0 0.0
    %391 = vmatprep.subr.mxu0 0.0
    %392 = vmatpush1.msra.mxu0 0.0
    %393 = vmatprep.subr.mxu0 0.0
    %394 = vmatpush1.msra.mxu0 0.0
    %395 = vmatprep.subr.mxu0 0.0
    %396 = vmatpush1.msra.mxu0 0.0
    %397 = vmatprep.subr.mxu0 0.0
    %398 = vmatpush1.msra.mxu0 0.0
    %399 = vmatprep.subr.mxu0 0.0
    %400 = vmatpush1.msra.mxu0 0.0
    %401 = vmatprep.subr.mxu0 0.0
    %402 = vmatpush1.msra.mxu0 0.0
    %403 = vmatprep.subr.mxu0 0.0
    %404 = vmatpush1.msra.mxu0 0.0
    %405 = vmatprep.subr.mxu0 0.0
    %406 = vmatpush1.msra.mxu0 0.0
    %407 = vmatprep.subr.mxu0 0.0
    %408 = vmatpush1.msra.mxu0 0.0
    %409 = vmatprep.subr.mxu0 0.0
    %410 = vmatpush1.msra.mxu0 0.0
    %411 = vmatprep.subr.mxu0 0.0
    %412 = vmatpush1.msra.mxu0 0.0
    %413 = vmatprep.mubr.f32.mxu0 0.0
    %414 = vmatmul.mubr.f32.gmra.mrb[0].mxu0 %v213
    %v415 = vpop.f32.mrb[0].mxu0
    %v416 = vadd.f32 %v207, %v415
    %v417 = vpop.f32.mrb[0].mxu0
    %418 = vmatprep.mubr.f32.mxu0 0.0
    %419 = vmatmul.mubr.f32.gmra.mrb[0].mxu0 %v216
    %v420 = vpop.f32.mrb[0].mxu0
    %v421 = vadd.f32 %v207, %v420
    %v422 = vpop.f32.mrb[0].mxu0
    %423 = vmatprep.mubr.f32.mxu0 0.0
    %424 = vmatmul.mubr.f32.gmra.mrb[0].mxu0 %v219
    %v425 = vpop.f32.mrb[0].mxu0
    %v426 = vadd.f32 %v207, %v425
    %v427 = vpop.f32.mrb[0].mxu0
    %428 = vmatprep.mubr.f32.mxu0 0.0
    %429 = vmatmul.mubr.f32.gmra.mrb[0].mxu0 %v222
    %v430 = vpop.f32.mrb[0].mxu0
    %v431 = vadd.f32 %v207, %v430
    %v432 = vpop.f32.mrb[0].mxu0
    %433 = vmatprep.mubr.f32.mxu0 0.0
    %434 = vmatmul.mubr.f32.gmra.mrb[0].mxu0 %v225
    %v435 = vpop.f32.mrb[0].mxu0
    %v436 = vadd.f32 %v207, %v435
    %v437 = vpop.f32.mrb[0].mxu0
    %438 = vmatprep.mubr.f32.mxu0 0.0
    %439 = vmatmul.mubr.f32.gmra.mrb[0].mxu0 %v228
    %v440 = vpop.f32.mrb[0].mxu0
    %v441 = vadd.f32 %v207, %v440
    %v442 = vpop.f32.mrb[0].mxu0
    %443 = vmatprep.mubr.f32.mxu0 0.0
    %444 = vmatmul.mubr.f32.gmra.mrb[0].mxu0 %v231
    %v445 = vpop.f32.mrb[0].mxu0
    %v446 = vadd.f32 %v207, %v445
    %v447 = vpop.f32.mrb[0].mxu0
    %448 = vmatprep.mubr.f32.mxu0 0.0
    %449 = vmatmul.mubr.f32.gmra.mrb[0].mxu0 %v234
    %v450 = vpop.f32.mrb[0].mxu0
    %v451 = vadd.f32 %v207, %v450
    %v452 = vpop.f32.mrb[0].mxu0
    %453 = vdwg.mxu0
    %v454 = vld [vmem:[#allocation7] sm:$0xff]
    %v455 = vld [vmem:[#allocation7 + $0x8] sm:$0xff]
    %v456 = vld [vmem:[#allocation7 + $0x10] sm:$0xff]
    %v457 = vld [vmem:[#allocation7 + $0x18] sm:$0xff]
    %v458 = vld [vmem:[#allocation7 + $0x20] sm:$0xff]
    %v459 = vld [vmem:[#allocation7 + $0x28] sm:$0xff]
    %v460 = vld [vmem:[%s7] sm:$0x7]
    %v462 = vlaneseq
    %v463 = vshrl.u32 %v462, 7
    %v464 = vsub.s32 0, %v463
    %v465 = vrot.slane %v460, %v464
    %v466 = vlaneseq
    %v467 = vshrl.u32 %v466, 7
    %v468 = vsub.s32 1, %v467
    %v469 = vrot.slane %v460, %v468
    %v470 = vlaneseq
    %v471 = vshrl.u32 %v470, 7
    %v472 = vsub.s32 2, %v471
    %v473 = vrot.slane %v460, %v472
    %477 = vmatprep.subr.mxu0 %v455
    %478 = vmatpush1.msra.mxu0 %v454
    %479 = vmatprep.subr.mxu0 %v458
    %480 = vmatpush1.msra.mxu0 %v457
    %481 = vmatprep.subr.mxu0 0.0
    %482 = vmatpush1.msra.mxu0 0.0
    %483 = vmatprep.subr.mxu0 0.0
    %484 = vmatpush1.msra.mxu0 0.0
    %485 = vmatprep.subr.mxu0 0.0
    %486 = vmatpush1.msra.mxu0 0.0
    %487 = vmatprep.subr.mxu0 0.0
    %488 = vmatpush1.msra.mxu0 0.0
    %489 = vmatprep.subr.mxu0 0.0
    %490 = vmatpush1.msra.mxu0 0.0
    %491 = vmatprep.subr.mxu0 0.0
    %492 = vmatpush1.msra.mxu0 0.0
    %493 = vmatprep.subr.mxu0 0.0
    %494 = vmatpush1.msra.mxu0 0.0
    %495 = vmatprep.subr.mxu0 0.0
    %496 = vmatpush1.msra.mxu0 0.0
    %497 = vmatprep.subr.mxu0 0.0
    %498 = vmatpush1.msra.mxu0 0.0
    %499 = vmatprep.subr.mxu0 0.0
    %500 = vmatpush1.msra.mxu0 0.0
    %501 = vmatprep.subr.mxu0 0.0
    %502 = vmatpush1.msra.mxu0 0.0
    %503 = vmatprep.subr.mxu0 0.0
    %504 = vmatpush1.msra.mxu0 0.0
    %505 = vmatprep.subr.mxu0 0.0
    %506 = vmatpush1.msra.mxu0 0.0
    %507 = vmatprep.subr.mxu0 0.0
    %508 = vmatpush1.msra.mxu0 0.0
    %509 = vmatprep.subr.mxu0 0.0
    %510 = vmatpush1.msra.mxu0 0.0
    %511 = vmatprep.subr.mxu0 0.0
    %512 = vmatpush1.msra.mxu0 0.0
    %513 = vmatprep.subr.mxu0 0.0
    %514 = vmatpush1.msra.mxu0 0.0
    %515 = vmatprep.subr.mxu0 0.0
    %516 = vmatpush1.msra.mxu0 0.0
    %517 = vmatprep.subr.mxu0 0.0
    %518 = vmatpush1.msra.mxu0 0.0
    %519 = vmatprep.subr.mxu0 0.0
    %520 = vmatpush1.msra.mxu0 0.0
    %521 = vmatprep.subr.mxu0 0.0
    %522 = vmatpush1.msra.mxu0 0.0
    %523 = vmatprep.subr.mxu0 0.0
    %524 = vmatpush1.msra.mxu0 0.0
    %525 = vmatprep.subr.mxu0 0.0
    %526 = vmatpush1.msra.mxu0 0.0
    %527 = vmatprep.subr.mxu0 0.0
    %528 = vmatpush1.msra.mxu0 0.0
    %529 = vmatprep.subr.mxu0 0.0
    %530 = vmatpush1.msra.mxu0 0.0
    %531 = vmatprep.subr.mxu0 0.0
    %532 = vmatpush1.msra.mxu0 0.0
    %533 = vmatprep.subr.mxu0 0.0
    %534 = vmatpush1.msra.mxu0 0.0
    %535 = vmatprep.subr.mxu0 0.0
    %536 = vmatpush1.msra.mxu0 0.0
    %537 = vmatprep.subr.mxu0 0.0
    %538 = vmatpush1.msra.mxu0 0.0
    %539 = vmatprep.subr.mxu0 0.0
    %540 = vmatpush1.msra.mxu0 0.0
    %541 = vmatprep.mubr.f32.mxu0 0.0
    %542 = vmatmul.mubr.f32.gmra.mrb[0].mxu0 %v213
    %v543 = vpop.f32.mrb[0].mxu0
    %v544 = vadd.f32 %v465, %v543
    %v545 = vpop.f32.mrb[0].mxu0
    %v546 = vadd.f32 %v469, %v545
    %547 = vmatprep.mubr.f32.mxu0 0.0
    %548 = vmatmul.mubr.f32.gmra.mrb[0].mxu0 %v216
    %v549 = vpop.f32.mrb[0].mxu0
    %v550 = vadd.f32 %v465, %v549
    %v551 = vpop.f32.mrb[0].mxu0
    %v552 = vadd.f32 %v469, %v551
    %553 = vmatprep.mubr.f32.mxu0 0.0
    %554 = vmatmul.mubr.f32.gmra.mrb[0].mxu0 %v219
    %v555 = vpop.f32.mrb[0].mxu0
    %v556 = vadd.f32 %v465, %v555
    %v557 = vpop.f32.mrb[0].mxu0
    %v558 = vadd.f32 %v469, %v557
    %559 = vmatprep.mubr.f32.mxu0 0.0
    %560 = vmatmul.mubr.f32.gmra.mrb[0].mxu0 %v222
    %v561 = vpop.f32.mrb[0].mxu0
    %v562 = vadd.f32 %v465, %v561
    %v563 = vpop.f32.mrb[0].mxu0
    %v564 = vadd.f32 %v469, %v563
    %565 = vmatprep.mubr.f32.mxu0 0.0
    %566 = vmatmul.mubr.f32.gmra.mrb[0].mxu0 %v225
    %v567 = vpop.f32.mrb[0].mxu0
    %v568 = vadd.f32 %v465, %v567
    %v569 = vpop.f32.mrb[0].mxu0
    %v570 = vadd.f32 %v469, %v569
    %571 = vmatprep.mubr.f32.mxu0 0.0
    %572 = vmatmul.mubr.f32.gmra.mrb[0].mxu0 %v228
    %v573 = vpop.f32.mrb[0].mxu0
    %v574 = vadd.f32 %v465, %v573
    %v575 = vpop.f32.mrb[0].mxu0
    %v576 = vadd.f32 %v469, %v575
    %577 = vmatprep.mubr.f32.mxu0 0.0
    %578 = vmatmul.mubr.f32.gmra.mrb[0].mxu0 %v231
    %v579 = vpop.f32.mrb[0].mxu0
    %v580 = vadd.f32 %v465, %v579
    %v581 = vpop.f32.mrb[0].mxu0
    %v582 = vadd.f32 %v469, %v581
    %583 = vmatprep.mubr.f32.mxu0 0.0
    %584 = vmatmul.mubr.f32.gmra.mrb[0].mxu0 %v234
    %v585 = vpop.f32.mrb[0].mxu0
    %v586 = vadd.f32 %v465, %v585
    %v587 = vpop.f32.mrb[0].mxu0
    %v588 = vadd.f32 %v469, %v587
    %589 = vdwg.mxu0
    %590 = vmatprep.subr.mxu0 0.0
    %591 = vmatpush1.msra.mxu0 %v456
    %592 = vmatprep.subr.mxu0 0.0
    %593 = vmatpush1.msra.mxu0 %v459
    %594 = vmatprep.subr.mxu0 0.0
    %595 = vmatpush1.msra.mxu0 0.0
    %596 = vmatprep.subr.mxu0 0.0
    %597 = vmatpush1.msra.mxu0 0.0
    %598 = vmatprep.subr.mxu0 0.0
    %599 = vmatpush1.msra.mxu0 0.0
    %600 = vmatprep.subr.mxu0 0.0
    %601 = vmatpush1.msra.mxu0 0.0
    %602 = vmatprep.subr.mxu0 0.0
    %603 = vmatpush1.msra.mxu0 0.0
    %604 = vmatprep.subr.mxu0 0.0
    %605 = vmatpush1.msra.mxu0 0.0
    %606 = vmatprep.subr.mxu0 0.0
    %607 = vmatpush1.msra.mxu0 0.0
    %608 = vmatprep.subr.mxu0 0.0
    %609 = vmatpush1.msra.mxu0 0.0
    %610 = vmatprep.subr.mxu0 0.0
    %611 = vmatpush1.msra.mxu0 0.0
    %612 = vmatprep.subr.mxu0 0.0
    %613 = vmatpush1.msra.mxu0 0.0
    %614 = vmatprep.subr.mxu0 0.0
    %615 = vmatpush1.msra.mxu0 0.0
    %616 = vmatprep.subr.mxu0 0.0
    %617 = vmatpush1.msra.mxu0 0.0
    %618 = vmatprep.subr.mxu0 0.0
    %619 = vmatpush1.msra.mxu0 0.0
    %620 = vmatprep.subr.mxu0 0.0
    %621 = vmatpush1.msra.mxu0 0.0
    %622 = vmatprep.subr.mxu0 0.0
    %623 = vmatpush1.msra.mxu0 0.0
    %624 = vmatprep.subr.mxu0 0.0
    %625 = vmatpush1.msra.mxu0 0.0
    %626 = vmatprep.subr.mxu0 0.0
    %627 = vmatpush1.msra.mxu0 0.0
    %628 = vmatprep.subr.mxu0 0.0
    %629 = vmatpush1.msra.mxu0 0.0
    %630 = vmatprep.subr.mxu0 0.0
    %631 = vmatpush1.msra.mxu0 0.0
    %632 = vmatprep.subr.mxu0 0.0
    %633 = vmatpush1.msra.mxu0 0.0
    %634 = vmatprep.subr.mxu0 0.0
    %635 = vmatpush1.msra.mxu0 0.0
    %636 = vmatprep.subr.mxu0 0.0
    %637 = vmatpush1.msra.mxu0 0.0
    %638 = vmatprep.subr.mxu0 0.0
    %639 = vmatpush1.msra.mxu0 0.0
    %640 = vmatprep.subr.mxu0 0.0
    %641 = vmatpush1.msra.mxu0 0.0
    %642 = vmatprep.subr.mxu0 0.0
    %643 = vmatpush1.msra.mxu0 0.0
    %644 = vmatprep.subr.mxu0 0.0
    %645 = vmatpush1.msra.mxu0 0.0
    %646 = vmatprep.subr.mxu0 0.0
    %647 = vmatpush1.msra.mxu0 0.0
    %648 = vmatprep.subr.mxu0 0.0
    %649 = vmatpush1.msra.mxu0 0.0
    %650 = vmatprep.subr.mxu0 0.0
    %651 = vmatpush1.msra.mxu0 0.0
    %652 = vmatprep.subr.mxu0 0.0
    %653 = vmatpush1.msra.mxu0 0.0
    %654 = vmatprep.mubr.f32.mxu0 0.0
    %655 = vmatmul.mubr.f32.gmra.mrb[0].mxu0 %v213
    %v656 = vpop.f32.mrb[0].mxu0
    %v657 = vadd.f32 %v473, %v656
    %v658 = vpop.f32.mrb[0].mxu0
    %659 = vmatprep.mubr.f32.mxu0 0.0
    %660 = vmatmul.mubr.f32.gmra.mrb[0].mxu0 %v216
    %v661 = vpop.f32.mrb[0].mxu0
    %v662 = vadd.f32 %v473, %v661
    %v663 = vpop.f32.mrb[0].mxu0
    %664 = vmatprep.mubr.f32.mxu0 0.0
    %665 = vmatmul.mubr.f32.gmra.mrb[0].mxu0 %v219
    %v666 = vpop.f32.mrb[0].mxu0
    %v667 = vadd.f32 %v473, %v666
    %v668 = vpop.f32.mrb[0].mxu0
    %669 = vmatprep.mubr.f32.mxu0 0.0
    %670 = vmatmul.mubr.f32.gmra.mrb[0].mxu0 %v222
    %v671 = vpop.f32.mrb[0].mxu0
    %v672 = vadd.f32 %v473, %v671
    %v673 = vpop.f32.mrb[0].mxu0
    %674 = vmatprep.mubr.f32.mxu0 0.0
    %675 = vmatmul.mubr.f32.gmra.mrb[0].mxu0 %v225
    %v676 = vpop.f32.mrb[0].mxu0
    %v677 = vadd.f32 %v473, %v676
    %v678 = vpop.f32.mrb[0].mxu0
    %679 = vmatprep.mubr.f32.mxu0 0.0
    %680 = vmatmul.mubr.f32.gmra.mrb[0].mxu0 %v228
    %v681 = vpop.f32.mrb[0].mxu0
    %v682 = vadd.f32 %v473, %v681
    %v683 = vpop.f32.mrb[0].mxu0
    %684 = vmatprep.mubr.f32.mxu0 0.0
    %685 = vmatmul.mubr.f32.gmra.mrb[0].mxu0 %v231
    %v686 = vpop.f32.mrb[0].mxu0
    %v687 = vadd.f32 %v473, %v686
    %v688 = vpop.f32.mrb[0].mxu0
    %689 = vmatprep.mubr.f32.mxu0 0.0
    %690 = vmatmul.mubr.f32.gmra.mrb[0].mxu0 %v234
    %v691 = vpop.f32.mrb[0].mxu0
    %v692 = vadd.f32 %v473, %v691
    %v693 = vpop.f32.mrb[0].mxu0
    %694 = vdwg.mxu0
    %v695 = vld [vmem:[%s2] sm:$0xff]
    %v696 = vld [vmem:[%s2 + $0x8] sm:$0xff]
    %v697 = vld [vmem:[%s2 + $0x10] sm:$0xff]
    %v698 = vld [vmem:[%s2 + $0x18] sm:$0xff]
    %v699 = vld [vmem:[%s2 + $0x20] sm:$0xff]
    %v700 = vld [vmem:[%s2 + $0x28] sm:$0xff]
    %v701 = vld [vmem:[%s2 + $0x30] sm:$0xff]
    %v702 = vld [vmem:[%s2 + $0x38] sm:$0xff]
    %v703 = vld [vmem:[%s2 + $0x40] sm:$0xff]
    %v704 = vld [vmem:[%s2 + $0x48] sm:$0xff]
    %v705 = vld [vmem:[%s2 + $0x50] sm:$0xff]
    %v706 = vld [vmem:[%s2 + $0x58] sm:$0xff]
    %v707 = vld [vmem:[%s2 + $0x60] sm:$0xff]
    %v708 = vld [vmem:[%s2 + $0x68] sm:$0xff]
    %v709 = vld [vmem:[%s2 + $0x70] sm:$0xff]
    %v710 = vld [vmem:[%s2 + $0x78] sm:$0xff]
    %v711 = vld [vmem:[%s2 + $0x80] sm:$0xff]
    %v712 = vld [vmem:[%s2 + $0x88] sm:$0xff]
    %v713 = vld [vmem:[%s2 + $0x90] sm:$0xff]
    %v714 = vld [vmem:[%s2 + $0x98] sm:$0xff]
    %v715 = vld [vmem:[%s2 + $0xa0] sm:$0xff]
    %v716 = vld [vmem:[%s2 + $0xa8] sm:$0xff]
    %v717 = vld [vmem:[%s2 + $0xb0] sm:$0xff]
    %v718 = vld [vmem:[%s2 + $0xb8] sm:$0xff]
    %v719 = vld [vmem:[%s2 + $0xc0] sm:$0xff]
    %v720 = vld [vmem:[%s2 + $0xc8] sm:$0xff]
    %v721 = vld [vmem:[%s2 + $0xd0] sm:$0xff]
    %v722 = vld [vmem:[%s2 + $0xd8] sm:$0xff]
    %v723 = vld [vmem:[%s2 + $0xe0] sm:$0xff]
    %v724 = vld [vmem:[%s2 + $0xe8] sm:$0xff]
    %v725 = vld [vmem:[%s2 + $0xf0] sm:$0xff]
    %v726 = vld [vmem:[%s2 + $0xf8] sm:$0xff]
    %v727 = vld [vmem:[%s2 + $0x100] sm:$0xff]
    %v728 = vld [vmem:[%s2 + $0x108] sm:$0xff]
    %v729 = vld [vmem:[%s2 + $0x110] sm:$0xff]
    %v730 = vld [vmem:[%s2 + $0x118] sm:$0xff]
    %v731 = vld [vmem:[%s2 + $0x120] sm:$0xff]
    %v732 = vld [vmem:[%s2 + $0x128] sm:$0xff]
    %v733 = vld [vmem:[%s2 + $0x130] sm:$0xff]
    %v734 = vld [vmem:[%s2 + $0x138] sm:$0xff]
    %v735 = vld [vmem:[%s2 + $0x140] sm:$0xff]
    %v736 = vld [vmem:[%s2 + $0x148] sm:$0xff]
    %v737 = vld [vmem:[%s2 + $0x150] sm:$0xff]
    %v738 = vld [vmem:[%s2 + $0x158] sm:$0xff]
    %v739 = vld [vmem:[%s2 + $0x160] sm:$0xff]
    %v740 = vld [vmem:[%s2 + $0x168] sm:$0xff]
    %v741 = vld [vmem:[%s2 + $0x170] sm:$0xff]
    %v742 = vld [vmem:[%s2 + $0x178] sm:$0xff]
    %v743 = vld [vmem:[#allocation6] sm:$0x7]
    %v745 = vlaneseq
    %v746 = vshrl.u32 %v745, 7
    %v747 = vsub.s32 0, %v746
    %v748 = vrot.slane %v743, %v747
    %v749 = vlaneseq
    %v750 = vshrl.u32 %v749, 7
    %v751 = vsub.s32 1, %v750
    %v752 = vrot.slane %v743, %v751
    %v753 = vlaneseq
    %v754 = vshrl.u32 %v753, 7
    %v755 = vsub.s32 2, %v754
    %v756 = vrot.slane %v743, %v755
    %760 = vmatprep.subr.mxu0 %v696
    %761 = vmatpush1.msra.mxu0 %v695
    %762 = vmatprep.subr.mxu0 %v699
    %763 = vmatpush1.msra.mxu0 %v698
    %764 = vmatprep.subr.mxu0 %v702
    %765 = vmatpush1.msra.mxu0 %v701
    %766 = vmatprep.subr.mxu0 %v705
    %767 = vmatpush1.msra.mxu0 %v704
    %768 = vmatprep.subr.mxu0 %v708
    %769 = vmatpush1.msra.mxu0 %v707
    %770 = vmatprep.subr.mxu0 %v711
    %771 = vmatpush1.msra.mxu0 %v710
    %772 = vmatprep.subr.mxu0 %v714
    %773 = vmatpush1.msra.mxu0 %v713
    %774 = vmatprep.subr.mxu0 %v717
    %775 = vmatpush1.msra.mxu0 %v716
    %776 = vmatprep.subr.mxu0 %v720
    %777 = vmatpush1.msra.mxu0 %v719
    %778 = vmatprep.subr.mxu0 %v723
    %779 = vmatpush1.msra.mxu0 %v722
    %780 = vmatprep.subr.mxu0 %v726
    %781 = vmatpush1.msra.mxu0 %v725
    %782 = vmatprep.subr.mxu0 %v729
    %783 = vmatpush1.msra.mxu0 %v728
    %784 = vmatprep.subr.mxu0 %v732
    %785 = vmatpush1.msra.mxu0 %v731
    %786 = vmatprep.subr.mxu0 %v735
    %787 = vmatpush1.msra.mxu0 %v734
    %788 = vmatprep.subr.mxu0 %v738
    %789 = vmatpush1.msra.mxu0 %v737
    %790 = vmatprep.subr.mxu0 %v741
    %791 = vmatpush1.msra.mxu0 %v740
    %792 = vmatprep.subr.mxu0 0.0
    %793 = vmatpush1.msra.mxu0 0.0
    %794 = vmatprep.subr.mxu0 0.0
    %795 = vmatpush1.msra.mxu0 0.0
    %796 = vmatprep.subr.mxu0 0.0
    %797 = vmatpush1.msra.mxu0 0.0
    %798 = vmatprep.subr.mxu0 0.0
    %799 = vmatpush1.msra.mxu0 0.0
    %800 = vmatprep.subr.mxu0 0.0
    %801 = vmatpush1.msra.mxu0 0.0
    %802 = vmatprep.subr.mxu0 0.0
    %803 = vmatpush1.msra.mxu0 0.0
    %804 = vmatprep.subr.mxu0 0.0
    %805 = vmatpush1.msra.mxu0 0.0
    %806 = vmatprep.subr.mxu0 0.0
    %807 = vmatpush1.msra.mxu0 0.0
    %808 = vmatprep.subr.mxu0 0.0
    %809 = vmatpush1.msra.mxu0 0.0
    %810 = vmatprep.subr.mxu0 0.0
    %811 = vmatpush1.msra.mxu0 0.0
    %812 = vmatprep.subr.mxu0 0.0
    %813 = vmatpush1.msra.mxu0 0.0
    %814 = vmatprep.subr.mxu0 0.0
    %815 = vmatpush1.msra.mxu0 0.0
    %816 = vmatprep.subr.mxu0 0.0
    %817 = vmatpush1.msra.mxu0 0.0
    %818 = vmatprep.subr.mxu0 0.0
    %819 = vmatpush1.msra.mxu0 0.0
    %820 = vmatprep.subr.mxu0 0.0
    %821 = vmatpush1.msra.mxu0 0.0
    %822 = vmatprep.subr.mxu0 0.0
    %823 = vmatpush1.msra.mxu0 0.0
    %824 = vmatprep.mubr.f32.mxu0 0.0
    %825 = vmatmul.mubr.f32.gmra.mrb[0].mxu0 0.0
    %v826 = vpop.f32.mrb[0].mxu0
    %v827 = vadd.f32 %v748, %v826
    %v828 = vpop.f32.mrb[0].mxu0
    %v829 = vadd.f32 %v752, %v828
    %830 = vdwg.mxu0
    %831 = vmatprep.subr.mxu0 0.0
    %832 = vmatpush1.msra.mxu0 %v697
    %833 = vmatprep.subr.mxu0 0.0
    %834 = vmatpush1.msra.mxu0 %v700
    %835 = vmatprep.subr.mxu0 0.0
    %836 = vmatpush1.msra.mxu0 %v703
    %837 = vmatprep.subr.mxu0 0.0
    %838 = vmatpush1.msra.mxu0 %v706
    %839 = vmatprep.subr.mxu0 0.0
    %840 = vmatpush1.msra.mxu0 %v709
    %841 = vmatprep.subr.mxu0 0.0
    %842 = vmatpush1.msra.mxu0 %v712
    %843 = vmatprep.subr.mxu0 0.0
    %844 = vmatpush1.msra.mxu0 %v715
    %845 = vmatprep.subr.mxu0 0.0
    %846 = vmatpush1.msra.mxu0 %v718
    %847 = vmatprep.subr.mxu0 0.0
    %848 = vmatpush1.msra.mxu0 %v721
    %849 = vmatprep.subr.mxu0 0.0
    %850 = vmatpush1.msra.mxu0 %v724
    %851 = vmatprep.subr.mxu0 0.0
    %852 = vmatpush1.msra.mxu0 %v727
    %853 = vmatprep.subr.mxu0 0.0
    %854 = vmatpush1.msra.mxu0 %v730
    %855 = vmatprep.subr.mxu0 0.0
    %856 = vmatpush1.msra.mxu0 %v733
    %857 = vmatprep.subr.mxu0 0.0
    %858 = vmatpush1.msra.mxu0 %v736
    %859 = vmatprep.subr.mxu0 0.0
    %860 = vmatpush1.msra.mxu0 %v739
    %861 = vmatprep.subr.mxu0 0.0
    %862 = vmatpush1.msra.mxu0 %v742
    %863 = vmatprep.subr.mxu0 0.0
    %864 = vmatpush1.msra.mxu0 0.0
    %865 = vmatprep.subr.mxu0 0.0
    %866 = vmatpush1.msra.mxu0 0.0
    %867 = vmatprep.subr.mxu0 0.0
    %868 = vmatpush1.msra.mxu0 0.0
    %869 = vmatprep.subr.mxu0 0.0
    %870 = vmatpush1.msra.mxu0 0.0
    %871 = vmatprep.subr.mxu0 0.0
    %872 = vmatpush1.msra.mxu0 0.0
    %873 = vmatprep.subr.mxu0 0.0
    %874 = vmatpush1.msra.mxu0 0.0
    %875 = vmatprep.subr.mxu0 0.0
    %876 = vmatpush1.msra.mxu0 0.0
    %877 = vmatprep.subr.mxu0 0.0
    %878 = vmatpush1.msra.mxu0 0.0
    %879 = vmatprep.subr.mxu0 0.0
    %880 = vmatpush1.msra.mxu0 0.0
    %881 = vmatprep.subr.mxu0 0.0
    %882 = vmatpush1.msra.mxu0 0.0
    %883 = vmatprep.subr.mxu0 0.0
    %884 = vmatpush1.msra.mxu0 0.0
    %885 = vmatprep.subr.mxu0 0.0
    %886 = vmatpush1.msra.mxu0 0.0
    %887 = vmatprep.subr.mxu0 0.0
    %888 = vmatpush1.msra.mxu0 0.0
    %889 = vmatprep.subr.mxu0 0.0
    %890 = vmatpush1.msra.mxu0 0.0
    %891 = vmatprep.subr.mxu0 0.0
    %892 = vmatpush1.msra.mxu0 0.0
    %893 = vmatprep.subr.mxu0 0.0
    %894 = vmatpush1.msra.mxu0 0.0
    %895 = vmatprep.mubr.f32.mxu0 0.0
    %896 = vmatmul.mubr.f32.gmra.mrb[0].mxu0 0.0
    %v897 = vpop.f32.mrb[0].mxu0
    %v898 = vadd.f32 %v756, %v897
    %v899 = vpop.f32.mrb[0].mxu0
    %900 = vdwg.mxu0
    %v901 = vadd.f32 %v303, %v827
    %v902 = vxor.u32 %v901, 2147483648
    %v903 = vmul.f32 %v902, 1.442695
    %v904 = vpow.pop %v903
    %v905 = vadd.f32 %v904, 1.0
    %v906 = vrcp.pop %v905
    %v907 = vmul.f32 1.0, %v906
    %v908 = vadd.f32 %v305, %v829
    %v909 = vxor.u32 %v908, 2147483648
    %v910 = vmul.f32 %v909, 1.442695
    %v911 = vpow.pop %v910
    %v912 = vadd.f32 %v911, 1.0
    %v913 = vrcp.pop %v912
    %v914 = vmul.f32 1.0, %v913
    %v915 = vmul.f32 %v907, %v898
    %v916 = vadd.f32 %v416, %v915
    %v917 = vtanh.pop %v916
    %v918 = vsub.f32 1.0, %v914
    %v919 = vmul.f32 %v918, %v917
    %v920 = vmul.f32 %v914, 0.0
    %v921 = vadd.f32 %v919, %v920
    %922 = vmatprep.subr.mxu0 %v696
    %923 = vmatpush1.msra.mxu0 %v695
    %924 = vmatprep.subr.mxu0 %v699
    %925 = vmatpush1.msra.mxu0 %v698
    %926 = vmatprep.subr.mxu0 %v702
    %927 = vmatpush1.msra.mxu0 %v701
    %928 = vmatprep.subr.mxu0 %v705
    %929 = vmatpush1.msra.mxu0 %v704
    %930 = vmatprep.subr.mxu0 %v708
    %931 = vmatpush1.msra.mxu0 %v707
    %932 = vmatprep.subr.mxu0 %v711
    %933 = vmatpush1.msra.mxu0 %v710
    %934 = vmatprep.subr.mxu0 %v714
    %935 = vmatpush1.msra.mxu0 %v713
    %936 = vmatprep.subr.mxu0 %v717
    %937 = vmatpush1.msra.mxu0 %v716
    %938 = vmatprep.subr.mxu0 %v720
    %939 = vmatpush1.msra.mxu0 %v719
    %940 = vmatprep.subr.mxu0 %v723
    %941 = vmatpush1.msra.mxu0 %v722
    %942 = vmatprep.subr.mxu0 %v726
    %943 = vmatpush1.msra.mxu0 %v725
    %944 = vmatprep.subr.mxu0 %v729
    %945 = vmatpush1.msra.mxu0 %v728
    %946 = vmatprep.subr.mxu0 %v732
    %947 = vmatpush1.msra.mxu0 %v731
    %948 = vmatprep.subr.mxu0 %v735
    %949 = vmatpush1.msra.mxu0 %v734
    %950 = vmatprep.subr.mxu0 %v738
    %951 = vmatpush1.msra.mxu0 %v737
    %952 = vmatprep.subr.mxu0 %v741
    %953 = vmatpush1.msra.mxu0 %v740
    %954 = vmatprep.subr.mxu0 0.0
    %955 = vmatpush1.msra.mxu0 0.0
    %956 = vmatprep.subr.mxu0 0.0
    %957 = vmatpush1.msra.mxu0 0.0
    %958 = vmatprep.subr.mxu0 0.0
    %959 = vmatpush1.msra.mxu0 0.0
    %960 = vmatprep.subr.mxu0 0.0
    %961 = vmatpush1.msra.mxu0 0.0
    %962 = vmatprep.subr.mxu0 0.0
    %963 = vmatpush1.msra.mxu0 0.0
    %964 = vmatprep.subr.mxu0 0.0
    %965 = vmatpush1.msra.mxu0 0.0
    %966 = vmatprep.subr.mxu0 0.0
    %967 = vmatpush1.msra.mxu0 0.0
    %968 = vmatprep.subr.mxu0 0.0
    %969 = vmatpush1.msra.mxu0 0.0
    %970 = vmatprep.subr.mxu0 0.0
    %971 = vmatpush1.msra.mxu0 0.0
    %972 = vmatprep.subr.mxu0 0.0
    %973 = vmatpush1.msra.mxu0 0.0
    %974 = vmatprep.subr.mxu0 0.0
    %975 = vmatpush1.msra.mxu0 0.0
    %976 = vmatprep.subr.mxu0 0.0
    %977 = vmatpush1.msra.mxu0 0.0
    %978 = vmatprep.subr.mxu0 0.0
    %979 = vmatpush1.msra.mxu0 0.0
    %980 = vmatprep.subr.mxu0 0.0
    %981 = vmatpush1.msra.mxu0 0.0
    %982 = vmatprep.subr.mxu0 0.0
    %983 = vmatpush1.msra.mxu0 0.0
    %984 = vmatprep.subr.mxu0 0.0
    %985 = vmatpush1.msra.mxu0 0.0
    %986 = vmatprep.mubr.f32.mxu0 0.0
    %987 = vmatmul.mubr.f32.gmra.mrb[0].mxu0 %v921
    %v988 = vpop.f32.mrb[0].mxu0
    %v989 = vadd.f32 %v748, %v988
    %v990 = vpop.f32.mrb[0].mxu0
    %v991 = vadd.f32 %v752, %v990
    %992 = vdwg.mxu0
    %993 = vmatprep.subr.mxu0 0.0
    %994 = vmatpush1.msra.mxu0 %v697
    %995 = vmatprep.subr.mxu0 0.0
    %996 = vmatpush1.msra.mxu0 %v700
    %997 = vmatprep.subr.mxu0 0.0
    %998 = vmatpush1.msra.mxu0 %v703
    %999 = vmatprep.subr.mxu0 0.0
    %1000 = vmatpush1.msra.mxu0 %v706
    %1001 = vmatprep.subr.mxu0 0.0
    %1002 = vmatpush1.msra.mxu0 %v709
    %1003 = vmatprep.subr.mxu0 0.0
    %1004 = vmatpush1.msra.mxu0 %v712
    %1005 = vmatprep.subr.mxu0 0.0
    %1006 = vmatpush1.msra.mxu0 %v715
    %1007 = vmatprep.subr.mxu0 0.0
    %1008 = vmatpush1.msra.mxu0 %v718
    %1009 = vmatprep.subr.mxu0 0.0
    %1010 = vmatpush1.msra.mxu0 %v721
    %1011 = vmatprep.subr.mxu0 0.0
    %1012 = vmatpush1.msra.mxu0 %v724
    %1013 = vmatprep.subr.mxu0 0.0
    %1014 = vmatpush1.msra.mxu0 %v727
    %1015 = vmatprep.subr.mxu0 0.0
    %1016 = vmatpush1.msra.mxu0 %v730
    %1017 = vmatprep.subr.mxu0 0.0
    %1018 = vmatpush1.msra.mxu0 %v733
    %1019 = vmatprep.subr.mxu0 0.0
    %1020 = vmatpush1.msra.mxu0 %v736
    %1021 = vmatprep.subr.mxu0 0.0
    %1022 = vmatpush1.msra.mxu0 %v739
    %1023 = vmatprep.subr.mxu0 0.0
    %1024 = vmatpush1.msra.mxu0 %v742
    %1025 = vmatprep.subr.mxu0 0.0
    %1026 = vmatpush1.msra.mxu0 0.0
    %1027 = vmatprep.subr.mxu0 0.0
    %1028 = vmatpush1.msra.mxu0 0.0
    %1029 = vmatprep.subr.mxu0 0.0
    %1030 = vmatpush1.msra.mxu0 0.0
    %1031 = vmatprep.subr.mxu0 0.0
    %1032 = vmatpush1.msra.mxu0 0.0
    %1033 = vmatprep.subr.mxu0 0.0
    %1034 = vmatpush1.msra.mxu0 0.0
    %1035 = vmatprep.subr.mxu0 0.0
    %1036 = vmatpush1.msra.mxu0 0.0
    %1037 = vmatprep.subr.mxu0 0.0
    %1038 = vmatpush1.msra.mxu0 0.0
    %1039 = vmatprep.subr.mxu0 0.0
    %1040 = vmatpush1.msra.mxu0 0.0
    %1041 = vmatprep.subr.mxu0 0.0
    %1042 = vmatpush1.msra.mxu0 0.0
    %1043 = vmatprep.subr.mxu0 0.0
    %1044 = vmatpush1.msra.mxu0 0.0
    %1045 = vmatprep.subr.mxu0 0.0
    %1046 = vmatpush1.msra.mxu0 0.0
    %1047 = vmatprep.subr.mxu0 0.0
    %1048 = vmatpush1.msra.mxu0 0.0
    %1049 = vmatprep.subr.mxu0 0.0
    %1050 = vmatpush1.msra.mxu0 0.0
    %1051 = vmatprep.subr.mxu0 0.0
    %1052 = vmatpush1.msra.mxu0 0.0
    %1053 = vmatprep.subr.mxu0 0.0
    %1054 = vmatpush1.msra.mxu0 0.0
    %1055 = vmatprep.subr.mxu0 0.0
    %1056 = vmatpush1.msra.mxu0 0.0
    %1057 = vmatprep.mubr.f32.mxu0 0.0
    %1058 = vmatmul.mubr.f32.gmra.mrb[0].mxu0 %v921
    %v1059 = vpop.f32.mrb[0].mxu0
    %v1060 = vadd.f32 %v756, %v1059
    %v1061 = vpop.f32.mrb[0].mxu0
    %1062 = vdwg.mxu0
    %v1063 = vadd.f32 %v309, %v989
    %v1064 = vxor.u32 %v1063, 2147483648
    %v1065 = vmul.f32 %v1064, 1.442695
    %v1066 = vpow.pop %v1065
    %v1067 = vadd.f32 %v1066, 1.0
    %v1068 = vrcp.pop %v1067
    %v1069 = vmul.f32 1.0, %v1068
    %v1070 = vadd.f32 %v311, %v991
    %v1071 = vxor.u32 %v1070, 2147483648
    %v1072 = vmul.f32 %v1071, 1.442695
    %v1073 = vpow.pop %v1072
    %v1074 = vadd.f32 %v1073, 1.0
    %v1075 = vrcp.pop %v1074
    %v1076 = vmul.f32 1.0, %v1075
    %v1077 = vmul.f32 %v1069, %v1060
    %v1078 = vadd.f32 %v421, %v1077
    %v1079 = vtanh.pop %v1078
    %v1080 = vsub.f32 1.0, %v1076
    %v1081 = vmul.f32 %v1080, %v1079
    %v1082 = vmul.f32 %v1076, %v921
    %v1083 = vadd.f32 %v1081, %v1082
    %1084 = vmatprep.subr.mxu0 %v696
    %1085 = vmatpush1.msra.mxu0 %v695
    %1086 = vmatprep.subr.mxu0 %v699
    %1087 = vmatpush1.msra.mxu0 %v698
    %1088 = vmatprep.subr.mxu0 %v702
    %1089 = vmatpush1.msra.mxu0 %v701
    %1090 = vmatprep.subr.mxu0 %v705
    %1091 = vmatpush1.msra.mxu0 %v704
    %1092 = vmatprep.subr.mxu0 %v708
    %1093 = vmatpush1.msra.mxu0 %v707
    %1094 = vmatprep.subr.mxu0 %v711
    %1095 = vmatpush1.msra.mxu0 %v710
    %1096 = vmatprep.subr.mxu0 %v714
    %1097 = vmatpush1.msra.mxu0 %v713
    %1098 = vmatprep.subr.mxu0 %v717
    %1099 = vmatpush1.msra.mxu0 %v716
    %1100 = vmatprep.subr.mxu0 %v720
    %1101 = vmatpush1.msra.mxu0 %v719
    %1102 = vmatprep.subr.mxu0 %v723
    %1103 = vmatpush1.msra.mxu0 %v722
    %1104 = vmatprep.subr.mxu0 %v726
    %1105 = vmatpush1.msra.mxu0 %v725
    %1106 = vmatprep.subr.mxu0 %v729
    %1107 = vmatpush1.msra.mxu0 %v728
    %1108 = vmatprep.subr.mxu0 %v732
    %1109 = vmatpush1.msra.mxu0 %v731
    %1110 = vmatprep.subr.mxu0 %v735
    %1111 = vmatpush1.msra.mxu0 %v734
    %1112 = vmatprep.subr.mxu0 %v738
    %1113 = vmatpush1.msra.mxu0 %v737
    %1114 = vmatprep.subr.mxu0 %v741
    %1115 = vmatpush1.msra.mxu0 %v740
    %1116 = vmatprep.subr.mxu0 0.0
    %1117 = vmatpush1.msra.mxu0 0.0
    %1118 = vmatprep.subr.mxu0 0.0
    %1119 = vmatpush1.msra.mxu0 0.0
    %1120 = vmatprep.subr.mxu0 0.0
    %1121 = vmatpush1.msra.mxu0 0.0
    %1122 = vmatprep.subr.mxu0 0.0
    %1123 = vmatpush1.msra.mxu0 0.0
    %1124 = vmatprep.subr.mxu0 0.0
    %1125 = vmatpush1.msra.mxu0 0.0
    %1126 = vmatprep.subr.mxu0 0.0
    %1127 = vmatpush1.msra.mxu0 0.0
    %1128 = vmatprep.subr.mxu0 0.0
    %1129 = vmatpush1.msra.mxu0 0.0
    %1130 = vmatprep.subr.mxu0 0.0
    %1131 = vmatpush1.msra.mxu0 0.0
    %1132 = vmatprep.subr.mxu0 0.0
    %1133 = vmatpush1.msra.mxu0 0.0
    %1134 = vmatprep.subr.mxu0 0.0
    %1135 = vmatpush1.msra.mxu0 0.0
    %1136 = vmatprep.subr.mxu0 0.0
    %1137 = vmatpush1.msra.mxu0 0.0
    %1138 = vmatprep.subr.mxu0 0.0
    %1139 = vmatpush1.msra.mxu0 0.0
    %1140 = vmatprep.subr.mxu0 0.0
    %1141 = vmatpush1.msra.mxu0 0.0
    %1142 = vmatprep.subr.mxu0 0.0
    %1143 = vmatpush1.msra.mxu0 0.0
    %1144 = vmatprep.subr.mxu0 0.0
    %1145 = vmatpush1.msra.mxu0 0.0
    %1146 = vmatprep.subr.mxu0 0.0
    %1147 = vmatpush1.msra.mxu0 0.0
    %1148 = vmatprep.mubr.f32.mxu0 0.0
    %1149 = vmatmul.mubr.f32.gmra.mrb[0].mxu0 %v1083
    %v1150 = vpop.f32.mrb[0].mxu0
    %v1151 = vadd.f32 %v748, %v1150
    %v1152 = vpop.f32.mrb[0].mxu0
    %v1153 = vadd.f32 %v752, %v1152
    %1154 = vdwg.mxu0
    %1155 = vmatprep.subr.mxu0 0.0
    %1156 = vmatpush1.msra.mxu0 %v697
    %1157 = vmatprep.subr.mxu0 0.0
    %1158 = vmatpush1.msra.mxu0 %v700
    %1159 = vmatprep.subr.mxu0 0.0
    %1160 = vmatpush1.msra.mxu0 %v703
    %1161 = vmatprep.subr.mxu0 0.0
    %1162 = vmatpush1.msra.mxu0 %v706
    %1163 = vmatprep.subr.mxu0 0.0
    %1164 = vmatpush1.msra.mxu0 %v709
    %1165 = vmatprep.subr.mxu0 0.0
    %1166 = vmatpush1.msra.mxu0 %v712
    %1167 = vmatprep.subr.mxu0 0.0
    %1168 = vmatpush1.msra.mxu0 %v715
    %1169 = vmatprep.subr.mxu0 0.0
    %1170 = vmatpush1.msra.mxu0 %v718
    %1171 = vmatprep.subr.mxu0 0.0
    %1172 = vmatpush1.msra.mxu0 %v721
    %1173 = vmatprep.subr.mxu0 0.0
    %1174 = vmatpush1.msra.mxu0 %v724
    %1175 = vmatprep.subr.mxu0 0.0
    %1176 = vmatpush1.msra.mxu0 %v727
    %1177 = vmatprep.subr.mxu0 0.0
    %1178 = vmatpush1.msra.mxu0 %v730
    %1179 = vmatprep.subr.mxu0 0.0
    %1180 = vmatpush1.msra.mxu0 %v733
    %1181 = vmatprep.subr.mxu0 0.0
    %1182 = vmatpush1.msra.mxu0 %v736
    %1183 = vmatprep.subr.mxu0 0.0
    %1184 = vmatpush1.msra.mxu0 %v739
    %1185 = vmatprep.subr.mxu0 0.0
    %1186 = vmatpush1.msra.mxu0 %v742
    %1187 = vmatprep.subr.mxu0 0.0
    %1188 = vmatpush1.msra.mxu0 0.0
    %1189 = vmatprep.subr.mxu0 0.0
    %1190 = vmatpush1.msra.mxu0 0.0
    %1191 = vmatprep.subr.mxu0 0.0
    %1192 = vmatpush1.msra.mxu0 0.0
    %1193 = vmatprep.subr.mxu0 0.0
    %1194 = vmatpush1.msra.mxu0 0.0
    %1195 = vmatprep.subr.mxu0 0.0
    %1196 = vmatpush1.msra.mxu0 0.0
    %1197 = vmatprep.subr.mxu0 0.0
    %1198 = vmatpush1.msra.mxu0 0.0
    %1199 = vmatprep.subr.mxu0 0.0
    %1200 = vmatpush1.msra.mxu0 0.0
    %1201 = vmatprep.subr.mxu0 0.0
    %1202 = vmatpush1.msra.mxu0 0.0
    %1203 = vmatprep.subr.mxu0 0.0
    %1204 = vmatpush1.msra.mxu0 0.0
    %1205 = vmatprep.subr.mxu0 0.0
    %1206 = vmatpush1.msra.mxu0 0.0
    %1207 = vmatprep.subr.mxu0 0.0
    %1208 = vmatpush1.msra.mxu0 0.0
    %1209 = vmatprep.subr.mxu0 0.0
    %1210 = vmatpush1.msra.mxu0 0.0
    %1211 = vmatprep.subr.mxu0 0.0
    %1212 = vmatpush1.msra.mxu0 0.0
    %1213 = vmatprep.subr.mxu0 0.0
    %1214 = vmatpush1.msra.mxu0 0.0
    %1215 = vmatprep.subr.mxu0 0.0
    %1216 = vmatpush1.msra.mxu0 0.0
    %1217 = vmatprep.subr.mxu0 0.0
    %1218 = vmatpush1.msra.mxu0 0.0
    %1219 = vmatprep.mubr.f32.mxu0 0.0
    %1220 = vmatmul.mubr.f32.gmra.mrb[0].mxu0 %v1083
    %v1221 = vpop.f32.mrb[0].mxu0
    %v1222 = vadd.f32 %v756, %v1221
    %v1223 = vpop.f32.mrb[0].mxu0
    %1224 = vdwg.mxu0
    %v1225 = vadd.f32 %v315, %v1151
    %v1226 = vxor.u32 %v1225, 2147483648
    %v1227 = vmul.f32 %v1226, 1.442695
    %v1228 = vpow.pop %v1227
    %v1229 = vadd.f32 %v1228, 1.0
    %v1230 = vrcp.pop %v1229
    %v1231 = vmul.f32 1.0, %v1230
    %v1232 = vadd.f32 %v317, %v1153
    %v1233 = vxor.u32 %v1232, 2147483648
    %v1234 = vmul.f32 %v1233, 1.442695
    %v1235 = vpow.pop %v1234
    %v1236 = vadd.f32 %v1235, 1.0
    %v1237 = vrcp.pop %v1236
    %v1238 = vmul.f32 1.0, %v1237
    %v1239 = vmul.f32 %v1231, %v1222
    %v1240 = vadd.f32 %v426, %v1239
    %v1241 = vtanh.pop %v1240
    %v1242 = vsub.f32 1.0, %v1238
    %v1243 = vmul.f32 %v1242, %v1241
    %v1244 = vmul.f32 %v1238, %v1083
    %v1245 = vadd.f32 %v1243, %v1244
    %1246 = vmatprep.subr.mxu0 %v696
    %1247 = vmatpush1.msra.mxu0 %v695
    %1248 = vmatprep.subr.mxu0 %v699
    %1249 = vmatpush1.msra.mxu0 %v698
    %1250 = vmatprep.subr.mxu0 %v702
    %1251 = vmatpush1.msra.mxu0 %v701
    %1252 = vmatprep.subr.mxu0 %v705
    %1253 = vmatpush1.msra.mxu0 %v704
    %1254 = vmatprep.subr.mxu0 %v708
    %1255 = vmatpush1.msra.mxu0 %v707
    %1256 = vmatprep.subr.mxu0 %v711
    %1257 = vmatpush1.msra.mxu0 %v710
    %1258 = vmatprep.subr.mxu0 %v714
    %1259 = vmatpush1.msra.mxu0 %v713
    %1260 = vmatprep.subr.mxu0 %v717
    %1261 = vmatpush1.msra.mxu0 %v716
    %1262 = vmatprep.subr.mxu0 %v720
    %1263 = vmatpush1.msra.mxu0 %v719
    %1264 = vmatprep.subr.mxu0 %v723
    %1265 = vmatpush1.msra.mxu0 %v722
    %1266 = vmatprep.subr.mxu0 %v726
    %1267 = vmatpush1.msra.mxu0 %v725
    %1268 = vmatprep.subr.mxu0 %v729
    %1269 = vmatpush1.msra.mxu0 %v728
    %1270 = vmatprep.subr.mxu0 %v732
    %1271 = vmatpush1.msra.mxu0 %v731
    %1272 = vmatprep.subr.mxu0 %v735
    %1273 = vmatpush1.msra.mxu0 %v734
    %1274 = vmatprep.subr.mxu0 %v738
    %1275 = vmatpush1.msra.mxu0 %v737
    %1276 = vmatprep.subr.mxu0 %v741
    %1277 = vmatpush1.msra.mxu0 %v740
    %1278 = vmatprep.subr.mxu0 0.0
    %1279 = vmatpush1.msra.mxu0 0.0
    %1280 = vmatprep.subr.mxu0 0.0
    %1281 = vmatpush1.msra.mxu0 0.0
    %1282 = vmatprep.subr.mxu0 0.0
    %1283 = vmatpush1.msra.mxu0 0.0
    %1284 = vmatprep.subr.mxu0 0.0
    %1285 = vmatpush1.msra.mxu0 0.0
    %1286 = vmatprep.subr.mxu0 0.0
    %1287 = vmatpush1.msra.mxu0 0.0
    %1288 = vmatprep.subr.mxu0 0.0
    %1289 = vmatpush1.msra.mxu0 0.0
    %1290 = vmatprep.subr.mxu0 0.0
    %1291 = vmatpush1.msra.mxu0 0.0
    %1292 = vmatprep.subr.mxu0 0.0
    %1293 = vmatpush1.msra.mxu0 0.0
    %1294 = vmatprep.subr.mxu0 0.0
    %1295 = vmatpush1.msra.mxu0 0.0
    %1296 = vmatprep.subr.mxu0 0.0
    %1297 = vmatpush1.msra.mxu0 0.0
    %1298 = vmatprep.subr.mxu0 0.0
    %1299 = vmatpush1.msra.mxu0 0.0
    %1300 = vmatprep.subr.mxu0 0.0
    %1301 = vmatpush1.msra.mxu0 0.0
    %1302 = vmatprep.subr.mxu0 0.0
    %1303 = vmatpush1.msra.mxu0 0.0
    %1304 = vmatprep.subr.mxu0 0.0
    %1305 = vmatpush1.msra.mxu0 0.0
    %1306 = vmatprep.subr.mxu0 0.0
    %1307 = vmatpush1.msra.mxu0 0.0
    %1308 = vmatprep.subr.mxu0 0.0
    %1309 = vmatpush1.msra.mxu0 0.0
    %1310 = vmatprep.mubr.f32.mxu0 0.0
    %1311 = vmatmul.mubr.f32.gmra.mrb[0].mxu0 %v1245
    %v1312 = vpop.f32.mrb[0].mxu0
    %v1313 = vadd.f32 %v748, %v1312
    %v1314 = vpop.f32.mrb[0].mxu0
    %v1315 = vadd.f32 %v752, %v1314
    %1316 = vdwg.mxu0
    %1317 = vmatprep.subr.mxu0 0.0
    %1318 = vmatpush1.msra.mxu0 %v697
    %1319 = vmatprep.subr.mxu0 0.0
    %1320 = vmatpush1.msra.mxu0 %v700
    %1321 = vmatprep.subr.mxu0 0.0
    %1322 = vmatpush1.msra.mxu0 %v703
    %1323 = vmatprep.subr.mxu0 0.0
    %1324 = vmatpush1.msra.mxu0 %v706
    %1325 = vmatprep.subr.mxu0 0.0
    %1326 = vmatpush1.msra.mxu0 %v709
    %1327 = vmatprep.subr.mxu0 0.0
    %1328 = vmatpush1.msra.mxu0 %v712
    %1329 = vmatprep.subr.mxu0 0.0
    %1330 = vmatpush1.msra.mxu0 %v715
    %1331 = vmatprep.subr.mxu0 0.0
    %1332 = vmatpush1.msra.mxu0 %v718
    %1333 = vmatprep.subr.mxu0 0.0
    %1334 = vmatpush1.msra.mxu0 %v721
    %1335 = vmatprep.subr.mxu0 0.0
    %1336 = vmatpush1.msra.mxu0 %v724
    %1337 = vmatprep.subr.mxu0 0.0
    %1338 = vmatpush1.msra.mxu0 %v727
    %1339 = vmatprep.subr.mxu0 0.0
    %1340 = vmatpush1.msra.mxu0 %v730
    %1341 = vmatprep.subr.mxu0 0.0
    %1342 = vmatpush1.msra.mxu0 %v733
    %1343 = vmatprep.subr.mxu0 0.0
    %1344 = vmatpush1.msra.mxu0 %v736
    %1345 = vmatprep.subr.mxu0 0.0
    %1346 = vmatpush1.msra.mxu0 %v739
    %1347 = vmatprep.subr.mxu0 0.0
    %1348 = vmatpush1.msra.mxu0 %v742
    %1349 = vmatprep.subr.mxu0 0.0
    %1350 = vmatpush1.msra.mxu0 0.0
    %1351 = vmatprep.subr.mxu0 0.0
    %1352 = vmatpush1.msra.mxu0 0.0
    %1353 = vmatprep.subr.mxu0 0.0
    %1354 = vmatpush1.msra.mxu0 0.0
    %1355 = vmatprep.subr.mxu0 0.0
    %1356 = vmatpush1.msra.mxu0 0.0
    %1357 = vmatprep.subr.mxu0 0.0
    %1358 = vmatpush1.msra.mxu0 0.0
    %1359 = vmatprep.subr.mxu0 0.0
    %1360 = vmatpush1.msra.mxu0 0.0
    %1361 = vmatprep.subr.mxu0 0.0
    %1362 = vmatpush1.msra.mxu0 0.0
    %1363 = vmatprep.subr.mxu0 0.0
    %1364 = vmatpush1.msra.mxu0 0.0
    %1365 = vmatprep.subr.mxu0 0.0
    %1366 = vmatpush1.msra.mxu0 0.0
    %1367 = vmatprep.subr.mxu0 0.0
    %1368 = vmatpush1.msra.mxu0 0.0
    %1369 = vmatprep.subr.mxu0 0.0
    %1370 = vmatpush1.msra.mxu0 0.0
    %1371 = vmatprep.subr.mxu0 0.0
    %1372 = vmatpush1.msra.mxu0 0.0
    %1373 = vmatprep.subr.mxu0 0.0
    %1374 = vmatpush1.msra.mxu0 0.0
    %1375 = vmatprep.subr.mxu0 0.0
    %1376 = vmatpush1.msra.mxu0 0.0
    %1377 = vmatprep.subr.mxu0 0.0
    %1378 = vmatpush1.msra.mxu0 0.0
    %1379 = vmatprep.subr.mxu0 0.0
    %1380 = vmatpush1.msra.mxu0 0.0
    %1381 = vmatprep.mubr.f32.mxu0 0.0
    %1382 = vmatmul.mubr.f32.gmra.mrb[0].mxu0 %v1245
    %v1383 = vpop.f32.mrb[0].mxu0
    %v1384 = vadd.f32 %v756, %v1383
    %v1385 = vpop.f32.mrb[0].mxu0
    %1386 = vdwg.mxu0
    %v1387 = vadd.f32 %v321, %v1313
    %v1388 = vxor.u32 %v1387, 2147483648
    %v1389 = vmul.f32 %v1388, 1.442695
    %v1390 = vpow.pop %v1389
    %v1391 = vadd.f32 %v1390, 1.0
    %v1392 = vrcp.pop %v1391
    %v1393 = vmul.f32 1.0, %v1392
    %v1394 = vadd.f32 %v323, %v1315
    %v1395 = vxor.u32 %v1394, 2147483648
    %v1396 = vmul.f32 %v1395, 1.442695
    %v1397 = vpow.pop %v1396
    %v1398 = vadd.f32 %v1397, 1.0
    %v1399 = vrcp.pop %v1398
    %v1400 = vmul.f32 1.0, %v1399
    %v1401 = vmul.f32 %v1393, %v1384
    %v1402 = vadd.f32 %v431, %v1401
    %v1403 = vtanh.pop %v1402
    %v1404 = vsub.f32 1.0, %v1400
    %v1405 = vmul.f32 %v1404, %v1403
    %v1406 = vmul.f32 %v1400, %v1245
    %v1407 = vadd.f32 %v1405, %v1406
    %1408 = vmatprep.subr.mxu0 %v696
    %1409 = vmatpush1.msra.mxu0 %v695
    %1410 = vmatprep.subr.mxu0 %v699
    %1411 = vmatpush1.msra.mxu0 %v698
    %1412 = vmatprep.subr.mxu0 %v702
    %1413 = vmatpush1.msra.mxu0 %v701
    %1414 = vmatprep.subr.mxu0 %v705
    %1415 = vmatpush1.msra.mxu0 %v704
    %1416 = vmatprep.subr.mxu0 %v708
    %1417 = vmatpush1.msra.mxu0 %v707
    %1418 = vmatprep.subr.mxu0 %v711
    %1419 = vmatpush1.msra.mxu0 %v710
    %1420 = vmatprep.subr.mxu0 %v714
    %1421 = vmatpush1.msra.mxu0 %v713
    %1422 = vmatprep.subr.mxu0 %v717
    %1423 = vmatpush1.msra.mxu0 %v716
    %1424 = vmatprep.subr.mxu0 %v720
    %1425 = vmatpush1.msra.mxu0 %v719
    %1426 = vmatprep.subr.mxu0 %v723
    %1427 = vmatpush1.msra.mxu0 %v722
    %1428 = vmatprep.subr.mxu0 %v726
    %1429 = vmatpush1.msra.mxu0 %v725
    %1430 = vmatprep.subr.mxu0 %v729
    %1431 = vmatpush1.msra.mxu0 %v728
    %1432 = vmatprep.subr.mxu0 %v732
    %1433 = vmatpush1.msra.mxu0 %v731
    %1434 = vmatprep.subr.mxu0 %v735
    %1435 = vmatpush1.msra.mxu0 %v734
    %1436 = vmatprep.subr.mxu0 %v738
    %1437 = vmatpush1.msra.mxu0 %v737
    %1438 = vmatprep.subr.mxu0 %v741
    %1439 = vmatpush1.msra.mxu0 %v740
    %1440 = vmatprep.subr.mxu0 0.0
    %1441 = vmatpush1.msra.mxu0 0.0
    %1442 = vmatprep.subr.mxu0 0.0
    %1443 = vmatpush1.msra.mxu0 0.0
    %1444 = vmatprep.subr.mxu0 0.0
    %1445 = vmatpush1.msra.mxu0 0.0
    %1446 = vmatprep.subr.mxu0 0.0
    %1447 = vmatpush1.msra.mxu0 0.0
    %1448 = vmatprep.subr.mxu0 0.0
    %1449 = vmatpush1.msra.mxu0 0.0
    %1450 = vmatprep.subr.mxu0 0.0
    %1451 = vmatpush1.msra.mxu0 0.0
    %1452 = vmatprep.subr.mxu0 0.0
    %1453 = vmatpush1.msra.mxu0 0.0
    %1454 = vmatprep.subr.mxu0 0.0
    %1455 = vmatpush1.msra.mxu0 0.0
    %1456 = vmatprep.subr.mxu0 0.0
    %1457 = vmatpush1.msra.mxu0 0.0
    %1458 = vmatprep.subr.mxu0 0.0
    %1459 = vmatpush1.msra.mxu0 0.0
    %1460 = vmatprep.subr.mxu0 0.0
    %1461 = vmatpush1.msra.mxu0 0.0
    %1462 = vmatprep.subr.mxu0 0.0
    %1463 = vmatpush1.msra.mxu0 0.0
    %1464 = vmatprep.subr.mxu0 0.0
    %1465 = vmatpush1.msra.mxu0 0.0
    %1466 = vmatprep.subr.mxu0 0.0
    %1467 = vmatpush1.msra.mxu0 0.0
    %1468 = vmatprep.subr.mxu0 0.0
    %1469 = vmatpush1.msra.mxu0 0.0
    %1470 = vmatprep.subr.mxu0 0.0
    %1471 = vmatpush1.msra.mxu0 0.0
    %1472 = vmatprep.mubr.f32.mxu0 0.0
    %1473 = vmatmul.mubr.f32.gmra.mrb[0].mxu0 %v1407
    %v1474 = vpop.f32.mrb[0].mxu0
    %v1475 = vadd.f32 %v748, %v1474
    %v1476 = vpop.f32.mrb[0].mxu0
    %v1477 = vadd.f32 %v752, %v1476
    %1478 = vdwg.mxu0
    %1479 = vmatprep.subr.mxu0 0.0
    %1480 = vmatpush1.msra.mxu0 %v697
    %1481 = vmatprep.subr.mxu0 0.0
    %1482 = vmatpush1.msra.mxu0 %v700
    %1483 = vmatprep.subr.mxu0 0.0
    %1484 = vmatpush1.msra.mxu0 %v703
    %1485 = vmatprep.subr.mxu0 0.0
    %1486 = vmatpush1.msra.mxu0 %v706
    %1487 = vmatprep.subr.mxu0 0.0
    %1488 = vmatpush1.msra.mxu0 %v709
    %1489 = vmatprep.subr.mxu0 0.0
    %1490 = vmatpush1.msra.mxu0 %v712
    %1491 = vmatprep.subr.mxu0 0.0
    %1492 = vmatpush1.msra.mxu0 %v715
    %1493 = vmatprep.subr.mxu0 0.0
    %1494 = vmatpush1.msra.mxu0 %v718
    %1495 = vmatprep.subr.mxu0 0.0
    %1496 = vmatpush1.msra.mxu0 %v721
    %1497 = vmatprep.subr.mxu0 0.0
    %1498 = vmatpush1.msra.mxu0 %v724
    %1499 = vmatprep.subr.mxu0 0.0
    %1500 = vmatpush1.msra.mxu0 %v727
    %1501 = vmatprep.subr.mxu0 0.0
    %1502 = vmatpush1.msra.mxu0 %v730
    %1503 = vmatprep.subr.mxu0 0.0
    %1504 = vmatpush1.msra.mxu0 %v733
    %1505 = vmatprep.subr.mxu0 0.0
    %1506 = vmatpush1.msra.mxu0 %v736
    %1507 = vmatprep.subr.mxu0 0.0
    %1508 = vmatpush1.msra.mxu0 %v739
    %1509 = vmatprep.subr.mxu0 0.0
    %1510 = vmatpush1.msra.mxu0 %v742
    %1511 = vmatprep.subr.mxu0 0.0
    %1512 = vmatpush1.msra.mxu0 0.0
    %1513 = vmatprep.subr.mxu0 0.0
    %1514 = vmatpush1.msra.mxu0 0.0
    %1515 = vmatprep.subr.mxu0 0.0
    %1516 = vmatpush1.msra.mxu0 0.0
    %1517 = vmatprep.subr.mxu0 0.0
    %1518 = vmatpush1.msra.mxu0 0.0
    %1519 = vmatprep.subr.mxu0 0.0
    %1520 = vmatpush1.msra.mxu0 0.0
    %1521 = vmatprep.subr.mxu0 0.0
    %1522 = vmatpush1.msra.mxu0 0.0
    %1523 = vmatprep.subr.mxu0 0.0
    %1524 = vmatpush1.msra.mxu0 0.0
    %1525 = vmatprep.subr.mxu0 0.0
    %1526 = vmatpush1.msra.mxu0 0.0
    %1527 = vmatprep.subr.mxu0 0.0
    %1528 = vmatpush1.msra.mxu0 0.0
    %1529 = vmatprep.subr.mxu0 0.0
    %1530 = vmatpush1.msra.mxu0 0.0
    %1531 = vmatprep.subr.mxu0 0.0
    %1532 = vmatpush1.msra.mxu0 0.0
    %1533 = vmatprep.subr.mxu0 0.0
    %1534 = vmatpush1.msra.mxu0 0.0
    %1535 = vmatprep.subr.mxu0 0.0
    %1536 = vmatpush1.msra.mxu0 0.0
    %1537 = vmatprep.subr.mxu0 0.0
    %1538 = vmatpush1.msra.mxu0 0.0
    %1539 = vmatprep.subr.mxu0 0.0
    %1540 = vmatpush1.msra.mxu0 0.0
    %1541 = vmatprep.subr.mxu0 0.0
    %1542 = vmatpush1.msra.mxu0 0.0
    %1543 = vmatprep.mubr.f32.mxu0 0.0
    %1544 = vmatmul.mubr.f32.gmra.mrb[0].mxu0 %v1407
    %v1545 = vpop.f32.mrb[0].mxu0
    %v1546 = vadd.f32 %v756, %v1545
    %v1547 = vpop.f32.mrb[0].mxu0
    %1548 = vdwg.mxu0
    %v1549 = vadd.f32 %v327, %v1475
    %v1550 = vxor.u32 %v1549, 2147483648
    %v1551 = vmul.f32 %v1550, 1.442695
    %v1552 = vpow.pop %v1551
    %v1553 = vadd.f32 %v1552, 1.0
    %v1554 = vrcp.pop %v1553
    %v1555 = vmul.f32 1.0, %v1554
    %v1556 = vadd.f32 %v329, %v1477
    %v1557 = vxor.u32 %v1556, 2147483648
    %v1558 = vmul.f32 %v1557, 1.442695
    %v1559 = vpow.pop %v1558
    %v1560 = vadd.f32 %v1559, 1.0
    %v1561 = vrcp.pop %v1560
    %v1562 = vmul.f32 1.0, %v1561
    %v1563 = vmul.f32 %v1555, %v1546
    %v1564 = vadd.f32 %v436, %v1563
    %v1565 = vtanh.pop %v1564
    %v1566 = vsub.f32 1.0, %v1562
    %v1567 = vmul.f32 %v1566, %v1565
    %v1568 = vmul.f32 %v1562, %v1407
    %v1569 = vadd.f32 %v1567, %v1568
    %1570 = vmatprep.subr.mxu0 %v696
    %1571 = vmatpush1.msra.mxu0 %v695
    %1572 = vmatprep.subr.mxu0 %v699
    %1573 = vmatpush1.msra.mxu0 %v698
    %1574 = vmatprep.subr.mxu0 %v702
    %1575 = vmatpush1.msra.mxu0 %v701
    %1576 = vmatprep.subr.mxu0 %v705
    %1577 = vmatpush1.msra.mxu0 %v704
    %1578 = vmatprep.subr.mxu0 %v708
    %1579 = vmatpush1.msra.mxu0 %v707
    %1580 = vmatprep.subr.mxu0 %v711
    %1581 = vmatpush1.msra.mxu0 %v710
    %1582 = vmatprep.subr.mxu0 %v714
    %1583 = vmatpush1.msra.mxu0 %v713
    %1584 = vmatprep.subr.mxu0 %v717
    %1585 = vmatpush1.msra.mxu0 %v716
    %1586 = vmatprep.subr.mxu0 %v720
    %1587 = vmatpush1.msra.mxu0 %v719
    %1588 = vmatprep.subr.mxu0 %v723
    %1589 = vmatpush1.msra.mxu0 %v722
    %1590 = vmatprep.subr.mxu0 %v726
    %1591 = vmatpush1.msra.mxu0 %v725
    %1592 = vmatprep.subr.mxu0 %v729
    %1593 = vmatpush1.msra.mxu0 %v728
    %1594 = vmatprep.subr.mxu0 %v732
    %1595 = vmatpush1.msra.mxu0 %v731
    %1596 = vmatprep.subr.mxu0 %v735
    %1597 = vmatpush1.msra.mxu0 %v734
    %1598 = vmatprep.subr.mxu0 %v738
    %1599 = vmatpush1.msra.mxu0 %v737
    %1600 = vmatprep.subr.mxu0 %v741
    %1601 = vmatpush1.msra.mxu0 %v740
    %1602 = vmatprep.subr.mxu0 0.0
    %1603 = vmatpush1.msra.mxu0 0.0
    %1604 = vmatprep.subr.mxu0 0.0
    %1605 = vmatpush1.msra.mxu0 0.0
    %1606 = vmatprep.subr.mxu0 0.0
    %1607 = vmatpush1.msra.mxu0 0.0
    %1608 = vmatprep.subr.mxu0 0.0
    %1609 = vmatpush1.msra.mxu0 0.0
    %1610 = vmatprep.subr.mxu0 0.0
    %1611 = vmatpush1.msra.mxu0 0.0
    %1612 = vmatprep.subr.mxu0 0.0
    %1613 = vmatpush1.msra.mxu0 0.0
    %1614 = vmatprep.subr.mxu0 0.0
    %1615 = vmatpush1.msra.mxu0 0.0
    %1616 = vmatprep.subr.mxu0 0.0
    %1617 = vmatpush1.msra.mxu0 0.0
    %1618 = vmatprep.subr.mxu0 0.0
    %1619 = vmatpush1.msra.mxu0 0.0
    %1620 = vmatprep.subr.mxu0 0.0
    %1621 = vmatpush1.msra.mxu0 0.0
    %1622 = vmatprep.subr.mxu0 0.0
    %1623 = vmatpush1.msra.mxu0 0.0
    %1624 = vmatprep.subr.mxu0 0.0
    %1625 = vmatpush1.msra.mxu0 0.0
    %1626 = vmatprep.subr.mxu0 0.0
    %1627 = vmatpush1.msra.mxu0 0.0
    %1628 = vmatprep.subr.mxu0 0.0
    %1629 = vmatpush1.msra.mxu0 0.0
    %1630 = vmatprep.subr.mxu0 0.0
    %1631 = vmatpush1.msra.mxu0 0.0
    %1632 = vmatprep.subr.mxu0 0.0
    %1633 = vmatpush1.msra.mxu0 0.0
    %1634 = vmatprep.mubr.f32.mxu0 0.0
    %1635 = vmatmul.mubr.f32.gmra.mrb[0].mxu0 %v1569
    %v1636 = vpop.f32.mrb[0].mxu0
    %v1637 = vadd.f32 %v748, %v1636
    %v1638 = vpop.f32.mrb[0].mxu0
    %v1639 = vadd.f32 %v752, %v1638
    %1640 = vdwg.mxu0
    %1641 = vmatprep.subr.mxu0 0.0
    %1642 = vmatpush1.msra.mxu0 %v697
    %1643 = vmatprep.subr.mxu0 0.0
    %1644 = vmatpush1.msra.mxu0 %v700
    %1645 = vmatprep.subr.mxu0 0.0
    %1646 = vmatpush1.msra.mxu0 %v703
    %1647 = vmatprep.subr.mxu0 0.0
    %1648 = vmatpush1.msra.mxu0 %v706
    %1649 = vmatprep.subr.mxu0 0.0
    %1650 = vmatpush1.msra.mxu0 %v709
    %1651 = vmatprep.subr.mxu0 0.0
    %1652 = vmatpush1.msra.mxu0 %v712
    %1653 = vmatprep.subr.mxu0 0.0
    %1654 = vmatpush1.msra.mxu0 %v715
    %1655 = vmatprep.subr.mxu0 0.0
    %1656 = vmatpush1.msra.mxu0 %v718
    %1657 = vmatprep.subr.mxu0 0.0
    %1658 = vmatpush1.msra.mxu0 %v721
    %1659 = vmatprep.subr.mxu0 0.0
    %1660 = vmatpush1.msra.mxu0 %v724
    %1661 = vmatprep.subr.mxu0 0.0
    %1662 = vmatpush1.msra.mxu0 %v727
    %1663 = vmatprep.subr.mxu0 0.0
    %1664 = vmatpush1.msra.mxu0 %v730
    %1665 = vmatprep.subr.mxu0 0.0
    %1666 = vmatpush1.msra.mxu0 %v733
    %1667 = vmatprep.subr.mxu0 0.0
    %1668 = vmatpush1.msra.mxu0 %v736
    %1669 = vmatprep.subr.mxu0 0.0
    %1670 = vmatpush1.msra.mxu0 %v739
    %1671 = vmatprep.subr.mxu0 0.0
    %1672 = vmatpush1.msra.mxu0 %v742
    %1673 = vmatprep.subr.mxu0 0.0
    %1674 = vmatpush1.msra.mxu0 0.0
    %1675 = vmatprep.subr.mxu0 0.0
    %1676 = vmatpush1.msra.mxu0 0.0
    %1677 = vmatprep.subr.mxu0 0.0
    %1678 = vmatpush1.msra.mxu0 0.0
    %1679 = vmatprep.subr.mxu0 0.0
    %1680 = vmatpush1.msra.mxu0 0.0
    %1681 = vmatprep.subr.mxu0 0.0
    %1682 = vmatpush1.msra.mxu0 0.0
    %1683 = vmatprep.subr.mxu0 0.0
    %1684 = vmatpush1.msra.mxu0 0.0
    %1685 = vmatprep.subr.mxu0 0.0
    %1686 = vmatpush1.msra.mxu0 0.0
    %1687 = vmatprep.subr.mxu0 0.0
    %1688 = vmatpush1.msra.mxu0 0.0
    %1689 = vmatprep.subr.mxu0 0.0
    %1690 = vmatpush1.msra.mxu0 0.0
    %1691 = vmatprep.subr.mxu0 0.0
    %1692 = vmatpush1.msra.mxu0 0.0
    %1693 = vmatprep.subr.mxu0 0.0
    %1694 = vmatpush1.msra.mxu0 0.0
    %1695 = vmatprep.subr.mxu0 0.0
    %1696 = vmatpush1.msra.mxu0 0.0
    %1697 = vmatprep.subr.mxu0 0.0
    %1698 = vmatpush1.msra.mxu0 0.0
    %1699 = vmatprep.subr.mxu0 0.0
    %1700 = vmatpush1.msra.mxu0 0.0
    %1701 = vmatprep.subr.mxu0 0.0
    %1702 = vmatpush1.msra.mxu0 0.0
    %1703 = vmatprep.subr.mxu0 0.0
    %1704 = vmatpush1.msra.mxu0 0.0
    %1705 = vmatprep.mubr.f32.mxu0 0.0
    %1706 = vmatmul.mubr.f32.gmra.mrb[0].mxu0 %v1569
    %v1707 = vpop.f32.mrb[0].mxu0
    %v1708 = vadd.f32 %v756, %v1707
    %v1709 = vpop.f32.mrb[0].mxu0
    %1710 = vdwg.mxu0
    %v1711 = vadd.f32 %v333, %v1637
    %v1712 = vxor.u32 %v1711, 2147483648
    %v1713 = vmul.f32 %v1712, 1.442695
    %v1714 = vpow.pop %v1713
    %v1715 = vadd.f32 %v1714, 1.0
    %v1716 = vrcp.pop %v1715
    %v1717 = vmul.f32 1.0, %v1716
    %v1718 = vadd.f32 %v335, %v1639
    %v1719 = vxor.u32 %v1718, 2147483648
    %v1720 = vmul.f32 %v1719, 1.442695
    %v1721 = vpow.pop %v1720
    %v1722 = vadd.f32 %v1721, 1.0
    %v1723 = vrcp.pop %v1722
    %v1724 = vmul.f32 1.0, %v1723
    %v1725 = vmul.f32 %v1717, %v1708
    %v1726 = vadd.f32 %v441, %v1725
    %v1727 = vtanh.pop %v1726
    %v1728 = vsub.f32 1.0, %v1724
    %v1729 = vmul.f32 %v1728, %v1727
    %v1730 = vmul.f32 %v1724, %v1569
    %v1731 = vadd.f32 %v1729, %v1730
    %1732 = vmatprep.subr.mxu0 %v696
    %1733 = vmatpush1.msra.mxu0 %v695
    %1734 = vmatprep.subr.mxu0 %v699
    %1735 = vmatpush1.msra.mxu0 %v698
    %1736 = vmatprep.subr.mxu0 %v702
    %1737 = vmatpush1.msra.mxu0 %v701
    %1738 = vmatprep.subr.mxu0 %v705
    %1739 = vmatpush1.msra.mxu0 %v704
    %1740 = vmatprep.subr.mxu0 %v708
    %1741 = vmatpush1.msra.mxu0 %v707
    %1742 = vmatprep.subr.mxu0 %v711
    %1743 = vmatpush1.msra.mxu0 %v710
    %1744 = vmatprep.subr.mxu0 %v714
    %1745 = vmatpush1.msra.mxu0 %v713
    %1746 = vmatprep.subr.mxu0 %v717
    %1747 = vmatpush1.msra.mxu0 %v716
    %1748 = vmatprep.subr.mxu0 %v720
    %1749 = vmatpush1.msra.mxu0 %v719
    %1750 = vmatprep.subr.mxu0 %v723
    %1751 = vmatpush1.msra.mxu0 %v722
    %1752 = vmatprep.subr.mxu0 %v726
    %1753 = vmatpush1.msra.mxu0 %v725
    %1754 = vmatprep.subr.mxu0 %v729
    %1755 = vmatpush1.msra.mxu0 %v728
    %1756 = vmatprep.subr.mxu0 %v732
    %1757 = vmatpush1.msra.mxu0 %v731
    %1758 = vmatprep.subr.mxu0 %v735
    %1759 = vmatpush1.msra.mxu0 %v734
    %1760 = vmatprep.subr.mxu0 %v738
    %1761 = vmatpush1.msra.mxu0 %v737
    %1762 = vmatprep.subr.mxu0 %v741
    %1763 = vmatpush1.msra.mxu0 %v740
    %1764 = vmatprep.subr.mxu0 0.0
    %1765 = vmatpush1.msra.mxu0 0.0
    %1766 = vmatprep.subr.mxu0 0.0
    %1767 = vmatpush1.msra.mxu0 0.0
    %1768 = vmatprep.subr.mxu0 0.0
    %1769 = vmatpush1.msra.mxu0 0.0
    %1770 = vmatprep.subr.mxu0 0.0
    %1771 = vmatpush1.msra.mxu0 0.0
    %1772 = vmatprep.subr.mxu0 0.0
    %1773 = vmatpush1.msra.mxu0 0.0
    %1774 = vmatprep.subr.mxu0 0.0
    %1775 = vmatpush1.msra.mxu0 0.0
    %1776 = vmatprep.subr.mxu0 0.0
    %1777 = vmatpush1.msra.mxu0 0.0
    %1778 = vmatprep.subr.mxu0 0.0
    %1779 = vmatpush1.msra.mxu0 0.0
    %1780 = vmatprep.subr.mxu0 0.0
    %1781 = vmatpush1.msra.mxu0 0.0
    %1782 = vmatprep.subr.mxu0 0.0
    %1783 = vmatpush1.msra.mxu0 0.0
    %1784 = vmatprep.subr.mxu0 0.0
    %1785 = vmatpush1.msra.mxu0 0.0
    %1786 = vmatprep.subr.mxu0 0.0
    %1787 = vmatpush1.msra.mxu0 0.0
    %1788 = vmatprep.subr.mxu0 0.0
    %1789 = vmatpush1.msra.mxu0 0.0
    %1790 = vmatprep.subr.mxu0 0.0
    %1791 = vmatpush1.msra.mxu0 0.0
    %1792 = vmatprep.subr.mxu0 0.0
    %1793 = vmatpush1.msra.mxu0 0.0
    %1794 = vmatprep.subr.mxu0 0.0
    %1795 = vmatpush1.msra.mxu0 0.0
    %1796 = vmatprep.mubr.f32.mxu0 0.0
    %1797 = vmatmul.mubr.f32.gmra.mrb[0].mxu0 %v1731
    %v1798 = vpop.f32.mrb[0].mxu0
    %v1799 = vadd.f32 %v748, %v1798
    %v1800 = vpop.f32.mrb[0].mxu0
    %v1801 = vadd.f32 %v752, %v1800
    %1802 = vdwg.mxu0
    %1803 = vmatprep.subr.mxu0 0.0
    %1804 = vmatpush1.msra.mxu0 %v697
    %1805 = vmatprep.subr.mxu0 0.0
    %1806 = vmatpush1.msra.mxu0 %v700
    %1807 = vmatprep.subr.mxu0 0.0
    %1808 = vmatpush1.msra.mxu0 %v703
    %1809 = vmatprep.subr.mxu0 0.0
    %1810 = vmatpush1.msra.mxu0 %v706
    %1811 = vmatprep.subr.mxu0 0.0
    %1812 = vmatpush1.msra.mxu0 %v709
    %1813 = vmatprep.subr.mxu0 0.0
    %1814 = vmatpush1.msra.mxu0 %v712
    %1815 = vmatprep.subr.mxu0 0.0
    %1816 = vmatpush1.msra.mxu0 %v715
    %1817 = vmatprep.subr.mxu0 0.0
    %1818 = vmatpush1.msra.mxu0 %v718
    %1819 = vmatprep.subr.mxu0 0.0
    %1820 = vmatpush1.msra.mxu0 %v721
    %1821 = vmatprep.subr.mxu0 0.0
    %1822 = vmatpush1.msra.mxu0 %v724
    %1823 = vmatprep.subr.mxu0 0.0
    %1824 = vmatpush1.msra.mxu0 %v727
    %1825 = vmatprep.subr.mxu0 0.0
    %1826 = vmatpush1.msra.mxu0 %v730
    %1827 = vmatprep.subr.mxu0 0.0
    %1828 = vmatpush1.msra.mxu0 %v733
    %1829 = vmatprep.subr.mxu0 0.0
    %1830 = vmatpush1.msra.mxu0 %v736
    %1831 = vmatprep.subr.mxu0 0.0
    %1832 = vmatpush1.msra.mxu0 %v739
    %1833 = vmatprep.subr.mxu0 0.0
    %1834 = vmatpush1.msra.mxu0 %v742
    %1835 = vmatprep.subr.mxu0 0.0
    %1836 = vmatpush1.msra.mxu0 0.0
    %1837 = vmatprep.subr.mxu0 0.0
    %1838 = vmatpush1.msra.mxu0 0.0
    %1839 = vmatprep.subr.mxu0 0.0
    %1840 = vmatpush1.msra.mxu0 0.0
    %1841 = vmatprep.subr.mxu0 0.0
    %1842 = vmatpush1.msra.mxu0 0.0
    %1843 = vmatprep.subr.mxu0 0.0
    %1844 = vmatpush1.msra.mxu0 0.0
    %1845 = vmatprep.subr.mxu0 0.0
    %1846 = vmatpush1.msra.mxu0 0.0
    %1847 = vmatprep.subr.mxu0 0.0
    %1848 = vmatpush1.msra.mxu0 0.0
    %1849 = vmatprep.subr.mxu0 0.0
    %1850 = vmatpush1.msra.mxu0 0.0
    %1851 = vmatprep.subr.mxu0 0.0
    %1852 = vmatpush1.msra.mxu0 0.0
    %1853 = vmatprep.subr.mxu0 0.0
    %1854 = vmatpush1.msra.mxu0 0.0
    %1855 = vmatprep.subr.mxu0 0.0
    %1856 = vmatpush1.msra.mxu0 0.0
    %1857 = vmatprep.subr.mxu0 0.0
    %1858 = vmatpush1.msra.mxu0 0.0
    %1859 = vmatprep.subr.mxu0 0.0
    %1860 = vmatpush1.msra.mxu0 0.0
    %1861 = vmatprep.subr.mxu0 0.0
    %1862 = vmatpush1.msra.mxu0 0.0
    %1863 = vmatprep.subr.mxu0 0.0
    %1864 = vmatpush1.msra.mxu0 0.0
    %1865 = vmatprep.subr.mxu0 0.0
    %1866 = vmatpush1.msra.mxu0 0.0
    %1867 = vmatprep.mubr.f32.mxu0 0.0
    %1868 = vmatmul.mubr.f32.gmra.mrb[0].mxu0 %v1731
    %v1869 = vpop.f32.mrb[0].mxu0
    %v1870 = vadd.f32 %v756, %v1869
    %v1871 = vpop.f32.mrb[0].mxu0
    %1872 = vdwg.mxu0
    %v1873 = vadd.f32 %v339, %v1799
    %v1874 = vxor.u32 %v1873, 2147483648
    %v1875 = vmul.f32 %v1874, 1.442695
    %v1876 = vpow.pop %v1875
    %v1877 = vadd.f32 %v1876, 1.0
    %v1878 = vrcp.pop %v1877
    %v1879 = vmul.f32 1.0, %v1878
    %v1880 = vadd.f32 %v341, %v1801
    %v1881 = vxor.u32 %v1880, 2147483648
    %v1882 = vmul.f32 %v1881, 1.442695
    %v1883 = vpow.pop %v1882
    %v1884 = vadd.f32 %v1883, 1.0
    %v1885 = vrcp.pop %v1884
    %v1886 = vmul.f32 1.0, %v1885
    %v1887 = vmul.f32 %v1879, %v1870
    %v1888 = vadd.f32 %v446, %v1887
    %v1889 = vtanh.pop %v1888
    %v1890 = vsub.f32 1.0, %v1886
    %v1891 = vmul.f32 %v1890, %v1889
    %v1892 = vmul.f32 %v1886, %v1731
    %v1893 = vadd.f32 %v1891, %v1892
    %1894 = vmatprep.subr.mxu0 %v696
    %1895 = vmatpush1.msra.mxu0 %v695
    %1896 = vmatprep.subr.mxu0 %v699
    %1897 = vmatpush1.msra.mxu0 %v698
    %1898 = vmatprep.subr.mxu0 %v702
    %1899 = vmatpush1.msra.mxu0 %v701
    %1900 = vmatprep.subr.mxu0 %v705
    %1901 = vmatpush1.msra.mxu0 %v704
    %1902 = vmatprep.subr.mxu0 %v708
    %1903 = vmatpush1.msra.mxu0 %v707
    %1904 = vmatprep.subr.mxu0 %v711
    %1905 = vmatpush1.msra.mxu0 %v710
    %1906 = vmatprep.subr.mxu0 %v714
    %1907 = vmatpush1.msra.mxu0 %v713
    %1908 = vmatprep.subr.mxu0 %v717
    %1909 = vmatpush1.msra.mxu0 %v716
    %1910 = vmatprep.subr.mxu0 %v720
    %1911 = vmatpush1.msra.mxu0 %v719
    %1912 = vmatprep.subr.mxu0 %v723
    %1913 = vmatpush1.msra.mxu0 %v722
    %1914 = vmatprep.subr.mxu0 %v726
    %1915 = vmatpush1.msra.mxu0 %v725
    %1916 = vmatprep.subr.mxu0 %v729
    %1917 = vmatpush1.msra.mxu0 %v728
    %1918 = vmatprep.subr.mxu0 %v732
    %1919 = vmatpush1.msra.mxu0 %v731
    %1920 = vmatprep.subr.mxu0 %v735
    %1921 = vmatpush1.msra.mxu0 %v734
    %1922 = vmatprep.subr.mxu0 %v738
    %1923 = vmatpush1.msra.mxu0 %v737
    %1924 = vmatprep.subr.mxu0 %v741
    %1925 = vmatpush1.msra.mxu0 %v740
    %1926 = vmatprep.subr.mxu0 0.0
    %1927 = vmatpush1.msra.mxu0 0.0
    %1928 = vmatprep.subr.mxu0 0.0
    %1929 = vmatpush1.msra.mxu0 0.0
    %1930 = vmatprep.subr.mxu0 0.0
    %1931 = vmatpush1.msra.mxu0 0.0
    %1932 = vmatprep.subr.mxu0 0.0
    %1933 = vmatpush1.msra.mxu0 0.0
    %1934 = vmatprep.subr.mxu0 0.0
    %1935 = vmatpush1.msra.mxu0 0.0
    %1936 = vmatprep.subr.mxu0 0.0
    %1937 = vmatpush1.msra.mxu0 0.0
    %1938 = vmatprep.subr.mxu0 0.0
    %1939 = vmatpush1.msra.mxu0 0.0
    %1940 = vmatprep.subr.mxu0 0.0
    %1941 = vmatpush1.msra.mxu0 0.0
    %1942 = vmatprep.subr.mxu0 0.0
    %1943 = vmatpush1.msra.mxu0 0.0
    %1944 = vmatprep.subr.mxu0 0.0
    %1945 = vmatpush1.msra.mxu0 0.0
    %1946 = vmatprep.subr.mxu0 0.0
    %1947 = vmatpush1.msra.mxu0 0.0
    %1948 = vmatprep.subr.mxu0 0.0
    %1949 = vmatpush1.msra.mxu0 0.0
    %1950 = vmatprep.subr.mxu0 0.0
    %1951 = vmatpush1.msra.mxu0 0.0
    %1952 = vmatprep.subr.mxu0 0.0
    %1953 = vmatpush1.msra.mxu0 0.0
    %1954 = vmatprep.subr.mxu0 0.0
    %1955 = vmatpush1.msra.mxu0 0.0
    %1956 = vmatprep.subr.mxu0 0.0
    %1957 = vmatpush1.msra.mxu0 0.0
    %1958 = vmatprep.mubr.f32.mxu0 0.0
    %1959 = vmatmul.mubr.f32.gmra.mrb[0].mxu0 %v1893
    %v1960 = vpop.f32.mrb[0].mxu0
    %v1961 = vadd.f32 %v748, %v1960
    %v1962 = vpop.f32.mrb[0].mxu0
    %v1963 = vadd.f32 %v752, %v1962
    %1964 = vdwg.mxu0
    %1965 = vmatprep.subr.mxu0 0.0
    %1966 = vmatpush1.msra.mxu0 %v697
    %1967 = vmatprep.subr.mxu0 0.0
    %1968 = vmatpush1.msra.mxu0 %v700
    %1969 = vmatprep.subr.mxu0 0.0
    %1970 = vmatpush1.msra.mxu0 %v703
    %1971 = vmatprep.subr.mxu0 0.0
    %1972 = vmatpush1.msra.mxu0 %v706
    %1973 = vmatprep.subr.mxu0 0.0
    %1974 = vmatpush1.msra.mxu0 %v709
    %1975 = vmatprep.subr.mxu0 0.0
    %1976 = vmatpush1.msra.mxu0 %v712
    %1977 = vmatprep.subr.mxu0 0.0
    %1978 = vmatpush1.msra.mxu0 %v715
    %1979 = vmatprep.subr.mxu0 0.0
    %1980 = vmatpush1.msra.mxu0 %v718
    %1981 = vmatprep.subr.mxu0 0.0
    %1982 = vmatpush1.msra.mxu0 %v721
    %1983 = vmatprep.subr.mxu0 0.0
    %1984 = vmatpush1.msra.mxu0 %v724
    %1985 = vmatprep.subr.mxu0 0.0
    %1986 = vmatpush1.msra.mxu0 %v727
    %1987 = vmatprep.subr.mxu0 0.0
    %1988 = vmatpush1.msra.mxu0 %v730
    %1989 = vmatprep.subr.mxu0 0.0
    %1990 = vmatpush1.msra.mxu0 %v733
    %1991 = vmatprep.subr.mxu0 0.0
    %1992 = vmatpush1.msra.mxu0 %v736
    %1993 = vmatprep.subr.mxu0 0.0
    %1994 = vmatpush1.msra.mxu0 %v739
    %1995 = vmatprep.subr.mxu0 0.0
    %1996 = vmatpush1.msra.mxu0 %v742
    %1997 = vmatprep.subr.mxu0 0.0
    %1998 = vmatpush1.msra.mxu0 0.0
    %1999 = vmatprep.subr.mxu0 0.0
    %2000 = vmatpush1.msra.mxu0 0.0
    %2001 = vmatprep.subr.mxu0 0.0
    %2002 = vmatpush1.msra.mxu0 0.0
    %2003 = vmatprep.subr.mxu0 0.0
    %2004 = vmatpush1.msra.mxu0 0.0
    %2005 = vmatprep.subr.mxu0 0.0
    %2006 = vmatpush1.msra.mxu0 0.0
    %2007 = vmatprep.subr.mxu0 0.0
    %2008 = vmatpush1.msra.mxu0 0.0
    %2009 = vmatprep.subr.mxu0 0.0
    %2010 = vmatpush1.msra.mxu0 0.0
    %2011 = vmatprep.subr.mxu0 0.0
    %2012 = vmatpush1.msra.mxu0 0.0
    %2013 = vmatprep.subr.mxu0 0.0
    %2014 = vmatpush1.msra.mxu0 0.0
    %2015 = vmatprep.subr.mxu0 0.0
    %2016 = vmatpush1.msra.mxu0 0.0
    %2017 = vmatprep.subr.mxu0 0.0
    %2018 = vmatpush1.msra.mxu0 0.0
    %2019 = vmatprep.subr.mxu0 0.0
    %2020 = vmatpush1.msra.mxu0 0.0
    %2021 = vmatprep.subr.mxu0 0.0
    %2022 = vmatpush1.msra.mxu0 0.0
    %2023 = vmatprep.subr.mxu0 0.0
    %2024 = vmatpush1.msra.mxu0 0.0
    %2025 = vmatprep.subr.mxu0 0.0
    %2026 = vmatpush1.msra.mxu0 0.0
    %2027 = vmatprep.subr.mxu0 0.0
    %2028 = vmatpush1.msra.mxu0 0.0
    %2029 = vmatprep.mubr.f32.mxu0 0.0
    %2030 = vmatmul.mubr.f32.gmra.mrb[0].mxu0 %v1893
    %v2031 = vpop.f32.mrb[0].mxu0
    %v2032 = vadd.f32 %v756, %v2031
    %v2033 = vpop.f32.mrb[0].mxu0
    %2034 = vdwg.mxu0
    %v2035 = vadd.f32 %v345, %v1961
    %v2036 = vxor.u32 %v2035, 2147483648
    %v2037 = vmul.f32 %v2036, 1.442695
    %v2038 = vpow.pop %v2037
    %v2039 = vadd.f32 %v2038, 1.0
    %v2040 = vrcp.pop %v2039
    %v2041 = vmul.f32 1.0, %v2040
    %v2042 = vadd.f32 %v347, %v1963
    %v2043 = vxor.u32 %v2042, 2147483648
    %v2044 = vmul.f32 %v2043, 1.442695
    %v2045 = vpow.pop %v2044
    %v2046 = vadd.f32 %v2045, 1.0
    %v2047 = vrcp.pop %v2046
    %v2048 = vmul.f32 1.0, %v2047
    %v2049 = vmul.f32 %v2041, %v2032
    %v2050 = vadd.f32 %v451, %v2049
    %v2051 = vtanh.pop %v2050
    %v2052 = vsub.f32 1.0, %v2048
    %v2053 = vmul.f32 %v2052, %v2051
    %v2054 = vmul.f32 %v2048, %v1893
    %v2055 = vadd.f32 %v2053, %v2054
    %v2056 = vld [vmem:[#allocation9] sm:$0xff]
    %v2057 = vld [vmem:[#allocation9 + $0x8] sm:$0xff]
    %v2058 = vld [vmem:[#allocation9 + $0x10] sm:$0xff]
    %v2059 = vld [vmem:[#allocation9 + $0x18] sm:$0xff]
    %v2060 = vld [vmem:[#allocation9 + $0x20] sm:$0xff]
    %v2061 = vld [vmem:[#allocation9 + $0x28] sm:$0xff]
    %v2062 = vld [vmem:[#allocation9 + $0x30] sm:$0xff]
    %v2063 = vld [vmem:[#allocation9 + $0x38] sm:$0xff]
    %v2064 = vld [vmem:[#allocation9 + $0x40] sm:$0xff]
    %v2065 = vld [vmem:[#allocation9 + $0x48] sm:$0xff]
    %v2066 = vld [vmem:[#allocation9 + $0x50] sm:$0xff]
    %v2067 = vld [vmem:[#allocation9 + $0x58] sm:$0xff]
    %v2068 = vld [vmem:[#allocation9 + $0x60] sm:$0xff]
    %v2069 = vld [vmem:[#allocation9 + $0x68] sm:$0xff]
    %v2070 = vld [vmem:[#allocation9 + $0x70] sm:$0xff]
    %v2071 = vld [vmem:[#allocation9 + $0x78] sm:$0xff]
    %v2072 = vld [vmem:[#allocation9 + $0x80] sm:$0xff]
    %v2073 = vld [vmem:[#allocation9 + $0x88] sm:$0xff]
    %v2074 = vld [vmem:[#allocation9 + $0x90] sm:$0xff]
    %v2075 = vld [vmem:[#allocation9 + $0x98] sm:$0xff]
    %v2076 = vld [vmem:[#allocation9 + $0xa0] sm:$0xff]
    %v2077 = vld [vmem:[#allocation9 + $0xa8] sm:$0xff]
    %v2078 = vld [vmem:[#allocation9 + $0xb0] sm:$0xff]
    %v2079 = vld [vmem:[#allocation9 + $0xb8] sm:$0xff]
    %v2080 = vld [vmem:[#allocation9 + $0xc0] sm:$0xff]
    %v2081 = vld [vmem:[#allocation9 + $0xc8] sm:$0xff]
    %v2082 = vld [vmem:[#allocation9 + $0xd0] sm:$0xff]
    %v2083 = vld [vmem:[#allocation9 + $0xd8] sm:$0xff]
    %v2084 = vld [vmem:[#allocation9 + $0xe0] sm:$0xff]
    %v2085 = vld [vmem:[#allocation9 + $0xe8] sm:$0xff]
    %v2086 = vld [vmem:[#allocation9 + $0xf0] sm:$0xff]
    %v2087 = vld [vmem:[#allocation9 + $0xf8] sm:$0xff]
    %v2088 = vld [vmem:[#allocation9 + $0x100] sm:$0xff]
    %v2089 = vld [vmem:[#allocation9 + $0x108] sm:$0xff]
    %v2090 = vld [vmem:[#allocation9 + $0x110] sm:$0xff]
    %v2091 = vld [vmem:[#allocation9 + $0x118] sm:$0xff]
    %v2092 = vld [vmem:[#allocation9 + $0x120] sm:$0xff]
    %v2093 = vld [vmem:[#allocation9 + $0x128] sm:$0xff]
    %v2094 = vld [vmem:[#allocation9 + $0x130] sm:$0xff]
    %v2095 = vld [vmem:[#allocation9 + $0x138] sm:$0xff]
    %v2096 = vld [vmem:[#allocation9 + $0x140] sm:$0xff]
    %v2097 = vld [vmem:[#allocation9 + $0x148] sm:$0xff]
    %v2098 = vld [vmem:[#allocation9 + $0x150] sm:$0xff]
    %v2099 = vld [vmem:[#allocation9 + $0x158] sm:$0xff]
    %v2100 = vld [vmem:[#allocation9 + $0x160] sm:$0xff]
    %v2101 = vld [vmem:[#allocation9 + $0x168] sm:$0xff]
    %v2102 = vld [vmem:[#allocation9 + $0x170] sm:$0xff]
    %v2103 = vld [vmem:[#allocation9 + $0x178] sm:$0xff]
    %v2104 = vld [vmem:[%s8] sm:$0x7]
    %v2106 = vlaneseq
    %v2107 = vshrl.u32 %v2106, 7
    %v2108 = vsub.s32 0, %v2107
    %v2109 = vrot.slane %v2104, %v2108
    %v2110 = vlaneseq
    %v2111 = vshrl.u32 %v2110, 7
    %v2112 = vsub.s32 1, %v2111
    %v2113 = vrot.slane %v2104, %v2112
    %v2114 = vlaneseq
    %v2115 = vshrl.u32 %v2114, 7
    %v2116 = vsub.s32 2, %v2115
    %v2117 = vrot.slane %v2104, %v2116
    %2121 = vmatprep.subr.mxu0 %v2057
    %2122 = vmatpush1.msra.mxu0 %v2056
    %2123 = vmatprep.subr.mxu0 %v2060
    %2124 = vmatpush1.msra.mxu0 %v2059
    %2125 = vmatprep.subr.mxu0 %v2063
    %2126 = vmatpush1.msra.mxu0 %v2062
    %2127 = vmatprep.subr.mxu0 %v2066
    %2128 = vmatpush1.msra.mxu0 %v2065
    %2129 = vmatprep.subr.mxu0 %v2069
    %2130 = vmatpush1.msra.mxu0 %v2068
    %2131 = vmatprep.subr.mxu0 %v2072
    %2132 = vmatpush1.msra.mxu0 %v2071
    %2133 = vmatprep.subr.mxu0 %v2075
    %2134 = vmatpush1.msra.mxu0 %v2074
    %2135 = vmatprep.subr.mxu0 %v2078
    %2136 = vmatpush1.msra.mxu0 %v2077
    %2137 = vmatprep.subr.mxu0 %v2081
    %2138 = vmatpush1.msra.mxu0 %v2080
    %2139 = vmatprep.subr.mxu0 %v2084
    %2140 = vmatpush1.msra.mxu0 %v2083
    %2141 = vmatprep.subr.mxu0 %v2087
    %2142 = vmatpush1.msra.mxu0 %v2086
    %2143 = vmatprep.subr.mxu0 %v2090
    %2144 = vmatpush1.msra.mxu0 %v2089
    %2145 = vmatprep.subr.mxu0 %v2093
    %2146 = vmatpush1.msra.mxu0 %v2092
    %2147 = vmatprep.subr.mxu0 %v2096
    %2148 = vmatpush1.msra.mxu0 %v2095
    %2149 = vmatprep.subr.mxu0 %v2099
    %2150 = vmatpush1.msra.mxu0 %v2098
    %2151 = vmatprep.subr.mxu0 %v2102
    %2152 = vmatpush1.msra.mxu0 %v2101
    %2153 = vmatprep.subr.mxu0 0.0
    %2154 = vmatpush1.msra.mxu0 0.0
    %2155 = vmatprep.subr.mxu0 0.0
    %2156 = vmatpush1.msra.mxu0 0.0
    %2157 = vmatprep.subr.mxu0 0.0
    %2158 = vmatpush1.msra.mxu0 0.0
    %2159 = vmatprep.subr.mxu0 0.0
    %2160 = vmatpush1.msra.mxu0 0.0
    %2161 = vmatprep.subr.mxu0 0.0
    %2162 = vmatpush1.msra.mxu0 0.0
    %2163 = vmatprep.subr.mxu0 0.0
    %2164 = vmatpush1.msra.mxu0 0.0
    %2165 = vmatprep.subr.mxu0 0.0
    %2166 = vmatpush1.msra.mxu0 0.0
    %2167 = vmatprep.subr.mxu0 0.0
    %2168 = vmatpush1.msra.mxu0 0.0
    %2169 = vmatprep.subr.mxu0 0.0
    %2170 = vmatpush1.msra.mxu0 0.0
    %2171 = vmatprep.subr.mxu0 0.0
    %2172 = vmatpush1.msra.mxu0 0.0
    %2173 = vmatprep.subr.mxu0 0.0
    %2174 = vmatpush1.msra.mxu0 0.0
    %2175 = vmatprep.subr.mxu0 0.0
    %2176 = vmatpush1.msra.mxu0 0.0
    %2177 = vmatprep.subr.mxu0 0.0
    %2178 = vmatpush1.msra.mxu0 0.0
    %2179 = vmatprep.subr.mxu0 0.0
    %2180 = vmatpush1.msra.mxu0 0.0
    %2181 = vmatprep.subr.mxu0 0.0
    %2182 = vmatpush1.msra.mxu0 0.0
    %2183 = vmatprep.subr.mxu0 0.0
    %2184 = vmatpush1.msra.mxu0 0.0
    %2185 = vmatprep.mubr.f32.mxu0 0.0
    %2186 = vmatmul.mubr.f32.gmra.mrb[0].mxu0 0.0
    %v2187 = vpop.f32.mrb[0].mxu0
    %v2188 = vadd.f32 %v2109, %v2187
    %v2189 = vpop.f32.mrb[0].mxu0
    %v2190 = vadd.f32 %v2113, %v2189
    %2191 = vdwg.mxu0
    %2192 = vmatprep.subr.mxu0 0.0
    %2193 = vmatpush1.msra.mxu0 %v2058
    %2194 = vmatprep.subr.mxu0 0.0
    %2195 = vmatpush1.msra.mxu0 %v2061
    %2196 = vmatprep.subr.mxu0 0.0
    %2197 = vmatpush1.msra.mxu0 %v2064
    %2198 = vmatprep.subr.mxu0 0.0
    %2199 = vmatpush1.msra.mxu0 %v2067
    %2200 = vmatprep.subr.mxu0 0.0
    %2201 = vmatpush1.msra.mxu0 %v2070
    %2202 = vmatprep.subr.mxu0 0.0
    %2203 = vmatpush1.msra.mxu0 %v2073
    %2204 = vmatprep.subr.mxu0 0.0
    %2205 = vmatpush1.msra.mxu0 %v2076
    %2206 = vmatprep.subr.mxu0 0.0
    %2207 = vmatpush1.msra.mxu0 %v2079
    %2208 = vmatprep.subr.mxu0 0.0
    %2209 = vmatpush1.msra.mxu0 %v2082
    %2210 = vmatprep.subr.mxu0 0.0
    %2211 = vmatpush1.msra.mxu0 %v2085
    %2212 = vmatprep.subr.mxu0 0.0
    %2213 = vmatpush1.msra.mxu0 %v2088
    %2214 = vmatprep.subr.mxu0 0.0
    %2215 = vmatpush1.msra.mxu0 %v2091
    %2216 = vmatprep.subr.mxu0 0.0
    %2217 = vmatpush1.msra.mxu0 %v2094
    %2218 = vmatprep.subr.mxu0 0.0
    %2219 = vmatpush1.msra.mxu0 %v2097
    %2220 = vmatprep.subr.mxu0 0.0
    %2221 = vmatpush1.msra.mxu0 %v2100
    %2222 = vmatprep.subr.mxu0 0.0
    %2223 = vmatpush1.msra.mxu0 %v2103
    %2224 = vmatprep.subr.mxu0 0.0
    %2225 = vmatpush1.msra.mxu0 0.0
    %2226 = vmatprep.subr.mxu0 0.0
    %2227 = vmatpush1.msra.mxu0 0.0
    %2228 = vmatprep.subr.mxu0 0.0
    %2229 = vmatpush1.msra.mxu0 0.0
    %2230 = vmatprep.subr.mxu0 0.0
    %2231 = vmatpush1.msra.mxu0 0.0
    %2232 = vmatprep.subr.mxu0 0.0
    %2233 = vmatpush1.msra.mxu0 0.0
    %2234 = vmatprep.subr.mxu0 0.0
    %2235 = vmatpush1.msra.mxu0 0.0
    %2236 = vmatprep.subr.mxu0 0.0
    %2237 = vmatpush1.msra.mxu0 0.0
    %2238 = vmatprep.subr.mxu0 0.0
    %2239 = vmatpush1.msra.mxu0 0.0
    %2240 = vmatprep.subr.mxu0 0.0
    %2241 = vmatpush1.msra.mxu0 0.0
    %2242 = vmatprep.subr.mxu0 0.0
    %2243 = vmatpush1.msra.mxu0 0.0
    %2244 = vmatprep.subr.mxu0 0.0
    %2245 = vmatpush1.msra.mxu0 0.0
    %2246 = vmatprep.subr.mxu0 0.0
    %2247 = vmatpush1.msra.mxu0 0.0
    %2248 = vmatprep.subr.mxu0 0.0
    %2249 = vmatpush1.msra.mxu0 0.0
    %2250 = vmatprep.subr.mxu0 0.0
    %2251 = vmatpush1.msra.mxu0 0.0
    %2252 = vmatprep.subr.mxu0 0.0
    %2253 = vmatpush1.msra.mxu0 0.0
    %2254 = vmatprep.subr.mxu0 0.0
    %2255 = vmatpush1.msra.mxu0 0.0
    %2256 = vmatprep.mubr.f32.mxu0 0.0
    %2257 = vmatmul.mubr.f32.gmra.mrb[0].mxu0 0.0
    %v2258 = vpop.f32.mrb[0].mxu0
    %v2259 = vadd.f32 %v2117, %v2258
    %v2260 = vpop.f32.mrb[0].mxu0
    %2261 = vdwg.mxu0
    %v2262 = vadd.f32 %v586, %v2188
    %v2263 = vxor.u32 %v2262, 2147483648
    %v2264 = vmul.f32 %v2263, 1.442695
    %v2265 = vpow.pop %v2264
    %v2266 = vadd.f32 %v2265, 1.0
    %v2267 = vrcp.pop %v2266
    %v2268 = vmul.f32 1.0, %v2267
    %v2269 = vadd.f32 %v588, %v2190
    %v2270 = vxor.u32 %v2269, 2147483648
    %v2271 = vmul.f32 %v2270, 1.442695
    %v2272 = vpow.pop %v2271
    %v2273 = vadd.f32 %v2272, 1.0
    %v2274 = vrcp.pop %v2273
    %v2275 = vmul.f32 1.0, %v2274
    %v2276 = vmul.f32 %v2268, %v2259
    %v2277 = vadd.f32 %v692, %v2276
    %v2278 = vtanh.pop %v2277
    %v2279 = vsub.f32 1.0, %v2275
    %v2280 = vmul.f32 %v2279, %v2278
    %v2281 = vmul.f32 %v2275, 0.0
    %v2282 = vadd.f32 %v2280, %v2281
    %2283 = vmatprep.subr.mxu0 %v2057
    %2284 = vmatpush1.msra.mxu0 %v2056
    %2285 = vmatprep.subr.mxu0 %v2060
    %2286 = vmatpush1.msra.mxu0 %v2059
    %2287 = vmatprep.subr.mxu0 %v2063
    %2288 = vmatpush1.msra.mxu0 %v2062
    %2289 = vmatprep.subr.mxu0 %v2066
    %2290 = vmatpush1.msra.mxu0 %v2065
    %2291 = vmatprep.subr.mxu0 %v2069
    %2292 = vmatpush1.msra.mxu0 %v2068
    %2293 = vmatprep.subr.mxu0 %v2072
    %2294 = vmatpush1.msra.mxu0 %v2071
    %2295 = vmatprep.subr.mxu0 %v2075
    %2296 = vmatpush1.msra.mxu0 %v2074
    %2297 = vmatprep.subr.mxu0 %v2078
    %2298 = vmatpush1.msra.mxu0 %v2077
    %2299 = vmatprep.subr.mxu0 %v2081
    %2300 = vmatpush1.msra.mxu0 %v2080
    %2301 = vmatprep.subr.mxu0 %v2084
    %2302 = vmatpush1.msra.mxu0 %v2083
    %2303 = vmatprep.subr.mxu0 %v2087
    %2304 = vmatpush1.msra.mxu0 %v2086
    %2305 = vmatprep.subr.mxu0 %v2090
    %2306 = vmatpush1.msra.mxu0 %v2089
    %2307 = vmatprep.subr.mxu0 %v2093
    %2308 = vmatpush1.msra.mxu0 %v2092
    %2309 = vmatprep.subr.mxu0 %v2096
    %2310 = vmatpush1.msra.mxu0 %v2095
    %2311 = vmatprep.subr.mxu0 %v2099
    %2312 = vmatpush1.msra.mxu0 %v2098
    %2313 = vmatprep.subr.mxu0 %v2102
    %2314 = vmatpush1.msra.mxu0 %v2101
    %2315 = vmatprep.subr.mxu0 0.0
    %2316 = vmatpush1.msra.mxu0 0.0
    %2317 = vmatprep.subr.mxu0 0.0
    %2318 = vmatpush1.msra.mxu0 0.0
    %2319 = vmatprep.subr.mxu0 0.0
    %2320 = vmatpush1.msra.mxu0 0.0
    %2321 = vmatprep.subr.mxu0 0.0
    %2322 = vmatpush1.msra.mxu0 0.0
    %2323 = vmatprep.subr.mxu0 0.0
    %2324 = vmatpush1.msra.mxu0 0.0
    %2325 = vmatprep.subr.mxu0 0.0
    %2326 = vmatpush1.msra.mxu0 0.0
    %2327 = vmatprep.subr.mxu0 0.0
    %2328 = vmatpush1.msra.mxu0 0.0
    %2329 = vmatprep.subr.mxu0 0.0
    %2330 = vmatpush1.msra.mxu0 0.0
    %2331 = vmatprep.subr.mxu0 0.0
    %2332 = vmatpush1.msra.mxu0 0.0
    %2333 = vmatprep.subr.mxu0 0.0
    %2334 = vmatpush1.msra.mxu0 0.0
    %2335 = vmatprep.subr.mxu0 0.0
    %2336 = vmatpush1.msra.mxu0 0.0
    %2337 = vmatprep.subr.mxu0 0.0
    %2338 = vmatpush1.msra.mxu0 0.0
    %2339 = vmatprep.subr.mxu0 0.0
    %2340 = vmatpush1.msra.mxu0 0.0
    %2341 = vmatprep.subr.mxu0 0.0
    %2342 = vmatpush1.msra.mxu0 0.0
    %2343 = vmatprep.subr.mxu0 0.0
    %2344 = vmatpush1.msra.mxu0 0.0
    %2345 = vmatprep.subr.mxu0 0.0
    %2346 = vmatpush1.msra.mxu0 0.0
    %2347 = vmatprep.mubr.f32.mxu0 0.0
    %2348 = vmatmul.mubr.f32.gmra.mrb[0].mxu0 %v2282
    %v2349 = vpop.f32.mrb[0].mxu0
    %v2350 = vadd.f32 %v2109, %v2349
    %v2351 = vpop.f32.mrb[0].mxu0
    %v2352 = vadd.f32 %v2113, %v2351
    %2353 = vdwg.mxu0
    %2354 = vmatprep.subr.mxu0 0.0
    %2355 = vmatpush1.msra.mxu0 %v2058
    %2356 = vmatprep.subr.mxu0 0.0
    %2357 = vmatpush1.msra.mxu0 %v2061
    %2358 = vmatprep.subr.mxu0 0.0
    %2359 = vmatpush1.msra.mxu0 %v2064
    %2360 = vmatprep.subr.mxu0 0.0
    %2361 = vmatpush1.msra.mxu0 %v2067
    %2362 = vmatprep.subr.mxu0 0.0
    %2363 = vmatpush1.msra.mxu0 %v2070
    %2364 = vmatprep.subr.mxu0 0.0
    %2365 = vmatpush1.msra.mxu0 %v2073
    %2366 = vmatprep.subr.mxu0 0.0
    %2367 = vmatpush1.msra.mxu0 %v2076
    %2368 = vmatprep.subr.mxu0 0.0
    %2369 = vmatpush1.msra.mxu0 %v2079
    %2370 = vmatprep.subr.mxu0 0.0
    %2371 = vmatpush1.msra.mxu0 %v2082
    %2372 = vmatprep.subr.mxu0 0.0
    %2373 = vmatpush1.msra.mxu0 %v2085
    %2374 = vmatprep.subr.mxu0 0.0
    %2375 = vmatpush1.msra.mxu0 %v2088
    %2376 = vmatprep.subr.mxu0 0.0
    %2377 = vmatpush1.msra.mxu0 %v2091
    %2378 = vmatprep.subr.mxu0 0.0
    %2379 = vmatpush1.msra.mxu0 %v2094
    %2380 = vmatprep.subr.mxu0 0.0
    %2381 = vmatpush1.msra.mxu0 %v2097
    %2382 = vmatprep.subr.mxu0 0.0
    %2383 = vmatpush1.msra.mxu0 %v2100
    %2384 = vmatprep.subr.mxu0 0.0
    %2385 = vmatpush1.msra.mxu0 %v2103
    %2386 = vmatprep.subr.mxu0 0.0
    %2387 = vmatpush1.msra.mxu0 0.0
    %2388 = vmatprep.subr.mxu0 0.0
    %2389 = vmatpush1.msra.mxu0 0.0
    %2390 = vmatprep.subr.mxu0 0.0
    %2391 = vmatpush1.msra.mxu0 0.0
    %2392 = vmatprep.subr.mxu0 0.0
    %2393 = vmatpush1.msra.mxu0 0.0
    %2394 = vmatprep.subr.mxu0 0.0
    %2395 = vmatpush1.msra.mxu0 0.0
    %2396 = vmatprep.subr.mxu0 0.0
    %2397 = vmatpush1.msra.mxu0 0.0
    %2398 = vmatprep.subr.mxu0 0.0
    %2399 = vmatpush1.msra.mxu0 0.0
    %2400 = vmatprep.subr.mxu0 0.0
    %2401 = vmatpush1.msra.mxu0 0.0
    %2402 = vmatprep.subr.mxu0 0.0
    %2403 = vmatpush1.msra.mxu0 0.0
    %2404 = vmatprep.subr.mxu0 0.0
    %2405 = vmatpush1.msra.mxu0 0.0
    %2406 = vmatprep.subr.mxu0 0.0
    %2407 = vmatpush1.msra.mxu0 0.0
    %2408 = vmatprep.subr.mxu0 0.0
    %2409 = vmatpush1.msra.mxu0 0.0
    %2410 = vmatprep.subr.mxu0 0.0
    %2411 = vmatpush1.msra.mxu0 0.0
    %2412 = vmatprep.subr.mxu0 0.0
    %2413 = vmatpush1.msra.mxu0 0.0
    %2414 = vmatprep.subr.mxu0 0.0
    %2415 = vmatpush1.msra.mxu0 0.0
    %2416 = vmatprep.subr.mxu0 0.0
    %2417 = vmatpush1.msra.mxu0 0.0
    %2418 = vmatprep.mubr.f32.mxu0 0.0
    %2419 = vmatmul.mubr.f32.gmra.mrb[0].mxu0 %v2282
    %v2420 = vpop.f32.mrb[0].mxu0
    %v2421 = vadd.f32 %v2117, %v2420
    %v2422 = vpop.f32.mrb[0].mxu0
    %2423 = vdwg.mxu0
    %v2424 = vadd.f32 %v580, %v2350
    %v2425 = vxor.u32 %v2424, 2147483648
    %v2426 = vmul.f32 %v2425, 1.442695
    %v2427 = vpow.pop %v2426
    %v2428 = vadd.f32 %v2427, 1.0
    %v2429 = vrcp.pop %v2428
    %v2430 = vmul.f32 1.0, %v2429
    %v2431 = vadd.f32 %v582, %v2352
    %v2432 = vxor.u32 %v2431, 2147483648
    %v2433 = vmul.f32 %v2432, 1.442695
    %v2434 = vpow.pop %v2433
    %v2435 = vadd.f32 %v2434, 1.0
    %v2436 = vrcp.pop %v2435
    %v2437 = vmul.f32 1.0, %v2436
    %v2438 = vmul.f32 %v2430, %v2421
    %v2439 = vadd.f32 %v687, %v2438
    %v2440 = vtanh.pop %v2439
    %v2441 = vsub.f32 1.0, %v2437
    %v2442 = vmul.f32 %v2441, %v2440
    %v2443 = vmul.f32 %v2437, %v2282
    %v2444 = vadd.f32 %v2442, %v2443
    %2445 = vmatprep.subr.mxu0 %v2057
    %2446 = vmatpush1.msra.mxu0 %v2056
    %2447 = vmatprep.subr.mxu0 %v2060
    %2448 = vmatpush1.msra.mxu0 %v2059
    %2449 = vmatprep.subr.mxu0 %v2063
    %2450 = vmatpush1.msra.mxu0 %v2062
    %2451 = vmatprep.subr.mxu0 %v2066
    %2452 = vmatpush1.msra.mxu0 %v2065
    %2453 = vmatprep.subr.mxu0 %v2069
    %2454 = vmatpush1.msra.mxu0 %v2068
    %2455 = vmatprep.subr.mxu0 %v2072
    %2456 = vmatpush1.msra.mxu0 %v2071
    %2457 = vmatprep.subr.mxu0 %v2075
    %2458 = vmatpush1.msra.mxu0 %v2074
    %2459 = vmatprep.subr.mxu0 %v2078
    %2460 = vmatpush1.msra.mxu0 %v2077
    %2461 = vmatprep.subr.mxu0 %v2081
    %2462 = vmatpush1.msra.mxu0 %v2080
    %2463 = vmatprep.subr.mxu0 %v2084
    %2464 = vmatpush1.msra.mxu0 %v2083
    %2465 = vmatprep.subr.mxu0 %v2087
    %2466 = vmatpush1.msra.mxu0 %v2086
    %2467 = vmatprep.subr.mxu0 %v2090
    %2468 = vmatpush1.msra.mxu0 %v2089
    %2469 = vmatprep.subr.mxu0 %v2093
    %2470 = vmatpush1.msra.mxu0 %v2092
    %2471 = vmatprep.subr.mxu0 %v2096
    %2472 = vmatpush1.msra.mxu0 %v2095
    %2473 = vmatprep.subr.mxu0 %v2099
    %2474 = vmatpush1.msra.mxu0 %v2098
    %2475 = vmatprep.subr.mxu0 %v2102
    %2476 = vmatpush1.msra.mxu0 %v2101
    %2477 = vmatprep.subr.mxu0 0.0
    %2478 = vmatpush1.msra.mxu0 0.0
    %2479 = vmatprep.subr.mxu0 0.0
    %2480 = vmatpush1.msra.mxu0 0.0
    %2481 = vmatprep.subr.mxu0 0.0
    %2482 = vmatpush1.msra.mxu0 0.0
    %2483 = vmatprep.subr.mxu0 0.0
    %2484 = vmatpush1.msra.mxu0 0.0
    %2485 = vmatprep.subr.mxu0 0.0
    %2486 = vmatpush1.msra.mxu0 0.0
    %2487 = vmatprep.subr.mxu0 0.0
    %2488 = vmatpush1.msra.mxu0 0.0
    %2489 = vmatprep.subr.mxu0 0.0
    %2490 = vmatpush1.msra.mxu0 0.0
    %2491 = vmatprep.subr.mxu0 0.0
    %2492 = vmatpush1.msra.mxu0 0.0
    %2493 = vmatprep.subr.mxu0 0.0
    %2494 = vmatpush1.msra.mxu0 0.0
    %2495 = vmatprep.subr.mxu0 0.0
    %2496 = vmatpush1.msra.mxu0 0.0
    %2497 = vmatprep.subr.mxu0 0.0
    %2498 = vmatpush1.msra.mxu0 0.0
    %2499 = vmatprep.subr.mxu0 0.0
    %2500 = vmatpush1.msra.mxu0 0.0
    %2501 = vmatprep.subr.mxu0 0.0
    %2502 = vmatpush1.msra.mxu0 0.0
    %2503 = vmatprep.subr.mxu0 0.0
    %2504 = vmatpush1.msra.mxu0 0.0
    %2505 = vmatprep.subr.mxu0 0.0
    %2506 = vmatpush1.msra.mxu0 0.0
    %2507 = vmatprep.subr.mxu0 0.0
    %2508 = vmatpush1.msra.mxu0 0.0
    %2509 = vmatprep.mubr.f32.mxu0 0.0
    %2510 = vmatmul.mubr.f32.gmra.mrb[0].mxu0 %v2444
    %v2511 = vpop.f32.mrb[0].mxu0
    %v2512 = vadd.f32 %v2109, %v2511
    %v2513 = vpop.f32.mrb[0].mxu0
    %v2514 = vadd.f32 %v2113, %v2513
    %2515 = vdwg.mxu0
    %2516 = vmatprep.subr.mxu0 0.0
    %2517 = vmatpush1.msra.mxu0 %v2058
    %2518 = vmatprep.subr.mxu0 0.0
    %2519 = vmatpush1.msra.mxu0 %v2061
    %2520 = vmatprep.subr.mxu0 0.0
    %2521 = vmatpush1.msra.mxu0 %v2064
    %2522 = vmatprep.subr.mxu0 0.0
    %2523 = vmatpush1.msra.mxu0 %v2067
    %2524 = vmatprep.subr.mxu0 0.0
    %2525 = vmatpush1.msra.mxu0 %v2070
    %2526 = vmatprep.subr.mxu0 0.0
    %2527 = vmatpush1.msra.mxu0 %v2073
    %2528 = vmatprep.subr.mxu0 0.0
    %2529 = vmatpush1.msra.mxu0 %v2076
    %2530 = vmatprep.subr.mxu0 0.0
    %2531 = vmatpush1.msra.mxu0 %v2079
    %2532 = vmatprep.subr.mxu0 0.0
    %2533 = vmatpush1.msra.mxu0 %v2082
    %2534 = vmatprep.subr.mxu0 0.0
    %2535 = vmatpush1.msra.mxu0 %v2085
    %2536 = vmatprep.subr.mxu0 0.0
    %2537 = vmatpush1.msra.mxu0 %v2088
    %2538 = vmatprep.subr.mxu0 0.0
    %2539 = vmatpush1.msra.mxu0 %v2091
    %2540 = vmatprep.subr.mxu0 0.0
    %2541 = vmatpush1.msra.mxu0 %v2094
    %2542 = vmatprep.subr.mxu0 0.0
    %2543 = vmatpush1.msra.mxu0 %v2097
    %2544 = vmatprep.subr.mxu0 0.0
    %2545 = vmatpush1.msra.mxu0 %v2100
    %2546 = vmatprep.subr.mxu0 0.0
    %2547 = vmatpush1.msra.mxu0 %v2103
    %2548 = vmatprep.subr.mxu0 0.0
    %2549 = vmatpush1.msra.mxu0 0.0
    %2550 = vmatprep.subr.mxu0 0.0
    %2551 = vmatpush1.msra.mxu0 0.0
    %2552 = vmatprep.subr.mxu0 0.0
    %2553 = vmatpush1.msra.mxu0 0.0
    %2554 = vmatprep.subr.mxu0 0.0
    %2555 = vmatpush1.msra.mxu0 0.0
    %2556 = vmatprep.subr.mxu0 0.0
    %2557 = vmatpush1.msra.mxu0 0.0
    %2558 = vmatprep.subr.mxu0 0.0
    %2559 = vmatpush1.msra.mxu0 0.0
    %2560 = vmatprep.subr.mxu0 0.0
    %2561 = vmatpush1.msra.mxu0 0.0
    %2562 = vmatprep.subr.mxu0 0.0
    %2563 = vmatpush1.msra.mxu0 0.0
    %2564 = vmatprep.subr.mxu0 0.0
    %2565 = vmatpush1.msra.mxu0 0.0
    %2566 = vmatprep.subr.mxu0 0.0
    %2567 = vmatpush1.msra.mxu0 0.0
    %2568 = vmatprep.subr.mxu0 0.0
    %2569 = vmatpush1.msra.mxu0 0.0
    %2570 = vmatprep.subr.mxu0 0.0
    %2571 = vmatpush1.msra.mxu0 0.0
    %2572 = vmatprep.subr.mxu0 0.0
    %2573 = vmatpush1.msra.mxu0 0.0
    %2574 = vmatprep.subr.mxu0 0.0
    %2575 = vmatpush1.msra.mxu0 0.0
    %2576 = vmatprep.subr.mxu0 0.0
    %2577 = vmatpush1.msra.mxu0 0.0
    %2578 = vmatprep.subr.mxu0 0.0
    %2579 = vmatpush1.msra.mxu0 0.0
    %2580 = vmatprep.mubr.f32.mxu0 0.0
    %2581 = vmatmul.mubr.f32.gmra.mrb[0].mxu0 %v2444
    %v2582 = vpop.f32.mrb[0].mxu0
    %v2583 = vadd.f32 %v2117, %v2582
    %v2584 = vpop.f32.mrb[0].mxu0
    %2585 = vdwg.mxu0
    %v2586 = vadd.f32 %v574, %v2512
    %v2587 = vxor.u32 %v2586, 2147483648
    %v2588 = vmul.f32 %v2587, 1.442695
    %v2589 = vpow.pop %v2588
    %v2590 = vadd.f32 %v2589, 1.0
    %v2591 = vrcp.pop %v2590
    %v2592 = vmul.f32 1.0, %v2591
    %v2593 = vadd.f32 %v576, %v2514
    %v2594 = vxor.u32 %v2593, 2147483648
    %v2595 = vmul.f32 %v2594, 1.442695
    %v2596 = vpow.pop %v2595
    %v2597 = vadd.f32 %v2596, 1.0
    %v2598 = vrcp.pop %v2597
    %v2599 = vmul.f32 1.0, %v2598
    %v2600 = vmul.f32 %v2592, %v2583
    %v2601 = vadd.f32 %v682, %v2600
    %v2602 = vtanh.pop %v2601
    %v2603 = vsub.f32 1.0, %v2599
    %v2604 = vmul.f32 %v2603, %v2602
    %v2605 = vmul.f32 %v2599, %v2444
    %v2606 = vadd.f32 %v2604, %v2605
    %2607 = vmatprep.subr.mxu0 %v2057
    %2608 = vmatpush1.msra.mxu0 %v2056
    %2609 = vmatprep.subr.mxu0 %v2060
    %2610 = vmatpush1.msra.mxu0 %v2059
    %2611 = vmatprep.subr.mxu0 %v2063
    %2612 = vmatpush1.msra.mxu0 %v2062
    %2613 = vmatprep.subr.mxu0 %v2066
    %2614 = vmatpush1.msra.mxu0 %v2065
    %2615 = vmatprep.subr.mxu0 %v2069
    %2616 = vmatpush1.msra.mxu0 %v2068
    %2617 = vmatprep.subr.mxu0 %v2072
    %2618 = vmatpush1.msra.mxu0 %v2071
    %2619 = vmatprep.subr.mxu0 %v2075
    %2620 = vmatpush1.msra.mxu0 %v2074
    %2621 = vmatprep.subr.mxu0 %v2078
    %2622 = vmatpush1.msra.mxu0 %v2077
    %2623 = vmatprep.subr.mxu0 %v2081
    %2624 = vmatpush1.msra.mxu0 %v2080
    %2625 = vmatprep.subr.mxu0 %v2084
    %2626 = vmatpush1.msra.mxu0 %v2083
    %2627 = vmatprep.subr.mxu0 %v2087
    %2628 = vmatpush1.msra.mxu0 %v2086
    %2629 = vmatprep.subr.mxu0 %v2090
    %2630 = vmatpush1.msra.mxu0 %v2089
    %2631 = vmatprep.subr.mxu0 %v2093
    %2632 = vmatpush1.msra.mxu0 %v2092
    %2633 = vmatprep.subr.mxu0 %v2096
    %2634 = vmatpush1.msra.mxu0 %v2095
    %2635 = vmatprep.subr.mxu0 %v2099
    %2636 = vmatpush1.msra.mxu0 %v2098
    %2637 = vmatprep.subr.mxu0 %v2102
    %2638 = vmatpush1.msra.mxu0 %v2101
    %2639 = vmatprep.subr.mxu0 0.0
    %2640 = vmatpush1.msra.mxu0 0.0
    %2641 = vmatprep.subr.mxu0 0.0
    %2642 = vmatpush1.msra.mxu0 0.0
    %2643 = vmatprep.subr.mxu0 0.0
    %2644 = vmatpush1.msra.mxu0 0.0
    %2645 = vmatprep.subr.mxu0 0.0
    %2646 = vmatpush1.msra.mxu0 0.0
    %2647 = vmatprep.subr.mxu0 0.0
    %2648 = vmatpush1.msra.mxu0 0.0
    %2649 = vmatprep.subr.mxu0 0.0
    %2650 = vmatpush1.msra.mxu0 0.0
    %2651 = vmatprep.subr.mxu0 0.0
    %2652 = vmatpush1.msra.mxu0 0.0
    %2653 = vmatprep.subr.mxu0 0.0
    %2654 = vmatpush1.msra.mxu0 0.0
    %2655 = vmatprep.subr.mxu0 0.0
    %2656 = vmatpush1.msra.mxu0 0.0
    %2657 = vmatprep.subr.mxu0 0.0
    %2658 = vmatpush1.msra.mxu0 0.0
    %2659 = vmatprep.subr.mxu0 0.0
    %2660 = vmatpush1.msra.mxu0 0.0
    %2661 = vmatprep.subr.mxu0 0.0
    %2662 = vmatpush1.msra.mxu0 0.0
    %2663 = vmatprep.subr.mxu0 0.0
    %2664 = vmatpush1.msra.mxu0 0.0
    %2665 = vmatprep.subr.mxu0 0.0
    %2666 = vmatpush1.msra.mxu0 0.0
    %2667 = vmatprep.subr.mxu0 0.0
    %2668 = vmatpush1.msra.mxu0 0.0
    %2669 = vmatprep.subr.mxu0 0.0
    %2670 = vmatpush1.msra.mxu0 0.0
    %2671 = vmatprep.mubr.f32.mxu0 0.0
    %2672 = vmatmul.mubr.f32.gmra.mrb[0].mxu0 %v2606
    %v2673 = vpop.f32.mrb[0].mxu0
    %v2674 = vadd.f32 %v2109, %v2673
    %v2675 = vpop.f32.mrb[0].mxu0
    %v2676 = vadd.f32 %v2113, %v2675
    %2677 = vdwg.mxu0
    %2678 = vmatprep.subr.mxu0 0.0
    %2679 = vmatpush1.msra.mxu0 %v2058
    %2680 = vmatprep.subr.mxu0 0.0
    %2681 = vmatpush1.msra.mxu0 %v2061
    %2682 = vmatprep.subr.mxu0 0.0
    %2683 = vmatpush1.msra.mxu0 %v2064
    %2684 = vmatprep.subr.mxu0 0.0
    %2685 = vmatpush1.msra.mxu0 %v2067
    %2686 = vmatprep.subr.mxu0 0.0
    %2687 = vmatpush1.msra.mxu0 %v2070
    %2688 = vmatprep.subr.mxu0 0.0
    %2689 = vmatpush1.msra.mxu0 %v2073
    %2690 = vmatprep.subr.mxu0 0.0
    %2691 = vmatpush1.msra.mxu0 %v2076
    %2692 = vmatprep.subr.mxu0 0.0
    %2693 = vmatpush1.msra.mxu0 %v2079
    %2694 = vmatprep.subr.mxu0 0.0
    %2695 = vmatpush1.msra.mxu0 %v2082
    %2696 = vmatprep.subr.mxu0 0.0
    %2697 = vmatpush1.msra.mxu0 %v2085
    %2698 = vmatprep.subr.mxu0 0.0
    %2699 = vmatpush1.msra.mxu0 %v2088
    %2700 = vmatprep.subr.mxu0 0.0
    %2701 = vmatpush1.msra.mxu0 %v2091
    %2702 = vmatprep.subr.mxu0 0.0
    %2703 = vmatpush1.msra.mxu0 %v2094
    %2704 = vmatprep.subr.mxu0 0.0
    %2705 = vmatpush1.msra.mxu0 %v2097
    %2706 = vmatprep.subr.mxu0 0.0
    %2707 = vmatpush1.msra.mxu0 %v2100
    %2708 = vmatprep.subr.mxu0 0.0
    %2709 = vmatpush1.msra.mxu0 %v2103
    %2710 = vmatprep.subr.mxu0 0.0
    %2711 = vmatpush1.msra.mxu0 0.0
    %2712 = vmatprep.subr.mxu0 0.0
    %2713 = vmatpush1.msra.mxu0 0.0
    %2714 = vmatprep.subr.mxu0 0.0
    %2715 = vmatpush1.msra.mxu0 0.0
    %2716 = vmatprep.subr.mxu0 0.0
    %2717 = vmatpush1.msra.mxu0 0.0
    %2718 = vmatprep.subr.mxu0 0.0
    %2719 = vmatpush1.msra.mxu0 0.0
    %2720 = vmatprep.subr.mxu0 0.0
    %2721 = vmatpush1.msra.mxu0 0.0
    %2722 = vmatprep.subr.mxu0 0.0
    %2723 = vmatpush1.msra.mxu0 0.0
    %2724 = vmatprep.subr.mxu0 0.0
    %2725 = vmatpush1.msra.mxu0 0.0
    %2726 = vmatprep.subr.mxu0 0.0
    %2727 = vmatpush1.msra.mxu0 0.0
    %2728 = vmatprep.subr.mxu0 0.0
    %2729 = vmatpush1.msra.mxu0 0.0
    %2730 = vmatprep.subr.mxu0 0.0
    %2731 = vmatpush1.msra.mxu0 0.0
    %2732 = vmatprep.subr.mxu0 0.0
    %2733 = vmatpush1.msra.mxu0 0.0
    %2734 = vmatprep.subr.mxu0 0.0
    %2735 = vmatpush1.msra.mxu0 0.0
    %2736 = vmatprep.subr.mxu0 0.0
    %2737 = vmatpush1.msra.mxu0 0.0
    %2738 = vmatprep.subr.mxu0 0.0
    %2739 = vmatpush1.msra.mxu0 0.0
    %2740 = vmatprep.subr.mxu0 0.0
    %2741 = vmatpush1.msra.mxu0 0.0
    %2742 = vmatprep.mubr.f32.mxu0 0.0
    %2743 = vmatmul.mubr.f32.gmra.mrb[0].mxu0 %v2606
    %v2744 = vpop.f32.mrb[0].mxu0
    %v2745 = vadd.f32 %v2117, %v2744
    %v2746 = vpop.f32.mrb[0].mxu0
    %2747 = vdwg.mxu0
    %v2748 = vadd.f32 %v568, %v2674
    %v2749 = vxor.u32 %v2748, 2147483648
    %v2750 = vmul.f32 %v2749, 1.442695
    %v2751 = vpow.pop %v2750
    %v2752 = vadd.f32 %v2751, 1.0
    %v2753 = vrcp.pop %v2752
    %v2754 = vmul.f32 1.0, %v2753
    %v2755 = vadd.f32 %v570, %v2676
    %v2756 = vxor.u32 %v2755, 2147483648
    %v2757 = vmul.f32 %v2756, 1.442695
    %v2758 = vpow.pop %v2757
    %v2759 = vadd.f32 %v2758, 1.0
    %v2760 = vrcp.pop %v2759
    %v2761 = vmul.f32 1.0, %v2760
    %v2762 = vmul.f32 %v2754, %v2745
    %v2763 = vadd.f32 %v677, %v2762
    %v2764 = vtanh.pop %v2763
    %v2765 = vsub.f32 1.0, %v2761
    %v2766 = vmul.f32 %v2765, %v2764
    %v2767 = vmul.f32 %v2761, %v2606
    %v2768 = vadd.f32 %v2766, %v2767
    %2769 = vmatprep.subr.mxu0 %v2057
    %2770 = vmatpush1.msra.mxu0 %v2056
    %2771 = vmatprep.subr.mxu0 %v2060
    %2772 = vmatpush1.msra.mxu0 %v2059
    %2773 = vmatprep.subr.mxu0 %v2063
    %2774 = vmatpush1.msra.mxu0 %v2062
    %2775 = vmatprep.subr.mxu0 %v2066
    %2776 = vmatpush1.msra.mxu0 %v2065
    %2777 = vmatprep.subr.mxu0 %v2069
    %2778 = vmatpush1.msra.mxu0 %v2068
    %2779 = vmatprep.subr.mxu0 %v2072
    %2780 = vmatpush1.msra.mxu0 %v2071
    %2781 = vmatprep.subr.mxu0 %v2075
    %2782 = vmatpush1.msra.mxu0 %v2074
    %2783 = vmatprep.subr.mxu0 %v2078
    %2784 = vmatpush1.msra.mxu0 %v2077
    %2785 = vmatprep.subr.mxu0 %v2081
    %2786 = vmatpush1.msra.mxu0 %v2080
    %2787 = vmatprep.subr.mxu0 %v2084
    %2788 = vmatpush1.msra.mxu0 %v2083
    %2789 = vmatprep.subr.mxu0 %v2087
    %2790 = vmatpush1.msra.mxu0 %v2086
    %2791 = vmatprep.subr.mxu0 %v2090
    %2792 = vmatpush1.msra.mxu0 %v2089
    %2793 = vmatprep.subr.mxu0 %v2093
    %2794 = vmatpush1.msra.mxu0 %v2092
    %2795 = vmatprep.subr.mxu0 %v2096
    %2796 = vmatpush1.msra.mxu0 %v2095
    %2797 = vmatprep.subr.mxu0 %v2099
    %2798 = vmatpush1.msra.mxu0 %v2098
    %2799 = vmatprep.subr.mxu0 %v2102
    %2800 = vmatpush1.msra.mxu0 %v2101
    %2801 = vmatprep.subr.mxu0 0.0
    %2802 = vmatpush1.msra.mxu0 0.0
    %2803 = vmatprep.subr.mxu0 0.0
    %2804 = vmatpush1.msra.mxu0 0.0
    %2805 = vmatprep.subr.mxu0 0.0
    %2806 = vmatpush1.msra.mxu0 0.0
    %2807 = vmatprep.subr.mxu0 0.0
    %2808 = vmatpush1.msra.mxu0 0.0
    %2809 = vmatprep.subr.mxu0 0.0
    %2810 = vmatpush1.msra.mxu0 0.0
    %2811 = vmatprep.subr.mxu0 0.0
    %2812 = vmatpush1.msra.mxu0 0.0
    %2813 = vmatprep.subr.mxu0 0.0
    %2814 = vmatpush1.msra.mxu0 0.0
    %2815 = vmatprep.subr.mxu0 0.0
    %2816 = vmatpush1.msra.mxu0 0.0
    %2817 = vmatprep.subr.mxu0 0.0
    %2818 = vmatpush1.msra.mxu0 0.0
    %2819 = vmatprep.subr.mxu0 0.0
    %2820 = vmatpush1.msra.mxu0 0.0
    %2821 = vmatprep.subr.mxu0 0.0
    %2822 = vmatpush1.msra.mxu0 0.0
    %2823 = vmatprep.subr.mxu0 0.0
    %2824 = vmatpush1.msra.mxu0 0.0
    %2825 = vmatprep.subr.mxu0 0.0
    %2826 = vmatpush1.msra.mxu0 0.0
    %2827 = vmatprep.subr.mxu0 0.0
    %2828 = vmatpush1.msra.mxu0 0.0
    %2829 = vmatprep.subr.mxu0 0.0
    %2830 = vmatpush1.msra.mxu0 0.0
    %2831 = vmatprep.subr.mxu0 0.0
    %2832 = vmatpush1.msra.mxu0 0.0
    %2833 = vmatprep.mubr.f32.mxu0 0.0
    %2834 = vmatmul.mubr.f32.gmra.mrb[0].mxu0 %v2768
    %v2835 = vpop.f32.mrb[0].mxu0
    %v2836 = vadd.f32 %v2109, %v2835
    %v2837 = vpop.f32.mrb[0].mxu0
    %v2838 = vadd.f32 %v2113, %v2837
    %2839 = vdwg.mxu0
    %2840 = vmatprep.subr.mxu0 0.0
    %2841 = vmatpush1.msra.mxu0 %v2058
    %2842 = vmatprep.subr.mxu0 0.0
    %2843 = vmatpush1.msra.mxu0 %v2061
    %2844 = vmatprep.subr.mxu0 0.0
    %2845 = vmatpush1.msra.mxu0 %v2064
    %2846 = vmatprep.subr.mxu0 0.0
    %2847 = vmatpush1.msra.mxu0 %v2067
    %2848 = vmatprep.subr.mxu0 0.0
    %2849 = vmatpush1.msra.mxu0 %v2070
    %2850 = vmatprep.subr.mxu0 0.0
    %2851 = vmatpush1.msra.mxu0 %v2073
    %2852 = vmatprep.subr.mxu0 0.0
    %2853 = vmatpush1.msra.mxu0 %v2076
    %2854 = vmatprep.subr.mxu0 0.0
    %2855 = vmatpush1.msra.mxu0 %v2079
    %2856 = vmatprep.subr.mxu0 0.0
    %2857 = vmatpush1.msra.mxu0 %v2082
    %2858 = vmatprep.subr.mxu0 0.0
    %2859 = vmatpush1.msra.mxu0 %v2085
    %2860 = vmatprep.subr.mxu0 0.0
    %2861 = vmatpush1.msra.mxu0 %v2088
    %2862 = vmatprep.subr.mxu0 0.0
    %2863 = vmatpush1.msra.mxu0 %v2091
    %2864 = vmatprep.subr.mxu0 0.0
    %2865 = vmatpush1.msra.mxu0 %v2094
    %2866 = vmatprep.subr.mxu0 0.0
    %2867 = vmatpush1.msra.mxu0 %v2097
    %2868 = vmatprep.subr.mxu0 0.0
    %2869 = vmatpush1.msra.mxu0 %v2100
    %2870 = vmatprep.subr.mxu0 0.0
    %2871 = vmatpush1.msra.mxu0 %v2103
    %2872 = vmatprep.subr.mxu0 0.0
    %2873 = vmatpush1.msra.mxu0 0.0
    %2874 = vmatprep.subr.mxu0 0.0
    %2875 = vmatpush1.msra.mxu0 0.0
    %2876 = vmatprep.subr.mxu0 0.0
    %2877 = vmatpush1.msra.mxu0 0.0
    %2878 = vmatprep.subr.mxu0 0.0
    %2879 = vmatpush1.msra.mxu0 0.0
    %2880 = vmatprep.subr.mxu0 0.0
    %2881 = vmatpush1.msra.mxu0 0.0
    %2882 = vmatprep.subr.mxu0 0.0
    %2883 = vmatpush1.msra.mxu0 0.0
    %2884 = vmatprep.subr.mxu0 0.0
    %2885 = vmatpush1.msra.mxu0 0.0
    %2886 = vmatprep.subr.mxu0 0.0
    %2887 = vmatpush1.msra.mxu0 0.0
    %2888 = vmatprep.subr.mxu0 0.0
    %2889 = vmatpush1.msra.mxu0 0.0
    %2890 = vmatprep.subr.mxu0 0.0
    %2891 = vmatpush1.msra.mxu0 0.0
    %2892 = vmatprep.subr.mxu0 0.0
    %2893 = vmatpush1.msra.mxu0 0.0
    %2894 = vmatprep.subr.mxu0 0.0
    %2895 = vmatpush1.msra.mxu0 0.0
    %2896 = vmatprep.subr.mxu0 0.0
    %2897 = vmatpush1.msra.mxu0 0.0
    %2898 = vmatprep.subr.mxu0 0.0
    %2899 = vmatpush1.msra.mxu0 0.0
    %2900 = vmatprep.subr.mxu0 0.0
    %2901 = vmatpush1.msra.mxu0 0.0
    %2902 = vmatprep.subr.mxu0 0.0
    %2903 = vmatpush1.msra.mxu0 0.0
    %2904 = vmatprep.mubr.f32.mxu0 0.0
    %2905 = vmatmul.mubr.f32.gmra.mrb[0].mxu0 %v2768
    %v2906 = vpop.f32.mrb[0].mxu0
    %v2907 = vadd.f32 %v2117, %v2906
    %v2908 = vpop.f32.mrb[0].mxu0
    %2909 = vdwg.mxu0
    %v2910 = vadd.f32 %v562, %v2836
    %v2911 = vxor.u32 %v2910, 2147483648
    %v2912 = vmul.f32 %v2911, 1.442695
    %v2913 = vpow.pop %v2912
    %v2914 = vadd.f32 %v2913, 1.0
    %v2915 = vrcp.pop %v2914
    %v2916 = vmul.f32 1.0, %v2915
    %v2917 = vadd.f32 %v564, %v2838
    %v2918 = vxor.u32 %v2917, 2147483648
    %v2919 = vmul.f32 %v2918, 1.442695
    %v2920 = vpow.pop %v2919
    %v2921 = vadd.f32 %v2920, 1.0
    %v2922 = vrcp.pop %v2921
    %v2923 = vmul.f32 1.0, %v2922
    %v2924 = vmul.f32 %v2916, %v2907
    %v2925 = vadd.f32 %v672, %v2924
    %v2926 = vtanh.pop %v2925
    %v2927 = vsub.f32 1.0, %v2923
    %v2928 = vmul.f32 %v2927, %v2926
    %v2929 = vmul.f32 %v2923, %v2768
    %v2930 = vadd.f32 %v2928, %v2929
    %2931 = vmatprep.subr.mxu0 %v2057
    %2932 = vmatpush1.msra.mxu0 %v2056
    %2933 = vmatprep.subr.mxu0 %v2060
    %2934 = vmatpush1.msra.mxu0 %v2059
    %2935 = vmatprep.subr.mxu0 %v2063
    %2936 = vmatpush1.msra.mxu0 %v2062
    %2937 = vmatprep.subr.mxu0 %v2066
    %2938 = vmatpush1.msra.mxu0 %v2065
    %2939 = vmatprep.subr.mxu0 %v2069
    %2940 = vmatpush1.msra.mxu0 %v2068
    %2941 = vmatprep.subr.mxu0 %v2072
    %2942 = vmatpush1.msra.mxu0 %v2071
    %2943 = vmatprep.subr.mxu0 %v2075
    %2944 = vmatpush1.msra.mxu0 %v2074
    %2945 = vmatprep.subr.mxu0 %v2078
    %2946 = vmatpush1.msra.mxu0 %v2077
    %2947 = vmatprep.subr.mxu0 %v2081
    %2948 = vmatpush1.msra.mxu0 %v2080
    %2949 = vmatprep.subr.mxu0 %v2084
    %2950 = vmatpush1.msra.mxu0 %v2083
    %2951 = vmatprep.subr.mxu0 %v2087
    %2952 = vmatpush1.msra.mxu0 %v2086
    %2953 = vmatprep.subr.mxu0 %v2090
    %2954 = vmatpush1.msra.mxu0 %v2089
    %2955 = vmatprep.subr.mxu0 %v2093
    %2956 = vmatpush1.msra.mxu0 %v2092
    %2957 = vmatprep.subr.mxu0 %v2096
    %2958 = vmatpush1.msra.mxu0 %v2095
    %2959 = vmatprep.subr.mxu0 %v2099
    %2960 = vmatpush1.msra.mxu0 %v2098
    %2961 = vmatprep.subr.mxu0 %v2102
    %2962 = vmatpush1.msra.mxu0 %v2101
    %2963 = vmatprep.subr.mxu0 0.0
    %2964 = vmatpush1.msra.mxu0 0.0
    %2965 = vmatprep.subr.mxu0 0.0
    %2966 = vmatpush1.msra.mxu0 0.0
    %2967 = vmatprep.subr.mxu0 0.0
    %2968 = vmatpush1.msra.mxu0 0.0
    %2969 = vmatprep.subr.mxu0 0.0
    %2970 = vmatpush1.msra.mxu0 0.0
    %2971 = vmatprep.subr.mxu0 0.0
    %2972 = vmatpush1.msra.mxu0 0.0
    %2973 = vmatprep.subr.mxu0 0.0
    %2974 = vmatpush1.msra.mxu0 0.0
    %2975 = vmatprep.subr.mxu0 0.0
    %2976 = vmatpush1.msra.mxu0 0.0
    %2977 = vmatprep.subr.mxu0 0.0
    %2978 = vmatpush1.msra.mxu0 0.0
    %2979 = vmatprep.subr.mxu0 0.0
    %2980 = vmatpush1.msra.mxu0 0.0
    %2981 = vmatprep.subr.mxu0 0.0
    %2982 = vmatpush1.msra.mxu0 0.0
    %2983 = vmatprep.subr.mxu0 0.0
    %2984 = vmatpush1.msra.mxu0 0.0
    %2985 = vmatprep.subr.mxu0 0.0
    %2986 = vmatpush1.msra.mxu0 0.0
    %2987 = vmatprep.subr.mxu0 0.0
    %2988 = vmatpush1.msra.mxu0 0.0
    %2989 = vmatprep.subr.mxu0 0.0
    %2990 = vmatpush1.msra.mxu0 0.0
    %2991 = vmatprep.subr.mxu0 0.0
    %2992 = vmatpush1.msra.mxu0 0.0
    %2993 = vmatprep.subr.mxu0 0.0
    %2994 = vmatpush1.msra.mxu0 0.0
    %2995 = vmatprep.mubr.f32.mxu0 0.0
    %2996 = vmatmul.mubr.f32.gmra.mrb[0].mxu0 %v2930
    %v2997 = vpop.f32.mrb[0].mxu0
    %v2998 = vadd.f32 %v2109, %v2997
    %v2999 = vpop.f32.mrb[0].mxu0
    %v3000 = vadd.f32 %v2113, %v2999
    %3001 = vdwg.mxu0
    %3002 = vmatprep.subr.mxu0 0.0
    %3003 = vmatpush1.msra.mxu0 %v2058
    %3004 = vmatprep.subr.mxu0 0.0
    %3005 = vmatpush1.msra.mxu0 %v2061
    %3006 = vmatprep.subr.mxu0 0.0
    %3007 = vmatpush1.msra.mxu0 %v2064
    %3008 = vmatprep.subr.mxu0 0.0
    %3009 = vmatpush1.msra.mxu0 %v2067
    %3010 = vmatprep.subr.mxu0 0.0
    %3011 = vmatpush1.msra.mxu0 %v2070
    %3012 = vmatprep.subr.mxu0 0.0
    %3013 = vmatpush1.msra.mxu0 %v2073
    %3014 = vmatprep.subr.mxu0 0.0
    %3015 = vmatpush1.msra.mxu0 %v2076
    %3016 = vmatprep.subr.mxu0 0.0
    %3017 = vmatpush1.msra.mxu0 %v2079
    %3018 = vmatprep.subr.mxu0 0.0
    %3019 = vmatpush1.msra.mxu0 %v2082
    %3020 = vmatprep.subr.mxu0 0.0
    %3021 = vmatpush1.msra.mxu0 %v2085
    %3022 = vmatprep.subr.mxu0 0.0
    %3023 = vmatpush1.msra.mxu0 %v2088
    %3024 = vmatprep.subr.mxu0 0.0
    %3025 = vmatpush1.msra.mxu0 %v2091
    %3026 = vmatprep.subr.mxu0 0.0
    %3027 = vmatpush1.msra.mxu0 %v2094
    %3028 = vmatprep.subr.mxu0 0.0
    %3029 = vmatpush1.msra.mxu0 %v2097
    %3030 = vmatprep.subr.mxu0 0.0
    %3031 = vmatpush1.msra.mxu0 %v2100
    %3032 = vmatprep.subr.mxu0 0.0
    %3033 = vmatpush1.msra.mxu0 %v2103
    %3034 = vmatprep.subr.mxu0 0.0
    %3035 = vmatpush1.msra.mxu0 0.0
    %3036 = vmatprep.subr.mxu0 0.0
    %3037 = vmatpush1.msra.mxu0 0.0
    %3038 = vmatprep.subr.mxu0 0.0
    %3039 = vmatpush1.msra.mxu0 0.0
    %3040 = vmatprep.subr.mxu0 0.0
    %3041 = vmatpush1.msra.mxu0 0.0
    %3042 = vmatprep.subr.mxu0 0.0
    %3043 = vmatpush1.msra.mxu0 0.0
    %3044 = vmatprep.subr.mxu0 0.0
    %3045 = vmatpush1.msra.mxu0 0.0
    %3046 = vmatprep.subr.mxu0 0.0
    %3047 = vmatpush1.msra.mxu0 0.0
    %3048 = vmatprep.subr.mxu0 0.0
    %3049 = vmatpush1.msra.mxu0 0.0
    %3050 = vmatprep.subr.mxu0 0.0
    %3051 = vmatpush1.msra.mxu0 0.0
    %3052 = vmatprep.subr.mxu0 0.0
    %3053 = vmatpush1.msra.mxu0 0.0
    %3054 = vmatprep.subr.mxu0 0.0
    %3055 = vmatpush1.msra.mxu0 0.0
    %3056 = vmatprep.subr.mxu0 0.0
    %3057 = vmatpush1.msra.mxu0 0.0
    %3058 = vmatprep.subr.mxu0 0.0
    %3059 = vmatpush1.msra.mxu0 0.0
    %3060 = vmatprep.subr.mxu0 0.0
    %3061 = vmatpush1.msra.mxu0 0.0
    %3062 = vmatprep.subr.mxu0 0.0
    %3063 = vmatpush1.msra.mxu0 0.0
    %3064 = vmatprep.subr.mxu0 0.0
    %3065 = vmatpush1.msra.mxu0 0.0
    %3066 = vmatprep.mubr.f32.mxu0 0.0
    %3067 = vmatmul.mubr.f32.gmra.mrb[0].mxu0 %v2930
    %v3068 = vpop.f32.mrb[0].mxu0
    %v3069 = vadd.f32 %v2117, %v3068
    %v3070 = vpop.f32.mrb[0].mxu0
    %3071 = vdwg.mxu0
    %v3072 = vadd.f32 %v556, %v2998
    %v3073 = vxor.u32 %v3072, 2147483648
    %v3074 = vmul.f32 %v3073, 1.442695
    %v3075 = vpow.pop %v3074
    %v3076 = vadd.f32 %v3075, 1.0
    %v3077 = vrcp.pop %v3076
    %v3078 = vmul.f32 1.0, %v3077
    %v3079 = vadd.f32 %v558, %v3000
    %v3080 = vxor.u32 %v3079, 2147483648
    %v3081 = vmul.f32 %v3080, 1.442695
    %v3082 = vpow.pop %v3081
    %v3083 = vadd.f32 %v3082, 1.0
    %v3084 = vrcp.pop %v3083
    %v3085 = vmul.f32 1.0, %v3084
    %v3086 = vmul.f32 %v3078, %v3069
    %v3087 = vadd.f32 %v667, %v3086
    %v3088 = vtanh.pop %v3087
    %v3089 = vsub.f32 1.0, %v3085
    %v3090 = vmul.f32 %v3089, %v3088
    %v3091 = vmul.f32 %v3085, %v2930
    %v3092 = vadd.f32 %v3090, %v3091
    %3093 = vmatprep.subr.mxu0 %v2057
    %3094 = vmatpush1.msra.mxu0 %v2056
    %3095 = vmatprep.subr.mxu0 %v2060
    %3096 = vmatpush1.msra.mxu0 %v2059
    %3097 = vmatprep.subr.mxu0 %v2063
    %3098 = vmatpush1.msra.mxu0 %v2062
    %3099 = vmatprep.subr.mxu0 %v2066
    %3100 = vmatpush1.msra.mxu0 %v2065
    %3101 = vmatprep.subr.mxu0 %v2069
    %3102 = vmatpush1.msra.mxu0 %v2068
    %3103 = vmatprep.subr.mxu0 %v2072
    %3104 = vmatpush1.msra.mxu0 %v2071
    %3105 = vmatprep.subr.mxu0 %v2075
    %3106 = vmatpush1.msra.mxu0 %v2074
    %3107 = vmatprep.subr.mxu0 %v2078
    %3108 = vmatpush1.msra.mxu0 %v2077
    %3109 = vmatprep.subr.mxu0 %v2081
    %3110 = vmatpush1.msra.mxu0 %v2080
    %3111 = vmatprep.subr.mxu0 %v2084
    %3112 = vmatpush1.msra.mxu0 %v2083
    %3113 = vmatprep.subr.mxu0 %v2087
    %3114 = vmatpush1.msra.mxu0 %v2086
    %3115 = vmatprep.subr.mxu0 %v2090
    %3116 = vmatpush1.msra.mxu0 %v2089
    %3117 = vmatprep.subr.mxu0 %v2093
    %3118 = vmatpush1.msra.mxu0 %v2092
    %3119 = vmatprep.subr.mxu0 %v2096
    %3120 = vmatpush1.msra.mxu0 %v2095
    %3121 = vmatprep.subr.mxu0 %v2099
    %3122 = vmatpush1.msra.mxu0 %v2098
    %3123 = vmatprep.subr.mxu0 %v2102
    %3124 = vmatpush1.msra.mxu0 %v2101
    %3125 = vmatprep.subr.mxu0 0.0
    %3126 = vmatpush1.msra.mxu0 0.0
    %3127 = vmatprep.subr.mxu0 0.0
    %3128 = vmatpush1.msra.mxu0 0.0
    %3129 = vmatprep.subr.mxu0 0.0
    %3130 = vmatpush1.msra.mxu0 0.0
    %3131 = vmatprep.subr.mxu0 0.0
    %3132 = vmatpush1.msra.mxu0 0.0
    %3133 = vmatprep.subr.mxu0 0.0
    %3134 = vmatpush1.msra.mxu0 0.0
    %3135 = vmatprep.subr.mxu0 0.0
    %3136 = vmatpush1.msra.mxu0 0.0
    %3137 = vmatprep.subr.mxu0 0.0
    %3138 = vmatpush1.msra.mxu0 0.0
    %3139 = vmatprep.subr.mxu0 0.0
    %3140 = vmatpush1.msra.mxu0 0.0
    %3141 = vmatprep.subr.mxu0 0.0
    %3142 = vmatpush1.msra.mxu0 0.0
    %3143 = vmatprep.subr.mxu0 0.0
    %3144 = vmatpush1.msra.mxu0 0.0
    %3145 = vmatprep.subr.mxu0 0.0
    %3146 = vmatpush1.msra.mxu0 0.0
    %3147 = vmatprep.subr.mxu0 0.0
    %3148 = vmatpush1.msra.mxu0 0.0
    %3149 = vmatprep.subr.mxu0 0.0
    %3150 = vmatpush1.msra.mxu0 0.0
    %3151 = vmatprep.subr.mxu0 0.0
    %3152 = vmatpush1.msra.mxu0 0.0
    %3153 = vmatprep.subr.mxu0 0.0
    %3154 = vmatpush1.msra.mxu0 0.0
    %3155 = vmatprep.subr.mxu0 0.0
    %3156 = vmatpush1.msra.mxu0 0.0
    %3157 = vmatprep.mubr.f32.mxu0 0.0
    %3158 = vmatmul.mubr.f32.gmra.mrb[0].mxu0 %v3092
    %v3159 = vpop.f32.mrb[0].mxu0
    %v3160 = vadd.f32 %v2109, %v3159
    %v3161 = vpop.f32.mrb[0].mxu0
    %v3162 = vadd.f32 %v2113, %v3161
    %3163 = vdwg.mxu0
    %3164 = vmatprep.subr.mxu0 0.0
    %3165 = vmatpush1.msra.mxu0 %v2058
    %3166 = vmatprep.subr.mxu0 0.0
    %3167 = vmatpush1.msra.mxu0 %v2061
    %3168 = vmatprep.subr.mxu0 0.0
    %3169 = vmatpush1.msra.mxu0 %v2064
    %3170 = vmatprep.subr.mxu0 0.0
    %3171 = vmatpush1.msra.mxu0 %v2067
    %3172 = vmatprep.subr.mxu0 0.0
    %3173 = vmatpush1.msra.mxu0 %v2070
    %3174 = vmatprep.subr.mxu0 0.0
    %3175 = vmatpush1.msra.mxu0 %v2073
    %3176 = vmatprep.subr.mxu0 0.0
    %3177 = vmatpush1.msra.mxu0 %v2076
    %3178 = vmatprep.subr.mxu0 0.0
    %3179 = vmatpush1.msra.mxu0 %v2079
    %3180 = vmatprep.subr.mxu0 0.0
    %3181 = vmatpush1.msra.mxu0 %v2082
    %3182 = vmatprep.subr.mxu0 0.0
    %3183 = vmatpush1.msra.mxu0 %v2085
    %3184 = vmatprep.subr.mxu0 0.0
    %3185 = vmatpush1.msra.mxu0 %v2088
    %3186 = vmatprep.subr.mxu0 0.0
    %3187 = vmatpush1.msra.mxu0 %v2091
    %3188 = vmatprep.subr.mxu0 0.0
    %3189 = vmatpush1.msra.mxu0 %v2094
    %3190 = vmatprep.subr.mxu0 0.0
    %3191 = vmatpush1.msra.mxu0 %v2097
    %3192 = vmatprep.subr.mxu0 0.0
    %3193 = vmatpush1.msra.mxu0 %v2100
    %3194 = vmatprep.subr.mxu0 0.0
    %3195 = vmatpush1.msra.mxu0 %v2103
    %3196 = vmatprep.subr.mxu0 0.0
    %3197 = vmatpush1.msra.mxu0 0.0
    %3198 = vmatprep.subr.mxu0 0.0
    %3199 = vmatpush1.msra.mxu0 0.0
    %3200 = vmatprep.subr.mxu0 0.0
    %3201 = vmatpush1.msra.mxu0 0.0
    %3202 = vmatprep.subr.mxu0 0.0
    %3203 = vmatpush1.msra.mxu0 0.0
    %3204 = vmatprep.subr.mxu0 0.0
    %3205 = vmatpush1.msra.mxu0 0.0
    %3206 = vmatprep.subr.mxu0 0.0
    %3207 = vmatpush1.msra.mxu0 0.0
    %3208 = vmatprep.subr.mxu0 0.0
    %3209 = vmatpush1.msra.mxu0 0.0
    %3210 = vmatprep.subr.mxu0 0.0
    %3211 = vmatpush1.msra.mxu0 0.0
    %3212 = vmatprep.subr.mxu0 0.0
    %3213 = vmatpush1.msra.mxu0 0.0
    %3214 = vmatprep.subr.mxu0 0.0
    %3215 = vmatpush1.msra.mxu0 0.0
    %3216 = vmatprep.subr.mxu0 0.0
    %3217 = vmatpush1.msra.mxu0 0.0
    %3218 = vmatprep.subr.mxu0 0.0
    %3219 = vmatpush1.msra.mxu0 0.0
    %3220 = vmatprep.subr.mxu0 0.0
    %3221 = vmatpush1.msra.mxu0 0.0
    %3222 = vmatprep.subr.mxu0 0.0
    %3223 = vmatpush1.msra.mxu0 0.0
    %3224 = vmatprep.subr.mxu0 0.0
    %3225 = vmatpush1.msra.mxu0 0.0
    %3226 = vmatprep.subr.mxu0 0.0
    %3227 = vmatpush1.msra.mxu0 0.0
    %3228 = vmatprep.mubr.f32.mxu0 0.0
    %3229 = vmatmul.mubr.f32.gmra.mrb[0].mxu0 %v3092
    %v3230 = vpop.f32.mrb[0].mxu0
    %v3231 = vadd.f32 %v2117, %v3230
    %v3232 = vpop.f32.mrb[0].mxu0
    %3233 = vdwg.mxu0
    %v3234 = vadd.f32 %v550, %v3160
    %v3235 = vxor.u32 %v3234, 2147483648
    %v3236 = vmul.f32 %v3235, 1.442695
    %v3237 = vpow.pop %v3236
    %v3238 = vadd.f32 %v3237, 1.0
    %v3239 = vrcp.pop %v3238
    %v3240 = vmul.f32 1.0, %v3239
    %v3241 = vadd.f32 %v552, %v3162
    %v3242 = vxor.u32 %v3241, 2147483648
    %v3243 = vmul.f32 %v3242, 1.442695
    %v3244 = vpow.pop %v3243
    %v3245 = vadd.f32 %v3244, 1.0
    %v3246 = vrcp.pop %v3245
    %v3247 = vmul.f32 1.0, %v3246
    %v3248 = vmul.f32 %v3240, %v3231
    %v3249 = vadd.f32 %v662, %v3248
    %v3250 = vtanh.pop %v3249
    %v3251 = vsub.f32 1.0, %v3247
    %v3252 = vmul.f32 %v3251, %v3250
    %v3253 = vmul.f32 %v3247, %v3092
    %v3254 = vadd.f32 %v3252, %v3253
    %3255 = vmatprep.subr.mxu0 %v2057
    %3256 = vmatpush1.msra.mxu0 %v2056
    %3257 = vmatprep.subr.mxu0 %v2060
    %3258 = vmatpush1.msra.mxu0 %v2059
    %3259 = vmatprep.subr.mxu0 %v2063
    %3260 = vmatpush1.msra.mxu0 %v2062
    %3261 = vmatprep.subr.mxu0 %v2066
    %3262 = vmatpush1.msra.mxu0 %v2065
    %3263 = vmatprep.subr.mxu0 %v2069
    %3264 = vmatpush1.msra.mxu0 %v2068
    %3265 = vmatprep.subr.mxu0 %v2072
    %3266 = vmatpush1.msra.mxu0 %v2071
    %3267 = vmatprep.subr.mxu0 %v2075
    %3268 = vmatpush1.msra.mxu0 %v2074
    %3269 = vmatprep.subr.mxu0 %v2078
    %3270 = vmatpush1.msra.mxu0 %v2077
    %3271 = vmatprep.subr.mxu0 %v2081
    %3272 = vmatpush1.msra.mxu0 %v2080
    %3273 = vmatprep.subr.mxu0 %v2084
    %3274 = vmatpush1.msra.mxu0 %v2083
    %3275 = vmatprep.subr.mxu0 %v2087
    %3276 = vmatpush1.msra.mxu0 %v2086
    %3277 = vmatprep.subr.mxu0 %v2090
    %3278 = vmatpush1.msra.mxu0 %v2089
    %3279 = vmatprep.subr.mxu0 %v2093
    %3280 = vmatpush1.msra.mxu0 %v2092
    %3281 = vmatprep.subr.mxu0 %v2096
    %3282 = vmatpush1.msra.mxu0 %v2095
    %3283 = vmatprep.subr.mxu0 %v2099
    %3284 = vmatpush1.msra.mxu0 %v2098
    %3285 = vmatprep.subr.mxu0 %v2102
    %3286 = vmatpush1.msra.mxu0 %v2101
    %3287 = vmatprep.subr.mxu0 0.0
    %3288 = vmatpush1.msra.mxu0 0.0
    %3289 = vmatprep.subr.mxu0 0.0
    %3290 = vmatpush1.msra.mxu0 0.0
    %3291 = vmatprep.subr.mxu0 0.0
    %3292 = vmatpush1.msra.mxu0 0.0
    %3293 = vmatprep.subr.mxu0 0.0
    %3294 = vmatpush1.msra.mxu0 0.0
    %3295 = vmatprep.subr.mxu0 0.0
    %3296 = vmatpush1.msra.mxu0 0.0
    %3297 = vmatprep.subr.mxu0 0.0
    %3298 = vmatpush1.msra.mxu0 0.0
    %3299 = vmatprep.subr.mxu0 0.0
    %3300 = vmatpush1.msra.mxu0 0.0
    %3301 = vmatprep.subr.mxu0 0.0
    %3302 = vmatpush1.msra.mxu0 0.0
    %3303 = vmatprep.subr.mxu0 0.0
    %3304 = vmatpush1.msra.mxu0 0.0
    %3305 = vmatprep.subr.mxu0 0.0
    %3306 = vmatpush1.msra.mxu0 0.0
    %3307 = vmatprep.subr.mxu0 0.0
    %3308 = vmatpush1.msra.mxu0 0.0
    %3309 = vmatprep.subr.mxu0 0.0
    %3310 = vmatpush1.msra.mxu0 0.0
    %3311 = vmatprep.subr.mxu0 0.0
    %3312 = vmatpush1.msra.mxu0 0.0
    %3313 = vmatprep.subr.mxu0 0.0
    %3314 = vmatpush1.msra.mxu0 0.0
    %3315 = vmatprep.subr.mxu0 0.0
    %3316 = vmatpush1.msra.mxu0 0.0
    %3317 = vmatprep.subr.mxu0 0.0
    %3318 = vmatpush1.msra.mxu0 0.0
    %3319 = vmatprep.mubr.f32.mxu0 0.0
    %3320 = vmatmul.mubr.f32.gmra.mrb[0].mxu0 %v3254
    %v3321 = vpop.f32.mrb[0].mxu0
    %v3322 = vadd.f32 %v2109, %v3321
    %v3323 = vpop.f32.mrb[0].mxu0
    %v3324 = vadd.f32 %v2113, %v3323
    %3325 = vdwg.mxu0
    %3326 = vmatprep.subr.mxu0 0.0
    %3327 = vmatpush1.msra.mxu0 %v2058
    %3328 = vmatprep.subr.mxu0 0.0
    %3329 = vmatpush1.msra.mxu0 %v2061
    %3330 = vmatprep.subr.mxu0 0.0
    %3331 = vmatpush1.msra.mxu0 %v2064
    %3332 = vmatprep.subr.mxu0 0.0
    %3333 = vmatpush1.msra.mxu0 %v2067
    %3334 = vmatprep.subr.mxu0 0.0
    %3335 = vmatpush1.msra.mxu0 %v2070
    %3336 = vmatprep.subr.mxu0 0.0
    %3337 = vmatpush1.msra.mxu0 %v2073
    %3338 = vmatprep.subr.mxu0 0.0
    %3339 = vmatpush1.msra.mxu0 %v2076
    %3340 = vmatprep.subr.mxu0 0.0
    %3341 = vmatpush1.msra.mxu0 %v2079
    %3342 = vmatprep.subr.mxu0 0.0
    %3343 = vmatpush1.msra.mxu0 %v2082
    %3344 = vmatprep.subr.mxu0 0.0
    %3345 = vmatpush1.msra.mxu0 %v2085
    %3346 = vmatprep.subr.mxu0 0.0
    %3347 = vmatpush1.msra.mxu0 %v2088
    %3348 = vmatprep.subr.mxu0 0.0
    %3349 = vmatpush1.msra.mxu0 %v2091
    %3350 = vmatprep.subr.mxu0 0.0
    %3351 = vmatpush1.msra.mxu0 %v2094
    %3352 = vmatprep.subr.mxu0 0.0
    %3353 = vmatpush1.msra.mxu0 %v2097
    %3354 = vmatprep.subr.mxu0 0.0
    %3355 = vmatpush1.msra.mxu0 %v2100
    %3356 = vmatprep.subr.mxu0 0.0
    %3357 = vmatpush1.msra.mxu0 %v2103
    %3358 = vmatprep.subr.mxu0 0.0
    %3359 = vmatpush1.msra.mxu0 0.0
    %3360 = vmatprep.subr.mxu0 0.0
    %3361 = vmatpush1.msra.mxu0 0.0
    %3362 = vmatprep.subr.mxu0 0.0
    %3363 = vmatpush1.msra.mxu0 0.0
    %3364 = vmatprep.subr.mxu0 0.0
    %3365 = vmatpush1.msra.mxu0 0.0
    %3366 = vmatprep.subr.mxu0 0.0
    %3367 = vmatpush1.msra.mxu0 0.0
    %3368 = vmatprep.subr.mxu0 0.0
    %3369 = vmatpush1.msra.mxu0 0.0
    %3370 = vmatprep.subr.mxu0 0.0
    %3371 = vmatpush1.msra.mxu0 0.0
    %3372 = vmatprep.subr.mxu0 0.0
    %3373 = vmatpush1.msra.mxu0 0.0
    %3374 = vmatprep.subr.mxu0 0.0
    %3375 = vmatpush1.msra.mxu0 0.0
    %3376 = vmatprep.subr.mxu0 0.0
    %3377 = vmatpush1.msra.mxu0 0.0
    %3378 = vmatprep.subr.mxu0 0.0
    %3379 = vmatpush1.msra.mxu0 0.0
    %3380 = vmatprep.subr.mxu0 0.0
    %3381 = vmatpush1.msra.mxu0 0.0
    %3382 = vmatprep.subr.mxu0 0.0
    %3383 = vmatpush1.msra.mxu0 0.0
    %3384 = vmatprep.subr.mxu0 0.0
    %3385 = vmatpush1.msra.mxu0 0.0
    %3386 = vmatprep.subr.mxu0 0.0
    %3387 = vmatpush1.msra.mxu0 0.0
    %3388 = vmatprep.subr.mxu0 0.0
    %3389 = vmatpush1.msra.mxu0 0.0
    %3390 = vmatprep.mubr.f32.mxu0 0.0
    %3391 = vmatmul.mubr.f32.gmra.mrb[0].mxu0 %v3254
    %v3392 = vpop.f32.mrb[0].mxu0
    %v3393 = vadd.f32 %v2117, %v3392
    %v3394 = vpop.f32.mrb[0].mxu0
    %3395 = vdwg.mxu0
    %v3396 = vadd.f32 %v544, %v3322
    %v3397 = vxor.u32 %v3396, 2147483648
    %v3398 = vmul.f32 %v3397, 1.442695
    %v3399 = vpow.pop %v3398
    %v3400 = vadd.f32 %v3399, 1.0
    %v3401 = vrcp.pop %v3400
    %v3402 = vmul.f32 1.0, %v3401
    %v3403 = vadd.f32 %v546, %v3324
    %v3404 = vxor.u32 %v3403, 2147483648
    %v3405 = vmul.f32 %v3404, 1.442695
    %v3406 = vpow.pop %v3405
    %v3407 = vadd.f32 %v3406, 1.0
    %v3408 = vrcp.pop %v3407
    %v3409 = vmul.f32 1.0, %v3408
    %v3410 = vmul.f32 %v3402, %v3393
    %v3411 = vadd.f32 %v657, %v3410
    %v3412 = vtanh.pop %v3411
    %v3413 = vsub.f32 1.0, %v3409
    %v3414 = vmul.f32 %v3413, %v3412
    %v3415 = vmul.f32 %v3409, %v3254
    %v3416 = vadd.f32 %v3414, %v3415
    %v3417 = vld [vmem:[#allocation10] sm:$0xff]
    %v3418 = vld [vmem:[#allocation10 + $0x8] sm:$0xff]
    %v3419 = vld [vmem:[#allocation10 + $0x10] sm:$0xff]
    %v3420 = vld [vmem:[#allocation10 + $0x18] sm:$0xff]
    %v3421 = vld [vmem:[#allocation10 + $0x20] sm:$0xff]
    %v3422 = vld [vmem:[#allocation10 + $0x28] sm:$0xff]
    %v3423 = vld [vmem:[#allocation10 + $0x30] sm:$0xff]
    %v3424 = vld [vmem:[#allocation10 + $0x38] sm:$0xff]
    %v3425 = vld [vmem:[#allocation10 + $0x40] sm:$0xff]
    %v3426 = vld [vmem:[#allocation10 + $0x48] sm:$0xff]
    %v3427 = vld [vmem:[#allocation10 + $0x50] sm:$0xff]
    %v3428 = vld [vmem:[#allocation10 + $0x58] sm:$0xff]
    %v3429 = vld [vmem:[#allocation10 + $0x60] sm:$0xff]
    %v3430 = vld [vmem:[#allocation10 + $0x68] sm:$0xff]
    %v3431 = vld [vmem:[#allocation10 + $0x70] sm:$0xff]
    %v3432 = vld [vmem:[#allocation10 + $0x78] sm:$0xff]
    %v3433 = vld [vmem:[#allocation10 + $0x80] sm:$0xff]
    %v3434 = vld [vmem:[#allocation10 + $0x88] sm:$0xff]
    %v3435 = vld [vmem:[#allocation10 + $0x90] sm:$0xff]
    %v3436 = vld [vmem:[#allocation10 + $0x98] sm:$0xff]
    %v3437 = vld [vmem:[#allocation10 + $0xa0] sm:$0xff]
    %v3438 = vld [vmem:[#allocation10 + $0xa8] sm:$0xff]
    %v3439 = vld [vmem:[#allocation10 + $0xb0] sm:$0xff]
    %v3440 = vld [vmem:[#allocation10 + $0xb8] sm:$0xff]
    %v3441 = vld [vmem:[#allocation10 + $0xc0] sm:$0xff]
    %v3442 = vld [vmem:[#allocation10 + $0xc8] sm:$0xff]
    %v3443 = vld [vmem:[#allocation10 + $0xd0] sm:$0xff]
    %v3444 = vld [vmem:[#allocation10 + $0xd8] sm:$0xff]
    %v3445 = vld [vmem:[#allocation10 + $0xe0] sm:$0xff]
    %v3446 = vld [vmem:[#allocation10 + $0xe8] sm:$0xff]
    %v3447 = vld [vmem:[#allocation10 + $0xf0] sm:$0xff]
    %v3448 = vld [vmem:[#allocation10 + $0xf8] sm:$0xff]
    %v3449 = vld [vmem:[#allocation10 + $0x100] sm:$0xff]
    %v3450 = vld [vmem:[#allocation10 + $0x108] sm:$0xff]
    %v3451 = vld [vmem:[#allocation10 + $0x110] sm:$0xff]
    %v3452 = vld [vmem:[#allocation10 + $0x118] sm:$0xff]
    %v3453 = vld [vmem:[#allocation10 + $0x120] sm:$0xff]
    %v3454 = vld [vmem:[#allocation10 + $0x128] sm:$0xff]
    %v3455 = vld [vmem:[#allocation10 + $0x130] sm:$0xff]
    %v3456 = vld [vmem:[#allocation10 + $0x138] sm:$0xff]
    %v3457 = vld [vmem:[#allocation10 + $0x140] sm:$0xff]
    %v3458 = vld [vmem:[#allocation10 + $0x148] sm:$0xff]
    %v3459 = vld [vmem:[#allocation10 + $0x150] sm:$0xff]
    %v3460 = vld [vmem:[#allocation10 + $0x158] sm:$0xff]
    %v3461 = vld [vmem:[#allocation10 + $0x160] sm:$0xff]
    %v3462 = vld [vmem:[#allocation10 + $0x168] sm:$0xff]
    %v3463 = vld [vmem:[#allocation10 + $0x170] sm:$0xff]
    %v3464 = vld [vmem:[#allocation10 + $0x178] sm:$0xff]
    %v3465 = vld [vmem:[#allocation10 + $0x180] sm:$0xff]
    %v3466 = vld [vmem:[#allocation10 + $0x188] sm:$0xff]
    %v3467 = vld [vmem:[#allocation10 + $0x190] sm:$0xff]
    %v3468 = vld [vmem:[#allocation10 + $0x198] sm:$0xff]
    %v3469 = vld [vmem:[#allocation10 + $0x1a0] sm:$0xff]
    %v3470 = vld [vmem:[#allocation10 + $0x1a8] sm:$0xff]
    %v3471 = vld [vmem:[#allocation10 + $0x1b0] sm:$0xff]
    %v3472 = vld [vmem:[#allocation10 + $0x1b8] sm:$0xff]
    %v3473 = vld [vmem:[#allocation10 + $0x1c0] sm:$0xff]
    %v3474 = vld [vmem:[#allocation10 + $0x1c8] sm:$0xff]
    %v3475 = vld [vmem:[#allocation10 + $0x1d0] sm:$0xff]
    %v3476 = vld [vmem:[#allocation10 + $0x1d8] sm:$0xff]
    %v3477 = vld [vmem:[#allocation10 + $0x1e0] sm:$0xff]
    %v3478 = vld [vmem:[#allocation10 + $0x1e8] sm:$0xff]
    %v3479 = vld [vmem:[#allocation10 + $0x1f0] sm:$0xff]
    %v3480 = vld [vmem:[#allocation10 + $0x1f8] sm:$0xff]
    %v3481 = vld [vmem:[#allocation10 + $0x200] sm:$0xff]
    %v3482 = vld [vmem:[#allocation10 + $0x208] sm:$0xff]
    %v3483 = vld [vmem:[#allocation10 + $0x210] sm:$0xff]
    %v3484 = vld [vmem:[#allocation10 + $0x218] sm:$0xff]
    %v3485 = vld [vmem:[#allocation10 + $0x220] sm:$0xff]
    %v3486 = vld [vmem:[#allocation10 + $0x228] sm:$0xff]
    %v3487 = vld [vmem:[#allocation10 + $0x230] sm:$0xff]
    %v3488 = vld [vmem:[#allocation10 + $0x238] sm:$0xff]
    %v3489 = vld [vmem:[#allocation10 + $0x240] sm:$0xff]
    %v3490 = vld [vmem:[#allocation10 + $0x248] sm:$0xff]
    %v3491 = vld [vmem:[#allocation10 + $0x250] sm:$0xff]
    %v3492 = vld [vmem:[#allocation10 + $0x258] sm:$0xff]
    %v3493 = vld [vmem:[#allocation10 + $0x260] sm:$0xff]
    %v3494 = vld [vmem:[#allocation10 + $0x268] sm:$0xff]
    %v3495 = vld [vmem:[#allocation10 + $0x270] sm:$0xff]
    %v3496 = vld [vmem:[#allocation10 + $0x278] sm:$0xff]
    %v3497 = vld [vmem:[#allocation10 + $0x280] sm:$0xff]
    %v3498 = vld [vmem:[#allocation10 + $0x288] sm:$0xff]
    %v3499 = vld [vmem:[#allocation10 + $0x290] sm:$0xff]
    %v3500 = vld [vmem:[#allocation10 + $0x298] sm:$0xff]
    %v3501 = vld [vmem:[#allocation10 + $0x2a0] sm:$0xff]
    %v3502 = vld [vmem:[#allocation10 + $0x2a8] sm:$0xff]
    %v3503 = vld [vmem:[#allocation10 + $0x2b0] sm:$0xff]
    %v3504 = vld [vmem:[#allocation10 + $0x2b8] sm:$0xff]
    %v3505 = vld [vmem:[#allocation10 + $0x2c0] sm:$0xff]
    %v3506 = vld [vmem:[#allocation10 + $0x2c8] sm:$0xff]
    %v3507 = vld [vmem:[#allocation10 + $0x2d0] sm:$0xff]
    %v3508 = vld [vmem:[#allocation10 + $0x2d8] sm:$0xff]
    %v3509 = vld [vmem:[#allocation10 + $0x2e0] sm:$0xff]
    %v3510 = vld [vmem:[#allocation10 + $0x2e8] sm:$0xff]
    %v3511 = vld [vmem:[#allocation10 + $0x2f0] sm:$0xff]
    %v3512 = vld [vmem:[#allocation10 + $0x2f8] sm:$0xff]
    %v3513 = vld [vmem:[%s11] sm:$0x7]
    %v3515 = vlaneseq
    %v3516 = vshrl.u32 %v3515, 7
    %v3517 = vsub.s32 0, %v3516
    %v3518 = vrot.slane %v3513, %v3517
    %v3519 = vlaneseq
    %v3520 = vshrl.u32 %v3519, 7
    %v3521 = vsub.s32 1, %v3520
    %v3522 = vrot.slane %v3513, %v3521
    %v3523 = vlaneseq
    %v3524 = vshrl.u32 %v3523, 7
    %v3525 = vsub.s32 2, %v3524
    %v3526 = vrot.slane %v3513, %v3525
    %3530 = vmatprep.subr.mxu0 %v3418
    %3531 = vmatpush1.msra.mxu0 %v3417
    %3532 = vmatprep.subr.mxu0 %v3421
    %3533 = vmatpush1.msra.mxu0 %v3420
    %3534 = vmatprep.subr.mxu0 %v3424
    %3535 = vmatpush1.msra.mxu0 %v3423
    %3536 = vmatprep.subr.mxu0 %v3427
    %3537 = vmatpush1.msra.mxu0 %v3426
    %3538 = vmatprep.subr.mxu0 %v3430
    %3539 = vmatpush1.msra.mxu0 %v3429
    %3540 = vmatprep.subr.mxu0 %v3433
    %3541 = vmatpush1.msra.mxu0 %v3432
    %3542 = vmatprep.subr.mxu0 %v3436
    %3543 = vmatpush1.msra.mxu0 %v3435
    %3544 = vmatprep.subr.mxu0 %v3439
    %3545 = vmatpush1.msra.mxu0 %v3438
    %3546 = vmatprep.subr.mxu0 %v3442
    %3547 = vmatpush1.msra.mxu0 %v3441
    %3548 = vmatprep.subr.mxu0 %v3445
    %3549 = vmatpush1.msra.mxu0 %v3444
    %3550 = vmatprep.subr.mxu0 %v3448
    %3551 = vmatpush1.msra.mxu0 %v3447
    %3552 = vmatprep.subr.mxu0 %v3451
    %3553 = vmatpush1.msra.mxu0 %v3450
    %3554 = vmatprep.subr.mxu0 %v3454
    %3555 = vmatpush1.msra.mxu0 %v3453
    %3556 = vmatprep.subr.mxu0 %v3457
    %3557 = vmatpush1.msra.mxu0 %v3456
    %3558 = vmatprep.subr.mxu0 %v3460
    %3559 = vmatpush1.msra.mxu0 %v3459
    %3560 = vmatprep.subr.mxu0 %v3463
    %3561 = vmatpush1.msra.mxu0 %v3462
    %3562 = vmatprep.subr.mxu0 %v3466
    %3563 = vmatpush1.msra.mxu0 %v3465
    %3564 = vmatprep.subr.mxu0 %v3469
    %3565 = vmatpush1.msra.mxu0 %v3468
    %3566 = vmatprep.subr.mxu0 %v3472
    %3567 = vmatpush1.msra.mxu0 %v3471
    %3568 = vmatprep.subr.mxu0 %v3475
    %3569 = vmatpush1.msra.mxu0 %v3474
    %3570 = vmatprep.subr.mxu0 %v3478
    %3571 = vmatpush1.msra.mxu0 %v3477
    %3572 = vmatprep.subr.mxu0 %v3481
    %3573 = vmatpush1.msra.mxu0 %v3480
    %3574 = vmatprep.subr.mxu0 %v3484
    %3575 = vmatpush1.msra.mxu0 %v3483
    %3576 = vmatprep.subr.mxu0 %v3487
    %3577 = vmatpush1.msra.mxu0 %v3486
    %3578 = vmatprep.subr.mxu0 %v3490
    %3579 = vmatpush1.msra.mxu0 %v3489
    %3580 = vmatprep.subr.mxu0 %v3493
    %3581 = vmatpush1.msra.mxu0 %v3492
    %3582 = vmatprep.subr.mxu0 %v3496
    %3583 = vmatpush1.msra.mxu0 %v3495
    %3584 = vmatprep.subr.mxu0 %v3499
    %3585 = vmatpush1.msra.mxu0 %v3498
    %3586 = vmatprep.subr.mxu0 %v3502
    %3587 = vmatpush1.msra.mxu0 %v3501
    %3588 = vmatprep.subr.mxu0 %v3505
    %3589 = vmatpush1.msra.mxu0 %v3504
    %3590 = vmatprep.subr.mxu0 %v3508
    %3591 = vmatpush1.msra.mxu0 %v3507
    %3592 = vmatprep.subr.mxu0 %v3511
    %3593 = vmatpush1.msra.mxu0 %v3510
    %3594 = vmatprep.mubr.f32.mxu0 %v3416
    %3595 = vmatmul.mubr.f32.gmra.mrb[0].mxu0 %v921
    %v3596 = vpop.f32.mrb[0].mxu0
    %v3597 = vadd.f32 %v3518, %v3596
    %v3598 = vpop.f32.mrb[0].mxu0
    %v3599 = vadd.f32 %v3522, %v3598
    %3600 = vmatprep.mubr.f32.mxu0 %v3254
    %3601 = vmatmul.mubr.f32.gmra.mrb[0].mxu0 %v1083
    %v3602 = vpop.f32.mrb[0].mxu0
    %v3603 = vadd.f32 %v3518, %v3602
    %v3604 = vpop.f32.mrb[0].mxu0
    %v3605 = vadd.f32 %v3522, %v3604
    %3606 = vmatprep.mubr.f32.mxu0 %v3092
    %3607 = vmatmul.mubr.f32.gmra.mrb[0].mxu0 %v1245
    %v3608 = vpop.f32.mrb[0].mxu0
    %v3609 = vadd.f32 %v3518, %v3608
    %v3610 = vpop.f32.mrb[0].mxu0
    %v3611 = vadd.f32 %v3522, %v3610
    %3612 = vmatprep.mubr.f32.mxu0 %v2930
    %3613 = vmatmul.mubr.f32.gmra.mrb[0].mxu0 %v1407
    %v3614 = vpop.f32.mrb[0].mxu0
    %v3615 = vadd.f32 %v3518, %v3614
    %v3616 = vpop.f32.mrb[0].mxu0
    %v3617 = vadd.f32 %v3522, %v3616
    %3618 = vmatprep.mubr.f32.mxu0 %v2768
    %3619 = vmatmul.mubr.f32.gmra.mrb[0].mxu0 %v1569
    %v3620 = vpop.f32.mrb[0].mxu0
    %v3621 = vadd.f32 %v3518, %v3620
    %v3622 = vpop.f32.mrb[0].mxu0
    %v3623 = vadd.f32 %v3522, %v3622
    %3624 = vmatprep.mubr.f32.mxu0 %v2606
    %3625 = vmatmul.mubr.f32.gmra.mrb[0].mxu0 %v1731
    %v3626 = vpop.f32.mrb[0].mxu0
    %v3627 = vadd.f32 %v3518, %v3626
    %v3628 = vpop.f32.mrb[0].mxu0
    %v3629 = vadd.f32 %v3522, %v3628
    %3630 = vmatprep.mubr.f32.mxu0 %v2444
    %3631 = vmatmul.mubr.f32.gmra.mrb[0].mxu0 %v1893
    %v3632 = vpop.f32.mrb[0].mxu0
    %v3633 = vadd.f32 %v3518, %v3632
    %v3634 = vpop.f32.mrb[0].mxu0
    %v3635 = vadd.f32 %v3522, %v3634
    %3636 = vmatprep.mubr.f32.mxu0 %v2282
    %3637 = vmatmul.mubr.f32.gmra.mrb[0].mxu0 %v2055
    %v3638 = vpop.f32.mrb[0].mxu0
    %v3639 = vadd.f32 %v3518, %v3638
    %v3640 = vpop.f32.mrb[0].mxu0
    %v3641 = vadd.f32 %v3522, %v3640
    %3642 = vdwg.mxu0
    %3643 = vmatprep.subr.mxu0 0.0
    %3644 = vmatpush1.msra.mxu0 %v3419
    %3645 = vmatprep.subr.mxu0 0.0
    %3646 = vmatpush1.msra.mxu0 %v3422
    %3647 = vmatprep.subr.mxu0 0.0
    %3648 = vmatpush1.msra.mxu0 %v3425
    %3649 = vmatprep.subr.mxu0 0.0
    %3650 = vmatpush1.msra.mxu0 %v3428
    %3651 = vmatprep.subr.mxu0 0.0
    %3652 = vmatpush1.msra.mxu0 %v3431
    %3653 = vmatprep.subr.mxu0 0.0
    %3654 = vmatpush1.msra.mxu0 %v3434
    %3655 = vmatprep.subr.mxu0 0.0
    %3656 = vmatpush1.msra.mxu0 %v3437
    %3657 = vmatprep.subr.mxu0 0.0
    %3658 = vmatpush1.msra.mxu0 %v3440
    %3659 = vmatprep.subr.mxu0 0.0
    %3660 = vmatpush1.msra.mxu0 %v3443
    %3661 = vmatprep.subr.mxu0 0.0
    %3662 = vmatpush1.msra.mxu0 %v3446
    %3663 = vmatprep.subr.mxu0 0.0
    %3664 = vmatpush1.msra.mxu0 %v3449
    %3665 = vmatprep.subr.mxu0 0.0
    %3666 = vmatpush1.msra.mxu0 %v3452
    %3667 = vmatprep.subr.mxu0 0.0
    %3668 = vmatpush1.msra.mxu0 %v3455
    %3669 = vmatprep.subr.mxu0 0.0
    %3670 = vmatpush1.msra.mxu0 %v3458
    %3671 = vmatprep.subr.mxu0 0.0
    %3672 = vmatpush1.msra.mxu0 %v3461
    %3673 = vmatprep.subr.mxu0 0.0
    %3674 = vmatpush1.msra.mxu0 %v3464
    %3675 = vmatprep.subr.mxu0 0.0
    %3676 = vmatpush1.msra.mxu0 %v3467
    %3677 = vmatprep.subr.mxu0 0.0
    %3678 = vmatpush1.msra.mxu0 %v3470
    %3679 = vmatprep.subr.mxu0 0.0
    %3680 = vmatpush1.msra.mxu0 %v3473
    %3681 = vmatprep.subr.mxu0 0.0
    %3682 = vmatpush1.msra.mxu0 %v3476
    %3683 = vmatprep.subr.mxu0 0.0
    %3684 = vmatpush1.msra.mxu0 %v3479
    %3685 = vmatprep.subr.mxu0 0.0
    %3686 = vmatpush1.msra.mxu0 %v3482
    %3687 = vmatprep.subr.mxu0 0.0
    %3688 = vmatpush1.msra.mxu0 %v3485
    %3689 = vmatprep.subr.mxu0 0.0
    %3690 = vmatpush1.msra.mxu0 %v3488
    %3691 = vmatprep.subr.mxu0 0.0
    %3692 = vmatpush1.msra.mxu0 %v3491
    %3693 = vmatprep.subr.mxu0 0.0
    %3694 = vmatpush1.msra.mxu0 %v3494
    %3695 = vmatprep.subr.mxu0 0.0
    %3696 = vmatpush1.msra.mxu0 %v3497
    %3697 = vmatprep.subr.mxu0 0.0
    %3698 = vmatpush1.msra.mxu0 %v3500
    %3699 = vmatprep.subr.mxu0 0.0
    %3700 = vmatpush1.msra.mxu0 %v3503
    %3701 = vmatprep.subr.mxu0 0.0
    %3702 = vmatpush1.msra.mxu0 %v3506
    %3703 = vmatprep.subr.mxu0 0.0
    %3704 = vmatpush1.msra.mxu0 %v3509
    %3705 = vmatprep.subr.mxu0 0.0
    %3706 = vmatpush1.msra.mxu0 %v3512
    %3707 = vmatprep.mubr.f32.mxu0 %v3416
    %3708 = vmatmul.mubr.f32.gmra.mrb[0].mxu0 %v921
    %v3709 = vpop.f32.mrb[0].mxu0
    %v3710 = vadd.f32 %v3526, %v3709
    %v3711 = vpop.f32.mrb[0].mxu0
    %3712 = vmatprep.mubr.f32.mxu0 %v3254
    %3713 = vmatmul.mubr.f32.gmra.mrb[0].mxu0 %v1083
    %v3714 = vpop.f32.mrb[0].mxu0
    %v3715 = vadd.f32 %v3526, %v3714
    %v3716 = vpop.f32.mrb[0].mxu0
    %3717 = vmatprep.mubr.f32.mxu0 %v3092
    %3718 = vmatmul.mubr.f32.gmra.mrb[0].mxu0 %v1245
    %v3719 = vpop.f32.mrb[0].mxu0
    %v3720 = vadd.f32 %v3526, %v3719
    %v3721 = vpop.f32.mrb[0].mxu0
    %3722 = vmatprep.mubr.f32.mxu0 %v2930
    %3723 = vmatmul.mubr.f32.gmra.mrb[0].mxu0 %v1407
    %v3724 = vpop.f32.mrb[0].mxu0
    %v3725 = vadd.f32 %v3526, %v3724
    %v3726 = vpop.f32.mrb[0].mxu0
    %3727 = vmatprep.mubr.f32.mxu0 %v2768
    %3728 = vmatmul.mubr.f32.gmra.mrb[0].mxu0 %v1569
    %v3729 = vpop.f32.mrb[0].mxu0
    %v3730 = vadd.f32 %v3526, %v3729
    %v3731 = vpop.f32.mrb[0].mxu0
    %3732 = vmatprep.mubr.f32.mxu0 %v2606
    %3733 = vmatmul.mubr.f32.gmra.mrb[0].mxu0 %v1731
    %v3734 = vpop.f32.mrb[0].mxu0
    %v3735 = vadd.f32 %v3526, %v3734
    %v3736 = vpop.f32.mrb[0].mxu0
    %3737 = vmatprep.mubr.f32.mxu0 %v2444
    %3738 = vmatmul.mubr.f32.gmra.mrb[0].mxu0 %v1893
    %v3739 = vpop.f32.mrb[0].mxu0
    %v3740 = vadd.f32 %v3526, %v3739
    %v3741 = vpop.f32.mrb[0].mxu0
    %3742 = vmatprep.mubr.f32.mxu0 %v2282
    %3743 = vmatmul.mubr.f32.gmra.mrb[0].mxu0 %v2055
    %v3744 = vpop.f32.mrb[0].mxu0
    %v3745 = vadd.f32 %v3526, %v3744
    %v3746 = vpop.f32.mrb[0].mxu0
    %3747 = vdwg.mxu0
    %v3748 = vld [vmem:[#allocation13] sm:$0xff]
    %v3749 = vld [vmem:[#allocation13 + $0x8] sm:$0xff]
    %v3750 = vld [vmem:[#allocation13 + $0x10] sm:$0xff]
    %v3751 = vld [vmem:[#allocation13 + $0x18] sm:$0xff]
    %v3752 = vld [vmem:[#allocation13 + $0x20] sm:$0xff]
    %v3753 = vld [vmem:[#allocation13 + $0x28] sm:$0xff]
    %v3754 = vld [vmem:[#allocation13 + $0x30] sm:$0xff]
    %v3755 = vld [vmem:[#allocation13 + $0x38] sm:$0xff]
    %v3756 = vld [vmem:[#allocation13 + $0x40] sm:$0xff]
    %v3757 = vld [vmem:[#allocation13 + $0x48] sm:$0xff]
    %v3758 = vld [vmem:[#allocation13 + $0x50] sm:$0xff]
    %v3759 = vld [vmem:[#allocation13 + $0x58] sm:$0xff]
    %v3760 = vld [vmem:[#allocation13 + $0x60] sm:$0xff]
    %v3761 = vld [vmem:[#allocation13 + $0x68] sm:$0xff]
    %v3762 = vld [vmem:[#allocation13 + $0x70] sm:$0xff]
    %v3763 = vld [vmem:[#allocation13 + $0x78] sm:$0xff]
    %v3764 = vld [vmem:[#allocation13 + $0x80] sm:$0xff]
    %v3765 = vld [vmem:[#allocation13 + $0x88] sm:$0xff]
    %v3766 = vld [vmem:[#allocation13 + $0x90] sm:$0xff]
    %v3767 = vld [vmem:[#allocation13 + $0x98] sm:$0xff]
    %v3768 = vld [vmem:[#allocation13 + $0xa0] sm:$0xff]
    %v3769 = vld [vmem:[#allocation13 + $0xa8] sm:$0xff]
    %v3770 = vld [vmem:[#allocation13 + $0xb0] sm:$0xff]
    %v3771 = vld [vmem:[#allocation13 + $0xb8] sm:$0xff]
    %v3772 = vld [vmem:[#allocation13 + $0xc0] sm:$0xff]
    %v3773 = vld [vmem:[#allocation13 + $0xc8] sm:$0xff]
    %v3774 = vld [vmem:[#allocation13 + $0xd0] sm:$0xff]
    %v3775 = vld [vmem:[#allocation13 + $0xd8] sm:$0xff]
    %v3776 = vld [vmem:[#allocation13 + $0xe0] sm:$0xff]
    %v3777 = vld [vmem:[#allocation13 + $0xe8] sm:$0xff]
    %v3778 = vld [vmem:[#allocation13 + $0xf0] sm:$0xff]
    %v3779 = vld [vmem:[#allocation13 + $0xf8] sm:$0xff]
    %v3780 = vld [vmem:[#allocation13 + $0x100] sm:$0xff]
    %v3781 = vld [vmem:[#allocation13 + $0x108] sm:$0xff]
    %v3782 = vld [vmem:[#allocation13 + $0x110] sm:$0xff]
    %v3783 = vld [vmem:[#allocation13 + $0x118] sm:$0xff]
    %v3784 = vld [vmem:[#allocation13 + $0x120] sm:$0xff]
    %v3785 = vld [vmem:[#allocation13 + $0x128] sm:$0xff]
    %v3786 = vld [vmem:[#allocation13 + $0x130] sm:$0xff]
    %v3787 = vld [vmem:[#allocation13 + $0x138] sm:$0xff]
    %v3788 = vld [vmem:[#allocation13 + $0x140] sm:$0xff]
    %v3789 = vld [vmem:[#allocation13 + $0x148] sm:$0xff]
    %v3790 = vld [vmem:[#allocation13 + $0x150] sm:$0xff]
    %v3791 = vld [vmem:[#allocation13 + $0x158] sm:$0xff]
    %v3792 = vld [vmem:[#allocation13 + $0x160] sm:$0xff]
    %v3793 = vld [vmem:[#allocation13 + $0x168] sm:$0xff]
    %v3794 = vld [vmem:[#allocation13 + $0x170] sm:$0xff]
    %v3795 = vld [vmem:[#allocation13 + $0x178] sm:$0xff]
    %v3796 = vld [vmem:[#allocation13 + $0x180] sm:$0xff]
    %v3797 = vld [vmem:[#allocation13 + $0x188] sm:$0xff]
    %v3798 = vld [vmem:[#allocation13 + $0x190] sm:$0xff]
    %v3799 = vld [vmem:[#allocation13 + $0x198] sm:$0xff]
    %v3800 = vld [vmem:[#allocation13 + $0x1a0] sm:$0xff]
    %v3801 = vld [vmem:[#allocation13 + $0x1a8] sm:$0xff]
    %v3802 = vld [vmem:[#allocation13 + $0x1b0] sm:$0xff]
    %v3803 = vld [vmem:[#allocation13 + $0x1b8] sm:$0xff]
    %v3804 = vld [vmem:[#allocation13 + $0x1c0] sm:$0xff]
    %v3805 = vld [vmem:[#allocation13 + $0x1c8] sm:$0xff]
    %v3806 = vld [vmem:[#allocation13 + $0x1d0] sm:$0xff]
    %v3807 = vld [vmem:[#allocation13 + $0x1d8] sm:$0xff]
    %v3808 = vld [vmem:[#allocation13 + $0x1e0] sm:$0xff]
    %v3809 = vld [vmem:[#allocation13 + $0x1e8] sm:$0xff]
    %v3810 = vld [vmem:[#allocation13 + $0x1f0] sm:$0xff]
    %v3811 = vld [vmem:[#allocation13 + $0x1f8] sm:$0xff]
    %v3812 = vld [vmem:[#allocation13 + $0x200] sm:$0xff]
    %v3813 = vld [vmem:[#allocation13 + $0x208] sm:$0xff]
    %v3814 = vld [vmem:[#allocation13 + $0x210] sm:$0xff]
    %v3815 = vld [vmem:[#allocation13 + $0x218] sm:$0xff]
    %v3816 = vld [vmem:[#allocation13 + $0x220] sm:$0xff]
    %v3817 = vld [vmem:[#allocation13 + $0x228] sm:$0xff]
    %v3818 = vld [vmem:[#allocation13 + $0x230] sm:$0xff]
    %v3819 = vld [vmem:[#allocation13 + $0x238] sm:$0xff]
    %v3820 = vld [vmem:[#allocation13 + $0x240] sm:$0xff]
    %v3821 = vld [vmem:[#allocation13 + $0x248] sm:$0xff]
    %v3822 = vld [vmem:[#allocation13 + $0x250] sm:$0xff]
    %v3823 = vld [vmem:[#allocation13 + $0x258] sm:$0xff]
    %v3824 = vld [vmem:[#allocation13 + $0x260] sm:$0xff]
    %v3825 = vld [vmem:[#allocation13 + $0x268] sm:$0xff]
    %v3826 = vld [vmem:[#allocation13 + $0x270] sm:$0xff]
    %v3827 = vld [vmem:[#allocation13 + $0x278] sm:$0xff]
    %v3828 = vld [vmem:[#allocation13 + $0x280] sm:$0xff]
    %v3829 = vld [vmem:[#allocation13 + $0x288] sm:$0xff]
    %v3830 = vld [vmem:[#allocation13 + $0x290] sm:$0xff]
    %v3831 = vld [vmem:[#allocation13 + $0x298] sm:$0xff]
    %v3832 = vld [vmem:[#allocation13 + $0x2a0] sm:$0xff]
    %v3833 = vld [vmem:[#allocation13 + $0x2a8] sm:$0xff]
    %v3834 = vld [vmem:[#allocation13 + $0x2b0] sm:$0xff]
    %v3835 = vld [vmem:[#allocation13 + $0x2b8] sm:$0xff]
    %v3836 = vld [vmem:[#allocation13 + $0x2c0] sm:$0xff]
    %v3837 = vld [vmem:[#allocation13 + $0x2c8] sm:$0xff]
    %v3838 = vld [vmem:[#allocation13 + $0x2d0] sm:$0xff]
    %v3839 = vld [vmem:[#allocation13 + $0x2d8] sm:$0xff]
    %v3840 = vld [vmem:[#allocation13 + $0x2e0] sm:$0xff]
    %v3841 = vld [vmem:[#allocation13 + $0x2e8] sm:$0xff]
    %v3842 = vld [vmem:[#allocation13 + $0x2f0] sm:$0xff]
    %v3843 = vld [vmem:[#allocation13 + $0x2f8] sm:$0xff]
    %v3844 = vld [vmem:[%s15] sm:$0x7]
    %v3846 = vlaneseq
    %v3847 = vshrl.u32 %v3846, 7
    %v3848 = vsub.s32 0, %v3847
    %v3849 = vrot.slane %v3844, %v3848
    %v3850 = vlaneseq
    %v3851 = vshrl.u32 %v3850, 7
    %v3852 = vsub.s32 1, %v3851
    %v3853 = vrot.slane %v3844, %v3852
    %v3854 = vlaneseq
    %v3855 = vshrl.u32 %v3854, 7
    %v3856 = vsub.s32 2, %v3855
    %v3857 = vrot.slane %v3844, %v3856
    %3861 = vmatprep.subr.mxu0 %v3749
    %3862 = vmatpush1.msra.mxu0 %v3748
    %3863 = vmatprep.subr.mxu0 %v3752
    %3864 = vmatpush1.msra.mxu0 %v3751
    %3865 = vmatprep.subr.mxu0 %v3755
    %3866 = vmatpush1.msra.mxu0 %v3754
    %3867 = vmatprep.subr.mxu0 %v3758
    %3868 = vmatpush1.msra.mxu0 %v3757
    %3869 = vmatprep.subr.mxu0 %v3761
    %3870 = vmatpush1.msra.mxu0 %v3760
    %3871 = vmatprep.subr.mxu0 %v3764
    %3872 = vmatpush1.msra.mxu0 %v3763
    %3873 = vmatprep.subr.mxu0 %v3767
    %3874 = vmatpush1.msra.mxu0 %v3766
    %3875 = vmatprep.subr.mxu0 %v3770
    %3876 = vmatpush1.msra.mxu0 %v3769
    %3877 = vmatprep.subr.mxu0 %v3773
    %3878 = vmatpush1.msra.mxu0 %v3772
    %3879 = vmatprep.subr.mxu0 %v3776
    %3880 = vmatpush1.msra.mxu0 %v3775
    %3881 = vmatprep.subr.mxu0 %v3779
    %3882 = vmatpush1.msra.mxu0 %v3778
    %3883 = vmatprep.subr.mxu0 %v3782
    %3884 = vmatpush1.msra.mxu0 %v3781
    %3885 = vmatprep.subr.mxu0 %v3785
    %3886 = vmatpush1.msra.mxu0 %v3784
    %3887 = vmatprep.subr.mxu0 %v3788
    %3888 = vmatpush1.msra.mxu0 %v3787
    %3889 = vmatprep.subr.mxu0 %v3791
    %3890 = vmatpush1.msra.mxu0 %v3790
    %3891 = vmatprep.subr.mxu0 %v3794
    %3892 = vmatpush1.msra.mxu0 %v3793
    %3893 = vmatprep.subr.mxu0 %v3797
    %3894 = vmatpush1.msra.mxu0 %v3796
    %3895 = vmatprep.subr.mxu0 %v3800
    %3896 = vmatpush1.msra.mxu0 %v3799
    %3897 = vmatprep.subr.mxu0 %v3803
    %3898 = vmatpush1.msra.mxu0 %v3802
    %3899 = vmatprep.subr.mxu0 %v3806
    %3900 = vmatpush1.msra.mxu0 %v3805
    %3901 = vmatprep.subr.mxu0 %v3809
    %3902 = vmatpush1.msra.mxu0 %v3808
    %3903 = vmatprep.subr.mxu0 %v3812
    %3904 = vmatpush1.msra.mxu0 %v3811
    %3905 = vmatprep.subr.mxu0 %v3815
    %3906 = vmatpush1.msra.mxu0 %v3814
    %3907 = vmatprep.subr.mxu0 %v3818
    %3908 = vmatpush1.msra.mxu0 %v3817
    %3909 = vmatprep.subr.mxu0 %v3821
    %3910 = vmatpush1.msra.mxu0 %v3820
    %3911 = vmatprep.subr.mxu0 %v3824
    %3912 = vmatpush1.msra.mxu0 %v3823
    %3913 = vmatprep.subr.mxu0 %v3827
    %3914 = vmatpush1.msra.mxu0 %v3826
    %3915 = vmatprep.subr.mxu0 %v3830
    %3916 = vmatpush1.msra.mxu0 %v3829
    %3917 = vmatprep.subr.mxu0 %v3833
    %3918 = vmatpush1.msra.mxu0 %v3832
    %3919 = vmatprep.subr.mxu0 %v3836
    %3920 = vmatpush1.msra.mxu0 %v3835
    %3921 = vmatprep.subr.mxu0 %v3839
    %3922 = vmatpush1.msra.mxu0 %v3838
    %3923 = vmatprep.subr.mxu0 %v3842
    %3924 = vmatpush1.msra.mxu0 %v3841
    %3925 = vmatprep.mubr.f32.mxu0 %v3416
    %3926 = vmatmul.mubr.f32.gmra.mrb[0].mxu0 %v921
    %v3927 = vpop.f32.mrb[0].mxu0
    %v3928 = vadd.f32 %v3849, %v3927
    %v3929 = vpop.f32.mrb[0].mxu0
    %v3930 = vadd.f32 %v3853, %v3929
    %3931 = vmatprep.mubr.f32.mxu0 %v3254
    %3932 = vmatmul.mubr.f32.gmra.mrb[0].mxu0 %v1083
    %v3933 = vpop.f32.mrb[0].mxu0
    %v3934 = vadd.f32 %v3849, %v3933
    %v3935 = vpop.f32.mrb[0].mxu0
    %v3936 = vadd.f32 %v3853, %v3935
    %3937 = vmatprep.mubr.f32.mxu0 %v3092
    %3938 = vmatmul.mubr.f32.gmra.mrb[0].mxu0 %v1245
    %v3939 = vpop.f32.mrb[0].mxu0
    %v3940 = vadd.f32 %v3849, %v3939
    %v3941 = vpop.f32.mrb[0].mxu0
    %v3942 = vadd.f32 %v3853, %v3941
    %3943 = vmatprep.mubr.f32.mxu0 %v2930
    %3944 = vmatmul.mubr.f32.gmra.mrb[0].mxu0 %v1407
    %v3945 = vpop.f32.mrb[0].mxu0
    %v3946 = vadd.f32 %v3849, %v3945
    %v3947 = vpop.f32.mrb[0].mxu0
    %v3948 = vadd.f32 %v3853, %v3947
    %3949 = vmatprep.mubr.f32.mxu0 %v2768
    %3950 = vmatmul.mubr.f32.gmra.mrb[0].mxu0 %v1569
    %v3951 = vpop.f32.mrb[0].mxu0
    %v3952 = vadd.f32 %v3849, %v3951
    %v3953 = vpop.f32.mrb[0].mxu0
    %v3954 = vadd.f32 %v3853, %v3953
    %3955 = vmatprep.mubr.f32.mxu0 %v2606
    %3956 = vmatmul.mubr.f32.gmra.mrb[0].mxu0 %v1731
    %v3957 = vpop.f32.mrb[0].mxu0
    %v3958 = vadd.f32 %v3849, %v3957
    %v3959 = vpop.f32.mrb[0].mxu0
    %v3960 = vadd.f32 %v3853, %v3959
    %3961 = vmatprep.mubr.f32.mxu0 %v2444
    %3962 = vmatmul.mubr.f32.gmra.mrb[0].mxu0 %v1893
    %v3963 = vpop.f32.mrb[0].mxu0
    %v3964 = vadd.f32 %v3849, %v3963
    %v3965 = vpop.f32.mrb[0].mxu0
    %v3966 = vadd.f32 %v3853, %v3965
    %3967 = vmatprep.mubr.f32.mxu0 %v2282
    %3968 = vmatmul.mubr.f32.gmra.mrb[0].mxu0 %v2055
    %v3969 = vpop.f32.mrb[0].mxu0
    %v3970 = vadd.f32 %v3849, %v3969
    %v3971 = vpop.f32.mrb[0].mxu0
    %v3972 = vadd.f32 %v3853, %v3971
    %3973 = vdwg.mxu0
    %3974 = vmatprep.subr.mxu0 0.0
    %3975 = vmatpush1.msra.mxu0 %v3750
    %3976 = vmatprep.subr.mxu0 0.0
    %3977 = vmatpush1.msra.mxu0 %v3753
    %3978 = vmatprep.subr.mxu0 0.0
    %3979 = vmatpush1.msra.mxu0 %v3756
    %3980 = vmatprep.subr.mxu0 0.0
    %3981 = vmatpush1.msra.mxu0 %v3759
    %3982 = vmatprep.subr.mxu0 0.0
    %3983 = vmatpush1.msra.mxu0 %v3762
    %3984 = vmatprep.subr.mxu0 0.0
    %3985 = vmatpush1.msra.mxu0 %v3765
    %3986 = vmatprep.subr.mxu0 0.0
    %3987 = vmatpush1.msra.mxu0 %v3768
    %3988 = vmatprep.subr.mxu0 0.0
    %3989 = vmatpush1.msra.mxu0 %v3771
    %3990 = vmatprep.subr.mxu0 0.0
    %3991 = vmatpush1.msra.mxu0 %v3774
    %3992 = vmatprep.subr.mxu0 0.0
    %3993 = vmatpush1.msra.mxu0 %v3777
    %3994 = vmatprep.subr.mxu0 0.0
    %3995 = vmatpush1.msra.mxu0 %v3780
    %3996 = vmatprep.subr.mxu0 0.0
    %3997 = vmatpush1.msra.mxu0 %v3783
    %3998 = vmatprep.subr.mxu0 0.0
    %3999 = vmatpush1.msra.mxu0 %v3786
    %4000 = vmatprep.subr.mxu0 0.0
    %4001 = vmatpush1.msra.mxu0 %v3789
    %4002 = vmatprep.subr.mxu0 0.0
    %4003 = vmatpush1.msra.mxu0 %v3792
    %4004 = vmatprep.subr.mxu0 0.0
    %4005 = vmatpush1.msra.mxu0 %v3795
    %4006 = vmatprep.subr.mxu0 0.0
    %4007 = vmatpush1.msra.mxu0 %v3798
    %4008 = vmatprep.subr.mxu0 0.0
    %4009 = vmatpush1.msra.mxu0 %v3801
    %4010 = vmatprep.subr.mxu0 0.0
    %4011 = vmatpush1.msra.mxu0 %v3804
    %4012 = vmatprep.subr.mxu0 0.0
    %4013 = vmatpush1.msra.mxu0 %v3807
    %4014 = vmatprep.subr.mxu0 0.0
    %4015 = vmatpush1.msra.mxu0 %v3810
    %4016 = vmatprep.subr.mxu0 0.0
    %4017 = vmatpush1.msra.mxu0 %v3813
    %4018 = vmatprep.subr.mxu0 0.0
    %4019 = vmatpush1.msra.mxu0 %v3816
    %4020 = vmatprep.subr.mxu0 0.0
    %4021 = vmatpush1.msra.mxu0 %v3819
    %4022 = vmatprep.subr.mxu0 0.0
    %4023 = vmatpush1.msra.mxu0 %v3822
    %4024 = vmatprep.subr.mxu0 0.0
    %4025 = vmatpush1.msra.mxu0 %v3825
    %4026 = vmatprep.subr.mxu0 0.0
    %4027 = vmatpush1.msra.mxu0 %v3828
    %4028 = vmatprep.subr.mxu0 0.0
    %4029 = vmatpush1.msra.mxu0 %v3831
    %4030 = vmatprep.subr.mxu0 0.0
    %4031 = vmatpush1.msra.mxu0 %v3834
    %4032 = vmatprep.subr.mxu0 0.0
    %4033 = vmatpush1.msra.mxu0 %v3837
    %4034 = vmatprep.subr.mxu0 0.0
    %4035 = vmatpush1.msra.mxu0 %v3840
    %4036 = vmatprep.subr.mxu0 0.0
    %4037 = vmatpush1.msra.mxu0 %v3843
    %4038 = vmatprep.mubr.f32.mxu0 %v3416
    %4039 = vmatmul.mubr.f32.gmra.mrb[0].mxu0 %v921
    %v4040 = vpop.f32.mrb[0].mxu0
    %v4041 = vadd.f32 %v3857, %v4040
    %v4042 = vpop.f32.mrb[0].mxu0
    %4043 = vmatprep.mubr.f32.mxu0 %v3254
    %4044 = vmatmul.mubr.f32.gmra.mrb[0].mxu0 %v1083
    %v4045 = vpop.f32.mrb[0].mxu0
    %v4046 = vadd.f32 %v3857, %v4045
    %v4047 = vpop.f32.mrb[0].mxu0
    %4048 = vmatprep.mubr.f32.mxu0 %v3092
    %4049 = vmatmul.mubr.f32.gmra.mrb[0].mxu0 %v1245
    %v4050 = vpop.f32.mrb[0].mxu0
    %v4051 = vadd.f32 %v3857, %v4050
    %v4052 = vpop.f32.mrb[0].mxu0
    %4053 = vmatprep.mubr.f32.mxu0 %v2930
    %4054 = vmatmul.mubr.f32.gmra.mrb[0].mxu0 %v1407
    %v4055 = vpop.f32.mrb[0].mxu0
    %v4056 = vadd.f32 %v3857, %v4055
    %v4057 = vpop.f32.mrb[0].mxu0
    %4058 = vmatprep.mubr.f32.mxu0 %v2768
    %4059 = vmatmul.mubr.f32.gmra.mrb[0].mxu0 %v1569
    %v4060 = vpop.f32.mrb[0].mxu0
    %v4061 = vadd.f32 %v3857, %v4060
    %v4062 = vpop.f32.mrb[0].mxu0
    %4063 = vmatprep.mubr.f32.mxu0 %v2606
    %4064 = vmatmul.mubr.f32.gmra.mrb[0].mxu0 %v1731
    %v4065 = vpop.f32.mrb[0].mxu0
    %v4066 = vadd.f32 %v3857, %v4065
    %v4067 = vpop.f32.mrb[0].mxu0
    %4068 = vmatprep.mubr.f32.mxu0 %v2444
    %4069 = vmatmul.mubr.f32.gmra.mrb[0].mxu0 %v1893
    %v4070 = vpop.f32.mrb[0].mxu0
    %v4071 = vadd.f32 %v3857, %v4070
    %v4072 = vpop.f32.mrb[0].mxu0
    %4073 = vmatprep.mubr.f32.mxu0 %v2282
    %4074 = vmatmul.mubr.f32.gmra.mrb[0].mxu0 %v2055
    %v4075 = vpop.f32.mrb[0].mxu0
    %v4076 = vadd.f32 %v3857, %v4075
    %v4077 = vpop.f32.mrb[0].mxu0
    %4078 = vdwg.mxu0
    %v4079 = vld [vmem:[#allocation12] sm:$0xff]
    %v4080 = vld [vmem:[#allocation12 + $0x8] sm:$0xff]
    %v4081 = vld [vmem:[#allocation12 + $0x10] sm:$0xff]
    %v4082 = vld [vmem:[#allocation12 + $0x18] sm:$0xff]
    %v4083 = vld [vmem:[#allocation12 + $0x20] sm:$0xff]
    %v4084 = vld [vmem:[#allocation12 + $0x28] sm:$0xff]
    %v4085 = vld [vmem:[#allocation12 + $0x30] sm:$0xff]
    %v4086 = vld [vmem:[#allocation12 + $0x38] sm:$0xff]
    %v4087 = vld [vmem:[#allocation12 + $0x40] sm:$0xff]
    %v4088 = vld [vmem:[#allocation12 + $0x48] sm:$0xff]
    %v4089 = vld [vmem:[#allocation12 + $0x50] sm:$0xff]
    %v4090 = vld [vmem:[#allocation12 + $0x58] sm:$0xff]
    %v4091 = vld [vmem:[#allocation12 + $0x60] sm:$0xff]
    %v4092 = vld [vmem:[#allocation12 + $0x68] sm:$0xff]
    %v4093 = vld [vmem:[#allocation12 + $0x70] sm:$0xff]
    %v4094 = vld [vmem:[#allocation12 + $0x78] sm:$0xff]
    %v4095 = vld [vmem:[#allocation12 + $0x80] sm:$0xff]
    %v4096 = vld [vmem:[#allocation12 + $0x88] sm:$0xff]
    %v4097 = vld [vmem:[#allocation12 + $0x90] sm:$0xff]
    %v4098 = vld [vmem:[#allocation12 + $0x98] sm:$0xff]
    %v4099 = vld [vmem:[#allocation12 + $0xa0] sm:$0xff]
    %v4100 = vld [vmem:[#allocation12 + $0xa8] sm:$0xff]
    %v4101 = vld [vmem:[#allocation12 + $0xb0] sm:$0xff]
    %v4102 = vld [vmem:[#allocation12 + $0xb8] sm:$0xff]
    %v4103 = vld [vmem:[#allocation12 + $0xc0] sm:$0xff]
    %v4104 = vld [vmem:[#allocation12 + $0xc8] sm:$0xff]
    %v4105 = vld [vmem:[#allocation12 + $0xd0] sm:$0xff]
    %v4106 = vld [vmem:[#allocation12 + $0xd8] sm:$0xff]
    %v4107 = vld [vmem:[#allocation12 + $0xe0] sm:$0xff]
    %v4108 = vld [vmem:[#allocation12 + $0xe8] sm:$0xff]
    %v4109 = vld [vmem:[#allocation12 + $0xf0] sm:$0xff]
    %v4110 = vld [vmem:[#allocation12 + $0xf8] sm:$0xff]
    %v4111 = vld [vmem:[#allocation12 + $0x100] sm:$0xff]
    %v4112 = vld [vmem:[#allocation12 + $0x108] sm:$0xff]
    %v4113 = vld [vmem:[#allocation12 + $0x110] sm:$0xff]
    %v4114 = vld [vmem:[#allocation12 + $0x118] sm:$0xff]
    %v4115 = vld [vmem:[#allocation12 + $0x120] sm:$0xff]
    %v4116 = vld [vmem:[#allocation12 + $0x128] sm:$0xff]
    %v4117 = vld [vmem:[#allocation12 + $0x130] sm:$0xff]
    %v4118 = vld [vmem:[#allocation12 + $0x138] sm:$0xff]
    %v4119 = vld [vmem:[#allocation12 + $0x140] sm:$0xff]
    %v4120 = vld [vmem:[#allocation12 + $0x148] sm:$0xff]
    %v4121 = vld [vmem:[#allocation12 + $0x150] sm:$0xff]
    %v4122 = vld [vmem:[#allocation12 + $0x158] sm:$0xff]
    %v4123 = vld [vmem:[#allocation12 + $0x160] sm:$0xff]
    %v4124 = vld [vmem:[#allocation12 + $0x168] sm:$0xff]
    %v4125 = vld [vmem:[#allocation12 + $0x170] sm:$0xff]
    %v4126 = vld [vmem:[#allocation12 + $0x178] sm:$0xff]
    %v4127 = vld [vmem:[%s12] sm:$0x7]
    %v4129 = vlaneseq
    %v4130 = vshrl.u32 %v4129, 7
    %v4131 = vsub.s32 0, %v4130
    %v4132 = vrot.slane %v4127, %v4131
    %v4133 = vlaneseq
    %v4134 = vshrl.u32 %v4133, 7
    %v4135 = vsub.s32 1, %v4134
    %v4136 = vrot.slane %v4127, %v4135
    %v4137 = vlaneseq
    %v4138 = vshrl.u32 %v4137, 7
    %v4139 = vsub.s32 2, %v4138
    %v4140 = vrot.slane %v4127, %v4139
    %4144 = vmatprep.subr.mxu0 %v4080
    %4145 = vmatpush1.msra.mxu0 %v4079
    %4146 = vmatprep.subr.mxu0 %v4083
    %4147 = vmatpush1.msra.mxu0 %v4082
    %4148 = vmatprep.subr.mxu0 %v4086
    %4149 = vmatpush1.msra.mxu0 %v4085
    %4150 = vmatprep.subr.mxu0 %v4089
    %4151 = vmatpush1.msra.mxu0 %v4088
    %4152 = vmatprep.subr.mxu0 %v4092
    %4153 = vmatpush1.msra.mxu0 %v4091
    %4154 = vmatprep.subr.mxu0 %v4095
    %4155 = vmatpush1.msra.mxu0 %v4094
    %4156 = vmatprep.subr.mxu0 %v4098
    %4157 = vmatpush1.msra.mxu0 %v4097
    %4158 = vmatprep.subr.mxu0 %v4101
    %4159 = vmatpush1.msra.mxu0 %v4100
    %4160 = vmatprep.subr.mxu0 %v4104
    %4161 = vmatpush1.msra.mxu0 %v4103
    %4162 = vmatprep.subr.mxu0 %v4107
    %4163 = vmatpush1.msra.mxu0 %v4106
    %4164 = vmatprep.subr.mxu0 %v4110
    %4165 = vmatpush1.msra.mxu0 %v4109
    %4166 = vmatprep.subr.mxu0 %v4113
    %4167 = vmatpush1.msra.mxu0 %v4112
    %4168 = vmatprep.subr.mxu0 %v4116
    %4169 = vmatpush1.msra.mxu0 %v4115
    %4170 = vmatprep.subr.mxu0 %v4119
    %4171 = vmatpush1.msra.mxu0 %v4118
    %4172 = vmatprep.subr.mxu0 %v4122
    %4173 = vmatpush1.msra.mxu0 %v4121
    %4174 = vmatprep.subr.mxu0 %v4125
    %4175 = vmatpush1.msra.mxu0 %v4124
    %4176 = vmatprep.subr.mxu0 0.0
    %4177 = vmatpush1.msra.mxu0 0.0
    %4178 = vmatprep.subr.mxu0 0.0
    %4179 = vmatpush1.msra.mxu0 0.0
    %4180 = vmatprep.subr.mxu0 0.0
    %4181 = vmatpush1.msra.mxu0 0.0
    %4182 = vmatprep.subr.mxu0 0.0
    %4183 = vmatpush1.msra.mxu0 0.0
    %4184 = vmatprep.subr.mxu0 0.0
    %4185 = vmatpush1.msra.mxu0 0.0
    %4186 = vmatprep.subr.mxu0 0.0
    %4187 = vmatpush1.msra.mxu0 0.0
    %4188 = vmatprep.subr.mxu0 0.0
    %4189 = vmatpush1.msra.mxu0 0.0
    %4190 = vmatprep.subr.mxu0 0.0
    %4191 = vmatpush1.msra.mxu0 0.0
    %4192 = vmatprep.subr.mxu0 0.0
    %4193 = vmatpush1.msra.mxu0 0.0
    %4194 = vmatprep.subr.mxu0 0.0
    %4195 = vmatpush1.msra.mxu0 0.0
    %4196 = vmatprep.subr.mxu0 0.0
    %4197 = vmatpush1.msra.mxu0 0.0
    %4198 = vmatprep.subr.mxu0 0.0
    %4199 = vmatpush1.msra.mxu0 0.0
    %4200 = vmatprep.subr.mxu0 0.0
    %4201 = vmatpush1.msra.mxu0 0.0
    %4202 = vmatprep.subr.mxu0 0.0
    %4203 = vmatpush1.msra.mxu0 0.0
    %4204 = vmatprep.subr.mxu0 0.0
    %4205 = vmatpush1.msra.mxu0 0.0
    %4206 = vmatprep.subr.mxu0 0.0
    %4207 = vmatpush1.msra.mxu0 0.0
    %4208 = vmatprep.mubr.f32.mxu0 0.0
    %4209 = vmatmul.mubr.f32.gmra.mrb[0].mxu0 0.0
    %v4210 = vpop.f32.mrb[0].mxu0
    %v4211 = vadd.f32 %v4132, %v4210
    %v4212 = vpop.f32.mrb[0].mxu0
    %v4213 = vadd.f32 %v4136, %v4212
    %4214 = vdwg.mxu0
    %4215 = vmatprep.subr.mxu0 0.0
    %4216 = vmatpush1.msra.mxu0 %v4081
    %4217 = vmatprep.subr.mxu0 0.0
    %4218 = vmatpush1.msra.mxu0 %v4084
    %4219 = vmatprep.subr.mxu0 0.0
    %4220 = vmatpush1.msra.mxu0 %v4087
    %4221 = vmatprep.subr.mxu0 0.0
    %4222 = vmatpush1.msra.mxu0 %v4090
    %4223 = vmatprep.subr.mxu0 0.0
    %4224 = vmatpush1.msra.mxu0 %v4093
    %4225 = vmatprep.subr.mxu0 0.0
    %4226 = vmatpush1.msra.mxu0 %v4096
    %4227 = vmatprep.subr.mxu0 0.0
    %4228 = vmatpush1.msra.mxu0 %v4099
    %4229 = vmatprep.subr.mxu0 0.0
    %4230 = vmatpush1.msra.mxu0 %v4102
    %4231 = vmatprep.subr.mxu0 0.0
    %4232 = vmatpush1.msra.mxu0 %v4105
    %4233 = vmatprep.subr.mxu0 0.0
    %4234 = vmatpush1.msra.mxu0 %v4108
    %4235 = vmatprep.subr.mxu0 0.0
    %4236 = vmatpush1.msra.mxu0 %v4111
    %4237 = vmatprep.subr.mxu0 0.0
    %4238 = vmatpush1.msra.mxu0 %v4114
    %4239 = vmatprep.subr.mxu0 0.0
    %4240 = vmatpush1.msra.mxu0 %v4117
    %4241 = vmatprep.subr.mxu0 0.0
    %4242 = vmatpush1.msra.mxu0 %v4120
    %4243 = vmatprep.subr.mxu0 0.0
    %4244 = vmatpush1.msra.mxu0 %v4123
    %4245 = vmatprep.subr.mxu0 0.0
    %4246 = vmatpush1.msra.mxu0 %v4126
    %4247 = vmatprep.subr.mxu0 0.0
    %4248 = vmatpush1.msra.mxu0 0.0
    %4249 = vmatprep.subr.mxu0 0.0
    %4250 = vmatpush1.msra.mxu0 0.0
    %4251 = vmatprep.subr.mxu0 0.0
    %4252 = vmatpush1.msra.mxu0 0.0
    %4253 = vmatprep.subr.mxu0 0.0
    %4254 = vmatpush1.msra.mxu0 0.0
    %4255 = vmatprep.subr.mxu0 0.0
    %4256 = vmatpush1.msra.mxu0 0.0
    %4257 = vmatprep.subr.mxu0 0.0
    %4258 = vmatpush1.msra.mxu0 0.0
    %4259 = vmatprep.subr.mxu0 0.0
    %4260 = vmatpush1.msra.mxu0 0.0
    %4261 = vmatprep.subr.mxu0 0.0
    %4262 = vmatpush1.msra.mxu0 0.0
    %4263 = vmatprep.subr.mxu0 0.0
    %4264 = vmatpush1.msra.mxu0 0.0
    %4265 = vmatprep.subr.mxu0 0.0
    %4266 = vmatpush1.msra.mxu0 0.0
    %4267 = vmatprep.subr.mxu0 0.0
    %4268 = vmatpush1.msra.mxu0 0.0
    %4269 = vmatprep.subr.mxu0 0.0
    %4270 = vmatpush1.msra.mxu0 0.0
    %4271 = vmatprep.subr.mxu0 0.0
    %4272 = vmatpush1.msra.mxu0 0.0
    %4273 = vmatprep.subr.mxu0 0.0
    %4274 = vmatpush1.msra.mxu0 0.0
    %4275 = vmatprep.subr.mxu0 0.0
    %4276 = vmatpush1.msra.mxu0 0.0
    %4277 = vmatprep.subr.mxu0 0.0
    %4278 = vmatpush1.msra.mxu0 0.0
    %4279 = vmatprep.mubr.f32.mxu0 0.0
    %4280 = vmatmul.mubr.f32.gmra.mrb[0].mxu0 0.0
    %v4281 = vpop.f32.mrb[0].mxu0
    %v4282 = vadd.f32 %v4140, %v4281
    %v4283 = vpop.f32.mrb[0].mxu0
    %4284 = vdwg.mxu0
    %v4285 = vadd.f32 %v3597, %v4211
    %v4286 = vxor.u32 %v4285, 2147483648
    %v4287 = vmul.f32 %v4286, 1.442695
    %v4288 = vpow.pop %v4287
    %v4289 = vadd.f32 %v4288, 1.0
    %v4290 = vrcp.pop %v4289
    %v4291 = vmul.f32 1.0, %v4290
    %v4292 = vadd.f32 %v3599, %v4213
    %v4293 = vxor.u32 %v4292, 2147483648
    %v4294 = vmul.f32 %v4293, 1.442695
    %v4295 = vpow.pop %v4294
    %v4296 = vadd.f32 %v4295, 1.0
    %v4297 = vrcp.pop %v4296
    %v4298 = vmul.f32 1.0, %v4297
    %v4299 = vmul.f32 %v4291, %v4282
    %v4300 = vadd.f32 %v3710, %v4299
    %v4301 = vtanh.pop %v4300
    %v4302 = vsub.f32 1.0, %v4298
    %v4303 = vmul.f32 %v4302, %v4301
    %v4304 = vmul.f32 %v4298, 0.0
    %v4305 = vadd.f32 %v4303, %v4304
    %4306 = vmatprep.subr.mxu0 %v4080
    %4307 = vmatpush1.msra.mxu0 %v4079
    %4308 = vmatprep.subr.mxu0 %v4083
    %4309 = vmatpush1.msra.mxu0 %v4082
    %4310 = vmatprep.subr.mxu0 %v4086
    %4311 = vmatpush1.msra.mxu0 %v4085
    %4312 = vmatprep.subr.mxu0 %v4089
    %4313 = vmatpush1.msra.mxu0 %v4088
    %4314 = vmatprep.subr.mxu0 %v4092
    %4315 = vmatpush1.msra.mxu0 %v4091
    %4316 = vmatprep.subr.mxu0 %v4095
    %4317 = vmatpush1.msra.mxu0 %v4094
    %4318 = vmatprep.subr.mxu0 %v4098
    %4319 = vmatpush1.msra.mxu0 %v4097
    %4320 = vmatprep.subr.mxu0 %v4101
    %4321 = vmatpush1.msra.mxu0 %v4100
    %4322 = vmatprep.subr.mxu0 %v4104
    %4323 = vmatpush1.msra.mxu0 %v4103
    %4324 = vmatprep.subr.mxu0 %v4107
    %4325 = vmatpush1.msra.mxu0 %v4106
    %4326 = vmatprep.subr.mxu0 %v4110
    %4327 = vmatpush1.msra.mxu0 %v4109
    %4328 = vmatprep.subr.mxu0 %v4113
    %4329 = vmatpush1.msra.mxu0 %v4112
    %4330 = vmatprep.subr.mxu0 %v4116
    %4331 = vmatpush1.msra.mxu0 %v4115
    %4332 = vmatprep.subr.mxu0 %v4119
    %4333 = vmatpush1.msra.mxu0 %v4118
    %4334 = vmatprep.subr.mxu0 %v4122
    %4335 = vmatpush1.msra.mxu0 %v4121
    %4336 = vmatprep.subr.mxu0 %v4125
    %4337 = vmatpush1.msra.mxu0 %v4124
    %4338 = vmatprep.subr.mxu0 0.0
    %4339 = vmatpush1.msra.mxu0 0.0
    %4340 = vmatprep.subr.mxu0 0.0
    %4341 = vmatpush1.msra.mxu0 0.0
    %4342 = vmatprep.subr.mxu0 0.0
    %4343 = vmatpush1.msra.mxu0 0.0
    %4344 = vmatprep.subr.mxu0 0.0
    %4345 = vmatpush1.msra.mxu0 0.0
    %4346 = vmatprep.subr.mxu0 0.0
    %4347 = vmatpush1.msra.mxu0 0.0
    %4348 = vmatprep.subr.mxu0 0.0
    %4349 = vmatpush1.msra.mxu0 0.0
    %4350 = vmatprep.subr.mxu0 0.0
    %4351 = vmatpush1.msra.mxu0 0.0
    %4352 = vmatprep.subr.mxu0 0.0
    %4353 = vmatpush1.msra.mxu0 0.0
    %4354 = vmatprep.subr.mxu0 0.0
    %4355 = vmatpush1.msra.mxu0 0.0
    %4356 = vmatprep.subr.mxu0 0.0
    %4357 = vmatpush1.msra.mxu0 0.0
    %4358 = vmatprep.subr.mxu0 0.0
    %4359 = vmatpush1.msra.mxu0 0.0
    %4360 = vmatprep.subr.mxu0 0.0
    %4361 = vmatpush1.msra.mxu0 0.0
    %4362 = vmatprep.subr.mxu0 0.0
    %4363 = vmatpush1.msra.mxu0 0.0
    %4364 = vmatprep.subr.mxu0 0.0
    %4365 = vmatpush1.msra.mxu0 0.0
    %4366 = vmatprep.subr.mxu0 0.0
    %4367 = vmatpush1.msra.mxu0 0.0
    %4368 = vmatprep.subr.mxu0 0.0
    %4369 = vmatpush1.msra.mxu0 0.0
    %4370 = vmatprep.mubr.f32.mxu0 0.0
    %4371 = vmatmul.mubr.f32.gmra.mrb[0].mxu0 %v4305
    %v4372 = vpop.f32.mrb[0].mxu0
    %v4373 = vadd.f32 %v4132, %v4372
    %v4374 = vpop.f32.mrb[0].mxu0
    %v4375 = vadd.f32 %v4136, %v4374
    %4376 = vdwg.mxu0
    %4377 = vmatprep.subr.mxu0 0.0
    %4378 = vmatpush1.msra.mxu0 %v4081
    %4379 = vmatprep.subr.mxu0 0.0
    %4380 = vmatpush1.msra.mxu0 %v4084
    %4381 = vmatprep.subr.mxu0 0.0
    %4382 = vmatpush1.msra.mxu0 %v4087
    %4383 = vmatprep.subr.mxu0 0.0
    %4384 = vmatpush1.msra.mxu0 %v4090
    %4385 = vmatprep.subr.mxu0 0.0
    %4386 = vmatpush1.msra.mxu0 %v4093
    %4387 = vmatprep.subr.mxu0 0.0
    %4388 = vmatpush1.msra.mxu0 %v4096
    %4389 = vmatprep.subr.mxu0 0.0
    %4390 = vmatpush1.msra.mxu0 %v4099
    %4391 = vmatprep.subr.mxu0 0.0
    %4392 = vmatpush1.msra.mxu0 %v4102
    %4393 = vmatprep.subr.mxu0 0.0
    %4394 = vmatpush1.msra.mxu0 %v4105
    %4395 = vmatprep.subr.mxu0 0.0
    %4396 = vmatpush1.msra.mxu0 %v4108
    %4397 = vmatprep.subr.mxu0 0.0
    %4398 = vmatpush1.msra.mxu0 %v4111
    %4399 = vmatprep.subr.mxu0 0.0
    %4400 = vmatpush1.msra.mxu0 %v4114
    %4401 = vmatprep.subr.mxu0 0.0
    %4402 = vmatpush1.msra.mxu0 %v4117
    %4403 = vmatprep.subr.mxu0 0.0
    %4404 = vmatpush1.msra.mxu0 %v4120
    %4405 = vmatprep.subr.mxu0 0.0
    %4406 = vmatpush1.msra.mxu0 %v4123
    %4407 = vmatprep.subr.mxu0 0.0
    %4408 = vmatpush1.msra.mxu0 %v4126
    %4409 = vmatprep.subr.mxu0 0.0
    %4410 = vmatpush1.msra.mxu0 0.0
    %4411 = vmatprep.subr.mxu0 0.0
    %4412 = vmatpush1.msra.mxu0 0.0
    %4413 = vmatprep.subr.mxu0 0.0
    %4414 = vmatpush1.msra.mxu0 0.0
    %4415 = vmatprep.subr.mxu0 0.0
    %4416 = vmatpush1.msra.mxu0 0.0
    %4417 = vmatprep.subr.mxu0 0.0
    %4418 = vmatpush1.msra.mxu0 0.0
    %4419 = vmatprep.subr.mxu0 0.0
    %4420 = vmatpush1.msra.mxu0 0.0
    %4421 = vmatprep.subr.mxu0 0.0
    %4422 = vmatpush1.msra.mxu0 0.0
    %4423 = vmatprep.subr.mxu0 0.0
    %4424 = vmatpush1.msra.mxu0 0.0
    %4425 = vmatprep.subr.mxu0 0.0
    %4426 = vmatpush1.msra.mxu0 0.0
    %4427 = vmatprep.subr.mxu0 0.0
    %4428 = vmatpush1.msra.mxu0 0.0
    %4429 = vmatprep.subr.mxu0 0.0
    %4430 = vmatpush1.msra.mxu0 0.0
    %4431 = vmatprep.subr.mxu0 0.0
    %4432 = vmatpush1.msra.mxu0 0.0
    %4433 = vmatprep.subr.mxu0 0.0
    %4434 = vmatpush1.msra.mxu0 0.0
    %4435 = vmatprep.subr.mxu0 0.0
    %4436 = vmatpush1.msra.mxu0 0.0
    %4437 = vmatprep.subr.mxu0 0.0
    %4438 = vmatpush1.msra.mxu0 0.0
    %4439 = vmatprep.subr.mxu0 0.0
    %4440 = vmatpush1.msra.mxu0 0.0
    %4441 = vmatprep.mubr.f32.mxu0 0.0
    %4442 = vmatmul.mubr.f32.gmra.mrb[0].mxu0 %v4305
    %v4443 = vpop.f32.mrb[0].mxu0
    %v4444 = vadd.f32 %v4140, %v4443
    %v4445 = vpop.f32.mrb[0].mxu0
    %4446 = vdwg.mxu0
    %v4447 = vadd.f32 %v3603, %v4373
    %v4448 = vxor.u32 %v4447, 2147483648
    %v4449 = vmul.f32 %v4448, 1.442695
    %v4450 = vpow.pop %v4449
    %v4451 = vadd.f32 %v4450, 1.0
    %v4452 = vrcp.pop %v4451
    %v4453 = vmul.f32 1.0, %v4452
    %v4454 = vadd.f32 %v3605, %v4375
    %v4455 = vxor.u32 %v4454, 2147483648
    %v4456 = vmul.f32 %v4455, 1.442695
    %v4457 = vpow.pop %v4456
    %v4458 = vadd.f32 %v4457, 1.0
    %v4459 = vrcp.pop %v4458
    %v4460 = vmul.f32 1.0, %v4459
    %v4461 = vmul.f32 %v4453, %v4444
    %v4462 = vadd.f32 %v3715, %v4461
    %v4463 = vtanh.pop %v4462
    %v4464 = vsub.f32 1.0, %v4460
    %v4465 = vmul.f32 %v4464, %v4463
    %v4466 = vmul.f32 %v4460, %v4305
    %v4467 = vadd.f32 %v4465, %v4466
    %4468 = vmatprep.subr.mxu0 %v4080
    %4469 = vmatpush1.msra.mxu0 %v4079
    %4470 = vmatprep.subr.mxu0 %v4083
    %4471 = vmatpush1.msra.mxu0 %v4082
    %4472 = vmatprep.subr.mxu0 %v4086
    %4473 = vmatpush1.msra.mxu0 %v4085
    %4474 = vmatprep.subr.mxu0 %v4089
    %4475 = vmatpush1.msra.mxu0 %v4088
    %4476 = vmatprep.subr.mxu0 %v4092
    %4477 = vmatpush1.msra.mxu0 %v4091
    %4478 = vmatprep.subr.mxu0 %v4095
    %4479 = vmatpush1.msra.mxu0 %v4094
    %4480 = vmatprep.subr.mxu0 %v4098
    %4481 = vmatpush1.msra.mxu0 %v4097
    %4482 = vmatprep.subr.mxu0 %v4101
    %4483 = vmatpush1.msra.mxu0 %v4100
    %4484 = vmatprep.subr.mxu0 %v4104
    %4485 = vmatpush1.msra.mxu0 %v4103
    %4486 = vmatprep.subr.mxu0 %v4107
    %4487 = vmatpush1.msra.mxu0 %v4106
    %4488 = vmatprep.subr.mxu0 %v4110
    %4489 = vmatpush1.msra.mxu0 %v4109
    %4490 = vmatprep.subr.mxu0 %v4113
    %4491 = vmatpush1.msra.mxu0 %v4112
    %4492 = vmatprep.subr.mxu0 %v4116
    %4493 = vmatpush1.msra.mxu0 %v4115
    %4494 = vmatprep.subr.mxu0 %v4119
    %4495 = vmatpush1.msra.mxu0 %v4118
    %4496 = vmatprep.subr.mxu0 %v4122
    %4497 = vmatpush1.msra.mxu0 %v4121
    %4498 = vmatprep.subr.mxu0 %v4125
    %4499 = vmatpush1.msra.mxu0 %v4124
    %4500 = vmatprep.subr.mxu0 0.0
    %4501 = vmatpush1.msra.mxu0 0.0
    %4502 = vmatprep.subr.mxu0 0.0
    %4503 = vmatpush1.msra.mxu0 0.0
    %4504 = vmatprep.subr.mxu0 0.0
    %4505 = vmatpush1.msra.mxu0 0.0
    %4506 = vmatprep.subr.mxu0 0.0
    %4507 = vmatpush1.msra.mxu0 0.0
    %4508 = vmatprep.subr.mxu0 0.0
    %4509 = vmatpush1.msra.mxu0 0.0
    %4510 = vmatprep.subr.mxu0 0.0
    %4511 = vmatpush1.msra.mxu0 0.0
    %4512 = vmatprep.subr.mxu0 0.0
    %4513 = vmatpush1.msra.mxu0 0.0
    %4514 = vmatprep.subr.mxu0 0.0
    %4515 = vmatpush1.msra.mxu0 0.0
    %4516 = vmatprep.subr.mxu0 0.0
    %4517 = vmatpush1.msra.mxu0 0.0
    %4518 = vmatprep.subr.mxu0 0.0
    %4519 = vmatpush1.msra.mxu0 0.0
    %4520 = vmatprep.subr.mxu0 0.0
    %4521 = vmatpush1.msra.mxu0 0.0
    %4522 = vmatprep.subr.mxu0 0.0
    %4523 = vmatpush1.msra.mxu0 0.0
    %4524 = vmatprep.subr.mxu0 0.0
    %4525 = vmatpush1.msra.mxu0 0.0
    %4526 = vmatprep.subr.mxu0 0.0
    %4527 = vmatpush1.msra.mxu0 0.0
    %4528 = vmatprep.subr.mxu0 0.0
    %4529 = vmatpush1.msra.mxu0 0.0
    %4530 = vmatprep.subr.mxu0 0.0
    %4531 = vmatpush1.msra.mxu0 0.0
    %4532 = vmatprep.mubr.f32.mxu0 0.0
    %4533 = vmatmul.mubr.f32.gmra.mrb[0].mxu0 %v4467
    %v4534 = vpop.f32.mrb[0].mxu0
    %v4535 = vadd.f32 %v4132, %v4534
    %v4536 = vpop.f32.mrb[0].mxu0
    %v4537 = vadd.f32 %v4136, %v4536
    %4538 = vdwg.mxu0
    %4539 = vmatprep.subr.mxu0 0.0
    %4540 = vmatpush1.msra.mxu0 %v4081
    %4541 = vmatprep.subr.mxu0 0.0
    %4542 = vmatpush1.msra.mxu0 %v4084
    %4543 = vmatprep.subr.mxu0 0.0
    %4544 = vmatpush1.msra.mxu0 %v4087
    %4545 = vmatprep.subr.mxu0 0.0
    %4546 = vmatpush1.msra.mxu0 %v4090
    %4547 = vmatprep.subr.mxu0 0.0
    %4548 = vmatpush1.msra.mxu0 %v4093
    %4549 = vmatprep.subr.mxu0 0.0
    %4550 = vmatpush1.msra.mxu0 %v4096
    %4551 = vmatprep.subr.mxu0 0.0
    %4552 = vmatpush1.msra.mxu0 %v4099
    %4553 = vmatprep.subr.mxu0 0.0
    %4554 = vmatpush1.msra.mxu0 %v4102
    %4555 = vmatprep.subr.mxu0 0.0
    %4556 = vmatpush1.msra.mxu0 %v4105
    %4557 = vmatprep.subr.mxu0 0.0
    %4558 = vmatpush1.msra.mxu0 %v4108
    %4559 = vmatprep.subr.mxu0 0.0
    %4560 = vmatpush1.msra.mxu0 %v4111
    %4561 = vmatprep.subr.mxu0 0.0
    %4562 = vmatpush1.msra.mxu0 %v4114
    %4563 = vmatprep.subr.mxu0 0.0
    %4564 = vmatpush1.msra.mxu0 %v4117
    %4565 = vmatprep.subr.mxu0 0.0
    %4566 = vmatpush1.msra.mxu0 %v4120
    %4567 = vmatprep.subr.mxu0 0.0
    %4568 = vmatpush1.msra.mxu0 %v4123
    %4569 = vmatprep.subr.mxu0 0.0
    %4570 = vmatpush1.msra.mxu0 %v4126
    %4571 = vmatprep.subr.mxu0 0.0
    %4572 = vmatpush1.msra.mxu0 0.0
    %4573 = vmatprep.subr.mxu0 0.0
    %4574 = vmatpush1.msra.mxu0 0.0
    %4575 = vmatprep.subr.mxu0 0.0
    %4576 = vmatpush1.msra.mxu0 0.0
    %4577 = vmatprep.subr.mxu0 0.0
    %4578 = vmatpush1.msra.mxu0 0.0
    %4579 = vmatprep.subr.mxu0 0.0
    %4580 = vmatpush1.msra.mxu0 0.0
    %4581 = vmatprep.subr.mxu0 0.0
    %4582 = vmatpush1.msra.mxu0 0.0
    %4583 = vmatprep.subr.mxu0 0.0
    %4584 = vmatpush1.msra.mxu0 0.0
    %4585 = vmatprep.subr.mxu0 0.0
    %4586 = vmatpush1.msra.mxu0 0.0
    %4587 = vmatprep.subr.mxu0 0.0
    %4588 = vmatpush1.msra.mxu0 0.0
    %4589 = vmatprep.subr.mxu0 0.0
    %4590 = vmatpush1.msra.mxu0 0.0
    %4591 = vmatprep.subr.mxu0 0.0
    %4592 = vmatpush1.msra.mxu0 0.0
    %4593 = vmatprep.subr.mxu0 0.0
    %4594 = vmatpush1.msra.mxu0 0.0
    %4595 = vmatprep.subr.mxu0 0.0
    %4596 = vmatpush1.msra.mxu0 0.0
    %4597 = vmatprep.subr.mxu0 0.0
    %4598 = vmatpush1.msra.mxu0 0.0
    %4599 = vmatprep.subr.mxu0 0.0
    %4600 = vmatpush1.msra.mxu0 0.0
    %4601 = vmatprep.subr.mxu0 0.0
    %4602 = vmatpush1.msra.mxu0 0.0
    %4603 = vmatprep.mubr.f32.mxu0 0.0
    %4604 = vmatmul.mubr.f32.gmra.mrb[0].mxu0 %v4467
    %v4605 = vpop.f32.mrb[0].mxu0
    %v4606 = vadd.f32 %v4140, %v4605
    %v4607 = vpop.f32.mrb[0].mxu0
    %4608 = vdwg.mxu0
    %v4609 = vadd.f32 %v3609, %v4535
    %v4610 = vxor.u32 %v4609, 2147483648
    %v4611 = vmul.f32 %v4610, 1.442695
    %v4612 = vpow.pop %v4611
    %v4613 = vadd.f32 %v4612, 1.0
    %v4614 = vrcp.pop %v4613
    %v4615 = vmul.f32 1.0, %v4614
    %v4616 = vadd.f32 %v3611, %v4537
    %v4617 = vxor.u32 %v4616, 2147483648
    %v4618 = vmul.f32 %v4617, 1.442695
    %v4619 = vpow.pop %v4618
    %v4620 = vadd.f32 %v4619, 1.0
    %v4621 = vrcp.pop %v4620
    %v4622 = vmul.f32 1.0, %v4621
    %v4623 = vmul.f32 %v4615, %v4606
    %v4624 = vadd.f32 %v3720, %v4623
    %v4625 = vtanh.pop %v4624
    %v4626 = vsub.f32 1.0, %v4622
    %v4627 = vmul.f32 %v4626, %v4625
    %v4628 = vmul.f32 %v4622, %v4467
    %v4629 = vadd.f32 %v4627, %v4628
    %4630 = vmatprep.subr.mxu0 %v4080
    %4631 = vmatpush1.msra.mxu0 %v4079
    %4632 = vmatprep.subr.mxu0 %v4083
    %4633 = vmatpush1.msra.mxu0 %v4082
    %4634 = vmatprep.subr.mxu0 %v4086
    %4635 = vmatpush1.msra.mxu0 %v4085
    %4636 = vmatprep.subr.mxu0 %v4089
    %4637 = vmatpush1.msra.mxu0 %v4088
    %4638 = vmatprep.subr.mxu0 %v4092
    %4639 = vmatpush1.msra.mxu0 %v4091
    %4640 = vmatprep.subr.mxu0 %v4095
    %4641 = vmatpush1.msra.mxu0 %v4094
    %4642 = vmatprep.subr.mxu0 %v4098
    %4643 = vmatpush1.msra.mxu0 %v4097
    %4644 = vmatprep.subr.mxu0 %v4101
    %4645 = vmatpush1.msra.mxu0 %v4100
    %4646 = vmatprep.subr.mxu0 %v4104
    %4647 = vmatpush1.msra.mxu0 %v4103
    %4648 = vmatprep.subr.mxu0 %v4107
    %4649 = vmatpush1.msra.mxu0 %v4106
    %4650 = vmatprep.subr.mxu0 %v4110
    %4651 = vmatpush1.msra.mxu0 %v4109
    %4652 = vmatprep.subr.mxu0 %v4113
    %4653 = vmatpush1.msra.mxu0 %v4112
    %4654 = vmatprep.subr.mxu0 %v4116
    %4655 = vmatpush1.msra.mxu0 %v4115
    %4656 = vmatprep.subr.mxu0 %v4119
    %4657 = vmatpush1.msra.mxu0 %v4118
    %4658 = vmatprep.subr.mxu0 %v4122
    %4659 = vmatpush1.msra.mxu0 %v4121
    %4660 = vmatprep.subr.mxu0 %v4125
    %4661 = vmatpush1.msra.mxu0 %v4124
    %4662 = vmatprep.subr.mxu0 0.0
    %4663 = vmatpush1.msra.mxu0 0.0
    %4664 = vmatprep.subr.mxu0 0.0
    %4665 = vmatpush1.msra.mxu0 0.0
    %4666 = vmatprep.subr.mxu0 0.0
    %4667 = vmatpush1.msra.mxu0 0.0
    %4668 = vmatprep.subr.mxu0 0.0
    %4669 = vmatpush1.msra.mxu0 0.0
    %4670 = vmatprep.subr.mxu0 0.0
    %4671 = vmatpush1.msra.mxu0 0.0
    %4672 = vmatprep.subr.mxu0 0.0
    %4673 = vmatpush1.msra.mxu0 0.0
    %4674 = vmatprep.subr.mxu0 0.0
    %4675 = vmatpush1.msra.mxu0 0.0
    %4676 = vmatprep.subr.mxu0 0.0
    %4677 = vmatpush1.msra.mxu0 0.0
    %4678 = vmatprep.subr.mxu0 0.0
    %4679 = vmatpush1.msra.mxu0 0.0
    %4680 = vmatprep.subr.mxu0 0.0
    %4681 = vmatpush1.msra.mxu0 0.0
    %4682 = vmatprep.subr.mxu0 0.0
    %4683 = vmatpush1.msra.mxu0 0.0
    %4684 = vmatprep.subr.mxu0 0.0
    %4685 = vmatpush1.msra.mxu0 0.0
    %4686 = vmatprep.subr.mxu0 0.0
    %4687 = vmatpush1.msra.mxu0 0.0
    %4688 = vmatprep.subr.mxu0 0.0
    %4689 = vmatpush1.msra.mxu0 0.0
    %4690 = vmatprep.subr.mxu0 0.0
    %4691 = vmatpush1.msra.mxu0 0.0
    %4692 = vmatprep.subr.mxu0 0.0
    %4693 = vmatpush1.msra.mxu0 0.0
    %4694 = vmatprep.mubr.f32.mxu0 0.0
    %4695 = vmatmul.mubr.f32.gmra.mrb[0].mxu0 %v4629
    %v4696 = vpop.f32.mrb[0].mxu0
    %v4697 = vadd.f32 %v4132, %v4696
    %v4698 = vpop.f32.mrb[0].mxu0
    %v4699 = vadd.f32 %v4136, %v4698
    %4700 = vdwg.mxu0
    %4701 = vmatprep.subr.mxu0 0.0
    %4702 = vmatpush1.msra.mxu0 %v4081
    %4703 = vmatprep.subr.mxu0 0.0
    %4704 = vmatpush1.msra.mxu0 %v4084
    %4705 = vmatprep.subr.mxu0 0.0
    %4706 = vmatpush1.msra.mxu0 %v4087
    %4707 = vmatprep.subr.mxu0 0.0
    %4708 = vmatpush1.msra.mxu0 %v4090
    %4709 = vmatprep.subr.mxu0 0.0
    %4710 = vmatpush1.msra.mxu0 %v4093
    %4711 = vmatprep.subr.mxu0 0.0
    %4712 = vmatpush1.msra.mxu0 %v4096
    %4713 = vmatprep.subr.mxu0 0.0
    %4714 = vmatpush1.msra.mxu0 %v4099
    %4715 = vmatprep.subr.mxu0 0.0
    %4716 = vmatpush1.msra.mxu0 %v4102
    %4717 = vmatprep.subr.mxu0 0.0
    %4718 = vmatpush1.msra.mxu0 %v4105
    %4719 = vmatprep.subr.mxu0 0.0
    %4720 = vmatpush1.msra.mxu0 %v4108
    %4721 = vmatprep.subr.mxu0 0.0
    %4722 = vmatpush1.msra.mxu0 %v4111
    %4723 = vmatprep.subr.mxu0 0.0
    %4724 = vmatpush1.msra.mxu0 %v4114
    %4725 = vmatprep.subr.mxu0 0.0
    %4726 = vmatpush1.msra.mxu0 %v4117
    %4727 = vmatprep.subr.mxu0 0.0
    %4728 = vmatpush1.msra.mxu0 %v4120
    %4729 = vmatprep.subr.mxu0 0.0
    %4730 = vmatpush1.msra.mxu0 %v4123
    %4731 = vmatprep.subr.mxu0 0.0
    %4732 = vmatpush1.msra.mxu0 %v4126
    %4733 = vmatprep.subr.mxu0 0.0
    %4734 = vmatpush1.msra.mxu0 0.0
    %4735 = vmatprep.subr.mxu0 0.0
    %4736 = vmatpush1.msra.mxu0 0.0
    %4737 = vmatprep.subr.mxu0 0.0
    %4738 = vmatpush1.msra.mxu0 0.0
    %4739 = vmatprep.subr.mxu0 0.0
    %4740 = vmatpush1.msra.mxu0 0.0
    %4741 = vmatprep.subr.mxu0 0.0
    %4742 = vmatpush1.msra.mxu0 0.0
    %4743 = vmatprep.subr.mxu0 0.0
    %4744 = vmatpush1.msra.mxu0 0.0
    %4745 = vmatprep.subr.mxu0 0.0
    %4746 = vmatpush1.msra.mxu0 0.0
    %4747 = vmatprep.subr.mxu0 0.0
    %4748 = vmatpush1.msra.mxu0 0.0
    %4749 = vmatprep.subr.mxu0 0.0
    %4750 = vmatpush1.msra.mxu0 0.0
    %4751 = vmatprep.subr.mxu0 0.0
    %4752 = vmatpush1.msra.mxu0 0.0
    %4753 = vmatprep.subr.mxu0 0.0
    %4754 = vmatpush1.msra.mxu0 0.0
    %4755 = vmatprep.subr.mxu0 0.0
    %4756 = vmatpush1.msra.mxu0 0.0
    %4757 = vmatprep.subr.mxu0 0.0
    %4758 = vmatpush1.msra.mxu0 0.0
    %4759 = vmatprep.subr.mxu0 0.0
    %4760 = vmatpush1.msra.mxu0 0.0
    %4761 = vmatprep.subr.mxu0 0.0
    %4762 = vmatpush1.msra.mxu0 0.0
    %4763 = vmatprep.subr.mxu0 0.0
    %4764 = vmatpush1.msra.mxu0 0.0
    %4765 = vmatprep.mubr.f32.mxu0 0.0
    %4766 = vmatmul.mubr.f32.gmra.mrb[0].mxu0 %v4629
    %v4767 = vpop.f32.mrb[0].mxu0
    %v4768 = vadd.f32 %v4140, %v4767
    %v4769 = vpop.f32.mrb[0].mxu0
    %4770 = vdwg.mxu0
    %v4771 = vadd.f32 %v3615, %v4697
    %v4772 = vxor.u32 %v4771, 2147483648
    %v4773 = vmul.f32 %v4772, 1.442695
    %v4774 = vpow.pop %v4773
    %v4775 = vadd.f32 %v4774, 1.0
    %v4776 = vrcp.pop %v4775
    %v4777 = vmul.f32 1.0, %v4776
    %v4778 = vadd.f32 %v3617, %v4699
    %v4779 = vxor.u32 %v4778, 2147483648
    %v4780 = vmul.f32 %v4779, 1.442695
    %v4781 = vpow.pop %v4780
    %v4782 = vadd.f32 %v4781, 1.0
    %v4783 = vrcp.pop %v4782
    %v4784 = vmul.f32 1.0, %v4783
    %v4785 = vmul.f32 %v4777, %v4768
    %v4786 = vadd.f32 %v3725, %v4785
    %v4787 = vtanh.pop %v4786
    %v4788 = vsub.f32 1.0, %v4784
    %v4789 = vmul.f32 %v4788, %v4787
    %v4790 = vmul.f32 %v4784, %v4629
    %v4791 = vadd.f32 %v4789, %v4790
    %4792 = vmatprep.subr.mxu0 %v4080
    %4793 = vmatpush1.msra.mxu0 %v4079
    %4794 = vmatprep.subr.mxu0 %v4083
    %4795 = vmatpush1.msra.mxu0 %v4082
    %4796 = vmatprep.subr.mxu0 %v4086
    %4797 = vmatpush1.msra.mxu0 %v4085
    %4798 = vmatprep.subr.mxu0 %v4089
    %4799 = vmatpush1.msra.mxu0 %v4088
    %4800 = vmatprep.subr.mxu0 %v4092
    %4801 = vmatpush1.msra.mxu0 %v4091
    %4802 = vmatprep.subr.mxu0 %v4095
    %4803 = vmatpush1.msra.mxu0 %v4094
    %4804 = vmatprep.subr.mxu0 %v4098
    %4805 = vmatpush1.msra.mxu0 %v4097
    %4806 = vmatprep.subr.mxu0 %v4101
    %4807 = vmatpush1.msra.mxu0 %v4100
    %4808 = vmatprep.subr.mxu0 %v4104
    %4809 = vmatpush1.msra.mxu0 %v4103
    %4810 = vmatprep.subr.mxu0 %v4107
    %4811 = vmatpush1.msra.mxu0 %v4106
    %4812 = vmatprep.subr.mxu0 %v4110
    %4813 = vmatpush1.msra.mxu0 %v4109
    %4814 = vmatprep.subr.mxu0 %v4113
    %4815 = vmatpush1.msra.mxu0 %v4112
    %4816 = vmatprep.subr.mxu0 %v4116
    %4817 = vmatpush1.msra.mxu0 %v4115
    %4818 = vmatprep.subr.mxu0 %v4119
    %4819 = vmatpush1.msra.mxu0 %v4118
    %4820 = vmatprep.subr.mxu0 %v4122
    %4821 = vmatpush1.msra.mxu0 %v4121
    %4822 = vmatprep.subr.mxu0 %v4125
    %4823 = vmatpush1.msra.mxu0 %v4124
    %4824 = vmatprep.subr.mxu0 0.0
    %4825 = vmatpush1.msra.mxu0 0.0
    %4826 = vmatprep.subr.mxu0 0.0
    %4827 = vmatpush1.msra.mxu0 0.0
    %4828 = vmatprep.subr.mxu0 0.0
    %4829 = vmatpush1.msra.mxu0 0.0
    %4830 = vmatprep.subr.mxu0 0.0
    %4831 = vmatpush1.msra.mxu0 0.0
    %4832 = vmatprep.subr.mxu0 0.0
    %4833 = vmatpush1.msra.mxu0 0.0
    %4834 = vmatprep.subr.mxu0 0.0
    %4835 = vmatpush1.msra.mxu0 0.0
    %4836 = vmatprep.subr.mxu0 0.0
    %4837 = vmatpush1.msra.mxu0 0.0
    %4838 = vmatprep.subr.mxu0 0.0
    %4839 = vmatpush1.msra.mxu0 0.0
    %4840 = vmatprep.subr.mxu0 0.0
    %4841 = vmatpush1.msra.mxu0 0.0
    %4842 = vmatprep.subr.mxu0 0.0
    %4843 = vmatpush1.msra.mxu0 0.0
    %4844 = vmatprep.subr.mxu0 0.0
    %4845 = vmatpush1.msra.mxu0 0.0
    %4846 = vmatprep.subr.mxu0 0.0
    %4847 = vmatpush1.msra.mxu0 0.0
    %4848 = vmatprep.subr.mxu0 0.0
    %4849 = vmatpush1.msra.mxu0 0.0
    %4850 = vmatprep.subr.mxu0 0.0
    %4851 = vmatpush1.msra.mxu0 0.0
    %4852 = vmatprep.subr.mxu0 0.0
    %4853 = vmatpush1.msra.mxu0 0.0
    %4854 = vmatprep.subr.mxu0 0.0
    %4855 = vmatpush1.msra.mxu0 0.0
    %4856 = vmatprep.mubr.f32.mxu0 0.0
    %4857 = vmatmul.mubr.f32.gmra.mrb[0].mxu0 %v4791
    %v4858 = vpop.f32.mrb[0].mxu0
    %v4859 = vadd.f32 %v4132, %v4858
    %v4860 = vpop.f32.mrb[0].mxu0
    %v4861 = vadd.f32 %v4136, %v4860
    %4862 = vdwg.mxu0
    %4863 = vmatprep.subr.mxu0 0.0
    %4864 = vmatpush1.msra.mxu0 %v4081
    %4865 = vmatprep.subr.mxu0 0.0
    %4866 = vmatpush1.msra.mxu0 %v4084
    %4867 = vmatprep.subr.mxu0 0.0
    %4868 = vmatpush1.msra.mxu0 %v4087
    %4869 = vmatprep.subr.mxu0 0.0
    %4870 = vmatpush1.msra.mxu0 %v4090
    %4871 = vmatprep.subr.mxu0 0.0
    %4872 = vmatpush1.msra.mxu0 %v4093
    %4873 = vmatprep.subr.mxu0 0.0
    %4874 = vmatpush1.msra.mxu0 %v4096
    %4875 = vmatprep.subr.mxu0 0.0
    %4876 = vmatpush1.msra.mxu0 %v4099
    %4877 = vmatprep.subr.mxu0 0.0
    %4878 = vmatpush1.msra.mxu0 %v4102
    %4879 = vmatprep.subr.mxu0 0.0
    %4880 = vmatpush1.msra.mxu0 %v4105
    %4881 = vmatprep.subr.mxu0 0.0
    %4882 = vmatpush1.msra.mxu0 %v4108
    %4883 = vmatprep.subr.mxu0 0.0
    %4884 = vmatpush1.msra.mxu0 %v4111
    %4885 = vmatprep.subr.mxu0 0.0
    %4886 = vmatpush1.msra.mxu0 %v4114
    %4887 = vmatprep.subr.mxu0 0.0
    %4888 = vmatpush1.msra.mxu0 %v4117
    %4889 = vmatprep.subr.mxu0 0.0
    %4890 = vmatpush1.msra.mxu0 %v4120
    %4891 = vmatprep.subr.mxu0 0.0
    %4892 = vmatpush1.msra.mxu0 %v4123
    %4893 = vmatprep.subr.mxu0 0.0
    %4894 = vmatpush1.msra.mxu0 %v4126
    %4895 = vmatprep.subr.mxu0 0.0
    %4896 = vmatpush1.msra.mxu0 0.0
    %4897 = vmatprep.subr.mxu0 0.0
    %4898 = vmatpush1.msra.mxu0 0.0
    %4899 = vmatprep.subr.mxu0 0.0
    %4900 = vmatpush1.msra.mxu0 0.0
    %4901 = vmatprep.subr.mxu0 0.0
    %4902 = vmatpush1.msra.mxu0 0.0
    %4903 = vmatprep.subr.mxu0 0.0
    %4904 = vmatpush1.msra.mxu0 0.0
    %4905 = vmatprep.subr.mxu0 0.0
    %4906 = vmatpush1.msra.mxu0 0.0
    %4907 = vmatprep.subr.mxu0 0.0
    %4908 = vmatpush1.msra.mxu0 0.0
    %4909 = vmatprep.subr.mxu0 0.0
    %4910 = vmatpush1.msra.mxu0 0.0
    %4911 = vmatprep.subr.mxu0 0.0
    %4912 = vmatpush1.msra.mxu0 0.0
    %4913 = vmatprep.subr.mxu0 0.0
    %4914 = vmatpush1.msra.mxu0 0.0
    %4915 = vmatprep.subr.mxu0 0.0
    %4916 = vmatpush1.msra.mxu0 0.0
    %4917 = vmatprep.subr.mxu0 0.0
    %4918 = vmatpush1.msra.mxu0 0.0
    %4919 = vmatprep.subr.mxu0 0.0
    %4920 = vmatpush1.msra.mxu0 0.0
    %4921 = vmatprep.subr.mxu0 0.0
    %4922 = vmatpush1.msra.mxu0 0.0
    %4923 = vmatprep.subr.mxu0 0.0
    %4924 = vmatpush1.msra.mxu0 0.0
    %4925 = vmatprep.subr.mxu0 0.0
    %4926 = vmatpush1.msra.mxu0 0.0
    %4927 = vmatprep.mubr.f32.mxu0 0.0
    %4928 = vmatmul.mubr.f32.gmra.mrb[0].mxu0 %v4791
    %v4929 = vpop.f32.mrb[0].mxu0
    %v4930 = vadd.f32 %v4140, %v4929
    %v4931 = vpop.f32.mrb[0].mxu0
    %4932 = vdwg.mxu0
    %v4933 = vadd.f32 %v3621, %v4859
    %v4934 = vxor.u32 %v4933, 2147483648
    %v4935 = vmul.f32 %v4934, 1.442695
    %v4936 = vpow.pop %v4935
    %v4937 = vadd.f32 %v4936, 1.0
    %v4938 = vrcp.pop %v4937
    %v4939 = vmul.f32 1.0, %v4938
    %v4940 = vadd.f32 %v3623, %v4861
    %v4941 = vxor.u32 %v4940, 2147483648
    %v4942 = vmul.f32 %v4941, 1.442695
    %v4943 = vpow.pop %v4942
    %v4944 = vadd.f32 %v4943, 1.0
    %v4945 = vrcp.pop %v4944
    %v4946 = vmul.f32 1.0, %v4945
    %v4947 = vmul.f32 %v4939, %v4930
    %v4948 = vadd.f32 %v3730, %v4947
    %v4949 = vtanh.pop %v4948
    %v4950 = vsub.f32 1.0, %v4946
    %v4951 = vmul.f32 %v4950, %v4949
    %v4952 = vmul.f32 %v4946, %v4791
    %v4953 = vadd.f32 %v4951, %v4952
    %4954 = vmatprep.subr.mxu0 %v4080
    %4955 = vmatpush1.msra.mxu0 %v4079
    %4956 = vmatprep.subr.mxu0 %v4083
    %4957 = vmatpush1.msra.mxu0 %v4082
    %4958 = vmatprep.subr.mxu0 %v4086
    %4959 = vmatpush1.msra.mxu0 %v4085
    %4960 = vmatprep.subr.mxu0 %v4089
    %4961 = vmatpush1.msra.mxu0 %v4088
    %4962 = vmatprep.subr.mxu0 %v4092
    %4963 = vmatpush1.msra.mxu0 %v4091
    %4964 = vmatprep.subr.mxu0 %v4095
    %4965 = vmatpush1.msra.mxu0 %v4094
    %4966 = vmatprep.subr.mxu0 %v4098
    %4967 = vmatpush1.msra.mxu0 %v4097
    %4968 = vmatprep.subr.mxu0 %v4101
    %4969 = vmatpush1.msra.mxu0 %v4100
    %4970 = vmatprep.subr.mxu0 %v4104
    %4971 = vmatpush1.msra.mxu0 %v4103
    %4972 = vmatprep.subr.mxu0 %v4107
    %4973 = vmatpush1.msra.mxu0 %v4106
    %4974 = vmatprep.subr.mxu0 %v4110
    %4975 = vmatpush1.msra.mxu0 %v4109
    %4976 = vmatprep.subr.mxu0 %v4113
    %4977 = vmatpush1.msra.mxu0 %v4112
    %4978 = vmatprep.subr.mxu0 %v4116
    %4979 = vmatpush1.msra.mxu0 %v4115
    %4980 = vmatprep.subr.mxu0 %v4119
    %4981 = vmatpush1.msra.mxu0 %v4118
    %4982 = vmatprep.subr.mxu0 %v4122
    %4983 = vmatpush1.msra.mxu0 %v4121
    %4984 = vmatprep.subr.mxu0 %v4125
    %4985 = vmatpush1.msra.mxu0 %v4124
    %4986 = vmatprep.subr.mxu0 0.0
    %4987 = vmatpush1.msra.mxu0 0.0
    %4988 = vmatprep.subr.mxu0 0.0
    %4989 = vmatpush1.msra.mxu0 0.0
    %4990 = vmatprep.subr.mxu0 0.0
    %4991 = vmatpush1.msra.mxu0 0.0
    %4992 = vmatprep.subr.mxu0 0.0
    %4993 = vmatpush1.msra.mxu0 0.0
    %4994 = vmatprep.subr.mxu0 0.0
    %4995 = vmatpush1.msra.mxu0 0.0
    %4996 = vmatprep.subr.mxu0 0.0
    %4997 = vmatpush1.msra.mxu0 0.0
    %4998 = vmatprep.subr.mxu0 0.0
    %4999 = vmatpush1.msra.mxu0 0.0
    %5000 = vmatprep.subr.mxu0 0.0
    %5001 = vmatpush1.msra.mxu0 0.0
    %5002 = vmatprep.subr.mxu0 0.0
    %5003 = vmatpush1.msra.mxu0 0.0
    %5004 = vmatprep.subr.mxu0 0.0
    %5005 = vmatpush1.msra.mxu0 0.0
    %5006 = vmatprep.subr.mxu0 0.0
    %5007 = vmatpush1.msra.mxu0 0.0
    %5008 = vmatprep.subr.mxu0 0.0
    %5009 = vmatpush1.msra.mxu0 0.0
    %5010 = vmatprep.subr.mxu0 0.0
    %5011 = vmatpush1.msra.mxu0 0.0
    %5012 = vmatprep.subr.mxu0 0.0
    %5013 = vmatpush1.msra.mxu0 0.0
    %5014 = vmatprep.subr.mxu0 0.0
    %5015 = vmatpush1.msra.mxu0 0.0
    %5016 = vmatprep.subr.mxu0 0.0
    %5017 = vmatpush1.msra.mxu0 0.0
    %5018 = vmatprep.mubr.f32.mxu0 0.0
    %5019 = vmatmul.mubr.f32.gmra.mrb[0].mxu0 %v4953
    %v5020 = vpop.f32.mrb[0].mxu0
    %v5021 = vadd.f32 %v4132, %v5020
    %v5022 = vpop.f32.mrb[0].mxu0
    %v5023 = vadd.f32 %v4136, %v5022
    %5024 = vdwg.mxu0
    %5025 = vmatprep.subr.mxu0 0.0
    %5026 = vmatpush1.msra.mxu0 %v4081
    %5027 = vmatprep.subr.mxu0 0.0
    %5028 = vmatpush1.msra.mxu0 %v4084
    %5029 = vmatprep.subr.mxu0 0.0
    %5030 = vmatpush1.msra.mxu0 %v4087
    %5031 = vmatprep.subr.mxu0 0.0
    %5032 = vmatpush1.msra.mxu0 %v4090
    %5033 = vmatprep.subr.mxu0 0.0
    %5034 = vmatpush1.msra.mxu0 %v4093
    %5035 = vmatprep.subr.mxu0 0.0
    %5036 = vmatpush1.msra.mxu0 %v4096
    %5037 = vmatprep.subr.mxu0 0.0
    %5038 = vmatpush1.msra.mxu0 %v4099
    %5039 = vmatprep.subr.mxu0 0.0
    %5040 = vmatpush1.msra.mxu0 %v4102
    %5041 = vmatprep.subr.mxu0 0.0
    %5042 = vmatpush1.msra.mxu0 %v4105
    %5043 = vmatprep.subr.mxu0 0.0
    %5044 = vmatpush1.msra.mxu0 %v4108
    %5045 = vmatprep.subr.mxu0 0.0
    %5046 = vmatpush1.msra.mxu0 %v4111
    %5047 = vmatprep.subr.mxu0 0.0
    %5048 = vmatpush1.msra.mxu0 %v4114
    %5049 = vmatprep.subr.mxu0 0.0
    %5050 = vmatpush1.msra.mxu0 %v4117
    %5051 = vmatprep.subr.mxu0 0.0
    %5052 = vmatpush1.msra.mxu0 %v4120
    %5053 = vmatprep.subr.mxu0 0.0
    %5054 = vmatpush1.msra.mxu0 %v4123
    %5055 = vmatprep.subr.mxu0 0.0
    %5056 = vmatpush1.msra.mxu0 %v4126
    %5057 = vmatprep.subr.mxu0 0.0
    %5058 = vmatpush1.msra.mxu0 0.0
    %5059 = vmatprep.subr.mxu0 0.0
    %5060 = vmatpush1.msra.mxu0 0.0
    %5061 = vmatprep.subr.mxu0 0.0
    %5062 = vmatpush1.msra.mxu0 0.0
    %5063 = vmatprep.subr.mxu0 0.0
    %5064 = vmatpush1.msra.mxu0 0.0
    %5065 = vmatprep.subr.mxu0 0.0
    %5066 = vmatpush1.msra.mxu0 0.0
    %5067 = vmatprep.subr.mxu0 0.0
    %5068 = vmatpush1.msra.mxu0 0.0
    %5069 = vmatprep.subr.mxu0 0.0
    %5070 = vmatpush1.msra.mxu0 0.0
    %5071 = vmatprep.subr.mxu0 0.0
    %5072 = vmatpush1.msra.mxu0 0.0
    %5073 = vmatprep.subr.mxu0 0.0
    %5074 = vmatpush1.msra.mxu0 0.0
    %5075 = vmatprep.subr.mxu0 0.0
    %5076 = vmatpush1.msra.mxu0 0.0
    %5077 = vmatprep.subr.mxu0 0.0
    %5078 = vmatpush1.msra.mxu0 0.0
    %5079 = vmatprep.subr.mxu0 0.0
    %5080 = vmatpush1.msra.mxu0 0.0
    %5081 = vmatprep.subr.mxu0 0.0
    %5082 = vmatpush1.msra.mxu0 0.0
    %5083 = vmatprep.subr.mxu0 0.0
    %5084 = vmatpush1.msra.mxu0 0.0
    %5085 = vmatprep.subr.mxu0 0.0
    %5086 = vmatpush1.msra.mxu0 0.0
    %5087 = vmatprep.subr.mxu0 0.0
    %5088 = vmatpush1.msra.mxu0 0.0
    %5089 = vmatprep.mubr.f32.mxu0 0.0
    %5090 = vmatmul.mubr.f32.gmra.mrb[0].mxu0 %v4953
    %v5091 = vpop.f32.mrb[0].mxu0
    %v5092 = vadd.f32 %v4140, %v5091
    %v5093 = vpop.f32.mrb[0].mxu0
    %5094 = vdwg.mxu0
    %v5095 = vadd.f32 %v3627, %v5021
    %v5096 = vxor.u32 %v5095, 2147483648
    %v5097 = vmul.f32 %v5096, 1.442695
    %v5098 = vpow.pop %v5097
    %v5099 = vadd.f32 %v5098, 1.0
    %v5100 = vrcp.pop %v5099
    %v5101 = vmul.f32 1.0, %v5100
    %v5102 = vadd.f32 %v3629, %v5023
    %v5103 = vxor.u32 %v5102, 2147483648
    %v5104 = vmul.f32 %v5103, 1.442695
    %v5105 = vpow.pop %v5104
    %v5106 = vadd.f32 %v5105, 1.0
    %v5107 = vrcp.pop %v5106
    %v5108 = vmul.f32 1.0, %v5107
    %v5109 = vmul.f32 %v5101, %v5092
    %v5110 = vadd.f32 %v3735, %v5109
    %v5111 = vtanh.pop %v5110
    %v5112 = vsub.f32 1.0, %v5108
    %v5113 = vmul.f32 %v5112, %v5111
    %v5114 = vmul.f32 %v5108, %v4953
    %v5115 = vadd.f32 %v5113, %v5114
    %5116 = vmatprep.subr.mxu0 %v4080
    %5117 = vmatpush1.msra.mxu0 %v4079
    %5118 = vmatprep.subr.mxu0 %v4083
    %5119 = vmatpush1.msra.mxu0 %v4082
    %5120 = vmatprep.subr.mxu0 %v4086
    %5121 = vmatpush1.msra.mxu0 %v4085
    %5122 = vmatprep.subr.mxu0 %v4089
    %5123 = vmatpush1.msra.mxu0 %v4088
    %5124 = vmatprep.subr.mxu0 %v4092
    %5125 = vmatpush1.msra.mxu0 %v4091
    %5126 = vmatprep.subr.mxu0 %v4095
    %5127 = vmatpush1.msra.mxu0 %v4094
    %5128 = vmatprep.subr.mxu0 %v4098
    %5129 = vmatpush1.msra.mxu0 %v4097
    %5130 = vmatprep.subr.mxu0 %v4101
    %5131 = vmatpush1.msra.mxu0 %v4100
    %5132 = vmatprep.subr.mxu0 %v4104
    %5133 = vmatpush1.msra.mxu0 %v4103
    %5134 = vmatprep.subr.mxu0 %v4107
    %5135 = vmatpush1.msra.mxu0 %v4106
    %5136 = vmatprep.subr.mxu0 %v4110
    %5137 = vmatpush1.msra.mxu0 %v4109
    %5138 = vmatprep.subr.mxu0 %v4113
    %5139 = vmatpush1.msra.mxu0 %v4112
    %5140 = vmatprep.subr.mxu0 %v4116
    %5141 = vmatpush1.msra.mxu0 %v4115
    %5142 = vmatprep.subr.mxu0 %v4119
    %5143 = vmatpush1.msra.mxu0 %v4118
    %5144 = vmatprep.subr.mxu0 %v4122
    %5145 = vmatpush1.msra.mxu0 %v4121
    %5146 = vmatprep.subr.mxu0 %v4125
    %5147 = vmatpush1.msra.mxu0 %v4124
    %5148 = vmatprep.subr.mxu0 0.0
    %5149 = vmatpush1.msra.mxu0 0.0
    %5150 = vmatprep.subr.mxu0 0.0
    %5151 = vmatpush1.msra.mxu0 0.0
    %5152 = vmatprep.subr.mxu0 0.0
    %5153 = vmatpush1.msra.mxu0 0.0
    %5154 = vmatprep.subr.mxu0 0.0
    %5155 = vmatpush1.msra.mxu0 0.0
    %5156 = vmatprep.subr.mxu0 0.0
    %5157 = vmatpush1.msra.mxu0 0.0
    %5158 = vmatprep.subr.mxu0 0.0
    %5159 = vmatpush1.msra.mxu0 0.0
    %5160 = vmatprep.subr.mxu0 0.0
    %5161 = vmatpush1.msra.mxu0 0.0
    %5162 = vmatprep.subr.mxu0 0.0
    %5163 = vmatpush1.msra.mxu0 0.0
    %5164 = vmatprep.subr.mxu0 0.0
    %5165 = vmatpush1.msra.mxu0 0.0
    %5166 = vmatprep.subr.mxu0 0.0
    %5167 = vmatpush1.msra.mxu0 0.0
    %5168 = vmatprep.subr.mxu0 0.0
    %5169 = vmatpush1.msra.mxu0 0.0
    %5170 = vmatprep.subr.mxu0 0.0
    %5171 = vmatpush1.msra.mxu0 0.0
    %5172 = vmatprep.subr.mxu0 0.0
    %5173 = vmatpush1.msra.mxu0 0.0
    %5174 = vmatprep.subr.mxu0 0.0
    %5175 = vmatpush1.msra.mxu0 0.0
    %5176 = vmatprep.subr.mxu0 0.0
    %5177 = vmatpush1.msra.mxu0 0.0
    %5178 = vmatprep.subr.mxu0 0.0
    %5179 = vmatpush1.msra.mxu0 0.0
    %5180 = vmatprep.mubr.f32.mxu0 0.0
    %5181 = vmatmul.mubr.f32.gmra.mrb[0].mxu0 %v5115
    %v5182 = vpop.f32.mrb[0].mxu0
    %v5183 = vadd.f32 %v4132, %v5182
    %v5184 = vpop.f32.mrb[0].mxu0
    %v5185 = vadd.f32 %v4136, %v5184
    %5186 = vdwg.mxu0
    %5187 = vmatprep.subr.mxu0 0.0
    %5188 = vmatpush1.msra.mxu0 %v4081
    %5189 = vmatprep.subr.mxu0 0.0
    %5190 = vmatpush1.msra.mxu0 %v4084
    %5191 = vmatprep.subr.mxu0 0.0
    %5192 = vmatpush1.msra.mxu0 %v4087
    %5193 = vmatprep.subr.mxu0 0.0
    %5194 = vmatpush1.msra.mxu0 %v4090
    %5195 = vmatprep.subr.mxu0 0.0
    %5196 = vmatpush1.msra.mxu0 %v4093
    %5197 = vmatprep.subr.mxu0 0.0
    %5198 = vmatpush1.msra.mxu0 %v4096
    %5199 = vmatprep.subr.mxu0 0.0
    %5200 = vmatpush1.msra.mxu0 %v4099
    %5201 = vmatprep.subr.mxu0 0.0
    %5202 = vmatpush1.msra.mxu0 %v4102
    %5203 = vmatprep.subr.mxu0 0.0
    %5204 = vmatpush1.msra.mxu0 %v4105
    %5205 = vmatprep.subr.mxu0 0.0
    %5206 = vmatpush1.msra.mxu0 %v4108
    %5207 = vmatprep.subr.mxu0 0.0
    %5208 = vmatpush1.msra.mxu0 %v4111
    %5209 = vmatprep.subr.mxu0 0.0
    %5210 = vmatpush1.msra.mxu0 %v4114
    %5211 = vmatprep.subr.mxu0 0.0
    %5212 = vmatpush1.msra.mxu0 %v4117
    %5213 = vmatprep.subr.mxu0 0.0
    %5214 = vmatpush1.msra.mxu0 %v4120
    %5215 = vmatprep.subr.mxu0 0.0
    %5216 = vmatpush1.msra.mxu0 %v4123
    %5217 = vmatprep.subr.mxu0 0.0
    %5218 = vmatpush1.msra.mxu0 %v4126
    %5219 = vmatprep.subr.mxu0 0.0
    %5220 = vmatpush1.msra.mxu0 0.0
    %5221 = vmatprep.subr.mxu0 0.0
    %5222 = vmatpush1.msra.mxu0 0.0
    %5223 = vmatprep.subr.mxu0 0.0
    %5224 = vmatpush1.msra.mxu0 0.0
    %5225 = vmatprep.subr.mxu0 0.0
    %5226 = vmatpush1.msra.mxu0 0.0
    %5227 = vmatprep.subr.mxu0 0.0
    %5228 = vmatpush1.msra.mxu0 0.0
    %5229 = vmatprep.subr.mxu0 0.0
    %5230 = vmatpush1.msra.mxu0 0.0
    %5231 = vmatprep.subr.mxu0 0.0
    %5232 = vmatpush1.msra.mxu0 0.0
    %5233 = vmatprep.subr.mxu0 0.0
    %5234 = vmatpush1.msra.mxu0 0.0
    %5235 = vmatprep.subr.mxu0 0.0
    %5236 = vmatpush1.msra.mxu0 0.0
    %5237 = vmatprep.subr.mxu0 0.0
    %5238 = vmatpush1.msra.mxu0 0.0
    %5239 = vmatprep.subr.mxu0 0.0
    %5240 = vmatpush1.msra.mxu0 0.0
    %5241 = vmatprep.subr.mxu0 0.0
    %5242 = vmatpush1.msra.mxu0 0.0
    %5243 = vmatprep.subr.mxu0 0.0
    %5244 = vmatpush1.msra.mxu0 0.0
    %5245 = vmatprep.subr.mxu0 0.0
    %5246 = vmatpush1.msra.mxu0 0.0
    %5247 = vmatprep.subr.mxu0 0.0
    %5248 = vmatpush1.msra.mxu0 0.0
    %5249 = vmatprep.subr.mxu0 0.0
    %5250 = vmatpush1.msra.mxu0 0.0
    %5251 = vmatprep.mubr.f32.mxu0 0.0
    %5252 = vmatmul.mubr.f32.gmra.mrb[0].mxu0 %v5115
    %v5253 = vpop.f32.mrb[0].mxu0
    %v5254 = vadd.f32 %v4140, %v5253
    %v5255 = vpop.f32.mrb[0].mxu0
    %5256 = vdwg.mxu0
    %v5257 = vadd.f32 %v3633, %v5183
    %v5258 = vxor.u32 %v5257, 2147483648
    %v5259 = vmul.f32 %v5258, 1.442695
    %v5260 = vpow.pop %v5259
    %v5261 = vadd.f32 %v5260, 1.0
    %v5262 = vrcp.pop %v5261
    %v5263 = vmul.f32 1.0, %v5262
    %v5264 = vadd.f32 %v3635, %v5185
    %v5265 = vxor.u32 %v5264, 2147483648
    %v5266 = vmul.f32 %v5265, 1.442695
    %v5267 = vpow.pop %v5266
    %v5268 = vadd.f32 %v5267, 1.0
    %v5269 = vrcp.pop %v5268
    %v5270 = vmul.f32 1.0, %v5269
    %v5271 = vmul.f32 %v5263, %v5254
    %v5272 = vadd.f32 %v3740, %v5271
    %v5273 = vtanh.pop %v5272
    %v5274 = vsub.f32 1.0, %v5270
    %v5275 = vmul.f32 %v5274, %v5273
    %v5276 = vmul.f32 %v5270, %v5115
    %v5277 = vadd.f32 %v5275, %v5276
    %5278 = vmatprep.subr.mxu0 %v4080
    %5279 = vmatpush1.msra.mxu0 %v4079
    %5280 = vmatprep.subr.mxu0 %v4083
    %5281 = vmatpush1.msra.mxu0 %v4082
    %5282 = vmatprep.subr.mxu0 %v4086
    %5283 = vmatpush1.msra.mxu0 %v4085
    %5284 = vmatprep.subr.mxu0 %v4089
    %5285 = vmatpush1.msra.mxu0 %v4088
    %5286 = vmatprep.subr.mxu0 %v4092
    %5287 = vmatpush1.msra.mxu0 %v4091
    %5288 = vmatprep.subr.mxu0 %v4095
    %5289 = vmatpush1.msra.mxu0 %v4094
    %5290 = vmatprep.subr.mxu0 %v4098
    %5291 = vmatpush1.msra.mxu0 %v4097
    %5292 = vmatprep.subr.mxu0 %v4101
    %5293 = vmatpush1.msra.mxu0 %v4100
    %5294 = vmatprep.subr.mxu0 %v4104
    %5295 = vmatpush1.msra.mxu0 %v4103
    %5296 = vmatprep.subr.mxu0 %v4107
    %5297 = vmatpush1.msra.mxu0 %v4106
    %5298 = vmatprep.subr.mxu0 %v4110
    %5299 = vmatpush1.msra.mxu0 %v4109
    %5300 = vmatprep.subr.mxu0 %v4113
    %5301 = vmatpush1.msra.mxu0 %v4112
    %5302 = vmatprep.subr.mxu0 %v4116
    %5303 = vmatpush1.msra.mxu0 %v4115
    %5304 = vmatprep.subr.mxu0 %v4119
    %5305 = vmatpush1.msra.mxu0 %v4118
    %5306 = vmatprep.subr.mxu0 %v4122
    %5307 = vmatpush1.msra.mxu0 %v4121
    %5308 = vmatprep.subr.mxu0 %v4125
    %5309 = vmatpush1.msra.mxu0 %v4124
    %5310 = vmatprep.subr.mxu0 0.0
    %5311 = vmatpush1.msra.mxu0 0.0
    %5312 = vmatprep.subr.mxu0 0.0
    %5313 = vmatpush1.msra.mxu0 0.0
    %5314 = vmatprep.subr.mxu0 0.0
    %5315 = vmatpush1.msra.mxu0 0.0
    %5316 = vmatprep.subr.mxu0 0.0
    %5317 = vmatpush1.msra.mxu0 0.0
    %5318 = vmatprep.subr.mxu0 0.0
    %5319 = vmatpush1.msra.mxu0 0.0
    %5320 = vmatprep.subr.mxu0 0.0
    %5321 = vmatpush1.msra.mxu0 0.0
    %5322 = vmatprep.subr.mxu0 0.0
    %5323 = vmatpush1.msra.mxu0 0.0
    %5324 = vmatprep.subr.mxu0 0.0
    %5325 = vmatpush1.msra.mxu0 0.0
    %5326 = vmatprep.subr.mxu0 0.0
    %5327 = vmatpush1.msra.mxu0 0.0
    %5328 = vmatprep.subr.mxu0 0.0
    %5329 = vmatpush1.msra.mxu0 0.0
    %5330 = vmatprep.subr.mxu0 0.0
    %5331 = vmatpush1.msra.mxu0 0.0
    %5332 = vmatprep.subr.mxu0 0.0
    %5333 = vmatpush1.msra.mxu0 0.0
    %5334 = vmatprep.subr.mxu0 0.0
    %5335 = vmatpush1.msra.mxu0 0.0
    %5336 = vmatprep.subr.mxu0 0.0
    %5337 = vmatpush1.msra.mxu0 0.0
    %5338 = vmatprep.subr.mxu0 0.0
    %5339 = vmatpush1.msra.mxu0 0.0
    %5340 = vmatprep.subr.mxu0 0.0
    %5341 = vmatpush1.msra.mxu0 0.0
    %5342 = vmatprep.mubr.f32.mxu0 0.0
    %5343 = vmatmul.mubr.f32.gmra.mrb[0].mxu0 %v5277
    %v5344 = vpop.f32.mrb[0].mxu0
    %v5345 = vadd.f32 %v4132, %v5344
    %v5346 = vpop.f32.mrb[0].mxu0
    %v5347 = vadd.f32 %v4136, %v5346
    %5348 = vdwg.mxu0
    %5349 = vmatprep.subr.mxu0 0.0
    %5350 = vmatpush1.msra.mxu0 %v4081
    %5351 = vmatprep.subr.mxu0 0.0
    %5352 = vmatpush1.msra.mxu0 %v4084
    %5353 = vmatprep.subr.mxu0 0.0
    %5354 = vmatpush1.msra.mxu0 %v4087
    %5355 = vmatprep.subr.mxu0 0.0
    %5356 = vmatpush1.msra.mxu0 %v4090
    %5357 = vmatprep.subr.mxu0 0.0
    %5358 = vmatpush1.msra.mxu0 %v4093
    %5359 = vmatprep.subr.mxu0 0.0
    %5360 = vmatpush1.msra.mxu0 %v4096
    %5361 = vmatprep.subr.mxu0 0.0
    %5362 = vmatpush1.msra.mxu0 %v4099
    %5363 = vmatprep.subr.mxu0 0.0
    %5364 = vmatpush1.msra.mxu0 %v4102
    %5365 = vmatprep.subr.mxu0 0.0
    %5366 = vmatpush1.msra.mxu0 %v4105
    %5367 = vmatprep.subr.mxu0 0.0
    %5368 = vmatpush1.msra.mxu0 %v4108
    %5369 = vmatprep.subr.mxu0 0.0
    %5370 = vmatpush1.msra.mxu0 %v4111
    %5371 = vmatprep.subr.mxu0 0.0
    %5372 = vmatpush1.msra.mxu0 %v4114
    %5373 = vmatprep.subr.mxu0 0.0
    %5374 = vmatpush1.msra.mxu0 %v4117
    %5375 = vmatprep.subr.mxu0 0.0
    %5376 = vmatpush1.msra.mxu0 %v4120
    %5377 = vmatprep.subr.mxu0 0.0
    %5378 = vmatpush1.msra.mxu0 %v4123
    %5379 = vmatprep.subr.mxu0 0.0
    %5380 = vmatpush1.msra.mxu0 %v4126
    %5381 = vmatprep.subr.mxu0 0.0
    %5382 = vmatpush1.msra.mxu0 0.0
    %5383 = vmatprep.subr.mxu0 0.0
    %5384 = vmatpush1.msra.mxu0 0.0
    %5385 = vmatprep.subr.mxu0 0.0
    %5386 = vmatpush1.msra.mxu0 0.0
    %5387 = vmatprep.subr.mxu0 0.0
    %5388 = vmatpush1.msra.mxu0 0.0
    %5389 = vmatprep.subr.mxu0 0.0
    %5390 = vmatpush1.msra.mxu0 0.0
    %5391 = vmatprep.subr.mxu0 0.0
    %5392 = vmatpush1.msra.mxu0 0.0
    %5393 = vmatprep.subr.mxu0 0.0
    %5394 = vmatpush1.msra.mxu0 0.0
    %5395 = vmatprep.subr.mxu0 0.0
    %5396 = vmatpush1.msra.mxu0 0.0
    %5397 = vmatprep.subr.mxu0 0.0
    %5398 = vmatpush1.msra.mxu0 0.0
    %5399 = vmatprep.subr.mxu0 0.0
    %5400 = vmatpush1.msra.mxu0 0.0
    %5401 = vmatprep.subr.mxu0 0.0
    %5402 = vmatpush1.msra.mxu0 0.0
    %5403 = vmatprep.subr.mxu0 0.0
    %5404 = vmatpush1.msra.mxu0 0.0
    %5405 = vmatprep.subr.mxu0 0.0
    %5406 = vmatpush1.msra.mxu0 0.0
    %5407 = vmatprep.subr.mxu0 0.0
    %5408 = vmatpush1.msra.mxu0 0.0
    %5409 = vmatprep.subr.mxu0 0.0
    %5410 = vmatpush1.msra.mxu0 0.0
    %5411 = vmatprep.subr.mxu0 0.0
    %5412 = vmatpush1.msra.mxu0 0.0
    %5413 = vmatprep.mubr.f32.mxu0 0.0
    %5414 = vmatmul.mubr.f32.gmra.mrb[0].mxu0 %v5277
    %v5415 = vpop.f32.mrb[0].mxu0
    %v5416 = vadd.f32 %v4140, %v5415
    %v5417 = vpop.f32.mrb[0].mxu0
    %5418 = vdwg.mxu0
    %v5419 = vadd.f32 %v3639, %v5345
    %v5420 = vxor.u32 %v5419, 2147483648
    %v5421 = vmul.f32 %v5420, 1.442695
    %v5422 = vpow.pop %v5421
    %v5423 = vadd.f32 %v5422, 1.0
    %v5424 = vrcp.pop %v5423
    %v5425 = vmul.f32 1.0, %v5424
    %v5426 = vadd.f32 %v3641, %v5347
    %v5427 = vxor.u32 %v5426, 2147483648
    %v5428 = vmul.f32 %v5427, 1.442695
    %v5429 = vpow.pop %v5428
    %v5430 = vadd.f32 %v5429, 1.0
    %v5431 = vrcp.pop %v5430
    %v5432 = vmul.f32 1.0, %v5431
    %v5433 = vmul.f32 %v5425, %v5416
    %v5434 = vadd.f32 %v3745, %v5433
    %v5435 = vtanh.pop %v5434
    %v5436 = vsub.f32 1.0, %v5432
    %v5437 = vmul.f32 %v5436, %v5435
    %v5438 = vmul.f32 %v5432, %v5277
    %v5439 = vadd.f32 %v5437, %v5438
    %v5440 = vld [vmem:[#allocation15] sm:$0xff]
    %v5441 = vld [vmem:[#allocation15 + $0x8] sm:$0xff]
    %v5442 = vld [vmem:[#allocation15 + $0x10] sm:$0xff]
    %v5443 = vld [vmem:[#allocation15 + $0x18] sm:$0xff]
    %v5444 = vld [vmem:[#allocation15 + $0x20] sm:$0xff]
    %v5445 = vld [vmem:[#allocation15 + $0x28] sm:$0xff]
    %v5446 = vld [vmem:[#allocation15 + $0x30] sm:$0xff]
    %v5447 = vld [vmem:[#allocation15 + $0x38] sm:$0xff]
    %v5448 = vld [vmem:[#allocation15 + $0x40] sm:$0xff]
    %v5449 = vld [vmem:[#allocation15 + $0x48] sm:$0xff]
    %v5450 = vld [vmem:[#allocation15 + $0x50] sm:$0xff]
    %v5451 = vld [vmem:[#allocation15 + $0x58] sm:$0xff]
    %v5452 = vld [vmem:[#allocation15 + $0x60] sm:$0xff]
    %v5453 = vld [vmem:[#allocation15 + $0x68] sm:$0xff]
    %v5454 = vld [vmem:[#allocation15 + $0x70] sm:$0xff]
    %v5455 = vld [vmem:[#allocation15 + $0x78] sm:$0xff]
    %v5456 = vld [vmem:[#allocation15 + $0x80] sm:$0xff]
    %v5457 = vld [vmem:[#allocation15 + $0x88] sm:$0xff]
    %v5458 = vld [vmem:[#allocation15 + $0x90] sm:$0xff]
    %v5459 = vld [vmem:[#allocation15 + $0x98] sm:$0xff]
    %v5460 = vld [vmem:[#allocation15 + $0xa0] sm:$0xff]
    %v5461 = vld [vmem:[#allocation15 + $0xa8] sm:$0xff]
    %v5462 = vld [vmem:[#allocation15 + $0xb0] sm:$0xff]
    %v5463 = vld [vmem:[#allocation15 + $0xb8] sm:$0xff]
    %v5464 = vld [vmem:[#allocation15 + $0xc0] sm:$0xff]
    %v5465 = vld [vmem:[#allocation15 + $0xc8] sm:$0xff]
    %v5466 = vld [vmem:[#allocation15 + $0xd0] sm:$0xff]
    %v5467 = vld [vmem:[#allocation15 + $0xd8] sm:$0xff]
    %v5468 = vld [vmem:[#allocation15 + $0xe0] sm:$0xff]
    %v5469 = vld [vmem:[#allocation15 + $0xe8] sm:$0xff]
    %v5470 = vld [vmem:[#allocation15 + $0xf0] sm:$0xff]
    %v5471 = vld [vmem:[#allocation15 + $0xf8] sm:$0xff]
    %v5472 = vld [vmem:[#allocation15 + $0x100] sm:$0xff]
    %v5473 = vld [vmem:[#allocation15 + $0x108] sm:$0xff]
    %v5474 = vld [vmem:[#allocation15 + $0x110] sm:$0xff]
    %v5475 = vld [vmem:[#allocation15 + $0x118] sm:$0xff]
    %v5476 = vld [vmem:[#allocation15 + $0x120] sm:$0xff]
    %v5477 = vld [vmem:[#allocation15 + $0x128] sm:$0xff]
    %v5478 = vld [vmem:[#allocation15 + $0x130] sm:$0xff]
    %v5479 = vld [vmem:[#allocation15 + $0x138] sm:$0xff]
    %v5480 = vld [vmem:[#allocation15 + $0x140] sm:$0xff]
    %v5481 = vld [vmem:[#allocation15 + $0x148] sm:$0xff]
    %v5482 = vld [vmem:[#allocation15 + $0x150] sm:$0xff]
    %v5483 = vld [vmem:[#allocation15 + $0x158] sm:$0xff]
    %v5484 = vld [vmem:[#allocation15 + $0x160] sm:$0xff]
    %v5485 = vld [vmem:[#allocation15 + $0x168] sm:$0xff]
    %v5486 = vld [vmem:[#allocation15 + $0x170] sm:$0xff]
    %v5487 = vld [vmem:[#allocation15 + $0x178] sm:$0xff]
    %v5488 = vld [vmem:[%s16] sm:$0x7]
    %v5490 = vlaneseq
    %v5491 = vshrl.u32 %v5490, 7
    %v5492 = vsub.s32 0, %v5491
    %v5493 = vrot.slane %v5488, %v5492
    %v5494 = vlaneseq
    %v5495 = vshrl.u32 %v5494, 7
    %v5496 = vsub.s32 1, %v5495
    %v5497 = vrot.slane %v5488, %v5496
    %v5498 = vlaneseq
    %v5499 = vshrl.u32 %v5498, 7
    %v5500 = vsub.s32 2, %v5499
    %v5501 = vrot.slane %v5488, %v5500
    %5505 = vmatprep.subr.mxu0 %v5441
    %5506 = vmatpush1.msra.mxu0 %v5440
    %5507 = vmatprep.subr.mxu0 %v5444
    %5508 = vmatpush1.msra.mxu0 %v5443
    %5509 = vmatprep.subr.mxu0 %v5447
    %5510 = vmatpush1.msra.mxu0 %v5446
    %5511 = vmatprep.subr.mxu0 %v5450
    %5512 = vmatpush1.msra.mxu0 %v5449
    %5513 = vmatprep.subr.mxu0 %v5453
    %5514 = vmatpush1.msra.mxu0 %v5452
    %5515 = vmatprep.subr.mxu0 %v5456
    %5516 = vmatpush1.msra.mxu0 %v5455
    %5517 = vmatprep.subr.mxu0 %v5459
    %5518 = vmatpush1.msra.mxu0 %v5458
    %5519 = vmatprep.subr.mxu0 %v5462
    %5520 = vmatpush1.msra.mxu0 %v5461
    %5521 = vmatprep.subr.mxu0 %v5465
    %5522 = vmatpush1.msra.mxu0 %v5464
    %5523 = vmatprep.subr.mxu0 %v5468
    %5524 = vmatpush1.msra.mxu0 %v5467
    %5525 = vmatprep.subr.mxu0 %v5471
    %5526 = vmatpush1.msra.mxu0 %v5470
    %5527 = vmatprep.subr.mxu0 %v5474
    %5528 = vmatpush1.msra.mxu0 %v5473
    %5529 = vmatprep.subr.mxu0 %v5477
    %5530 = vmatpush1.msra.mxu0 %v5476
    %5531 = vmatprep.subr.mxu0 %v5480
    %5532 = vmatpush1.msra.mxu0 %v5479
    %5533 = vmatprep.subr.mxu0 %v5483
    %5534 = vmatpush1.msra.mxu0 %v5482
    %5535 = vmatprep.subr.mxu0 %v5486
    %5536 = vmatpush1.msra.mxu0 %v5485
    %5537 = vmatprep.subr.mxu0 0.0
    %5538 = vmatpush1.msra.mxu0 0.0
    %5539 = vmatprep.subr.mxu0 0.0
    %5540 = vmatpush1.msra.mxu0 0.0
    %5541 = vmatprep.subr.mxu0 0.0
    %5542 = vmatpush1.msra.mxu0 0.0
    %5543 = vmatprep.subr.mxu0 0.0
    %5544 = vmatpush1.msra.mxu0 0.0
    %5545 = vmatprep.subr.mxu0 0.0
    %5546 = vmatpush1.msra.mxu0 0.0
    %5547 = vmatprep.subr.mxu0 0.0
    %5548 = vmatpush1.msra.mxu0 0.0
    %5549 = vmatprep.subr.mxu0 0.0
    %5550 = vmatpush1.msra.mxu0 0.0
    %5551 = vmatprep.subr.mxu0 0.0
    %5552 = vmatpush1.msra.mxu0 0.0
    %5553 = vmatprep.subr.mxu0 0.0
    %5554 = vmatpush1.msra.mxu0 0.0
    %5555 = vmatprep.subr.mxu0 0.0
    %5556 = vmatpush1.msra.mxu0 0.0
    %5557 = vmatprep.subr.mxu0 0.0
    %5558 = vmatpush1.msra.mxu0 0.0
    %5559 = vmatprep.subr.mxu0 0.0
    %5560 = vmatpush1.msra.mxu0 0.0
    %5561 = vmatprep.subr.mxu0 0.0
    %5562 = vmatpush1.msra.mxu0 0.0
    %5563 = vmatprep.subr.mxu0 0.0
    %5564 = vmatpush1.msra.mxu0 0.0
    %5565 = vmatprep.subr.mxu0 0.0
    %5566 = vmatpush1.msra.mxu0 0.0
    %5567 = vmatprep.subr.mxu0 0.0
    %5568 = vmatpush1.msra.mxu0 0.0
    %5569 = vmatprep.mubr.f32.mxu0 0.0
    %5570 = vmatmul.mubr.f32.gmra.mrb[0].mxu0 0.0
    %v5571 = vpop.f32.mrb[0].mxu0
    %v5572 = vadd.f32 %v5493, %v5571
    %v5573 = vpop.f32.mrb[0].mxu0
    %v5574 = vadd.f32 %v5497, %v5573
    %5575 = vdwg.mxu0
    %5576 = vmatprep.subr.mxu0 0.0
    %5577 = vmatpush1.msra.mxu0 %v5442
    %5578 = vmatprep.subr.mxu0 0.0
    %5579 = vmatpush1.msra.mxu0 %v5445
    %5580 = vmatprep.subr.mxu0 0.0
    %5581 = vmatpush1.msra.mxu0 %v5448
    %5582 = vmatprep.subr.mxu0 0.0
    %5583 = vmatpush1.msra.mxu0 %v5451
    %5584 = vmatprep.subr.mxu0 0.0
    %5585 = vmatpush1.msra.mxu0 %v5454
    %5586 = vmatprep.subr.mxu0 0.0
    %5587 = vmatpush1.msra.mxu0 %v5457
    %5588 = vmatprep.subr.mxu0 0.0
    %5589 = vmatpush1.msra.mxu0 %v5460
    %5590 = vmatprep.subr.mxu0 0.0
    %5591 = vmatpush1.msra.mxu0 %v5463
    %5592 = vmatprep.subr.mxu0 0.0
    %5593 = vmatpush1.msra.mxu0 %v5466
    %5594 = vmatprep.subr.mxu0 0.0
    %5595 = vmatpush1.msra.mxu0 %v5469
    %5596 = vmatprep.subr.mxu0 0.0
    %5597 = vmatpush1.msra.mxu0 %v5472
    %5598 = vmatprep.subr.mxu0 0.0
    %5599 = vmatpush1.msra.mxu0 %v5475
    %5600 = vmatprep.subr.mxu0 0.0
    %5601 = vmatpush1.msra.mxu0 %v5478
    %5602 = vmatprep.subr.mxu0 0.0
    %5603 = vmatpush1.msra.mxu0 %v5481
    %5604 = vmatprep.subr.mxu0 0.0
    %5605 = vmatpush1.msra.mxu0 %v5484
    %5606 = vmatprep.subr.mxu0 0.0
    %5607 = vmatpush1.msra.mxu0 %v5487
    %5608 = vmatprep.subr.mxu0 0.0
    %5609 = vmatpush1.msra.mxu0 0.0
    %5610 = vmatprep.subr.mxu0 0.0
    %5611 = vmatpush1.msra.mxu0 0.0
    %5612 = vmatprep.subr.mxu0 0.0
    %5613 = vmatpush1.msra.mxu0 0.0
    %5614 = vmatprep.subr.mxu0 0.0
    %5615 = vmatpush1.msra.mxu0 0.0
    %5616 = vmatprep.subr.mxu0 0.0
    %5617 = vmatpush1.msra.mxu0 0.0
    %5618 = vmatprep.subr.mxu0 0.0
    %5619 = vmatpush1.msra.mxu0 0.0
    %5620 = vmatprep.subr.mxu0 0.0
    %5621 = vmatpush1.msra.mxu0 0.0
    %5622 = vmatprep.subr.mxu0 0.0
    %5623 = vmatpush1.msra.mxu0 0.0
    %5624 = vmatprep.subr.mxu0 0.0
    %5625 = vmatpush1.msra.mxu0 0.0
    %5626 = vmatprep.subr.mxu0 0.0
    %5627 = vmatpush1.msra.mxu0 0.0
    %5628 = vmatprep.subr.mxu0 0.0
    %5629 = vmatpush1.msra.mxu0 0.0
    %5630 = vmatprep.subr.mxu0 0.0
    %5631 = vmatpush1.msra.mxu0 0.0
    %5632 = vmatprep.subr.mxu0 0.0
    %5633 = vmatpush1.msra.mxu0 0.0
    %5634 = vmatprep.subr.mxu0 0.0
    %5635 = vmatpush1.msra.mxu0 0.0
    %5636 = vmatprep.subr.mxu0 0.0
    %5637 = vmatpush1.msra.mxu0 0.0
    %5638 = vmatprep.subr.mxu0 0.0
    %5639 = vmatpush1.msra.mxu0 0.0
    %5640 = vmatprep.mubr.f32.mxu0 0.0
    %5641 = vmatmul.mubr.f32.gmra.mrb[0].mxu0 0.0
    %v5642 = vpop.f32.mrb[0].mxu0
    %v5643 = vadd.f32 %v5501, %v5642
    %v5644 = vpop.f32.mrb[0].mxu0
    %5645 = vdwg.mxu0
    %v5646 = vadd.f32 %v3970, %v5572
    %v5647 = vxor.u32 %v5646, 2147483648
    %v5648 = vmul.f32 %v5647, 1.442695
    %v5649 = vpow.pop %v5648
    %v5650 = vadd.f32 %v5649, 1.0
    %v5651 = vrcp.pop %v5650
    %v5652 = vmul.f32 1.0, %v5651
    %v5653 = vadd.f32 %v3972, %v5574
    %v5654 = vxor.u32 %v5653, 2147483648
    %v5655 = vmul.f32 %v5654, 1.442695
    %v5656 = vpow.pop %v5655
    %v5657 = vadd.f32 %v5656, 1.0
    %v5658 = vrcp.pop %v5657
    %v5659 = vmul.f32 1.0, %v5658
    %v5660 = vmul.f32 %v5652, %v5643
    %v5661 = vadd.f32 %v4076, %v5660
    %v5662 = vtanh.pop %v5661
    %v5663 = vsub.f32 1.0, %v5659
    %v5664 = vmul.f32 %v5663, %v5662
    %v5665 = vmul.f32 %v5659, 0.0
    %v5666 = vadd.f32 %v5664, %v5665
    %5667 = vmatprep.subr.mxu0 %v5441
    %5668 = vmatpush1.msra.mxu0 %v5440
    %5669 = vmatprep.subr.mxu0 %v5444
    %5670 = vmatpush1.msra.mxu0 %v5443
    %5671 = vmatprep.subr.mxu0 %v5447
    %5672 = vmatpush1.msra.mxu0 %v5446
    %5673 = vmatprep.subr.mxu0 %v5450
    %5674 = vmatpush1.msra.mxu0 %v5449
    %5675 = vmatprep.subr.mxu0 %v5453
    %5676 = vmatpush1.msra.mxu0 %v5452
    %5677 = vmatprep.subr.mxu0 %v5456
    %5678 = vmatpush1.msra.mxu0 %v5455
    %5679 = vmatprep.subr.mxu0 %v5459
    %5680 = vmatpush1.msra.mxu0 %v5458
    %5681 = vmatprep.subr.mxu0 %v5462
    %5682 = vmatpush1.msra.mxu0 %v5461
    %5683 = vmatprep.subr.mxu0 %v5465
    %5684 = vmatpush1.msra.mxu0 %v5464
    %5685 = vmatprep.subr.mxu0 %v5468
    %5686 = vmatpush1.msra.mxu0 %v5467
    %5687 = vmatprep.subr.mxu0 %v5471
    %5688 = vmatpush1.msra.mxu0 %v5470
    %5689 = vmatprep.subr.mxu0 %v5474
    %5690 = vmatpush1.msra.mxu0 %v5473
    %5691 = vmatprep.subr.mxu0 %v5477
    %5692 = vmatpush1.msra.mxu0 %v5476
    %5693 = vmatprep.subr.mxu0 %v5480
    %5694 = vmatpush1.msra.mxu0 %v5479
    %5695 = vmatprep.subr.mxu0 %v5483
    %5696 = vmatpush1.msra.mxu0 %v5482
    %5697 = vmatprep.subr.mxu0 %v5486
    %5698 = vmatpush1.msra.mxu0 %v5485
    %5699 = vmatprep.subr.mxu0 0.0
    %5700 = vmatpush1.msra.mxu0 0.0
    %5701 = vmatprep.subr.mxu0 0.0
    %5702 = vmatpush1.msra.mxu0 0.0
    %5703 = vmatprep.subr.mxu0 0.0
    %5704 = vmatpush1.msra.mxu0 0.0
    %5705 = vmatprep.subr.mxu0 0.0
    %5706 = vmatpush1.msra.mxu0 0.0
    %5707 = vmatprep.subr.mxu0 0.0
    %5708 = vmatpush1.msra.mxu0 0.0
    %5709 = vmatprep.subr.mxu0 0.0
    %5710 = vmatpush1.msra.mxu0 0.0
    %5711 = vmatprep.subr.mxu0 0.0
    %5712 = vmatpush1.msra.mxu0 0.0
    %5713 = vmatprep.subr.mxu0 0.0
    %5714 = vmatpush1.msra.mxu0 0.0
    %5715 = vmatprep.subr.mxu0 0.0
    %5716 = vmatpush1.msra.mxu0 0.0
    %5717 = vmatprep.subr.mxu0 0.0
    %5718 = vmatpush1.msra.mxu0 0.0
    %5719 = vmatprep.subr.mxu0 0.0
    %5720 = vmatpush1.msra.mxu0 0.0
    %5721 = vmatprep.subr.mxu0 0.0
    %5722 = vmatpush1.msra.mxu0 0.0
    %5723 = vmatprep.subr.mxu0 0.0
    %5724 = vmatpush1.msra.mxu0 0.0
    %5725 = vmatprep.subr.mxu0 0.0
    %5726 = vmatpush1.msra.mxu0 0.0
    %5727 = vmatprep.subr.mxu0 0.0
    %5728 = vmatpush1.msra.mxu0 0.0
    %5729 = vmatprep.subr.mxu0 0.0
    %5730 = vmatpush1.msra.mxu0 0.0
    %5731 = vmatprep.mubr.f32.mxu0 0.0
    %5732 = vmatmul.mubr.f32.gmra.mrb[0].mxu0 %v5666
    %v5733 = vpop.f32.mrb[0].mxu0
    %v5734 = vadd.f32 %v5493, %v5733
    %v5735 = vpop.f32.mrb[0].mxu0
    %v5736 = vadd.f32 %v5497, %v5735
    %5737 = vdwg.mxu0
    %5738 = vmatprep.subr.mxu0 0.0
    %5739 = vmatpush1.msra.mxu0 %v5442
    %5740 = vmatprep.subr.mxu0 0.0
    %5741 = vmatpush1.msra.mxu0 %v5445
    %5742 = vmatprep.subr.mxu0 0.0
    %5743 = vmatpush1.msra.mxu0 %v5448
    %5744 = vmatprep.subr.mxu0 0.0
    %5745 = vmatpush1.msra.mxu0 %v5451
    %5746 = vmatprep.subr.mxu0 0.0
    %5747 = vmatpush1.msra.mxu0 %v5454
    %5748 = vmatprep.subr.mxu0 0.0
    %5749 = vmatpush1.msra.mxu0 %v5457
    %5750 = vmatprep.subr.mxu0 0.0
    %5751 = vmatpush1.msra.mxu0 %v5460
    %5752 = vmatprep.subr.mxu0 0.0
    %5753 = vmatpush1.msra.mxu0 %v5463
    %5754 = vmatprep.subr.mxu0 0.0
    %5755 = vmatpush1.msra.mxu0 %v5466
    %5756 = vmatprep.subr.mxu0 0.0
    %5757 = vmatpush1.msra.mxu0 %v5469
    %5758 = vmatprep.subr.mxu0 0.0
    %5759 = vmatpush1.msra.mxu0 %v5472
    %5760 = vmatprep.subr.mxu0 0.0
    %5761 = vmatpush1.msra.mxu0 %v5475
    %5762 = vmatprep.subr.mxu0 0.0
    %5763 = vmatpush1.msra.mxu0 %v5478
    %5764 = vmatprep.subr.mxu0 0.0
    %5765 = vmatpush1.msra.mxu0 %v5481
    %5766 = vmatprep.subr.mxu0 0.0
    %5767 = vmatpush1.msra.mxu0 %v5484
    %5768 = vmatprep.subr.mxu0 0.0
    %5769 = vmatpush1.msra.mxu0 %v5487
    %5770 = vmatprep.subr.mxu0 0.0
    %5771 = vmatpush1.msra.mxu0 0.0
    %5772 = vmatprep.subr.mxu0 0.0
    %5773 = vmatpush1.msra.mxu0 0.0
    %5774 = vmatprep.subr.mxu0 0.0
    %5775 = vmatpush1.msra.mxu0 0.0
    %5776 = vmatprep.subr.mxu0 0.0
    %5777 = vmatpush1.msra.mxu0 0.0
    %5778 = vmatprep.subr.mxu0 0.0
    %5779 = vmatpush1.msra.mxu0 0.0
    %5780 = vmatprep.subr.mxu0 0.0
    %5781 = vmatpush1.msra.mxu0 0.0
    %5782 = vmatprep.subr.mxu0 0.0
    %5783 = vmatpush1.msra.mxu0 0.0
    %5784 = vmatprep.subr.mxu0 0.0
    %5785 = vmatpush1.msra.mxu0 0.0
    %5786 = vmatprep.subr.mxu0 0.0
    %5787 = vmatpush1.msra.mxu0 0.0
    %5788 = vmatprep.subr.mxu0 0.0
    %5789 = vmatpush1.msra.mxu0 0.0
    %5790 = vmatprep.subr.mxu0 0.0
    %5791 = vmatpush1.msra.mxu0 0.0
    %5792 = vmatprep.subr.mxu0 0.0
    %5793 = vmatpush1.msra.mxu0 0.0
    %5794 = vmatprep.subr.mxu0 0.0
    %5795 = vmatpush1.msra.mxu0 0.0
    %5796 = vmatprep.subr.mxu0 0.0
    %5797 = vmatpush1.msra.mxu0 0.0
    %5798 = vmatprep.subr.mxu0 0.0
    %5799 = vmatpush1.msra.mxu0 0.0
    %5800 = vmatprep.subr.mxu0 0.0
    %5801 = vmatpush1.msra.mxu0 0.0
    %5802 = vmatprep.mubr.f32.mxu0 0.0
    %5803 = vmatmul.mubr.f32.gmra.mrb[0].mxu0 %v5666
    %v5804 = vpop.f32.mrb[0].mxu0
    %v5805 = vadd.f32 %v5501, %v5804
    %v5806 = vpop.f32.mrb[0].mxu0
    %5807 = vdwg.mxu0
    %v5808 = vadd.f32 %v3964, %v5734
    %v5809 = vxor.u32 %v5808, 2147483648
    %v5810 = vmul.f32 %v5809, 1.442695
    %v5811 = vpow.pop %v5810
    %v5812 = vadd.f32 %v5811, 1.0
    %v5813 = vrcp.pop %v5812
    %v5814 = vmul.f32 1.0, %v5813
    %v5815 = vadd.f32 %v3966, %v5736
    %v5816 = vxor.u32 %v5815, 2147483648
    %v5817 = vmul.f32 %v5816, 1.442695
    %v5818 = vpow.pop %v5817
    %v5819 = vadd.f32 %v5818, 1.0
    %v5820 = vrcp.pop %v5819
    %v5821 = vmul.f32 1.0, %v5820
    %v5822 = vmul.f32 %v5814, %v5805
    %v5823 = vadd.f32 %v4071, %v5822
    %v5824 = vtanh.pop %v5823
    %v5825 = vsub.f32 1.0, %v5821
    %v5826 = vmul.f32 %v5825, %v5824
    %v5827 = vmul.f32 %v5821, %v5666
    %v5828 = vadd.f32 %v5826, %v5827
    %5829 = vmatprep.subr.mxu0 %v5441
    %5830 = vmatpush1.msra.mxu0 %v5440
    %5831 = vmatprep.subr.mxu0 %v5444
    %5832 = vmatpush1.msra.mxu0 %v5443
    %5833 = vmatprep.subr.mxu0 %v5447
    %5834 = vmatpush1.msra.mxu0 %v5446
    %5835 = vmatprep.subr.mxu0 %v5450
    %5836 = vmatpush1.msra.mxu0 %v5449
    %5837 = vmatprep.subr.mxu0 %v5453
    %5838 = vmatpush1.msra.mxu0 %v5452
    %5839 = vmatprep.subr.mxu0 %v5456
    %5840 = vmatpush1.msra.mxu0 %v5455
    %5841 = vmatprep.subr.mxu0 %v5459
    %5842 = vmatpush1.msra.mxu0 %v5458
    %5843 = vmatprep.subr.mxu0 %v5462
    %5844 = vmatpush1.msra.mxu0 %v5461
    %5845 = vmatprep.subr.mxu0 %v5465
    %5846 = vmatpush1.msra.mxu0 %v5464
    %5847 = vmatprep.subr.mxu0 %v5468
    %5848 = vmatpush1.msra.mxu0 %v5467
    %5849 = vmatprep.subr.mxu0 %v5471
    %5850 = vmatpush1.msra.mxu0 %v5470
    %5851 = vmatprep.subr.mxu0 %v5474
    %5852 = vmatpush1.msra.mxu0 %v5473
    %5853 = vmatprep.subr.mxu0 %v5477
    %5854 = vmatpush1.msra.mxu0 %v5476
    %5855 = vmatprep.subr.mxu0 %v5480
    %5856 = vmatpush1.msra.mxu0 %v5479
    %5857 = vmatprep.subr.mxu0 %v5483
    %5858 = vmatpush1.msra.mxu0 %v5482
    %5859 = vmatprep.subr.mxu0 %v5486
    %5860 = vmatpush1.msra.mxu0 %v5485
    %5861 = vmatprep.subr.mxu0 0.0
    %5862 = vmatpush1.msra.mxu0 0.0
    %5863 = vmatprep.subr.mxu0 0.0
    %5864 = vmatpush1.msra.mxu0 0.0
    %5865 = vmatprep.subr.mxu0 0.0
    %5866 = vmatpush1.msra.mxu0 0.0
    %5867 = vmatprep.subr.mxu0 0.0
    %5868 = vmatpush1.msra.mxu0 0.0
    %5869 = vmatprep.subr.mxu0 0.0
    %5870 = vmatpush1.msra.mxu0 0.0
    %5871 = vmatprep.subr.mxu0 0.0
    %5872 = vmatpush1.msra.mxu0 0.0
    %5873 = vmatprep.subr.mxu0 0.0
    %5874 = vmatpush1.msra.mxu0 0.0
    %5875 = vmatprep.subr.mxu0 0.0
    %5876 = vmatpush1.msra.mxu0 0.0
    %5877 = vmatprep.subr.mxu0 0.0
    %5878 = vmatpush1.msra.mxu0 0.0
    %5879 = vmatprep.subr.mxu0 0.0
    %5880 = vmatpush1.msra.mxu0 0.0
    %5881 = vmatprep.subr.mxu0 0.0
    %5882 = vmatpush1.msra.mxu0 0.0
    %5883 = vmatprep.subr.mxu0 0.0
    %5884 = vmatpush1.msra.mxu0 0.0
    %5885 = vmatprep.subr.mxu0 0.0
    %5886 = vmatpush1.msra.mxu0 0.0
    %5887 = vmatprep.subr.mxu0 0.0
    %5888 = vmatpush1.msra.mxu0 0.0
    %5889 = vmatprep.subr.mxu0 0.0
    %5890 = vmatpush1.msra.mxu0 0.0
    %5891 = vmatprep.subr.mxu0 0.0
    %5892 = vmatpush1.msra.mxu0 0.0
    %5893 = vmatprep.mubr.f32.mxu0 0.0
    %5894 = vmatmul.mubr.f32.gmra.mrb[0].mxu0 %v5828
    %v5895 = vpop.f32.mrb[0].mxu0
    %v5896 = vadd.f32 %v5493, %v5895
    %v5897 = vpop.f32.mrb[0].mxu0
    %v5898 = vadd.f32 %v5497, %v5897
    %5899 = vdwg.mxu0
    %5900 = vmatprep.subr.mxu0 0.0
    %5901 = vmatpush1.msra.mxu0 %v5442
    %5902 = vmatprep.subr.mxu0 0.0
    %5903 = vmatpush1.msra.mxu0 %v5445
    %5904 = vmatprep.subr.mxu0 0.0
    %5905 = vmatpush1.msra.mxu0 %v5448
    %5906 = vmatprep.subr.mxu0 0.0
    %5907 = vmatpush1.msra.mxu0 %v5451
    %5908 = vmatprep.subr.mxu0 0.0
    %5909 = vmatpush1.msra.mxu0 %v5454
    %5910 = vmatprep.subr.mxu0 0.0
    %5911 = vmatpush1.msra.mxu0 %v5457
    %5912 = vmatprep.subr.mxu0 0.0
    %5913 = vmatpush1.msra.mxu0 %v5460
    %5914 = vmatprep.subr.mxu0 0.0
    %5915 = vmatpush1.msra.mxu0 %v5463
    %5916 = vmatprep.subr.mxu0 0.0
    %5917 = vmatpush1.msra.mxu0 %v5466
    %5918 = vmatprep.subr.mxu0 0.0
    %5919 = vmatpush1.msra.mxu0 %v5469
    %5920 = vmatprep.subr.mxu0 0.0
    %5921 = vmatpush1.msra.mxu0 %v5472
    %5922 = vmatprep.subr.mxu0 0.0
    %5923 = vmatpush1.msra.mxu0 %v5475
    %5924 = vmatprep.subr.mxu0 0.0
    %5925 = vmatpush1.msra.mxu0 %v5478
    %5926 = vmatprep.subr.mxu0 0.0
    %5927 = vmatpush1.msra.mxu0 %v5481
    %5928 = vmatprep.subr.mxu0 0.0
    %5929 = vmatpush1.msra.mxu0 %v5484
    %5930 = vmatprep.subr.mxu0 0.0
    %5931 = vmatpush1.msra.mxu0 %v5487
    %5932 = vmatprep.subr.mxu0 0.0
    %5933 = vmatpush1.msra.mxu0 0.0
    %5934 = vmatprep.subr.mxu0 0.0
    %5935 = vmatpush1.msra.mxu0 0.0
    %5936 = vmatprep.subr.mxu0 0.0
    %5937 = vmatpush1.msra.mxu0 0.0
    %5938 = vmatprep.subr.mxu0 0.0
    %5939 = vmatpush1.msra.mxu0 0.0
    %5940 = vmatprep.subr.mxu0 0.0
    %5941 = vmatpush1.msra.mxu0 0.0
    %5942 = vmatprep.subr.mxu0 0.0
    %5943 = vmatpush1.msra.mxu0 0.0
    %5944 = vmatprep.subr.mxu0 0.0
    %5945 = vmatpush1.msra.mxu0 0.0
    %5946 = vmatprep.subr.mxu0 0.0
    %5947 = vmatpush1.msra.mxu0 0.0
    %5948 = vmatprep.subr.mxu0 0.0
    %5949 = vmatpush1.msra.mxu0 0.0
    %5950 = vmatprep.subr.mxu0 0.0
    %5951 = vmatpush1.msra.mxu0 0.0
    %5952 = vmatprep.subr.mxu0 0.0
    %5953 = vmatpush1.msra.mxu0 0.0
    %5954 = vmatprep.subr.mxu0 0.0
    %5955 = vmatpush1.msra.mxu0 0.0
    %5956 = vmatprep.subr.mxu0 0.0
    %5957 = vmatpush1.msra.mxu0 0.0
    %5958 = vmatprep.subr.mxu0 0.0
    %5959 = vmatpush1.msra.mxu0 0.0
    %5960 = vmatprep.subr.mxu0 0.0
    %5961 = vmatpush1.msra.mxu0 0.0
    %5962 = vmatprep.subr.mxu0 0.0
    %5963 = vmatpush1.msra.mxu0 0.0
    %5964 = vmatprep.mubr.f32.mxu0 0.0
    %5965 = vmatmul.mubr.f32.gmra.mrb[0].mxu0 %v5828
    %v5966 = vpop.f32.mrb[0].mxu0
    %v5967 = vadd.f32 %v5501, %v5966
    %v5968 = vpop.f32.mrb[0].mxu0
    %5969 = vdwg.mxu0
    %v5970 = vadd.f32 %v3958, %v5896
    %v5971 = vxor.u32 %v5970, 2147483648
    %v5972 = vmul.f32 %v5971, 1.442695
    %v5973 = vpow.pop %v5972
    %v5974 = vadd.f32 %v5973, 1.0
    %v5975 = vrcp.pop %v5974
    %v5976 = vmul.f32 1.0, %v5975
    %v5977 = vadd.f32 %v3960, %v5898
    %v5978 = vxor.u32 %v5977, 2147483648
    %v5979 = vmul.f32 %v5978, 1.442695
    %v5980 = vpow.pop %v5979
    %v5981 = vadd.f32 %v5980, 1.0
    %v5982 = vrcp.pop %v5981
    %v5983 = vmul.f32 1.0, %v5982
    %v5984 = vmul.f32 %v5976, %v5967
    %v5985 = vadd.f32 %v4066, %v5984
    %v5986 = vtanh.pop %v5985
    %v5987 = vsub.f32 1.0, %v5983
    %v5988 = vmul.f32 %v5987, %v5986
    %v5989 = vmul.f32 %v5983, %v5828
    %v5990 = vadd.f32 %v5988, %v5989
    %5991 = vmatprep.subr.mxu0 %v5441
    %5992 = vmatpush1.msra.mxu0 %v5440
    %5993 = vmatprep.subr.mxu0 %v5444
    %5994 = vmatpush1.msra.mxu0 %v5443
    %5995 = vmatprep.subr.mxu0 %v5447
    %5996 = vmatpush1.msra.mxu0 %v5446
    %5997 = vmatprep.subr.mxu0 %v5450
    %5998 = vmatpush1.msra.mxu0 %v5449
    %5999 = vmatprep.subr.mxu0 %v5453
    %6000 = vmatpush1.msra.mxu0 %v5452
    %6001 = vmatprep.subr.mxu0 %v5456
    %6002 = vmatpush1.msra.mxu0 %v5455
    %6003 = vmatprep.subr.mxu0 %v5459
    %6004 = vmatpush1.msra.mxu0 %v5458
    %6005 = vmatprep.subr.mxu0 %v5462
    %6006 = vmatpush1.msra.mxu0 %v5461
    %6007 = vmatprep.subr.mxu0 %v5465
    %6008 = vmatpush1.msra.mxu0 %v5464
    %6009 = vmatprep.subr.mxu0 %v5468
    %6010 = vmatpush1.msra.mxu0 %v5467
    %6011 = vmatprep.subr.mxu0 %v5471
    %6012 = vmatpush1.msra.mxu0 %v5470
    %6013 = vmatprep.subr.mxu0 %v5474
    %6014 = vmatpush1.msra.mxu0 %v5473
    %6015 = vmatprep.subr.mxu0 %v5477
    %6016 = vmatpush1.msra.mxu0 %v5476
    %6017 = vmatprep.subr.mxu0 %v5480
    %6018 = vmatpush1.msra.mxu0 %v5479
    %6019 = vmatprep.subr.mxu0 %v5483
    %6020 = vmatpush1.msra.mxu0 %v5482
    %6021 = vmatprep.subr.mxu0 %v5486
    %6022 = vmatpush1.msra.mxu0 %v5485
    %6023 = vmatprep.subr.mxu0 0.0
    %6024 = vmatpush1.msra.mxu0 0.0
    %6025 = vmatprep.subr.mxu0 0.0
    %6026 = vmatpush1.msra.mxu0 0.0
    %6027 = vmatprep.subr.mxu0 0.0
    %6028 = vmatpush1.msra.mxu0 0.0
    %6029 = vmatprep.subr.mxu0 0.0
    %6030 = vmatpush1.msra.mxu0 0.0
    %6031 = vmatprep.subr.mxu0 0.0
    %6032 = vmatpush1.msra.mxu0 0.0
    %6033 = vmatprep.subr.mxu0 0.0
    %6034 = vmatpush1.msra.mxu0 0.0
    %6035 = vmatprep.subr.mxu0 0.0
    %6036 = vmatpush1.msra.mxu0 0.0
    %6037 = vmatprep.subr.mxu0 0.0
    %6038 = vmatpush1.msra.mxu0 0.0
    %6039 = vmatprep.subr.mxu0 0.0
    %6040 = vmatpush1.msra.mxu0 0.0
    %6041 = vmatprep.subr.mxu0 0.0
    %6042 = vmatpush1.msra.mxu0 0.0
    %6043 = vmatprep.subr.mxu0 0.0
    %6044 = vmatpush1.msra.mxu0 0.0
    %6045 = vmatprep.subr.mxu0 0.0
    %6046 = vmatpush1.msra.mxu0 0.0
    %6047 = vmatprep.subr.mxu0 0.0
    %6048 = vmatpush1.msra.mxu0 0.0
    %6049 = vmatprep.subr.mxu0 0.0
    %6050 = vmatpush1.msra.mxu0 0.0
    %6051 = vmatprep.subr.mxu0 0.0
    %6052 = vmatpush1.msra.mxu0 0.0
    %6053 = vmatprep.subr.mxu0 0.0
    %6054 = vmatpush1.msra.mxu0 0.0
    %6055 = vmatprep.mubr.f32.mxu0 0.0
    %6056 = vmatmul.mubr.f32.gmra.mrb[0].mxu0 %v5990
    %v6057 = vpop.f32.mrb[0].mxu0
    %v6058 = vadd.f32 %v5493, %v6057
    %v6059 = vpop.f32.mrb[0].mxu0
    %v6060 = vadd.f32 %v5497, %v6059
    %6061 = vdwg.mxu0
    %6062 = vmatprep.subr.mxu0 0.0
    %6063 = vmatpush1.msra.mxu0 %v5442
    %6064 = vmatprep.subr.mxu0 0.0
    %6065 = vmatpush1.msra.mxu0 %v5445
    %6066 = vmatprep.subr.mxu0 0.0
    %6067 = vmatpush1.msra.mxu0 %v5448
    %6068 = vmatprep.subr.mxu0 0.0
    %6069 = vmatpush1.msra.mxu0 %v5451
    %6070 = vmatprep.subr.mxu0 0.0
    %6071 = vmatpush1.msra.mxu0 %v5454
    %6072 = vmatprep.subr.mxu0 0.0
    %6073 = vmatpush1.msra.mxu0 %v5457
    %6074 = vmatprep.subr.mxu0 0.0
    %6075 = vmatpush1.msra.mxu0 %v5460
    %6076 = vmatprep.subr.mxu0 0.0
    %6077 = vmatpush1.msra.mxu0 %v5463
    %6078 = vmatprep.subr.mxu0 0.0
    %6079 = vmatpush1.msra.mxu0 %v5466
    %6080 = vmatprep.subr.mxu0 0.0
    %6081 = vmatpush1.msra.mxu0 %v5469
    %6082 = vmatprep.subr.mxu0 0.0
    %6083 = vmatpush1.msra.mxu0 %v5472
    %6084 = vmatprep.subr.mxu0 0.0
    %6085 = vmatpush1.msra.mxu0 %v5475
    %6086 = vmatprep.subr.mxu0 0.0
    %6087 = vmatpush1.msra.mxu0 %v5478
    %6088 = vmatprep.subr.mxu0 0.0
    %6089 = vmatpush1.msra.mxu0 %v5481
    %6090 = vmatprep.subr.mxu0 0.0
    %6091 = vmatpush1.msra.mxu0 %v5484
    %6092 = vmatprep.subr.mxu0 0.0
    %6093 = vmatpush1.msra.mxu0 %v5487
    %6094 = vmatprep.subr.mxu0 0.0
    %6095 = vmatpush1.msra.mxu0 0.0
    %6096 = vmatprep.subr.mxu0 0.0
    %6097 = vmatpush1.msra.mxu0 0.0
    %6098 = vmatprep.subr.mxu0 0.0
    %6099 = vmatpush1.msra.mxu0 0.0
    %6100 = vmatprep.subr.mxu0 0.0
    %6101 = vmatpush1.msra.mxu0 0.0
    %6102 = vmatprep.subr.mxu0 0.0
    %6103 = vmatpush1.msra.mxu0 0.0
    %6104 = vmatprep.subr.mxu0 0.0
    %6105 = vmatpush1.msra.mxu0 0.0
    %6106 = vmatprep.subr.mxu0 0.0
    %6107 = vmatpush1.msra.mxu0 0.0
    %6108 = vmatprep.subr.mxu0 0.0
    %6109 = vmatpush1.msra.mxu0 0.0
    %6110 = vmatprep.subr.mxu0 0.0
    %6111 = vmatpush1.msra.mxu0 0.0
    %6112 = vmatprep.subr.mxu0 0.0
    %6113 = vmatpush1.msra.mxu0 0.0
    %6114 = vmatprep.subr.mxu0 0.0
    %6115 = vmatpush1.msra.mxu0 0.0
    %6116 = vmatprep.subr.mxu0 0.0
    %6117 = vmatpush1.msra.mxu0 0.0
    %6118 = vmatprep.subr.mxu0 0.0
    %6119 = vmatpush1.msra.mxu0 0.0
    %6120 = vmatprep.subr.mxu0 0.0
    %6121 = vmatpush1.msra.mxu0 0.0
    %6122 = vmatprep.subr.mxu0 0.0
    %6123 = vmatpush1.msra.mxu0 0.0
    %6124 = vmatprep.subr.mxu0 0.0
    %6125 = vmatpush1.msra.mxu0 0.0
    %6126 = vmatprep.mubr.f32.mxu0 0.0
    %6127 = vmatmul.mubr.f32.gmra.mrb[0].mxu0 %v5990
    %v6128 = vpop.f32.mrb[0].mxu0
    %v6129 = vadd.f32 %v5501, %v6128
    %v6130 = vpop.f32.mrb[0].mxu0
    %6131 = vdwg.mxu0
    %v6132 = vadd.f32 %v3952, %v6058
    %v6133 = vxor.u32 %v6132, 2147483648
    %v6134 = vmul.f32 %v6133, 1.442695
    %v6135 = vpow.pop %v6134
    %v6136 = vadd.f32 %v6135, 1.0
    %v6137 = vrcp.pop %v6136
    %v6138 = vmul.f32 1.0, %v6137
    %v6139 = vadd.f32 %v3954, %v6060
    %v6140 = vxor.u32 %v6139, 2147483648
    %v6141 = vmul.f32 %v6140, 1.442695
    %v6142 = vpow.pop %v6141
    %v6143 = vadd.f32 %v6142, 1.0
    %v6144 = vrcp.pop %v6143
    %v6145 = vmul.f32 1.0, %v6144
    %v6146 = vmul.f32 %v6138, %v6129
    %v6147 = vadd.f32 %v4061, %v6146
    %v6148 = vtanh.pop %v6147
    %v6149 = vsub.f32 1.0, %v6145
    %v6150 = vmul.f32 %v6149, %v6148
    %v6151 = vmul.f32 %v6145, %v5990
    %v6152 = vadd.f32 %v6150, %v6151
    %6153 = vmatprep.subr.mxu0 %v5441
    %6154 = vmatpush1.msra.mxu0 %v5440
    %6155 = vmatprep.subr.mxu0 %v5444
    %6156 = vmatpush1.msra.mxu0 %v5443
    %6157 = vmatprep.subr.mxu0 %v5447
    %6158 = vmatpush1.msra.mxu0 %v5446
    %6159 = vmatprep.subr.mxu0 %v5450
    %6160 = vmatpush1.msra.mxu0 %v5449
    %6161 = vmatprep.subr.mxu0 %v5453
    %6162 = vmatpush1.msra.mxu0 %v5452
    %6163 = vmatprep.subr.mxu0 %v5456
    %6164 = vmatpush1.msra.mxu0 %v5455
    %6165 = vmatprep.subr.mxu0 %v5459
    %6166 = vmatpush1.msra.mxu0 %v5458
    %6167 = vmatprep.subr.mxu0 %v5462
    %6168 = vmatpush1.msra.mxu0 %v5461
    %6169 = vmatprep.subr.mxu0 %v5465
    %6170 = vmatpush1.msra.mxu0 %v5464
    %6171 = vmatprep.subr.mxu0 %v5468
    %6172 = vmatpush1.msra.mxu0 %v5467
    %6173 = vmatprep.subr.mxu0 %v5471
    %6174 = vmatpush1.msra.mxu0 %v5470
    %6175 = vmatprep.subr.mxu0 %v5474
    %6176 = vmatpush1.msra.mxu0 %v5473
    %6177 = vmatprep.subr.mxu0 %v5477
    %6178 = vmatpush1.msra.mxu0 %v5476
    %6179 = vmatprep.subr.mxu0 %v5480
    %6180 = vmatpush1.msra.mxu0 %v5479
    %6181 = vmatprep.subr.mxu0 %v5483
    %6182 = vmatpush1.msra.mxu0 %v5482
    %6183 = vmatprep.subr.mxu0 %v5486
    %6184 = vmatpush1.msra.mxu0 %v5485
    %6185 = vmatprep.subr.mxu0 0.0
    %6186 = vmatpush1.msra.mxu0 0.0
    %6187 = vmatprep.subr.mxu0 0.0
    %6188 = vmatpush1.msra.mxu0 0.0
    %6189 = vmatprep.subr.mxu0 0.0
    %6190 = vmatpush1.msra.mxu0 0.0
    %6191 = vmatprep.subr.mxu0 0.0
    %6192 = vmatpush1.msra.mxu0 0.0
    %6193 = vmatprep.subr.mxu0 0.0
    %6194 = vmatpush1.msra.mxu0 0.0
    %6195 = vmatprep.subr.mxu0 0.0
    %6196 = vmatpush1.msra.mxu0 0.0
    %6197 = vmatprep.subr.mxu0 0.0
    %6198 = vmatpush1.msra.mxu0 0.0
    %6199 = vmatprep.subr.mxu0 0.0
    %6200 = vmatpush1.msra.mxu0 0.0
    %6201 = vmatprep.subr.mxu0 0.0
    %6202 = vmatpush1.msra.mxu0 0.0
    %6203 = vmatprep.subr.mxu0 0.0
    %6204 = vmatpush1.msra.mxu0 0.0
    %6205 = vmatprep.subr.mxu0 0.0
    %6206 = vmatpush1.msra.mxu0 0.0
    %6207 = vmatprep.subr.mxu0 0.0
    %6208 = vmatpush1.msra.mxu0 0.0
    %6209 = vmatprep.subr.mxu0 0.0
    %6210 = vmatpush1.msra.mxu0 0.0
    %6211 = vmatprep.subr.mxu0 0.0
    %6212 = vmatpush1.msra.mxu0 0.0
    %6213 = vmatprep.subr.mxu0 0.0
    %6214 = vmatpush1.msra.mxu0 0.0
    %6215 = vmatprep.subr.mxu0 0.0
    %6216 = vmatpush1.msra.mxu0 0.0
    %6217 = vmatprep.mubr.f32.mxu0 0.0
    %6218 = vmatmul.mubr.f32.gmra.mrb[0].mxu0 %v6152
    %v6219 = vpop.f32.mrb[0].mxu0
    %v6220 = vadd.f32 %v5493, %v6219
    %v6221 = vpop.f32.mrb[0].mxu0
    %v6222 = vadd.f32 %v5497, %v6221
    %6223 = vdwg.mxu0
    %6224 = vmatprep.subr.mxu0 0.0
    %6225 = vmatpush1.msra.mxu0 %v5442
    %6226 = vmatprep.subr.mxu0 0.0
    %6227 = vmatpush1.msra.mxu0 %v5445
    %6228 = vmatprep.subr.mxu0 0.0
    %6229 = vmatpush1.msra.mxu0 %v5448
    %6230 = vmatprep.subr.mxu0 0.0
    %6231 = vmatpush1.msra.mxu0 %v5451
    %6232 = vmatprep.subr.mxu0 0.0
    %6233 = vmatpush1.msra.mxu0 %v5454
    %6234 = vmatprep.subr.mxu0 0.0
    %6235 = vmatpush1.msra.mxu0 %v5457
    %6236 = vmatprep.subr.mxu0 0.0
    %6237 = vmatpush1.msra.mxu0 %v5460
    %6238 = vmatprep.subr.mxu0 0.0
    %6239 = vmatpush1.msra.mxu0 %v5463
    %6240 = vmatprep.subr.mxu0 0.0
    %6241 = vmatpush1.msra.mxu0 %v5466
    %6242 = vmatprep.subr.mxu0 0.0
    %6243 = vmatpush1.msra.mxu0 %v5469
    %6244 = vmatprep.subr.mxu0 0.0
    %6245 = vmatpush1.msra.mxu0 %v5472
    %6246 = vmatprep.subr.mxu0 0.0
    %6247 = vmatpush1.msra.mxu0 %v5475
    %6248 = vmatprep.subr.mxu0 0.0
    %6249 = vmatpush1.msra.mxu0 %v5478
    %6250 = vmatprep.subr.mxu0 0.0
    %6251 = vmatpush1.msra.mxu0 %v5481
    %6252 = vmatprep.subr.mxu0 0.0
    %6253 = vmatpush1.msra.mxu0 %v5484
    %6254 = vmatprep.subr.mxu0 0.0
    %6255 = vmatpush1.msra.mxu0 %v5487
    %6256 = vmatprep.subr.mxu0 0.0
    %6257 = vmatpush1.msra.mxu0 0.0
    %6258 = vmatprep.subr.mxu0 0.0
    %6259 = vmatpush1.msra.mxu0 0.0
    %6260 = vmatprep.subr.mxu0 0.0
    %6261 = vmatpush1.msra.mxu0 0.0
    %6262 = vmatprep.subr.mxu0 0.0
    %6263 = vmatpush1.msra.mxu0 0.0
    %6264 = vmatprep.subr.mxu0 0.0
    %6265 = vmatpush1.msra.mxu0 0.0
    %6266 = vmatprep.subr.mxu0 0.0
    %6267 = vmatpush1.msra.mxu0 0.0
    %6268 = vmatprep.subr.mxu0 0.0
    %6269 = vmatpush1.msra.mxu0 0.0
    %6270 = vmatprep.subr.mxu0 0.0
    %6271 = vmatpush1.msra.mxu0 0.0
    %6272 = vmatprep.subr.mxu0 0.0
    %6273 = vmatpush1.msra.mxu0 0.0
    %6274 = vmatprep.subr.mxu0 0.0
    %6275 = vmatpush1.msra.mxu0 0.0
    %6276 = vmatprep.subr.mxu0 0.0
    %6277 = vmatpush1.msra.mxu0 0.0
    %6278 = vmatprep.subr.mxu0 0.0
    %6279 = vmatpush1.msra.mxu0 0.0
    %6280 = vmatprep.subr.mxu0 0.0
    %6281 = vmatpush1.msra.mxu0 0.0
    %6282 = vmatprep.subr.mxu0 0.0
    %6283 = vmatpush1.msra.mxu0 0.0
    %6284 = vmatprep.subr.mxu0 0.0
    %6285 = vmatpush1.msra.mxu0 0.0
    %6286 = vmatprep.subr.mxu0 0.0
    %6287 = vmatpush1.msra.mxu0 0.0
    %6288 = vmatprep.mubr.f32.mxu0 0.0
    %6289 = vmatmul.mubr.f32.gmra.mrb[0].mxu0 %v6152
    %v6290 = vpop.f32.mrb[0].mxu0
    %v6291 = vadd.f32 %v5501, %v6290
    %v6292 = vpop.f32.mrb[0].mxu0
    %6293 = vdwg.mxu0
    %v6294 = vadd.f32 %v3946, %v6220
    %v6295 = vxor.u32 %v6294, 2147483648
    %v6296 = vmul.f32 %v6295, 1.442695
    %v6297 = vpow.pop %v6296
    %v6298 = vadd.f32 %v6297, 1.0
    %v6299 = vrcp.pop %v6298
    %v6300 = vmul.f32 1.0, %v6299
    %v6301 = vadd.f32 %v3948, %v6222
    %v6302 = vxor.u32 %v6301, 2147483648
    %v6303 = vmul.f32 %v6302, 1.442695
    %v6304 = vpow.pop %v6303
    %v6305 = vadd.f32 %v6304, 1.0
    %v6306 = vrcp.pop %v6305
    %v6307 = vmul.f32 1.0, %v6306
    %v6308 = vmul.f32 %v6300, %v6291
    %v6309 = vadd.f32 %v4056, %v6308
    %v6310 = vtanh.pop %v6309
    %v6311 = vsub.f32 1.0, %v6307
    %v6312 = vmul.f32 %v6311, %v6310
    %v6313 = vmul.f32 %v6307, %v6152
    %v6314 = vadd.f32 %v6312, %v6313
    %6315 = vmatprep.subr.mxu0 %v5441
    %6316 = vmatpush1.msra.mxu0 %v5440
    %6317 = vmatprep.subr.mxu0 %v5444
    %6318 = vmatpush1.msra.mxu0 %v5443
    %6319 = vmatprep.subr.mxu0 %v5447
    %6320 = vmatpush1.msra.mxu0 %v5446
    %6321 = vmatprep.subr.mxu0 %v5450
    %6322 = vmatpush1.msra.mxu0 %v5449
    %6323 = vmatprep.subr.mxu0 %v5453
    %6324 = vmatpush1.msra.mxu0 %v5452
    %6325 = vmatprep.subr.mxu0 %v5456
    %6326 = vmatpush1.msra.mxu0 %v5455
    %6327 = vmatprep.subr.mxu0 %v5459
    %6328 = vmatpush1.msra.mxu0 %v5458
    %6329 = vmatprep.subr.mxu0 %v5462
    %6330 = vmatpush1.msra.mxu0 %v5461
    %6331 = vmatprep.subr.mxu0 %v5465
    %6332 = vmatpush1.msra.mxu0 %v5464
    %6333 = vmatprep.subr.mxu0 %v5468
    %6334 = vmatpush1.msra.mxu0 %v5467
    %6335 = vmatprep.subr.mxu0 %v5471
    %6336 = vmatpush1.msra.mxu0 %v5470
    %6337 = vmatprep.subr.mxu0 %v5474
    %6338 = vmatpush1.msra.mxu0 %v5473
    %6339 = vmatprep.subr.mxu0 %v5477
    %6340 = vmatpush1.msra.mxu0 %v5476
    %6341 = vmatprep.subr.mxu0 %v5480
    %6342 = vmatpush1.msra.mxu0 %v5479
    %6343 = vmatprep.subr.mxu0 %v5483
    %6344 = vmatpush1.msra.mxu0 %v5482
    %6345 = vmatprep.subr.mxu0 %v5486
    %6346 = vmatpush1.msra.mxu0 %v5485
    %6347 = vmatprep.subr.mxu0 0.0
    %6348 = vmatpush1.msra.mxu0 0.0
    %6349 = vmatprep.subr.mxu0 0.0
    %6350 = vmatpush1.msra.mxu0 0.0
    %6351 = vmatprep.subr.mxu0 0.0
    %6352 = vmatpush1.msra.mxu0 0.0
    %6353 = vmatprep.subr.mxu0 0.0
    %6354 = vmatpush1.msra.mxu0 0.0
    %6355 = vmatprep.subr.mxu0 0.0
    %6356 = vmatpush1.msra.mxu0 0.0
    %6357 = vmatprep.subr.mxu0 0.0
    %6358 = vmatpush1.msra.mxu0 0.0
    %6359 = vmatprep.subr.mxu0 0.0
    %6360 = vmatpush1.msra.mxu0 0.0
    %6361 = vmatprep.subr.mxu0 0.0
    %6362 = vmatpush1.msra.mxu0 0.0
    %6363 = vmatprep.subr.mxu0 0.0
    %6364 = vmatpush1.msra.mxu0 0.0
    %6365 = vmatprep.subr.mxu0 0.0
    %6366 = vmatpush1.msra.mxu0 0.0
    %6367 = vmatprep.subr.mxu0 0.0
    %6368 = vmatpush1.msra.mxu0 0.0
    %6369 = vmatprep.subr.mxu0 0.0
    %6370 = vmatpush1.msra.mxu0 0.0
    %6371 = vmatprep.subr.mxu0 0.0
    %6372 = vmatpush1.msra.mxu0 0.0
    %6373 = vmatprep.subr.mxu0 0.0
    %6374 = vmatpush1.msra.mxu0 0.0
    %6375 = vmatprep.subr.mxu0 0.0
    %6376 = vmatpush1.msra.mxu0 0.0
    %6377 = vmatprep.subr.mxu0 0.0
    %6378 = vmatpush1.msra.mxu0 0.0
    %6379 = vmatprep.mubr.f32.mxu0 0.0
    %6380 = vmatmul.mubr.f32.gmra.mrb[0].mxu0 %v6314
    %v6381 = vpop.f32.mrb[0].mxu0
    %v6382 = vadd.f32 %v5493, %v6381
    %v6383 = vpop.f32.mrb[0].mxu0
    %v6384 = vadd.f32 %v5497, %v6383
    %6385 = vdwg.mxu0
    %6386 = vmatprep.subr.mxu0 0.0
    %6387 = vmatpush1.msra.mxu0 %v5442
    %6388 = vmatprep.subr.mxu0 0.0
    %6389 = vmatpush1.msra.mxu0 %v5445
    %6390 = vmatprep.subr.mxu0 0.0
    %6391 = vmatpush1.msra.mxu0 %v5448
    %6392 = vmatprep.subr.mxu0 0.0
    %6393 = vmatpush1.msra.mxu0 %v5451
    %6394 = vmatprep.subr.mxu0 0.0
    %6395 = vmatpush1.msra.mxu0 %v5454
    %6396 = vmatprep.subr.mxu0 0.0
    %6397 = vmatpush1.msra.mxu0 %v5457
    %6398 = vmatprep.subr.mxu0 0.0
    %6399 = vmatpush1.msra.mxu0 %v5460
    %6400 = vmatprep.subr.mxu0 0.0
    %6401 = vmatpush1.msra.mxu0 %v5463
    %6402 = vmatprep.subr.mxu0 0.0
    %6403 = vmatpush1.msra.mxu0 %v5466
    %6404 = vmatprep.subr.mxu0 0.0
    %6405 = vmatpush1.msra.mxu0 %v5469
    %6406 = vmatprep.subr.mxu0 0.0
    %6407 = vmatpush1.msra.mxu0 %v5472
    %6408 = vmatprep.subr.mxu0 0.0
    %6409 = vmatpush1.msra.mxu0 %v5475
    %6410 = vmatprep.subr.mxu0 0.0
    %6411 = vmatpush1.msra.mxu0 %v5478
    %6412 = vmatprep.subr.mxu0 0.0
    %6413 = vmatpush1.msra.mxu0 %v5481
    %6414 = vmatprep.subr.mxu0 0.0
    %6415 = vmatpush1.msra.mxu0 %v5484
    %6416 = vmatprep.subr.mxu0 0.0
    %6417 = vmatpush1.msra.mxu0 %v5487
    %6418 = vmatprep.subr.mxu0 0.0
    %6419 = vmatpush1.msra.mxu0 0.0
    %6420 = vmatprep.subr.mxu0 0.0
    %6421 = vmatpush1.msra.mxu0 0.0
    %6422 = vmatprep.subr.mxu0 0.0
    %6423 = vmatpush1.msra.mxu0 0.0
    %6424 = vmatprep.subr.mxu0 0.0
    %6425 = vmatpush1.msra.mxu0 0.0
    %6426 = vmatprep.subr.mxu0 0.0
    %6427 = vmatpush1.msra.mxu0 0.0
    %6428 = vmatprep.subr.mxu0 0.0
    %6429 = vmatpush1.msra.mxu0 0.0
    %6430 = vmatprep.subr.mxu0 0.0
    %6431 = vmatpush1.msra.mxu0 0.0
    %6432 = vmatprep.subr.mxu0 0.0
    %6433 = vmatpush1.msra.mxu0 0.0
    %6434 = vmatprep.subr.mxu0 0.0
    %6435 = vmatpush1.msra.mxu0 0.0
    %6436 = vmatprep.subr.mxu0 0.0
    %6437 = vmatpush1.msra.mxu0 0.0
    %6438 = vmatprep.subr.mxu0 0.0
    %6439 = vmatpush1.msra.mxu0 0.0
    %6440 = vmatprep.subr.mxu0 0.0
    %6441 = vmatpush1.msra.mxu0 0.0
    %6442 = vmatprep.subr.mxu0 0.0
    %6443 = vmatpush1.msra.mxu0 0.0
    %6444 = vmatprep.subr.mxu0 0.0
    %6445 = vmatpush1.msra.mxu0 0.0
    %6446 = vmatprep.subr.mxu0 0.0
    %6447 = vmatpush1.msra.mxu0 0.0
    %6448 = vmatprep.subr.mxu0 0.0
    %6449 = vmatpush1.msra.mxu0 0.0
    %6450 = vmatprep.mubr.f32.mxu0 0.0
    %6451 = vmatmul.mubr.f32.gmra.mrb[0].mxu0 %v6314
    %v6452 = vpop.f32.mrb[0].mxu0
    %v6453 = vadd.f32 %v5501, %v6452
    %v6454 = vpop.f32.mrb[0].mxu0
    %6455 = vdwg.mxu0
    %v6456 = vadd.f32 %v3940, %v6382
    %v6457 = vxor.u32 %v6456, 2147483648
    %v6458 = vmul.f32 %v6457, 1.442695
    %v6459 = vpow.pop %v6458
    %v6460 = vadd.f32 %v6459, 1.0
    %v6461 = vrcp.pop %v6460
    %v6462 = vmul.f32 1.0, %v6461
    %v6463 = vadd.f32 %v3942, %v6384
    %v6464 = vxor.u32 %v6463, 2147483648
    %v6465 = vmul.f32 %v6464, 1.442695
    %v6466 = vpow.pop %v6465
    %v6467 = vadd.f32 %v6466, 1.0
    %v6468 = vrcp.pop %v6467
    %v6469 = vmul.f32 1.0, %v6468
    %v6470 = vmul.f32 %v6462, %v6453
    %v6471 = vadd.f32 %v4051, %v6470
    %v6472 = vtanh.pop %v6471
    %v6473 = vsub.f32 1.0, %v6469
    %v6474 = vmul.f32 %v6473, %v6472
    %v6475 = vmul.f32 %v6469, %v6314
    %v6476 = vadd.f32 %v6474, %v6475
    %6477 = vmatprep.subr.mxu0 %v5441
    %6478 = vmatpush1.msra.mxu0 %v5440
    %6479 = vmatprep.subr.mxu0 %v5444
    %6480 = vmatpush1.msra.mxu0 %v5443
    %6481 = vmatprep.subr.mxu0 %v5447
    %6482 = vmatpush1.msra.mxu0 %v5446
    %6483 = vmatprep.subr.mxu0 %v5450
    %6484 = vmatpush1.msra.mxu0 %v5449
    %6485 = vmatprep.subr.mxu0 %v5453
    %6486 = vmatpush1.msra.mxu0 %v5452
    %6487 = vmatprep.subr.mxu0 %v5456
    %6488 = vmatpush1.msra.mxu0 %v5455
    %6489 = vmatprep.subr.mxu0 %v5459
    %6490 = vmatpush1.msra.mxu0 %v5458
    %6491 = vmatprep.subr.mxu0 %v5462
    %6492 = vmatpush1.msra.mxu0 %v5461
    %6493 = vmatprep.subr.mxu0 %v5465
    %6494 = vmatpush1.msra.mxu0 %v5464
    %6495 = vmatprep.subr.mxu0 %v5468
    %6496 = vmatpush1.msra.mxu0 %v5467
    %6497 = vmatprep.subr.mxu0 %v5471
    %6498 = vmatpush1.msra.mxu0 %v5470
    %6499 = vmatprep.subr.mxu0 %v5474
    %6500 = vmatpush1.msra.mxu0 %v5473
    %6501 = vmatprep.subr.mxu0 %v5477
    %6502 = vmatpush1.msra.mxu0 %v5476
    %6503 = vmatprep.subr.mxu0 %v5480
    %6504 = vmatpush1.msra.mxu0 %v5479
    %6505 = vmatprep.subr.mxu0 %v5483
    %6506 = vmatpush1.msra.mxu0 %v5482
    %6507 = vmatprep.subr.mxu0 %v5486
    %6508 = vmatpush1.msra.mxu0 %v5485
    %6509 = vmatprep.subr.mxu0 0.0
    %6510 = vmatpush1.msra.mxu0 0.0
    %6511 = vmatprep.subr.mxu0 0.0
    %6512 = vmatpush1.msra.mxu0 0.0
    %6513 = vmatprep.subr.mxu0 0.0
    %6514 = vmatpush1.msra.mxu0 0.0
    %6515 = vmatprep.subr.mxu0 0.0
    %6516 = vmatpush1.msra.mxu0 0.0
    %6517 = vmatprep.subr.mxu0 0.0
    %6518 = vmatpush1.msra.mxu0 0.0
    %6519 = vmatprep.subr.mxu0 0.0
    %6520 = vmatpush1.msra.mxu0 0.0
    %6521 = vmatprep.subr.mxu0 0.0
    %6522 = vmatpush1.msra.mxu0 0.0
    %6523 = vmatprep.subr.mxu0 0.0
    %6524 = vmatpush1.msra.mxu0 0.0
    %6525 = vmatprep.subr.mxu0 0.0
    %6526 = vmatpush1.msra.mxu0 0.0
    %6527 = vmatprep.subr.mxu0 0.0
    %6528 = vmatpush1.msra.mxu0 0.0
    %6529 = vmatprep.subr.mxu0 0.0
    %6530 = vmatpush1.msra.mxu0 0.0
    %6531 = vmatprep.subr.mxu0 0.0
    %6532 = vmatpush1.msra.mxu0 0.0
    %6533 = vmatprep.subr.mxu0 0.0
    %6534 = vmatpush1.msra.mxu0 0.0
    %6535 = vmatprep.subr.mxu0 0.0
    %6536 = vmatpush1.msra.mxu0 0.0
    %6537 = vmatprep.subr.mxu0 0.0
    %6538 = vmatpush1.msra.mxu0 0.0
    %6539 = vmatprep.subr.mxu0 0.0
    %6540 = vmatpush1.msra.mxu0 0.0
    %6541 = vmatprep.mubr.f32.mxu0 0.0
    %6542 = vmatmul.mubr.f32.gmra.mrb[0].mxu0 %v6476
    %v6543 = vpop.f32.mrb[0].mxu0
    %v6544 = vadd.f32 %v5493, %v6543
    %v6545 = vpop.f32.mrb[0].mxu0
    %v6546 = vadd.f32 %v5497, %v6545
    %6547 = vdwg.mxu0
    %6548 = vmatprep.subr.mxu0 0.0
    %6549 = vmatpush1.msra.mxu0 %v5442
    %6550 = vmatprep.subr.mxu0 0.0
    %6551 = vmatpush1.msra.mxu0 %v5445
    %6552 = vmatprep.subr.mxu0 0.0
    %6553 = vmatpush1.msra.mxu0 %v5448
    %6554 = vmatprep.subr.mxu0 0.0
    %6555 = vmatpush1.msra.mxu0 %v5451
    %6556 = vmatprep.subr.mxu0 0.0
    %6557 = vmatpush1.msra.mxu0 %v5454
    %6558 = vmatprep.subr.mxu0 0.0
    %6559 = vmatpush1.msra.mxu0 %v5457
    %6560 = vmatprep.subr.mxu0 0.0
    %6561 = vmatpush1.msra.mxu0 %v5460
    %6562 = vmatprep.subr.mxu0 0.0
    %6563 = vmatpush1.msra.mxu0 %v5463
    %6564 = vmatprep.subr.mxu0 0.0
    %6565 = vmatpush1.msra.mxu0 %v5466
    %6566 = vmatprep.subr.mxu0 0.0
    %6567 = vmatpush1.msra.mxu0 %v5469
    %6568 = vmatprep.subr.mxu0 0.0
    %6569 = vmatpush1.msra.mxu0 %v5472
    %6570 = vmatprep.subr.mxu0 0.0
    %6571 = vmatpush1.msra.mxu0 %v5475
    %6572 = vmatprep.subr.mxu0 0.0
    %6573 = vmatpush1.msra.mxu0 %v5478
    %6574 = vmatprep.subr.mxu0 0.0
    %6575 = vmatpush1.msra.mxu0 %v5481
    %6576 = vmatprep.subr.mxu0 0.0
    %6577 = vmatpush1.msra.mxu0 %v5484
    %6578 = vmatprep.subr.mxu0 0.0
    %6579 = vmatpush1.msra.mxu0 %v5487
    %6580 = vmatprep.subr.mxu0 0.0
    %6581 = vmatpush1.msra.mxu0 0.0
    %6582 = vmatprep.subr.mxu0 0.0
    %6583 = vmatpush1.msra.mxu0 0.0
    %6584 = vmatprep.subr.mxu0 0.0
    %6585 = vmatpush1.msra.mxu0 0.0
    %6586 = vmatprep.subr.mxu0 0.0
    %6587 = vmatpush1.msra.mxu0 0.0
    %6588 = vmatprep.subr.mxu0 0.0
    %6589 = vmatpush1.msra.mxu0 0.0
    %6590 = vmatprep.subr.mxu0 0.0
    %6591 = vmatpush1.msra.mxu0 0.0
    %6592 = vmatprep.subr.mxu0 0.0
    %6593 = vmatpush1.msra.mxu0 0.0
    %6594 = vmatprep.subr.mxu0 0.0
    %6595 = vmatpush1.msra.mxu0 0.0
    %6596 = vmatprep.subr.mxu0 0.0
    %6597 = vmatpush1.msra.mxu0 0.0
    %6598 = vmatprep.subr.mxu0 0.0
    %6599 = vmatpush1.msra.mxu0 0.0
    %6600 = vmatprep.subr.mxu0 0.0
    %6601 = vmatpush1.msra.mxu0 0.0
    %6602 = vmatprep.subr.mxu0 0.0
    %6603 = vmatpush1.msra.mxu0 0.0
    %6604 = vmatprep.subr.mxu0 0.0
    %6605 = vmatpush1.msra.mxu0 0.0
    %6606 = vmatprep.subr.mxu0 0.0
    %6607 = vmatpush1.msra.mxu0 0.0
    %6608 = vmatprep.subr.mxu0 0.0
    %6609 = vmatpush1.msra.mxu0 0.0
    %6610 = vmatprep.subr.mxu0 0.0
    %6611 = vmatpush1.msra.mxu0 0.0
    %6612 = vmatprep.mubr.f32.mxu0 0.0
    %6613 = vmatmul.mubr.f32.gmra.mrb[0].mxu0 %v6476
    %v6614 = vpop.f32.mrb[0].mxu0
    %v6615 = vadd.f32 %v5501, %v6614
    %v6616 = vpop.f32.mrb[0].mxu0
    %6617 = vdwg.mxu0
    %v6618 = vadd.f32 %v3934, %v6544
    %v6619 = vxor.u32 %v6618, 2147483648
    %v6620 = vmul.f32 %v6619, 1.442695
    %v6621 = vpow.pop %v6620
    %v6622 = vadd.f32 %v6621, 1.0
    %v6623 = vrcp.pop %v6622
    %v6624 = vmul.f32 1.0, %v6623
    %v6625 = vadd.f32 %v3936, %v6546
    %v6626 = vxor.u32 %v6625, 2147483648
    %v6627 = vmul.f32 %v6626, 1.442695
    %v6628 = vpow.pop %v6627
    %v6629 = vadd.f32 %v6628, 1.0
    %v6630 = vrcp.pop %v6629
    %v6631 = vmul.f32 1.0, %v6630
    %v6632 = vmul.f32 %v6624, %v6615
    %v6633 = vadd.f32 %v4046, %v6632
    %v6634 = vtanh.pop %v6633
    %v6635 = vsub.f32 1.0, %v6631
    %v6636 = vmul.f32 %v6635, %v6634
    %v6637 = vmul.f32 %v6631, %v6476
    %v6638 = vadd.f32 %v6636, %v6637
    %6639 = vmatprep.subr.mxu0 %v5441
    %6640 = vmatpush1.msra.mxu0 %v5440
    %6641 = vmatprep.subr.mxu0 %v5444
    %6642 = vmatpush1.msra.mxu0 %v5443
    %6643 = vmatprep.subr.mxu0 %v5447
    %6644 = vmatpush1.msra.mxu0 %v5446
    %6645 = vmatprep.subr.mxu0 %v5450
    %6646 = vmatpush1.msra.mxu0 %v5449
    %6647 = vmatprep.subr.mxu0 %v5453
    %6648 = vmatpush1.msra.mxu0 %v5452
    %6649 = vmatprep.subr.mxu0 %v5456
    %6650 = vmatpush1.msra.mxu0 %v5455
    %6651 = vmatprep.subr.mxu0 %v5459
    %6652 = vmatpush1.msra.mxu0 %v5458
    %6653 = vmatprep.subr.mxu0 %v5462
    %6654 = vmatpush1.msra.mxu0 %v5461
    %6655 = vmatprep.subr.mxu0 %v5465
    %6656 = vmatpush1.msra.mxu0 %v5464
    %6657 = vmatprep.subr.mxu0 %v5468
    %6658 = vmatpush1.msra.mxu0 %v5467
    %6659 = vmatprep.subr.mxu0 %v5471
    %6660 = vmatpush1.msra.mxu0 %v5470
    %6661 = vmatprep.subr.mxu0 %v5474
    %6662 = vmatpush1.msra.mxu0 %v5473
    %6663 = vmatprep.subr.mxu0 %v5477
    %6664 = vmatpush1.msra.mxu0 %v5476
    %6665 = vmatprep.subr.mxu0 %v5480
    %6666 = vmatpush1.msra.mxu0 %v5479
    %6667 = vmatprep.subr.mxu0 %v5483
    %6668 = vmatpush1.msra.mxu0 %v5482
    %6669 = vmatprep.subr.mxu0 %v5486
    %6670 = vmatpush1.msra.mxu0 %v5485
    %6671 = vmatprep.subr.mxu0 0.0
    %6672 = vmatpush1.msra.mxu0 0.0
    %6673 = vmatprep.subr.mxu0 0.0
    %6674 = vmatpush1.msra.mxu0 0.0
    %6675 = vmatprep.subr.mxu0 0.0
    %6676 = vmatpush1.msra.mxu0 0.0
    %6677 = vmatprep.subr.mxu0 0.0
    %6678 = vmatpush1.msra.mxu0 0.0
    %6679 = vmatprep.subr.mxu0 0.0
    %6680 = vmatpush1.msra.mxu0 0.0
    %6681 = vmatprep.subr.mxu0 0.0
    %6682 = vmatpush1.msra.mxu0 0.0
    %6683 = vmatprep.subr.mxu0 0.0
    %6684 = vmatpush1.msra.mxu0 0.0
    %6685 = vmatprep.subr.mxu0 0.0
    %6686 = vmatpush1.msra.mxu0 0.0
    %6687 = vmatprep.subr.mxu0 0.0
    %6688 = vmatpush1.msra.mxu0 0.0
    %6689 = vmatprep.subr.mxu0 0.0
    %6690 = vmatpush1.msra.mxu0 0.0
    %6691 = vmatprep.subr.mxu0 0.0
    %6692 = vmatpush1.msra.mxu0 0.0
    %6693 = vmatprep.subr.mxu0 0.0
    %6694 = vmatpush1.msra.mxu0 0.0
    %6695 = vmatprep.subr.mxu0 0.0
    %6696 = vmatpush1.msra.mxu0 0.0
    %6697 = vmatprep.subr.mxu0 0.0
    %6698 = vmatpush1.msra.mxu0 0.0
    %6699 = vmatprep.subr.mxu0 0.0
    %6700 = vmatpush1.msra.mxu0 0.0
    %6701 = vmatprep.subr.mxu0 0.0
    %6702 = vmatpush1.msra.mxu0 0.0
    %6703 = vmatprep.mubr.f32.mxu0 0.0
    %6704 = vmatmul.mubr.f32.gmra.mrb[0].mxu0 %v6638
    %v6705 = vpop.f32.mrb[0].mxu0
    %v6706 = vadd.f32 %v5493, %v6705
    %v6707 = vpop.f32.mrb[0].mxu0
    %v6708 = vadd.f32 %v5497, %v6707
    %6709 = vdwg.mxu0
    %6710 = vmatprep.subr.mxu0 0.0
    %6711 = vmatpush1.msra.mxu0 %v5442
    %6712 = vmatprep.subr.mxu0 0.0
    %6713 = vmatpush1.msra.mxu0 %v5445
    %6714 = vmatprep.subr.mxu0 0.0
    %6715 = vmatpush1.msra.mxu0 %v5448
    %6716 = vmatprep.subr.mxu0 0.0
    %6717 = vmatpush1.msra.mxu0 %v5451
    %6718 = vmatprep.subr.mxu0 0.0
    %6719 = vmatpush1.msra.mxu0 %v5454
    %6720 = vmatprep.subr.mxu0 0.0
    %6721 = vmatpush1.msra.mxu0 %v5457
    %6722 = vmatprep.subr.mxu0 0.0
    %6723 = vmatpush1.msra.mxu0 %v5460
    %6724 = vmatprep.subr.mxu0 0.0
    %6725 = vmatpush1.msra.mxu0 %v5463
    %6726 = vmatprep.subr.mxu0 0.0
    %6727 = vmatpush1.msra.mxu0 %v5466
    %6728 = vmatprep.subr.mxu0 0.0
    %6729 = vmatpush1.msra.mxu0 %v5469
    %6730 = vmatprep.subr.mxu0 0.0
    %6731 = vmatpush1.msra.mxu0 %v5472
    %6732 = vmatprep.subr.mxu0 0.0
    %6733 = vmatpush1.msra.mxu0 %v5475
    %6734 = vmatprep.subr.mxu0 0.0
    %6735 = vmatpush1.msra.mxu0 %v5478
    %6736 = vmatprep.subr.mxu0 0.0
    %6737 = vmatpush1.msra.mxu0 %v5481
    %6738 = vmatprep.subr.mxu0 0.0
    %6739 = vmatpush1.msra.mxu0 %v5484
    %6740 = vmatprep.subr.mxu0 0.0
    %6741 = vmatpush1.msra.mxu0 %v5487
    %6742 = vmatprep.subr.mxu0 0.0
    %6743 = vmatpush1.msra.mxu0 0.0
    %6744 = vmatprep.subr.mxu0 0.0
    %6745 = vmatpush1.msra.mxu0 0.0
    %6746 = vmatprep.subr.mxu0 0.0
    %6747 = vmatpush1.msra.mxu0 0.0
    %6748 = vmatprep.subr.mxu0 0.0
    %6749 = vmatpush1.msra.mxu0 0.0
    %6750 = vmatprep.subr.mxu0 0.0
    %6751 = vmatpush1.msra.mxu0 0.0
    %6752 = vmatprep.subr.mxu0 0.0
    %6753 = vmatpush1.msra.mxu0 0.0
    %6754 = vmatprep.subr.mxu0 0.0
    %6755 = vmatpush1.msra.mxu0 0.0
    %6756 = vmatprep.subr.mxu0 0.0
    %6757 = vmatpush1.msra.mxu0 0.0
    %6758 = vmatprep.subr.mxu0 0.0
    %6759 = vmatpush1.msra.mxu0 0.0
    %6760 = vmatprep.subr.mxu0 0.0
    %6761 = vmatpush1.msra.mxu0 0.0
    %6762 = vmatprep.subr.mxu0 0.0
    %6763 = vmatpush1.msra.mxu0 0.0
    %6764 = vmatprep.subr.mxu0 0.0
    %6765 = vmatpush1.msra.mxu0 0.0
    %6766 = vmatprep.subr.mxu0 0.0
    %6767 = vmatpush1.msra.mxu0 0.0
    %6768 = vmatprep.subr.mxu0 0.0
    %6769 = vmatpush1.msra.mxu0 0.0
    %6770 = vmatprep.subr.mxu0 0.0
    %6771 = vmatpush1.msra.mxu0 0.0
    %6772 = vmatprep.subr.mxu0 0.0
    %6773 = vmatpush1.msra.mxu0 0.0
    %6774 = vmatprep.mubr.f32.mxu0 0.0
    %6775 = vmatmul.mubr.f32.gmra.mrb[0].mxu0 %v6638
    %v6776 = vpop.f32.mrb[0].mxu0
    %v6777 = vadd.f32 %v5501, %v6776
    %v6778 = vpop.f32.mrb[0].mxu0
    %6779 = vdwg.mxu0
    %v6780 = vadd.f32 %v3928, %v6706
    %v6781 = vxor.u32 %v6780, 2147483648
    %v6782 = vmul.f32 %v6781, 1.442695
    %v6783 = vpow.pop %v6782
    %v6784 = vadd.f32 %v6783, 1.0
    %v6785 = vrcp.pop %v6784
    %v6786 = vmul.f32 1.0, %v6785
    %v6787 = vadd.f32 %v3930, %v6708
    %v6788 = vxor.u32 %v6787, 2147483648
    %v6789 = vmul.f32 %v6788, 1.442695
    %v6790 = vpow.pop %v6789
    %v6791 = vadd.f32 %v6790, 1.0
    %v6792 = vrcp.pop %v6791
    %v6793 = vmul.f32 1.0, %v6792
    %v6794 = vmul.f32 %v6786, %v6777
    %v6795 = vadd.f32 %v4041, %v6794
    %v6796 = vtanh.pop %v6795
    %v6797 = vsub.f32 1.0, %v6793
    %v6798 = vmul.f32 %v6797, %v6796
    %v6799 = vmul.f32 %v6793, %v6638
    %v6800 = vadd.f32 %v6798, %v6799
    %v6801 = vld [vmem:[%s17] sm:$0xff]
    %v6802 = vld [vmem:[%s17 + $0x8] sm:$0xff]
    %v6803 = vld [vmem:[%s17 + $0x10] sm:$0xff]
    %v6804 = vld [vmem:[%s17 + $0x18] sm:$0xff]
    %v6805 = vld [vmem:[%s17 + $0x20] sm:$0xff]
    %v6806 = vld [vmem:[%s17 + $0x28] sm:$0xff]
    %v6807 = vld [vmem:[%s17 + $0x30] sm:$0xff]
    %v6808 = vld [vmem:[%s17 + $0x38] sm:$0xff]
    %v6809 = vld [vmem:[%s17 + $0x40] sm:$0xff]
    %v6810 = vld [vmem:[%s17 + $0x48] sm:$0xff]
    %v6811 = vld [vmem:[%s17 + $0x50] sm:$0xff]
    %v6812 = vld [vmem:[%s17 + $0x58] sm:$0xff]
    %v6813 = vld [vmem:[%s17 + $0x60] sm:$0xff]
    %v6814 = vld [vmem:[%s17 + $0x68] sm:$0xff]
    %v6815 = vld [vmem:[%s17 + $0x70] sm:$0xff]
    %v6816 = vld [vmem:[%s17 + $0x78] sm:$0xff]
    %v6817 = vld [vmem:[%s17 + $0x80] sm:$0xff]
    %v6818 = vld [vmem:[%s17 + $0x88] sm:$0xff]
    %v6819 = vld [vmem:[%s17 + $0x90] sm:$0xff]
    %v6820 = vld [vmem:[%s17 + $0x98] sm:$0xff]
    %v6821 = vld [vmem:[%s17 + $0xa0] sm:$0xff]
    %v6822 = vld [vmem:[%s17 + $0xa8] sm:$0xff]
    %v6823 = vld [vmem:[%s17 + $0xb0] sm:$0xff]
    %v6824 = vld [vmem:[%s17 + $0xb8] sm:$0xff]
    %v6825 = vld [vmem:[%s17 + $0xc0] sm:$0xff]
    %v6826 = vld [vmem:[%s17 + $0xc8] sm:$0xff]
    %v6827 = vld [vmem:[%s17 + $0xd0] sm:$0xff]
    %v6828 = vld [vmem:[%s17 + $0xd8] sm:$0xff]
    %v6829 = vld [vmem:[%s17 + $0xe0] sm:$0xff]
    %v6830 = vld [vmem:[%s17 + $0xe8] sm:$0xff]
    %v6831 = vld [vmem:[%s17 + $0xf0] sm:$0xff]
    %v6832 = vld [vmem:[%s17 + $0xf8] sm:$0xff]
    %v6833 = vld [vmem:[%s18] sm:$0x1]
    %v6835 = vlaneseq
    %v6836 = vshrl.u32 %v6835, 7
    %v6837 = vsub.s32 0, %v6836
    %v6838 = vrot.slane %v6833, %v6837
    %6840 = vmatprep.subr.mxu0 0.0
    %6841 = vmatpush1.msra.mxu0 %v6801
    %6842 = vmatprep.subr.mxu0 0.0
    %6843 = vmatpush1.msra.mxu0 %v6802
    %6844 = vmatprep.subr.mxu0 0.0
    %6845 = vmatpush1.msra.mxu0 %v6803
    %6846 = vmatprep.subr.mxu0 0.0
    %6847 = vmatpush1.msra.mxu0 %v6804
    %6848 = vmatprep.subr.mxu0 0.0
    %6849 = vmatpush1.msra.mxu0 %v6805
    %6850 = vmatprep.subr.mxu0 0.0
    %6851 = vmatpush1.msra.mxu0 %v6806
    %6852 = vmatprep.subr.mxu0 0.0
    %6853 = vmatpush1.msra.mxu0 %v6807
    %6854 = vmatprep.subr.mxu0 0.0
    %6855 = vmatpush1.msra.mxu0 %v6808
    %6856 = vmatprep.subr.mxu0 0.0
    %6857 = vmatpush1.msra.mxu0 %v6809
    %6858 = vmatprep.subr.mxu0 0.0
    %6859 = vmatpush1.msra.mxu0 %v6810
    %6860 = vmatprep.subr.mxu0 0.0
    %6861 = vmatpush1.msra.mxu0 %v6811
    %6862 = vmatprep.subr.mxu0 0.0
    %6863 = vmatpush1.msra.mxu0 %v6812
    %6864 = vmatprep.subr.mxu0 0.0
    %6865 = vmatpush1.msra.mxu0 %v6813
    %6866 = vmatprep.subr.mxu0 0.0
    %6867 = vmatpush1.msra.mxu0 %v6814
    %6868 = vmatprep.subr.mxu0 0.0
    %6869 = vmatpush1.msra.mxu0 %v6815
    %6870 = vmatprep.subr.mxu0 0.0
    %6871 = vmatpush1.msra.mxu0 %v6816
    %6872 = vmatprep.subr.mxu0 0.0
    %6873 = vmatpush1.msra.mxu0 %v6817
    %6874 = vmatprep.subr.mxu0 0.0
    %6875 = vmatpush1.msra.mxu0 %v6818
    %6876 = vmatprep.subr.mxu0 0.0
    %6877 = vmatpush1.msra.mxu0 %v6819
    %6878 = vmatprep.subr.mxu0 0.0
    %6879 = vmatpush1.msra.mxu0 %v6820
    %6880 = vmatprep.subr.mxu0 0.0
    %6881 = vmatpush1.msra.mxu0 %v6821
    %6882 = vmatprep.subr.mxu0 0.0
    %6883 = vmatpush1.msra.mxu0 %v6822
    %6884 = vmatprep.subr.mxu0 0.0
    %6885 = vmatpush1.msra.mxu0 %v6823
    %6886 = vmatprep.subr.mxu0 0.0
    %6887 = vmatpush1.msra.mxu0 %v6824
    %6888 = vmatprep.subr.mxu0 0.0
    %6889 = vmatpush1.msra.mxu0 %v6825
    %6890 = vmatprep.subr.mxu0 0.0
    %6891 = vmatpush1.msra.mxu0 %v6826
    %6892 = vmatprep.subr.mxu0 0.0
    %6893 = vmatpush1.msra.mxu0 %v6827
    %6894 = vmatprep.subr.mxu0 0.0
    %6895 = vmatpush1.msra.mxu0 %v6828
    %6896 = vmatprep.subr.mxu0 0.0
    %6897 = vmatpush1.msra.mxu0 %v6829
    %6898 = vmatprep.subr.mxu0 0.0
    %6899 = vmatpush1.msra.mxu0 %v6830
    %6900 = vmatprep.subr.mxu0 0.0
    %6901 = vmatpush1.msra.mxu0 %v6831
    %6902 = vmatprep.subr.mxu0 0.0
    %6903 = vmatpush1.msra.mxu0 %v6832
    %6904 = vmatprep.mubr.f32.mxu0 %v6800
    %6905 = vmatmul.mubr.f32.gmra.mrb[0].mxu0 %v4305
    %v6906 = vpop.f32.mrb[0].mxu0
    %v6907 = vadd.f32 %v6838, %v6906
    %v6908 = vpop.f32.mrb[0].mxu0
    %6909 = vmatprep.mubr.f32.mxu0 %v6638
    %6910 = vmatmul.mubr.f32.gmra.mrb[0].mxu0 %v4467
    %v6911 = vpop.f32.mrb[0].mxu0
    %v6912 = vadd.f32 %v6838, %v6911
    %v6913 = vpop.f32.mrb[0].mxu0
    %6914 = vmatprep.mubr.f32.mxu0 %v6476
    %6915 = vmatmul.mubr.f32.gmra.mrb[0].mxu0 %v4629
    %v6916 = vpop.f32.mrb[0].mxu0
    %v6917 = vadd.f32 %v6838, %v6916
    %v6918 = vpop.f32.mrb[0].mxu0
    %6919 = vmatprep.mubr.f32.mxu0 %v6314
    %6920 = vmatmul.mubr.f32.gmra.mrb[0].mxu0 %v4791
    %v6921 = vpop.f32.mrb[0].mxu0
    %v6922 = vadd.f32 %v6838, %v6921
    %v6923 = vpop.f32.mrb[0].mxu0
    %6924 = vmatprep.mubr.f32.mxu0 %v6152
    %6925 = vmatmul.mubr.f32.gmra.mrb[0].mxu0 %v4953
    %v6926 = vpop.f32.mrb[0].mxu0
    %v6927 = vadd.f32 %v6838, %v6926
    %v6928 = vpop.f32.mrb[0].mxu0
    %6929 = vmatprep.mubr.f32.mxu0 %v5990
    %6930 = vmatmul.mubr.f32.gmra.mrb[0].mxu0 %v5115
    %v6931 = vpop.f32.mrb[0].mxu0
    %v6932 = vadd.f32 %v6838, %v6931
    %v6933 = vpop.f32.mrb[0].mxu0
    %6934 = vmatprep.mubr.f32.mxu0 %v5828
    %6935 = vmatmul.mubr.f32.gmra.mrb[0].mxu0 %v5277
    %v6936 = vpop.f32.mrb[0].mxu0
    %v6937 = vadd.f32 %v6838, %v6936
    %v6938 = vpop.f32.mrb[0].mxu0
    %6939 = vmatprep.mubr.f32.mxu0 %v5666
    %6940 = vmatmul.mubr.f32.gmra.mrb[0].mxu0 %v5439
    %v6941 = vpop.f32.mrb[0].mxu0
    %v6942 = vadd.f32 %v6838, %v6941
    %v6943 = vpop.f32.mrb[0].mxu0
    %6944 = vdwg.mxu0
    %vm6945 = vcmask 31744
    %6946 = vst.msk [vmem:[%s19] sm:$0xff] %vm6945, %v6907
    %6947 = vst.msk [vmem:[%s19 + $0x8] sm:$0xff] %vm6945, %v6912
    %6948 = vst.msk [vmem:[%s19 + $0x10] sm:$0xff] %vm6945, %v6917
    %6949 = vst.msk [vmem:[%s19 + $0x18] sm:$0xff] %vm6945, %v6922
    %6950 = vst.msk [vmem:[%s19 + $0x20] sm:$0xff] %vm6945, %v6927
    %6951 = vst.msk [vmem:[%s19 + $0x28] sm:$0xff] %vm6945, %v6932
    %6952 = vst.msk [vmem:[%s19 + $0x30] sm:$0xff] %vm6945, %v6937
    %6953 = vst.msk [vmem:[%s19 + $0x38] sm:$0xff] %vm6945, %v6942
    // Predicated region
    $region114: #{model_bigru_forward.1} parent=1 // pred_check
      _
    $region115: #{model_bigru_forward.1} parent=1 // pred_check_branch
      %6955 = sbr.rel (0) target = $region117
    $region116: #{model_bigru_forward.1} parent=1 // pred_region
      _
    $region117: #{model_bigru_forward.1} parent=1 // pred_fallthru
      _
    // Predicated region
    $region118: #{model_bigru_forward.1} parent=1 // pred_check
      _
    $region119: #{model_bigru_forward.1} parent=1 // pred_check_branch
      %6957 = sbr.rel (0) target = $region121
    $region120: #{model_bigru_forward.1} parent=1 // pred_region
      _
    $region121: #{model_bigru_forward.1} parent=1 // pred_fallthru
      _
    %6958 = vsyncpa [#allocation3], 1
    %6959 = vsyncpa [#allocation5], 1
    %6960 = vsyncpa [#allocation8], 1
    %6961 = vsyncpa [#allocation11], 1
    %6962 = vsyncpa [#allocation14], 1

</llo_original>
